<compile_context>
chip_gen: v5e
topology: v5e:2x2
jax: 0.10.0
libtpu: 0.0.40
codegen_flags: <defaults>
</compile_context>

<pallas_src>
import functools

import jax
import jax.numpy as jnp
from jax.experimental import pallas as pl
from jax.experimental.pallas import tpu as pltpu


def _round_up(x, m):
    return (x + m - 1) // m * m


# ----------------------------------------------------------------------------
# Pallas kernels
# ----------------------------------------------------------------------------
def _mm_single_kernel(a_ref, b_ref, s_ref, t_ref, o_ref, *, relu):
    # single K pass: MXU dot + fused per-output-channel affine (eval-BN) + ReLU
    y = jnp.dot(a_ref[...], b_ref[...], preferred_element_type=jnp.float32)
    y = y * s_ref[...] + t_ref[...]
    if relu:
        y = jnp.maximum(y, 0.0)
    o_ref[...] = y.astype(o_ref.dtype)


def _mm_multi_kernel(a_ref, b_ref, s_ref, t_ref, o_ref, acc_ref, *, relu):
    @pl.when(pl.program_id(2) == 0)
    def _():
        acc_ref[...] = jnp.zeros_like(acc_ref)

    acc_ref[...] += jnp.dot(a_ref[...], b_ref[...],
                            preferred_element_type=jnp.float32)

    @pl.when(pl.program_id(2) == pl.num_programs(2) - 1)
    def _():
        y = acc_ref[...] * s_ref[...] + t_ref[...]
        if relu:
            y = jnp.maximum(y, 0.0)
        o_ref[...] = y.astype(o_ref.dtype)


_K_SINGLE_MAX = 2304   # single-K-pass threshold (covers every DenseNet-161 conv)


def pallas_matmul_fused(a, b, scale=None, bias=None, relu=False):
    """(M, K) @ (K, N): bf16 MXU operands, f32 accumulation, and a fused
    per-output-column `y * scale + bias` (+ optional ReLU) epilogue."""
    M, K = a.shape
    K2, N = b.shape
    assert K == K2
    Mp = _round_up(M, 16)
    Np = _round_up(N, 128)

    # bf16 operands for MXU throughput; accumulate in f32.
    a = a.astype(jnp.bfloat16)
    b = b.astype(jnp.bfloat16)

    if scale is None:
        s = jnp.ones((1, Np), jnp.float32)
    else:
        s = jnp.pad(scale.astype(jnp.float32), (0, Np - N)).reshape(1, Np)
    if bias is None:
        t = jnp.zeros((1, Np), jnp.float32)
    else:
        t = jnp.pad(bias.astype(jnp.float32), (0, Np - N)).reshape(1, Np)

    tm = min(512, Mp)
    tn = 256 if Np % 256 == 0 else 128
    gm, gn = pl.cdiv(Mp, tm), Np // tn

    if K <= _K_SINGLE_MAX:
        # Single K pass: no reduction grid axis, no accumulator scratch.
        Kp = _round_up(K, 128)
        if (Mp, Kp) != (M, K):
            a = jnp.pad(a, ((0, Mp - M), (0, Kp - K)))
        if (Kp, Np) != (K, N):
            b = jnp.pad(b, ((0, Kp - K), (0, Np - N)))
        out = pl.pallas_call(
            functools.partial(_mm_single_kernel, relu=relu),
            out_shape=jax.ShapeDtypeStruct((Mp, Np), jnp.float32),
            grid=(gm, gn),
            in_specs=[pl.BlockSpec((tm, Kp), lambda i, j: (i, 0)),
                      pl.BlockSpec((Kp, tn), lambda i, j: (0, j)),
                      pl.BlockSpec((1, tn), lambda i, j: (0, j)),
                      pl.BlockSpec((1, tn), lambda i, j: (0, j))],
            out_specs=pl.BlockSpec((tm, tn), lambda i, j: (i, j)),
            compiler_params=pltpu.CompilerParams(
                dimension_semantics=("parallel", "parallel")),
        )(a, b, s, t)
    else:
        tk = 512
        Kp = _round_up(K, tk)
        if (Mp, Kp) != (M, K):
            a = jnp.pad(a, ((0, Mp - M), (0, Kp - K)))
        if (Kp, Np) != (K, N):
            b = jnp.pad(b, ((0, Kp - K), (0, Np - N)))
        out = pl.pallas_call(
            functools.partial(_mm_multi_kernel, relu=relu),
            out_shape=jax.ShapeDtypeStruct((Mp, Np), jnp.float32),
            grid=(gm, gn, Kp // tk),
            in_specs=[pl.BlockSpec((tm, tk), lambda i, j, k: (i, k)),
                      pl.BlockSpec((tk, tn), lambda i, j, k: (k, j)),
                      pl.BlockSpec((1, tn), lambda i, j, k: (0, j)),
                      pl.BlockSpec((1, tn), lambda i, j, k: (0, j))],
            out_specs=pl.BlockSpec((tm, tn), lambda i, j, k: (i, j)),
            scratch_shapes=[pltpu.VMEM((tm, tn), jnp.float32)],
            compiler_params=pltpu.CompilerParams(
                dimension_semantics=("parallel", "parallel", "arbitrary")),
        )(a, b, s, t)
    return out[:M, :N]


def _scale_bias_relu_kernel(x_ref, s_ref, b_ref, o_ref):
    # fused (x * scale + bias) followed by ReLU  (== eval-mode BatchNorm + ReLU)
    o_ref[...] = jnp.maximum(x_ref[...] * s_ref[...] + b_ref[...], 0.0)


def pallas_bn_relu_2d(x2d, scale, bias):
    """x2d: (rows, C); per-column affine + ReLU, tiled over rows (f32 VPU)."""
    R, C = x2d.shape
    x = x2d.astype(jnp.float32)
    Rp = _round_up(R, 8)
    if Rp != R:
        x = jnp.pad(x, ((0, Rp - R), (0, 0)))
    tr = min(1024, Rp)
    out = pl.pallas_call(
        _scale_bias_relu_kernel,
        out_shape=jax.ShapeDtypeStruct((Rp, C), jnp.float32),
        grid=(pl.cdiv(Rp, tr),),
        in_specs=[pl.BlockSpec((tr, C), lambda i: (i, 0)),
                  pl.BlockSpec((1, C), lambda i: (0, 0)),
                  pl.BlockSpec((1, C), lambda i: (0, 0))],
        out_specs=pl.BlockSpec((tr, C), lambda i: (i, 0)),
        compiler_params=pltpu.CompilerParams(
            dimension_semantics=("parallel",)),
    )(x, scale.astype(jnp.float32).reshape(1, C),
      bias.astype(jnp.float32).reshape(1, C))
    return out[:R]


def _patch_reduce_kernel(x_ref, o_ref, *, op):
    x = x_ref[...]                       # (rows, P, C)
    if op == "max":
        o_ref[...] = jnp.max(x, axis=1)
    else:  # mean
        o_ref[...] = jnp.sum(x, axis=1) * (1.0 / x.shape[1])


def pallas_patch_reduce(patches, op):
    """patches: (rows, P, C) -> (rows, C) via max/mean, tiled over rows."""
    R, P, C = patches.shape
    x = patches.astype(jnp.float32)
    Rp = _round_up(R, 8)
    if Rp != R:
        x = jnp.pad(x, ((0, Rp - R), (0, 0), (0, 0)))
    tr = min(512, Rp)
    out = pl.pallas_call(
        functools.partial(_patch_reduce_kernel, op=op),
        out_shape=jax.ShapeDtypeStruct((Rp, C), jnp.float32),
        grid=(pl.cdiv(Rp, tr),),
        in_specs=[pl.BlockSpec((tr, P, C), lambda i: (i, 0, 0))],
        out_specs=pl.BlockSpec((tr, C), lambda i: (i, 0)),
        compiler_params=pltpu.CompilerParams(
            dimension_semantics=("parallel",)),
    )(x)
    return out[:R]


def _gap_classifier_kernel(x_ref, w_ref, b_ref, o_ref):
    feats = jnp.mean(x_ref[...], axis=1)                      # (N, C)
    o_ref[...] = (jnp.sum(feats * w_ref[...], axis=-1, keepdims=True)
                  + b_ref[...])


def pallas_gap_classifier(x3d, w, b):
    """x3d: (N, HW, C) -> global average pool fused with Linear(C, 1)."""
    N, HW, C = x3d.shape
    return pl.pallas_call(
        _gap_classifier_kernel,
        out_shape=jax.ShapeDtypeStruct((N, 1), jnp.float32),
        grid=(1,),
        in_specs=[pl.BlockSpec((N, HW, C), lambda i: (0, 0, 0)),
                  pl.BlockSpec((1, C), lambda i: (0, 0)),
                  pl.BlockSpec((1, 1), lambda i: (0, 0))],
        out_specs=pl.BlockSpec((N, 1), lambda i: (0, 0)),
    )(x3d.astype(jnp.float32), w.astype(jnp.float32).reshape(1, C),
      b.astype(jnp.float32).reshape(1, 1))


# ----------------------------------------------------------------------------
# Glue: im2col, conv, pooling, BN wrappers (pure JAX layout plumbing)
# ----------------------------------------------------------------------------
def im2col(x, kh, kw, stride, pad, pad_value=0.0):
    """x: NHWC -> patches (N, OH, OW, kh*kw, C)."""
    N, H, W, C = x.shape
    xp = jnp.pad(x, ((0, 0), (pad, pad), (pad, pad), (0, 0)),
                 constant_values=pad_value)
    OH = (H + 2 * pad - kh) // stride + 1
    OW = (W + 2 * pad - kw) // stride + 1
    cols = []
    for i in range(kh):
        for j in range(kw):
            cols.append(xp[:,
                           i: i + stride * (OH - 1) + 1: stride,
                           j: j + stride * (OW - 1) + 1: stride, :])
    patches = jnp.stack(cols, axis=3)    # (N, OH, OW, kh*kw, C)
    return patches, OH, OW


def conv2d(x, w, stride, pad, bn=None, relu=False, eps=1e-5):
    """x: NHWC; w: PyTorch layout (outC, inC, kh, kw); no bias (DenseNet convs).
    If `bn` is given, its eval-mode affine (+ ReLU) is fused into the matmul
    epilogue."""
    outC, inC, kh, kw = w.shape
    N, H, W, C = x.shape
    if kh == 1 and kw == 1 and stride == 1 and pad == 0:
        a = x.reshape(N * H * W, C)      # 1x1 conv: no im2col needed
        OH, OW = H, W
    else:
        patches, OH, OW = im2col(x, kh, kw, stride, pad)
        a = patches.reshape(N * OH * OW, kh * kw * inC)
    wt = jnp.transpose(w, (2, 3, 1, 0)).reshape(kh * kw * inC, outC)
    scale = bias = None
    if bn is not None:
        scale = bn["weight"] / jnp.sqrt(bn["var"] + eps)
        bias = bn["bias"] - bn["mean"] * scale
    y = pallas_matmul_fused(a, wt, scale=scale, bias=bias, relu=relu)
    return y.reshape(N, OH, OW, outC)


def bn_relu(x, bn, eps=1e-5):
    """Standalone eval-mode BatchNorm + ReLU on NHWC (pre-conv norms)."""
    N, H, W, C = x.shape
    scale = bn["weight"] / jnp.sqrt(bn["var"] + eps)
    bias = bn["bias"] - bn["mean"] * scale
    y = pallas_bn_relu_2d(x.reshape(N * H * W, C), scale, bias)
    return y.reshape(N, H, W, C)


def maxpool(x, k, stride, pad):
    # TODO(synk): a direct shift-and-max window kernel would avoid the ~2.25x
    # im2col expansion of the (single) stem maxpool.
    patches, OH, OW = im2col(x, k, k, stride, pad, pad_value=-1e30)
    N, C = x.shape[0], x.shape[3]
    y = pallas_patch_reduce(patches.reshape(N * OH * OW, k * k, C), "max")
    return y.reshape(N, OH, OW, C)


def avgpool2(x):
    # 2x2 stride-2 pooling is non-overlapping: patches are a pure relayout.
    patches, OH, OW = im2col(x, 2, 2, 2, 0)
    N, C = x.shape[0], x.shape[3]
    y = pallas_patch_reduce(patches.reshape(N * OH * OW, 4, C), "mean")
    return y.reshape(N, OH, OW, C)


# ----------------------------------------------------------------------------
# DenseNet forward (structure of torchvision densenet161)
# ----------------------------------------------------------------------------
def dense_layer(x, p):
    out = bn_relu(x, p["norm1"])
    # 1x1 bottleneck conv with the following BN+ReLU fused into its epilogue
    out = conv2d(out, p["conv1"], stride=1, pad=0, bn=p["norm2"], relu=True)
    out = conv2d(out, p["conv2"], stride=1, pad=1)   # 3x3
    return jnp.concatenate([x, out], axis=-1)        # dense connectivity


def transition(x, p):
    out = bn_relu(x, p["norm"])
    out = conv2d(out, p["conv"], stride=1, pad=0)    # 1x1 channel reduction
    return avgpool2(out)


def pneumonianet_forward(params, img_nchw):
    # layout: img_nchw is NCHW (PyTorch); convert to NHWC for the kernels.
    x = jnp.transpose(img_nchw, (0, 2, 3, 1)).astype(jnp.float32)
    # stem: conv7x7/s2 with fused BN+ReLU -> maxpool3/s2
    x = conv2d(x, params["conv0"], stride=2, pad=3,
               bn=params["norm0"], relu=True)
    x = maxpool(x, 3, 2, 1)
    # dense blocks + transitions
    n_blocks = len(params["blocks"])
    for bi, block in enumerate(params["blocks"]):
        for layer in block:
            x = dense_layer(x, layer)
        if bi < n_blocks - 1:
            x = transition(x, params["transitions"][bi])
    # final BN + ReLU, then fused global-average-pool + Linear(C, 1) classifier
    x = bn_relu(x, params["norm5"])
    N, H, W, C = x.shape
    logits = pallas_gap_classifier(x.reshape(N, H * W, C),
                                   params["classifier_w"],
                                   params["classifier_b"])
    return logits


# ----------------------------------------------------------------------------
# Deterministic parameter init (synthetic weights, densenet161-style shapes,
# scaled down: growth 8, blocks (2,2,2,2), 16 init features, bn_size 4)
# ----------------------------------------------------------------------------
def init_params(key, in_ch=3, growth=8, block_config=(2, 2, 2, 2),
                init_features=16, bn_size=4):
    keys = iter(jax.random.split(key, 4096))

    def conv_w(outc, inc, k):
        fan_in = inc * k * k
        return (jax.random.normal(next(keys), (outc, inc, k, k), jnp.float32)
                * (1.0 / jnp.sqrt(jnp.float32(fan_in))))

    def bn_p(c):
        return {
            "weight": jax.random.uniform(next(keys), (c,), jnp.float32, 0.5, 1.5),
            "bias": jax.random.normal(next(keys), (c,), jnp.float32) * 0.1,
            "mean": jax.random.normal(next(keys), (c,), jnp.float32) * 0.1,
            "var": jax.random.uniform(next(keys), (c,), jnp.float32, 0.5, 1.5),
        }

    params = {"conv0": conv_w(init_features, in_ch, 7), "norm0": bn_p(init_features)}
    blocks, transitions = [], []
    c = init_features
    for bi, n_layers in enumerate(block_config):
        block = []
        for _ in range(n_layers):
            block.append({
                "norm1": bn_p(c),
                "conv1": conv_w(bn_size * growth, c, 1),
                "norm2": bn_p(bn_size * growth),
                "conv2": conv_w(growth, bn_size * growth, 3),
            })
            c += growth
        blocks.append(block)
        if bi != len(block_config) - 1:
            transitions.append({"norm": bn_p(c), "conv": conv_w(c // 2, c, 1)})
            c = c // 2
    params["blocks"] = blocks
    params["transitions"] = transitions
    params["norm5"] = bn_p(c)
    # classifier: nn.Linear(num_features, 1) -> weight (1, C), bias (1,)
    params["classifier_w"] = jax.random.normal(next(keys), (1, c), jnp.float32) * 0.05
    params["classifier_b"] = jnp.zeros((1,), jnp.float32)
    return params


# ----------------------------------------------------------------------------
if __name__ == "__main__":
    key = jax.random.PRNGKey(0)
    k_img, k_params = jax.random.split(key)
    # Small image consistent with a conv backbone (NCHW, 3 channels).
    img = jax.random.normal(k_img, (2, 3, 32, 32), jnp.float32)
    params = init_params(k_params)

    fwd = jax.jit(pneumonianet_forward)
    logits = fwd(params, img)
    jax.block_until_ready(logits)

    assert logits.shape == (2, 1), logits.shape
    assert bool(jnp.all(jnp.isfinite(logits)))
    print("KERNEL_OK")
</pallas_src>

<mosaic_0001>
module attributes {stable_mosaic.version = 11 : i64} {
  func.func @_mm_single_kernel(%arg0: i32, %arg1: i32, %arg2: memref<512x256xbf16, #tpu.memory_space<vmem>>, %arg3: memref<256x128xbf16, #tpu.memory_space<vmem>>, %arg4: memref<1x128xf32, #tpu.memory_space<vmem>>, %arg5: memref<1x128xf32, #tpu.memory_space<vmem>>, %arg6: memref<512x128xf32, #tpu.memory_space<vmem>>) attributes {dimension_semantics = [#tpu.dimension_semantics<parallel>, #tpu.dimension_semantics<parallel>], iteration_bounds = array<i64: 1, 1>, scalar_prefetch = 0 : i64, scratch_operands = 0 : i64, tpu.core_type = #tpu.core_type<tc>, window_params = [{transform_indices = @transform_0, window_bounds = array<i64: 512, 256>}, {transform_indices = @transform_1, window_bounds = array<i64: 256, 128>}, {transform_indices = @transform_2, window_bounds = array<i64: 1, 128>}, {transform_indices = @transform_3, window_bounds = array<i64: 1, 128>}, {transform_indices = @transform_4, window_bounds = array<i64: 512, 128>}]} {
    %c0 = arith.constant 0 : index
    %c0_0 = arith.constant 0 : index
    %0 = vector.load %arg2[%c0, %c0_0] : memref<512x256xbf16, #tpu.memory_space<vmem>>, vector<512x256xbf16>
    %c0_1 = arith.constant 0 : index
    %c0_2 = arith.constant 0 : index
    %1 = vector.load %arg3[%c0_1, %c0_2] : memref<256x128xbf16, #tpu.memory_space<vmem>>, vector<256x128xbf16>
    %cst = arith.constant dense<0.000000e+00> : vector<512x128xf32>
    %2 = tpu.matmul %0, %1, %cst {dimension_numbers = #tpu.dot_dimension_numbers<[1], [0], [0], [1], [0, 0, 1, 1], [], []>} : vector<512x256xbf16>, vector<256x128xbf16>, vector<512x128xf32> -> vector<512x128xf32>
    %c0_3 = arith.constant 0 : index
    %c0_4 = arith.constant 0 : index
    %3 = vector.load %arg4[%c0_3, %c0_4] : memref<1x128xf32, #tpu.memory_space<vmem>>, vector<1x128xf32>
    %4 = vector.broadcast %3 : vector<1x128xf32> to vector<512x128xf32>
    %5 = arith.mulf %2, %4 : vector<512x128xf32>
    %c0_5 = arith.constant 0 : index
    %c0_6 = arith.constant 0 : index
    %6 = vector.load %arg5[%c0_5, %c0_6] : memref<1x128xf32, #tpu.memory_space<vmem>>, vector<1x128xf32>
    %7 = vector.broadcast %6 : vector<1x128xf32> to vector<512x128xf32>
    %8 = arith.addf %5, %7 : vector<512x128xf32>
    %cst_7 = arith.constant 0.000000e+00 : f32
    %9 = vector.broadcast %cst_7 : f32 to vector<512x128xf32>
    %10 = arith.maximumf %8, %9 : vector<512x128xf32>
    %c0_8 = arith.constant 0 : index
    %c0_9 = arith.constant 0 : index
    %11 = vector.load %arg6[%c0_8, %c0_9] : memref<512x128xf32, #tpu.memory_space<vmem>>, vector<512x128xf32>
    tpu.vector_store %arg6[%c0_8, %c0_9], %10 {strides = array<i32>} : memref<512x128xf32, #tpu.memory_space<vmem>>, vector<512x128xf32>,
    return
  }
  func.func @transform_0(%arg0: i32, %arg1: i32) -> (i32, i32) {
    %c0_i32 = arith.constant 0 : i32
    %c0_i32_0 = arith.constant 0 : i32
    return %arg0, %c0_i32 : i32, i32
  }
  func.func @transform_1(%arg0: i32, %arg1: i32) -> (i32, i32) {
    %c0_i32 = arith.constant 0 : i32
    %c0_i32_0 = arith.constant 0 : i32
    return %c0_i32, %arg1 : i32, i32
  }
  func.func @transform_2(%arg0: i32, %arg1: i32) -> (i32, i32) {
    %c0_i32 = arith.constant 0 : i32
    %c0_i32_0 = arith.constant 0 : i32
    return %c0_i32, %arg1 : i32, i32
  }
  func.func @transform_3(%arg0: i32, %arg1: i32) -> (i32, i32) {
    %c0_i32 = arith.constant 0 : i32
    %c0_i32_0 = arith.constant 0 : i32
    return %c0_i32, %arg1 : i32, i32
  }
  func.func @transform_4(%arg0: i32, %arg1: i32) -> (i32, i32) {
    %c0_i32 = arith.constant 0 : i32
    return %arg0, %arg1 : i32, i32
  }
}

module attributes {stable_mosaic.version = 11 : i64} {
  func.func @_patch_reduce_kernel(%arg0: i32, %arg1: memref<128x9x16xf32, #tpu.memory_space<vmem>>, %arg2: memref<128x16xf32, #tpu.memory_space<vmem>>) attributes {dimension_semantics = [#tpu.dimension_semantics<parallel>], iteration_bounds = array<i64: 1>, scalar_prefetch = 0 : i64, scratch_operands = 0 : i64, tpu.core_type = #tpu.core_type<tc>, window_params = [{transform_indices = @transform_0, window_bounds = array<i64: 128, 9, 16>}, {transform_indices = @transform_1, window_bounds = array<i64: 128, 16>}]} {
    %c0 = arith.constant 0 : index
    %c0_0 = arith.constant 0 : index
    %c0_1 = arith.constant 0 : index
    %0 = vector.load %arg1[%c0, %c0_0, %c0_1] : memref<128x9x16xf32, #tpu.memory_space<vmem>>, vector<128x9x16xf32>
    %cst = arith.constant dense<0xFF800000> : vector<128x16xf32>
    %1 = vector.multi_reduction <maximumf>, %0, %cst [1] : vector<128x9x16xf32> to vector<128x16xf32>
    %c0_2 = arith.constant 0 : index
    %c0_3 = arith.constant 0 : index
    %2 = vector.load %arg2[%c0_2, %c0_3] : memref<128x16xf32, #tpu.memory_space<vmem>>, vector<128x16xf32>
    tpu.vector_store %arg2[%c0_2, %c0_3], %1 {strides = array<i32>} : memref<128x16xf32, #tpu.memory_space<vmem>>, vector<128x16xf32>,
    return
  }
  func.func @transform_0(%arg0: i32) -> (i32, i32, i32) {
    %c0_i32 = arith.constant 0 : i32
    %c0_i32_0 = arith.constant 0 : i32
    %c0_i32_1 = arith.constant 0 : i32
    return %arg0, %c0_i32, %c0_i32_0 : i32, i32, i32
  }
  func.func @transform_1(%arg0: i32) -> (i32, i32) {
    %c0_i32 = arith.constant 0 : i32
    %c0_i32_0 = arith.constant 0 : i32
    return %arg0, %c0_i32 : i32, i32
  }
}

module attributes {stable_mosaic.version = 11 : i64} {
  func.func @_scale_bias_relu_kernel(%arg0: i32, %arg1: memref<128x16xf32, #tpu.memory_space<vmem>>, %arg2: memref<1x16xf32, #tpu.memory_space<vmem>>, %arg3: memref<1x16xf32, #tpu.memory_space<vmem>>, %arg4: memref<128x16xf32, #tpu.memory_space<vmem>>) attributes {dimension_semantics = [#tpu.dimension_semantics<parallel>], iteration_bounds = array<i64: 1>, scalar_prefetch = 0 : i64, scratch_operands = 0 : i64, tpu.core_type = #tpu.core_type<tc>, window_params = [{transform_indices = @transform_0, window_bounds = array<i64: 128, 16>}, {pipeline_mode = #tpu.pipeline_mode<synchronous>, transform_indices = @transform_1, window_bounds = array<i64: 1, 16>}, {pipeline_mode = #tpu.pipeline_mode<synchronous>, transform_indices = @transform_2, window_bounds = array<i64: 1, 16>}, {transform_indices = @transform_3, window_bounds = array<i64: 128, 16>}]} {
    %c0 = arith.constant 0 : index
    %c0_0 = arith.constant 0 : index
    %0 = vector.load %arg1[%c0, %c0_0] : memref<128x16xf32, #tpu.memory_space<vmem>>, vector<128x16xf32>
    %c0_1 = arith.constant 0 : index
    %c0_2 = arith.constant 0 : index
    %1 = vector.load %arg2[%c0_1, %c0_2] : memref<1x16xf32, #tpu.memory_space<vmem>>, vector<1x16xf32>
    %2 = vector.broadcast %1 : vector<1x16xf32> to vector<128x16xf32>
    %3 = arith.mulf %0, %2 : vector<128x16xf32>
    %c0_3 = arith.constant 0 : index
    %c0_4 = arith.constant 0 : index
    %4 = vector.load %arg3[%c0_3, %c0_4] : memref<1x16xf32, #tpu.memory_space<vmem>>, vector<1x16xf32>
    %5 = vector.broadcast %4 : vector<1x16xf32> to vector<128x16xf32>
    %6 = arith.addf %3, %5 : vector<128x16xf32>
    %cst = arith.constant 0.000000e+00 : f32
    %7 = vector.broadcast %cst : f32 to vector<128x16xf32>
    %8 = arith.maximumf %6, %7 : vector<128x16xf32>
    %c0_5 = arith.constant 0 : index
    %c0_6 = arith.constant 0 : index
    %9 = vector.load %arg4[%c0_5, %c0_6] : memref<128x16xf32, #tpu.memory_space<vmem>>, vector<128x16xf32>
    tpu.vector_store %arg4[%c0_5, %c0_6], %8 {strides = array<i32>} : memref<128x16xf32, #tpu.memory_space<vmem>>, vector<128x16xf32>,
    return
  }
  func.func @transform_0(%arg0: i32) -> (i32, i32) {
    %c0_i32 = arith.constant 0 : i32
    %c0_i32_0 = arith.constant 0 : i32
    return %arg0, %c0_i32 : i32, i32
  }
  func.func @transform_1(%arg0: i32) -> (i32, i32) {
    %c0_i32 = arith.constant 0 : i32
    %c0_i32_0 = arith.constant 0 : i32
    %c0_i32_1 = arith.constant 0 : i32
    return %c0_i32, %c0_i32_0 : i32, i32
  }
  func.func @transform_2(%arg0: i32) -> (i32, i32) {
    %c0_i32 = arith.constant 0 : i32
    %c0_i32_0 = arith.constant 0 : i32
    %c0_i32_1 = arith.constant 0 : i32
    return %c0_i32, %c0_i32_0 : i32, i32
  }
  func.func @transform_3(%arg0: i32) -> (i32, i32) {
    %c0_i32 = arith.constant 0 : i32
    %c0_i32_0 = arith.constant 0 : i32
    return %arg0, %c0_i32 : i32, i32
  }
}

module attributes {stable_mosaic.version = 11 : i64} {
  func.func @_mm_single_kernel(%arg0: i32, %arg1: i32, %arg2: memref<128x128xbf16, #tpu.memory_space<vmem>>, %arg3: memref<128x128xbf16, #tpu.memory_space<vmem>>, %arg4: memref<1x128xf32, #tpu.memory_space<vmem>>, %arg5: memref<1x128xf32, #tpu.memory_space<vmem>>, %arg6: memref<128x128xf32, #tpu.memory_space<vmem>>) attributes {dimension_semantics = [#tpu.dimension_semantics<parallel>, #tpu.dimension_semantics<parallel>], iteration_bounds = array<i64: 1, 1>, scalar_prefetch = 0 : i64, scratch_operands = 0 : i64, tpu.core_type = #tpu.core_type<tc>, window_params = [{transform_indices = @transform_0, window_bounds = array<i64: 128, 128>}, {transform_indices = @transform_1, window_bounds = array<i64: 128, 128>}, {transform_indices = @transform_2, window_bounds = array<i64: 1, 128>}, {transform_indices = @transform_3, window_bounds = array<i64: 1, 128>}, {transform_indices = @transform_4, window_bounds = array<i64: 128, 128>}]} {
    %c0 = arith.constant 0 : index
    %c0_0 = arith.constant 0 : index
    %0 = vector.load %arg2[%c0, %c0_0] : memref<128x128xbf16, #tpu.memory_space<vmem>>, vector<128x128xbf16>
    %c0_1 = arith.constant 0 : index
    %c0_2 = arith.constant 0 : index
    %1 = vector.load %arg3[%c0_1, %c0_2] : memref<128x128xbf16, #tpu.memory_space<vmem>>, vector<128x128xbf16>
    %cst = arith.constant dense<0.000000e+00> : vector<128x128xf32>
    %2 = tpu.matmul %0, %1, %cst {dimension_numbers = #tpu.dot_dimension_numbers<[1], [0], [0], [1], [0, 0, 1, 1], [], []>} : vector<128x128xbf16>, vector<128x128xbf16>, vector<128x128xf32> -> vector<128x128xf32>
    %c0_3 = arith.constant 0 : index
    %c0_4 = arith.constant 0 : index
    %3 = vector.load %arg4[%c0_3, %c0_4] : memref<1x128xf32, #tpu.memory_space<vmem>>, vector<1x128xf32>
    %4 = vector.broadcast %3 : vector<1x128xf32> to vector<128x128xf32>
    %5 = arith.mulf %2, %4 : vector<128x128xf32>
    %c0_5 = arith.constant 0 : index
    %c0_6 = arith.constant 0 : index
    %6 = vector.load %arg5[%c0_5, %c0_6] : memref<1x128xf32, #tpu.memory_space<vmem>>, vector<1x128xf32>
    %7 = vector.broadcast %6 : vector<1x128xf32> to vector<128x128xf32>
    %8 = arith.addf %5, %7 : vector<128x128xf32>
    %cst_7 = arith.constant 0.000000e+00 : f32
    %9 = vector.broadcast %cst_7 : f32 to vector<128x128xf32>
    %10 = arith.maximumf %8, %9 : vector<128x128xf32>
    %c0_8 = arith.constant 0 : index
    %c0_9 = arith.constant 0 : index
    %11 = vector.load %arg6[%c0_8, %c0_9] : memref<128x128xf32, #tpu.memory_space<vmem>>, vector<128x128xf32>
    tpu.vector_store %arg6[%c0_8, %c0_9], %10 {strides = array<i32>} : memref<128x128xf32, #tpu.memory_space<vmem>>, vector<128x128xf32>,
    return
  }
  func.func @transform_0(%arg0: i32, %arg1: i32) -> (i32, i32) {
    %c0_i32 = arith.constant 0 : i32
    %c0_i32_0 = arith.constant 0 : i32
    return %arg0, %c0_i32 : i32, i32
  }
  func.func @transform_1(%arg0: i32, %arg1: i32) -> (i32, i32) {
    %c0_i32 = arith.constant 0 : i32
    %c0_i32_0 = arith.constant 0 : i32
    return %c0_i32, %arg1 : i32, i32
  }
  func.func @transform_2(%arg0: i32, %arg1: i32) -> (i32, i32) {
    %c0_i32 = arith.constant 0 : i32
    %c0_i32_0 = arith.constant 0 : i32
    return %c0_i32, %arg1 : i32, i32
  }
  func.func @transform_3(%arg0: i32, %arg1: i32) -> (i32, i32) {
    %c0_i32 = arith.constant 0 : i32
    %c0_i32_0 = arith.constant 0 : i32
    return %c0_i32, %arg1 : i32, i32
  }
  func.func @transform_4(%arg0: i32, %arg1: i32) -> (i32, i32) {
    %c0_i32 = arith.constant 0 : i32
    return %arg0, %arg1 : i32, i32
  }
}

module attributes {stable_mosaic.version = 11 : i64} {
  func.func @_mm_single_kernel(%arg0: i32, %arg1: i32, %arg2: memref<128x384xbf16, #tpu.memory_space<vmem>>, %arg3: memref<384x128xbf16, #tpu.memory_space<vmem>>, %arg4: memref<1x128xf32, #tpu.memory_space<vmem>>, %arg5: memref<1x128xf32, #tpu.memory_space<vmem>>, %arg6: memref<128x128xf32, #tpu.memory_space<vmem>>) attributes {dimension_semantics = [#tpu.dimension_semantics<parallel>, #tpu.dimension_semantics<parallel>], iteration_bounds = array<i64: 1, 1>, scalar_prefetch = 0 : i64, scratch_operands = 0 : i64, tpu.core_type = #tpu.core_type<tc>, window_params = [{transform_indices = @transform_0, window_bounds = array<i64: 128, 384>}, {transform_indices = @transform_1, window_bounds = array<i64: 384, 128>}, {transform_indices = @transform_2, window_bounds = array<i64: 1, 128>}, {transform_indices = @transform_3, window_bounds = array<i64: 1, 128>}, {transform_indices = @transform_4, window_bounds = array<i64: 128, 128>}]} {
    %c0 = arith.constant 0 : index
    %c0_0 = arith.constant 0 : index
    %0 = vector.load %arg2[%c0, %c0_0] : memref<128x384xbf16, #tpu.memory_space<vmem>>, vector<128x384xbf16>
    %c0_1 = arith.constant 0 : index
    %c0_2 = arith.constant 0 : index
    %1 = vector.load %arg3[%c0_1, %c0_2] : memref<384x128xbf16, #tpu.memory_space<vmem>>, vector<384x128xbf16>
    %cst = arith.constant dense<0.000000e+00> : vector<128x128xf32>
    %2 = tpu.matmul %0, %1, %cst {dimension_numbers = #tpu.dot_dimension_numbers<[1], [0], [0], [1], [0, 0, 1, 1], [], []>} : vector<128x384xbf16>, vector<384x128xbf16>, vector<128x128xf32> -> vector<128x128xf32>
    %c0_3 = arith.constant 0 : index
    %c0_4 = arith.constant 0 : index
    %3 = vector.load %arg4[%c0_3, %c0_4] : memref<1x128xf32, #tpu.memory_space<vmem>>, vector<1x128xf32>
    %4 = vector.broadcast %3 : vector<1x128xf32> to vector<128x128xf32>
    %5 = arith.mulf %2, %4 : vector<128x128xf32>
    %c0_5 = arith.constant 0 : index
    %c0_6 = arith.constant 0 : index
    %6 = vector.load %arg5[%c0_5, %c0_6] : memref<1x128xf32, #tpu.memory_space<vmem>>, vector<1x128xf32>
    %7 = vector.broadcast %6 : vector<1x128xf32> to vector<128x128xf32>
    %8 = arith.addf %5, %7 : vector<128x128xf32>
    %c0_7 = arith.constant 0 : index
    %c0_8 = arith.constant 0 : index
    %9 = vector.load %arg6[%c0_7, %c0_8] : memref<128x128xf32, #tpu.memory_space<vmem>>, vector<128x128xf32>
    tpu.vector_store %arg6[%c0_7, %c0_8], %8 {strides = array<i32>} : memref<128x128xf32, #tpu.memory_space<vmem>>, vector<128x128xf32>,
    return
  }
  func.func @transform_0(%arg0: i32, %arg1: i32) -> (i32, i32) {
    %c0_i32 = arith.constant 0 : i32
    %c0_i32_0 = arith.constant 0 : i32
    return %arg0, %c0_i32 : i32, i32
  }
  func.func @transform_1(%arg0: i32, %arg1: i32) -> (i32, i32) {
    %c0_i32 = arith.constant 0 : i32
    %c0_i32_0 = arith.constant 0 : i32
    return %c0_i32, %arg1 : i32, i32
  }
  func.func @transform_2(%arg0: i32, %arg1: i32) -> (i32, i32) {
    %c0_i32 = arith.constant 0 : i32
    %c0_i32_0 = arith.constant 0 : i32
    return %c0_i32, %arg1 : i32, i32
  }
  func.func @transform_3(%arg0: i32, %arg1: i32) -> (i32, i32) {
    %c0_i32 = arith.constant 0 : i32
    %c0_i32_0 = arith.constant 0 : i32
    return %c0_i32, %arg1 : i32, i32
  }
  func.func @transform_4(%arg0: i32, %arg1: i32) -> (i32, i32) {
    %c0_i32 = arith.constant 0 : i32
    return %arg0, %arg1 : i32, i32
  }
}

module attributes {stable_mosaic.version = 11 : i64} {
  func.func @_scale_bias_relu_kernel(%arg0: i32, %arg1: memref<128x24xf32, #tpu.memory_space<vmem>>, %arg2: memref<1x24xf32, #tpu.memory_space<vmem>>, %arg3: memref<1x24xf32, #tpu.memory_space<vmem>>, %arg4: memref<128x24xf32, #tpu.memory_space<vmem>>) attributes {dimension_semantics = [#tpu.dimension_semantics<parallel>], iteration_bounds = array<i64: 1>, scalar_prefetch = 0 : i64, scratch_operands = 0 : i64, tpu.core_type = #tpu.core_type<tc>, window_params = [{transform_indices = @transform_0, window_bounds = array<i64: 128, 24>}, {pipeline_mode = #tpu.pipeline_mode<synchronous>, transform_indices = @transform_1, window_bounds = array<i64: 1, 24>}, {pipeline_mode = #tpu.pipeline_mode<synchronous>, transform_indices = @transform_2, window_bounds = array<i64: 1, 24>}, {transform_indices = @transform_3, window_bounds = array<i64: 128, 24>}]} {
    %c0 = arith.constant 0 : index
    %c0_0 = arith.constant 0 : index
    %0 = vector.load %arg1[%c0, %c0_0] : memref<128x24xf32, #tpu.memory_space<vmem>>, vector<128x24xf32>
    %c0_1 = arith.constant 0 : index
    %c0_2 = arith.constant 0 : index
    %1 = vector.load %arg2[%c0_1, %c0_2] : memref<1x24xf32, #tpu.memory_space<vmem>>, vector<1x24xf32>
    %2 = vector.broadcast %1 : vector<1x24xf32> to vector<128x24xf32>
    %3 = arith.mulf %0, %2 : vector<128x24xf32>
    %c0_3 = arith.constant 0 : index
    %c0_4 = arith.constant 0 : index
    %4 = vector.load %arg3[%c0_3, %c0_4] : memref<1x24xf32, #tpu.memory_space<vmem>>, vector<1x24xf32>
    %5 = vector.broadcast %4 : vector<1x24xf32> to vector<128x24xf32>
    %6 = arith.addf %3, %5 : vector<128x24xf32>
    %cst = arith.constant 0.000000e+00 : f32
    %7 = vector.broadcast %cst : f32 to vector<128x24xf32>
    %8 = arith.maximumf %6, %7 : vector<128x24xf32>
    %c0_5 = arith.constant 0 : index
    %c0_6 = arith.constant 0 : index
    %9 = vector.load %arg4[%c0_5, %c0_6] : memref<128x24xf32, #tpu.memory_space<vmem>>, vector<128x24xf32>
    tpu.vector_store %arg4[%c0_5, %c0_6], %8 {strides = array<i32>} : memref<128x24xf32, #tpu.memory_space<vmem>>, vector<128x24xf32>,
    return
  }
  func.func @transform_0(%arg0: i32) -> (i32, i32) {
    %c0_i32 = arith.constant 0 : i32
    %c0_i32_0 = arith.constant 0 : i32
    return %arg0, %c0_i32 : i32, i32
  }
  func.func @transform_1(%arg0: i32) -> (i32, i32) {
    %c0_i32 = arith.constant 0 : i32
    %c0_i32_0 = arith.constant 0 : i32
    %c0_i32_1 = arith.constant 0 : i32
    return %c0_i32, %c0_i32_0 : i32, i32
  }
  func.func @transform_2(%arg0: i32) -> (i32, i32) {
    %c0_i32 = arith.constant 0 : i32
    %c0_i32_0 = arith.constant 0 : i32
    %c0_i32_1 = arith.constant 0 : i32
    return %c0_i32, %c0_i32_0 : i32, i32
  }
  func.func @transform_3(%arg0: i32) -> (i32, i32) {
    %c0_i32 = arith.constant 0 : i32
    %c0_i32_0 = arith.constant 0 : i32
    return %arg0, %c0_i32 : i32, i32
  }
}

module attributes {stable_mosaic.version = 11 : i64} {
  func.func @_scale_bias_relu_kernel(%arg0: i32, %arg1: memref<128x32xf32, #tpu.memory_space<vmem>>, %arg2: memref<1x32xf32, #tpu.memory_space<vmem>>, %arg3: memref<1x32xf32, #tpu.memory_space<vmem>>, %arg4: memref<128x32xf32, #tpu.memory_space<vmem>>) attributes {dimension_semantics = [#tpu.dimension_semantics<parallel>], iteration_bounds = array<i64: 1>, scalar_prefetch = 0 : i64, scratch_operands = 0 : i64, tpu.core_type = #tpu.core_type<tc>, window_params = [{transform_indices = @transform_0, window_bounds = array<i64: 128, 32>}, {pipeline_mode = #tpu.pipeline_mode<synchronous>, transform_indices = @transform_1, window_bounds = array<i64: 1, 32>}, {pipeline_mode = #tpu.pipeline_mode<synchronous>, transform_indices = @transform_2, window_bounds = array<i64: 1, 32>}, {transform_indices = @transform_3, window_bounds = array<i64: 128, 32>}]} {
    %c0 = arith.constant 0 : index
    %c0_0 = arith.constant 0 : index
    %0 = vector.load %arg1[%c0, %c0_0] : memref<128x32xf32, #tpu.memory_space<vmem>>, vector<128x32xf32>
    %c0_1 = arith.constant 0 : index
    %c0_2 = arith.constant 0 : index
    %1 = vector.load %arg2[%c0_1, %c0_2] : memref<1x32xf32, #tpu.memory_space<vmem>>, vector<1x32xf32>
    %2 = vector.broadcast %1 : vector<1x32xf32> to vector<128x32xf32>
    %3 = arith.mulf %0, %2 : vector<128x32xf32>
    %c0_3 = arith.constant 0 : index
    %c0_4 = arith.constant 0 : index
    %4 = vector.load %arg3[%c0_3, %c0_4] : memref<1x32xf32, #tpu.memory_space<vmem>>, vector<1x32xf32>
    %5 = vector.broadcast %4 : vector<1x32xf32> to vector<128x32xf32>
    %6 = arith.addf %3, %5 : vector<128x32xf32>
    %cst = arith.constant 0.000000e+00 : f32
    %7 = vector.broadcast %cst : f32 to vector<128x32xf32>
    %8 = arith.maximumf %6, %7 : vector<128x32xf32>
    %c0_5 = arith.constant 0 : index
    %c0_6 = arith.constant 0 : index
    %9 = vector.load %arg4[%c0_5, %c0_6] : memref<128x32xf32, #tpu.memory_space<vmem>>, vector<128x32xf32>
    tpu.vector_store %arg4[%c0_5, %c0_6], %8 {strides = array<i32>} : memref<128x32xf32, #tpu.memory_space<vmem>>, vector<128x32xf32>,
    return
  }
  func.func @transform_0(%arg0: i32) -> (i32, i32) {
    %c0_i32 = arith.constant 0 : i32
    %c0_i32_0 = arith.constant 0 : i32
    return %arg0, %c0_i32 : i32, i32
  }
  func.func @transform_1(%arg0: i32) -> (i32, i32) {
    %c0_i32 = arith.constant 0 : i32
    %c0_i32_0 = arith.constant 0 : i32
    %c0_i32_1 = arith.constant 0 : i32
    return %c0_i32, %c0_i32_0 : i32, i32
  }
  func.func @transform_2(%arg0: i32) -> (i32, i32) {
    %c0_i32 = arith.constant 0 : i32
    %c0_i32_0 = arith.constant 0 : i32
    %c0_i32_1 = arith.constant 0 : i32
    return %c0_i32, %c0_i32_0 : i32, i32
  }
  func.func @transform_3(%arg0: i32) -> (i32, i32) {
    %c0_i32 = arith.constant 0 : i32
    %c0_i32_0 = arith.constant 0 : i32
    return %arg0, %c0_i32 : i32, i32
  }
}

module attributes {stable_mosaic.version = 11 : i64} {
  func.func @_mm_single_kernel(%arg0: i32, %arg1: i32, %arg2: memref<128x128xbf16, #tpu.memory_space<vmem>>, %arg3: memref<128x128xbf16, #tpu.memory_space<vmem>>, %arg4: memref<1x128xf32, #tpu.memory_space<vmem>>, %arg5: memref<1x128xf32, #tpu.memory_space<vmem>>, %arg6: memref<128x128xf32, #tpu.memory_space<vmem>>) attributes {dimension_semantics = [#tpu.dimension_semantics<parallel>, #tpu.dimension_semantics<parallel>], iteration_bounds = array<i64: 1, 1>, scalar_prefetch = 0 : i64, scratch_operands = 0 : i64, tpu.core_type = #tpu.core_type<tc>, window_params = [{transform_indices = @transform_0, window_bounds = array<i64: 128, 128>}, {transform_indices = @transform_1, window_bounds = array<i64: 128, 128>}, {transform_indices = @transform_2, window_bounds = array<i64: 1, 128>}, {transform_indices = @transform_3, window_bounds = array<i64: 1, 128>}, {transform_indices = @transform_4, window_bounds = array<i64: 128, 128>}]} {
    %c0 = arith.constant 0 : index
    %c0_0 = arith.constant 0 : index
    %0 = vector.load %arg2[%c0, %c0_0] : memref<128x128xbf16, #tpu.memory_space<vmem>>, vector<128x128xbf16>
    %c0_1 = arith.constant 0 : index
    %c0_2 = arith.constant 0 : index
    %1 = vector.load %arg3[%c0_1, %c0_2] : memref<128x128xbf16, #tpu.memory_space<vmem>>, vector<128x128xbf16>
    %cst = arith.constant dense<0.000000e+00> : vector<128x128xf32>
    %2 = tpu.matmul %0, %1, %cst {dimension_numbers = #tpu.dot_dimension_numbers<[1], [0], [0], [1], [0, 0, 1, 1], [], []>} : vector<128x128xbf16>, vector<128x128xbf16>, vector<128x128xf32> -> vector<128x128xf32>
    %c0_3 = arith.constant 0 : index
    %c0_4 = arith.constant 0 : index
    %3 = vector.load %arg4[%c0_3, %c0_4] : memref<1x128xf32, #tpu.memory_space<vmem>>, vector<1x128xf32>
    %4 = vector.broadcast %3 : vector<1x128xf32> to vector<128x128xf32>
    %5 = arith.mulf %2, %4 : vector<128x128xf32>
    %c0_5 = arith.constant 0 : index
    %c0_6 = arith.constant 0 : index
    %6 = vector.load %arg5[%c0_5, %c0_6] : memref<1x128xf32, #tpu.memory_space<vmem>>, vector<1x128xf32>
    %7 = vector.broadcast %6 : vector<1x128xf32> to vector<128x128xf32>
    %8 = arith.addf %5, %7 : vector<128x128xf32>
    %c0_7 = arith.constant 0 : index
    %c0_8 = arith.constant 0 : index
    %9 = vector.load %arg6[%c0_7, %c0_8] : memref<128x128xf32, #tpu.memory_space<vmem>>, vector<128x128xf32>
    tpu.vector_store %arg6[%c0_7, %c0_8], %8 {strides = array<i32>} : memref<128x128xf32, #tpu.memory_space<vmem>>, vector<128x128xf32>,
    return
  }
  func.func @transform_0(%arg0: i32, %arg1: i32) -> (i32, i32) {
    %c0_i32 = arith.constant 0 : i32
    %c0_i32_0 = arith.constant 0 : i32
    return %arg0, %c0_i32 : i32, i32
  }
  func.func @transform_1(%arg0: i32, %arg1: i32) -> (i32, i32) {
    %c0_i32 = arith.constant 0 : i32
    %c0_i32_0 = arith.constant 0 : i32
    return %c0_i32, %arg1 : i32, i32
  }
  func.func @transform_2(%arg0: i32, %arg1: i32) -> (i32, i32) {
    %c0_i32 = arith.constant 0 : i32
    %c0_i32_0 = arith.constant 0 : i32
    return %c0_i32, %arg1 : i32, i32
  }
  func.func @transform_3(%arg0: i32, %arg1: i32) -> (i32, i32) {
    %c0_i32 = arith.constant 0 : i32
    %c0_i32_0 = arith.constant 0 : i32
    return %c0_i32, %arg1 : i32, i32
  }
  func.func @transform_4(%arg0: i32, %arg1: i32) -> (i32, i32) {
    %c0_i32 = arith.constant 0 : i32
    return %arg0, %arg1 : i32, i32
  }
}

module attributes {stable_mosaic.version = 11 : i64} {
  func.func @_patch_reduce_kernel(%arg0: i32, %arg1: memref<32x4x16xf32, #tpu.memory_space<vmem>>, %arg2: memref<32x16xf32, #tpu.memory_space<vmem>>) attributes {dimension_semantics = [#tpu.dimension_semantics<parallel>], iteration_bounds = array<i64: 1>, scalar_prefetch = 0 : i64, scratch_operands = 0 : i64, tpu.core_type = #tpu.core_type<tc>, window_params = [{transform_indices = @transform_0, window_bounds = array<i64: 32, 4, 16>}, {transform_indices = @transform_1, window_bounds = array<i64: 32, 16>}]} {
    %c0 = arith.constant 0 : index
    %c0_0 = arith.constant 0 : index
    %c0_1 = arith.constant 0 : index
    %0 = vector.load %arg1[%c0, %c0_0, %c0_1] : memref<32x4x16xf32, #tpu.memory_space<vmem>>, vector<32x4x16xf32>
    %cst = arith.constant dense<0.000000e+00> : vector<32x16xf32>
    %1 = vector.multi_reduction <add>, %0, %cst [1] : vector<32x4x16xf32> to vector<32x16xf32>
    %cst_2 = arith.constant 2.500000e-01 : f32
    %2 = vector.broadcast %cst_2 : f32 to vector<32x16xf32>
    %3 = arith.mulf %1, %2 : vector<32x16xf32>
    %c0_3 = arith.constant 0 : index
    %c0_4 = arith.constant 0 : index
    %4 = vector.load %arg2[%c0_3, %c0_4] : memref<32x16xf32, #tpu.memory_space<vmem>>, vector<32x16xf32>
    tpu.vector_store %arg2[%c0_3, %c0_4], %3 {strides = array<i32>} : memref<32x16xf32, #tpu.memory_space<vmem>>, vector<32x16xf32>,
    return
  }
  func.func @transform_0(%arg0: i32) -> (i32, i32, i32) {
    %c0_i32 = arith.constant 0 : i32
    %c0_i32_0 = arith.constant 0 : i32
    %c0_i32_1 = arith.constant 0 : i32
    return %arg0, %c0_i32, %c0_i32_0 : i32, i32, i32
  }
  func.func @transform_1(%arg0: i32) -> (i32, i32) {
    %c0_i32 = arith.constant 0 : i32
    %c0_i32_0 = arith.constant 0 : i32
    return %arg0, %c0_i32 : i32, i32
  }
}

module attributes {stable_mosaic.version = 11 : i64} {
  func.func @_scale_bias_relu_kernel(%arg0: i32, %arg1: memref<32x16xf32, #tpu.memory_space<vmem>>, %arg2: memref<1x16xf32, #tpu.memory_space<vmem>>, %arg3: memref<1x16xf32, #tpu.memory_space<vmem>>, %arg4: memref<32x16xf32, #tpu.memory_space<vmem>>) attributes {dimension_semantics = [#tpu.dimension_semantics<parallel>], iteration_bounds = array<i64: 1>, scalar_prefetch = 0 : i64, scratch_operands = 0 : i64, tpu.core_type = #tpu.core_type<tc>, window_params = [{transform_indices = @transform_0, window_bounds = array<i64: 32, 16>}, {pipeline_mode = #tpu.pipeline_mode<synchronous>, transform_indices = @transform_1, window_bounds = array<i64: 1, 16>}, {pipeline_mode = #tpu.pipeline_mode<synchronous>, transform_indices = @transform_2, window_bounds = array<i64: 1, 16>}, {transform_indices = @transform_3, window_bounds = array<i64: 32, 16>}]} {
    %c0 = arith.constant 0 : index
    %c0_0 = arith.constant 0 : index
    %0 = vector.load %arg1[%c0, %c0_0] : memref<32x16xf32, #tpu.memory_space<vmem>>, vector<32x16xf32>
    %c0_1 = arith.constant 0 : index
    %c0_2 = arith.constant 0 : index
    %1 = vector.load %arg2[%c0_1, %c0_2] : memref<1x16xf32, #tpu.memory_space<vmem>>, vector<1x16xf32>
    %2 = vector.broadcast %1 : vector<1x16xf32> to vector<32x16xf32>
    %3 = arith.mulf %0, %2 : vector<32x16xf32>
    %c0_3 = arith.constant 0 : index
    %c0_4 = arith.constant 0 : index
    %4 = vector.load %arg3[%c0_3, %c0_4] : memref<1x16xf32, #tpu.memory_space<vmem>>, vector<1x16xf32>
    %5 = vector.broadcast %4 : vector<1x16xf32> to vector<32x16xf32>
    %6 = arith.addf %3, %5 : vector<32x16xf32>
    %cst = arith.constant 0.000000e+00 : f32
    %7 = vector.broadcast %cst : f32 to vector<32x16xf32>
    %8 = arith.maximumf %6, %7 : vector<32x16xf32>
    %c0_5 = arith.constant 0 : index
    %c0_6 = arith.constant 0 : index
    %9 = vector.load %arg4[%c0_5, %c0_6] : memref<32x16xf32, #tpu.memory_space<vmem>>, vector<32x16xf32>
    tpu.vector_store %arg4[%c0_5, %c0_6], %8 {strides = array<i32>} : memref<32x16xf32, #tpu.memory_space<vmem>>, vector<32x16xf32>,
    return
  }
  func.func @transform_0(%arg0: i32) -> (i32, i32) {
    %c0_i32 = arith.constant 0 : i32
    %c0_i32_0 = arith.constant 0 : i32
    return %arg0, %c0_i32 : i32, i32
  }
  func.func @transform_1(%arg0: i32) -> (i32, i32) {
    %c0_i32 = arith.constant 0 : i32
    %c0_i32_0 = arith.constant 0 : i32
    %c0_i32_1 = arith.constant 0 : i32
    return %c0_i32, %c0_i32_0 : i32, i32
  }
  func.func @transform_2(%arg0: i32) -> (i32, i32) {
    %c0_i32 = arith.constant 0 : i32
    %c0_i32_0 = arith.constant 0 : i32
    %c0_i32_1 = arith.constant 0 : i32
    return %c0_i32, %c0_i32_0 : i32, i32
  }
  func.func @transform_3(%arg0: i32) -> (i32, i32) {
    %c0_i32 = arith.constant 0 : i32
    %c0_i32_0 = arith.constant 0 : i32
    return %arg0, %c0_i32 : i32, i32
  }
}

module attributes {stable_mosaic.version = 11 : i64} {
  func.func @_mm_single_kernel(%arg0: i32, %arg1: i32, %arg2: memref<32x128xbf16, #tpu.memory_space<vmem>>, %arg3: memref<128x128xbf16, #tpu.memory_space<vmem>>, %arg4: memref<1x128xf32, #tpu.memory_space<vmem>>, %arg5: memref<1x128xf32, #tpu.memory_space<vmem>>, %arg6: memref<32x128xf32, #tpu.memory_space<vmem>>) attributes {dimension_semantics = [#tpu.dimension_semantics<parallel>, #tpu.dimension_semantics<parallel>], iteration_bounds = array<i64: 1, 1>, scalar_prefetch = 0 : i64, scratch_operands = 0 : i64, tpu.core_type = #tpu.core_type<tc>, window_params = [{transform_indices = @transform_0, window_bounds = array<i64: 32, 128>}, {transform_indices = @transform_1, window_bounds = array<i64: 128, 128>}, {transform_indices = @transform_2, window_bounds = array<i64: 1, 128>}, {transform_indices = @transform_3, window_bounds = array<i64: 1, 128>}, {transform_indices = @transform_4, window_bounds = array<i64: 32, 128>}]} {
    %c0 = arith.constant 0 : index
    %c0_0 = arith.constant 0 : index
    %0 = vector.load %arg2[%c0, %c0_0] : memref<32x128xbf16, #tpu.memory_space<vmem>>, vector<32x128xbf16>
    %c0_1 = arith.constant 0 : index
    %c0_2 = arith.constant 0 : index
    %1 = vector.load %arg3[%c0_1, %c0_2] : memref<128x128xbf16, #tpu.memory_space<vmem>>, vector<128x128xbf16>
    %cst = arith.constant dense<0.000000e+00> : vector<32x128xf32>
    %2 = tpu.matmul %0, %1, %cst {dimension_numbers = #tpu.dot_dimension_numbers<[1], [0], [0], [1], [0, 0, 1, 1], [], []>} : vector<32x128xbf16>, vector<128x128xbf16>, vector<32x128xf32> -> vector<32x128xf32>
    %c0_3 = arith.constant 0 : index
    %c0_4 = arith.constant 0 : index
    %3 = vector.load %arg4[%c0_3, %c0_4] : memref<1x128xf32, #tpu.memory_space<vmem>>, vector<1x128xf32>
    %4 = vector.broadcast %3 : vector<1x128xf32> to vector<32x128xf32>
    %5 = arith.mulf %2, %4 : vector<32x128xf32>
    %c0_5 = arith.constant 0 : index
    %c0_6 = arith.constant 0 : index
    %6 = vector.load %arg5[%c0_5, %c0_6] : memref<1x128xf32, #tpu.memory_space<vmem>>, vector<1x128xf32>
    %7 = vector.broadcast %6 : vector<1x128xf32> to vector<32x128xf32>
    %8 = arith.addf %5, %7 : vector<32x128xf32>
    %cst_7 = arith.constant 0.000000e+00 : f32
    %9 = vector.broadcast %cst_7 : f32 to vector<32x128xf32>
    %10 = arith.maximumf %8, %9 : vector<32x128xf32>
    %c0_8 = arith.constant 0 : index
    %c0_9 = arith.constant 0 : index
    %11 = vector.load %arg6[%c0_8, %c0_9] : memref<32x128xf32, #tpu.memory_space<vmem>>, vector<32x128xf32>
    tpu.vector_store %arg6[%c0_8, %c0_9], %10 {strides = array<i32>} : memref<32x128xf32, #tpu.memory_space<vmem>>, vector<32x128xf32>,
    return
  }
  func.func @transform_0(%arg0: i32, %arg1: i32) -> (i32, i32) {
    %c0_i32 = arith.constant 0 : i32
    %c0_i32_0 = arith.constant 0 : i32
    return %arg0, %c0_i32 : i32, i32
  }
  func.func @transform_1(%arg0: i32, %arg1: i32) -> (i32, i32) {
    %c0_i32 = arith.constant 0 : i32
    %c0_i32_0 = arith.constant 0 : i32
    return %c0_i32, %arg1 : i32, i32
  }
  func.func @transform_2(%arg0: i32, %arg1: i32) -> (i32, i32) {
    %c0_i32 = arith.constant 0 : i32
    %c0_i32_0 = arith.constant 0 : i32
    return %c0_i32, %arg1 : i32, i32
  }
  func.func @transform_3(%arg0: i32, %arg1: i32) -> (i32, i32) {
    %c0_i32 = arith.constant 0 : i32
    %c0_i32_0 = arith.constant 0 : i32
    return %c0_i32, %arg1 : i32, i32
  }
  func.func @transform_4(%arg0: i32, %arg1: i32) -> (i32, i32) {
    %c0_i32 = arith.constant 0 : i32
    return %arg0, %arg1 : i32, i32
  }
}

module attributes {stable_mosaic.version = 11 : i64} {
  func.func @_mm_single_kernel(%arg0: i32, %arg1: i32, %arg2: memref<32x384xbf16, #tpu.memory_space<vmem>>, %arg3: memref<384x128xbf16, #tpu.memory_space<vmem>>, %arg4: memref<1x128xf32, #tpu.memory_space<vmem>>, %arg5: memref<1x128xf32, #tpu.memory_space<vmem>>, %arg6: memref<32x128xf32, #tpu.memory_space<vmem>>) attributes {dimension_semantics = [#tpu.dimension_semantics<parallel>, #tpu.dimension_semantics<parallel>], iteration_bounds = array<i64: 1, 1>, scalar_prefetch = 0 : i64, scratch_operands = 0 : i64, tpu.core_type = #tpu.core_type<tc>, window_params = [{transform_indices = @transform_0, window_bounds = array<i64: 32, 384>}, {transform_indices = @transform_1, window_bounds = array<i64: 384, 128>}, {transform_indices = @transform_2, window_bounds = array<i64: 1, 128>}, {transform_indices = @transform_3, window_bounds = array<i64: 1, 128>}, {transform_indices = @transform_4, window_bounds = array<i64: 32, 128>}]} {
    %c0 = arith.constant 0 : index
    %c0_0 = arith.constant 0 : index
    %0 = vector.load %arg2[%c0, %c0_0] : memref<32x384xbf16, #tpu.memory_space<vmem>>, vector<32x384xbf16>
    %c0_1 = arith.constant 0 : index
    %c0_2 = arith.constant 0 : index
    %1 = vector.load %arg3[%c0_1, %c0_2] : memref<384x128xbf16, #tpu.memory_space<vmem>>, vector<384x128xbf16>
    %cst = arith.constant dense<0.000000e+00> : vector<32x128xf32>
    %2 = tpu.matmul %0, %1, %cst {dimension_numbers = #tpu.dot_dimension_numbers<[1], [0], [0], [1], [0, 0, 1, 1], [], []>} : vector<32x384xbf16>, vector<384x128xbf16>, vector<32x128xf32> -> vector<32x128xf32>
    %c0_3 = arith.constant 0 : index
    %c0_4 = arith.constant 0 : index
    %3 = vector.load %arg4[%c0_3, %c0_4] : memref<1x128xf32, #tpu.memory_space<vmem>>, vector<1x128xf32>
    %4 = vector.broadcast %3 : vector<1x128xf32> to vector<32x128xf32>
    %5 = arith.mulf %2, %4 : vector<32x128xf32>
    %c0_5 = arith.constant 0 : index
    %c0_6 = arith.constant 0 : index
    %6 = vector.load %arg5[%c0_5, %c0_6] : memref<1x128xf32, #tpu.memory_space<vmem>>, vector<1x128xf32>
    %7 = vector.broadcast %6 : vector<1x128xf32> to vector<32x128xf32>
    %8 = arith.addf %5, %7 : vector<32x128xf32>
    %c0_7 = arith.constant 0 : index
    %c0_8 = arith.constant 0 : index
    %9 = vector.load %arg6[%c0_7, %c0_8] : memref<32x128xf32, #tpu.memory_space<vmem>>, vector<32x128xf32>
    tpu.vector_store %arg6[%c0_7, %c0_8], %8 {strides = array<i32>} : memref<32x128xf32, #tpu.memory_space<vmem>>, vector<32x128xf32>,
    return
  }
  func.func @transform_0(%arg0: i32, %arg1: i32) -> (i32, i32) {
    %c0_i32 = arith.constant 0 : i32
    %c0_i32_0 = arith.constant 0 : i32
    return %arg0, %c0_i32 : i32, i32
  }
  func.func @transform_1(%arg0: i32, %arg1: i32) -> (i32, i32) {
    %c0_i32 = arith.constant 0 : i32
    %c0_i32_0 = arith.constant 0 : i32
    return %c0_i32, %arg1 : i32, i32
  }
  func.func @transform_2(%arg0: i32, %arg1: i32) -> (i32, i32) {
    %c0_i32 = arith.constant 0 : i32
    %c0_i32_0 = arith.constant 0 : i32
    return %c0_i32, %arg1 : i32, i32
  }
  func.func @transform_3(%arg0: i32, %arg1: i32) -> (i32, i32) {
    %c0_i32 = arith.constant 0 : i32
    %c0_i32_0 = arith.constant 0 : i32
    return %c0_i32, %arg1 : i32, i32
  }
  func.func @transform_4(%arg0: i32, %arg1: i32) -> (i32, i32) {
    %c0_i32 = arith.constant 0 : i32
    return %arg0, %arg1 : i32, i32
  }
}

module attributes {stable_mosaic.version = 11 : i64} {
  func.func @_scale_bias_relu_kernel(%arg0: i32, %arg1: memref<32x24xf32, #tpu.memory_space<vmem>>, %arg2: memref<1x24xf32, #tpu.memory_space<vmem>>, %arg3: memref<1x24xf32, #tpu.memory_space<vmem>>, %arg4: memref<32x24xf32, #tpu.memory_space<vmem>>) attributes {dimension_semantics = [#tpu.dimension_semantics<parallel>], iteration_bounds = array<i64: 1>, scalar_prefetch = 0 : i64, scratch_operands = 0 : i64, tpu.core_type = #tpu.core_type<tc>, window_params = [{transform_indices = @transform_0, window_bounds = array<i64: 32, 24>}, {pipeline_mode = #tpu.pipeline_mode<synchronous>, transform_indices = @transform_1, window_bounds = array<i64: 1, 24>}, {pipeline_mode = #tpu.pipeline_mode<synchronous>, transform_indices = @transform_2, window_bounds = array<i64: 1, 24>}, {transform_indices = @transform_3, window_bounds = array<i64: 32, 24>}]} {
    %c0 = arith.constant 0 : index
    %c0_0 = arith.constant 0 : index
    %0 = vector.load %arg1[%c0, %c0_0] : memref<32x24xf32, #tpu.memory_space<vmem>>, vector<32x24xf32>
    %c0_1 = arith.constant 0 : index
    %c0_2 = arith.constant 0 : index
    %1 = vector.load %arg2[%c0_1, %c0_2] : memref<1x24xf32, #tpu.memory_space<vmem>>, vector<1x24xf32>
    %2 = vector.broadcast %1 : vector<1x24xf32> to vector<32x24xf32>
    %3 = arith.mulf %0, %2 : vector<32x24xf32>
    %c0_3 = arith.constant 0 : index
    %c0_4 = arith.constant 0 : index
    %4 = vector.load %arg3[%c0_3, %c0_4] : memref<1x24xf32, #tpu.memory_space<vmem>>, vector<1x24xf32>
    %5 = vector.broadcast %4 : vector<1x24xf32> to vector<32x24xf32>
    %6 = arith.addf %3, %5 : vector<32x24xf32>
    %cst = arith.constant 0.000000e+00 : f32
    %7 = vector.broadcast %cst : f32 to vector<32x24xf32>
    %8 = arith.maximumf %6, %7 : vector<32x24xf32>
    %c0_5 = arith.constant 0 : index
    %c0_6 = arith.constant 0 : index
    %9 = vector.load %arg4[%c0_5, %c0_6] : memref<32x24xf32, #tpu.memory_space<vmem>>, vector<32x24xf32>
    tpu.vector_store %arg4[%c0_5, %c0_6], %8 {strides = array<i32>} : memref<32x24xf32, #tpu.memory_space<vmem>>, vector<32x24xf32>,
    return
  }
  func.func @transform_0(%arg0: i32) -> (i32, i32) {
    %c0_i32 = arith.constant 0 : i32
    %c0_i32_0 = arith.constant 0 : i32
    return %arg0, %c0_i32 : i32, i32
  }
  func.func @transform_1(%arg0: i32) -> (i32, i32) {
    %c0_i32 = arith.constant 0 : i32
    %c0_i32_0 = arith.constant 0 : i32
    %c0_i32_1 = arith.constant 0 : i32
    return %c0_i32, %c0_i32_0 : i32, i32
  }
  func.func @transform_2(%arg0: i32) -> (i32, i32) {
    %c0_i32 = arith.constant 0 : i32
    %c0_i32_0 = arith.constant 0 : i32
    %c0_i32_1 = arith.constant 0 : i32
    return %c0_i32, %c0_i32_0 : i32, i32
  }
  func.func @transform_3(%arg0: i32) -> (i32, i32) {
    %c0_i32 = arith.constant 0 : i32
    %c0_i32_0 = arith.constant 0 : i32
    return %arg0, %c0_i32 : i32, i32
  }
}

module attributes {stable_mosaic.version = 11 : i64} {
  func.func @_scale_bias_relu_kernel(%arg0: i32, %arg1: memref<32x32xf32, #tpu.memory_space<vmem>>, %arg2: memref<1x32xf32, #tpu.memory_space<vmem>>, %arg3: memref<1x32xf32, #tpu.memory_space<vmem>>, %arg4: memref<32x32xf32, #tpu.memory_space<vmem>>) attributes {dimension_semantics = [#tpu.dimension_semantics<parallel>], iteration_bounds = array<i64: 1>, scalar_prefetch = 0 : i64, scratch_operands = 0 : i64, tpu.core_type = #tpu.core_type<tc>, window_params = [{transform_indices = @transform_0, window_bounds = array<i64: 32, 32>}, {pipeline_mode = #tpu.pipeline_mode<synchronous>, transform_indices = @transform_1, window_bounds = array<i64: 1, 32>}, {pipeline_mode = #tpu.pipeline_mode<synchronous>, transform_indices = @transform_2, window_bounds = array<i64: 1, 32>}, {transform_indices = @transform_3, window_bounds = array<i64: 32, 32>}]} {
    %c0 = arith.constant 0 : index
    %c0_0 = arith.constant 0 : index
    %0 = vector.load %arg1[%c0, %c0_0] : memref<32x32xf32, #tpu.memory_space<vmem>>, vector<32x32xf32>
    %c0_1 = arith.constant 0 : index
    %c0_2 = arith.constant 0 : index
    %1 = vector.load %arg2[%c0_1, %c0_2] : memref<1x32xf32, #tpu.memory_space<vmem>>, vector<1x32xf32>
    %2 = vector.broadcast %1 : vector<1x32xf32> to vector<32x32xf32>
    %3 = arith.mulf %0, %2 : vector<32x32xf32>
    %c0_3 = arith.constant 0 : index
    %c0_4 = arith.constant 0 : index
    %4 = vector.load %arg3[%c0_3, %c0_4] : memref<1x32xf32, #tpu.memory_space<vmem>>, vector<1x32xf32>
    %5 = vector.broadcast %4 : vector<1x32xf32> to vector<32x32xf32>
    %6 = arith.addf %3, %5 : vector<32x32xf32>
    %cst = arith.constant 0.000000e+00 : f32
    %7 = vector.broadcast %cst : f32 to vector<32x32xf32>
    %8 = arith.maximumf %6, %7 : vector<32x32xf32>
    %c0_5 = arith.constant 0 : index
    %c0_6 = arith.constant 0 : index
    %9 = vector.load %arg4[%c0_5, %c0_6] : memref<32x32xf32, #tpu.memory_space<vmem>>, vector<32x32xf32>
    tpu.vector_store %arg4[%c0_5, %c0_6], %8 {strides = array<i32>} : memref<32x32xf32, #tpu.memory_space<vmem>>, vector<32x32xf32>,
    return
  }
  func.func @transform_0(%arg0: i32) -> (i32, i32) {
    %c0_i32 = arith.constant 0 : i32
    %c0_i32_0 = arith.constant 0 : i32
    return %arg0, %c0_i32 : i32, i32
  }
  func.func @transform_1(%arg0: i32) -> (i32, i32) {
    %c0_i32 = arith.constant 0 : i32
    %c0_i32_0 = arith.constant 0 : i32
    %c0_i32_1 = arith.constant 0 : i32
    return %c0_i32, %c0_i32_0 : i32, i32
  }
  func.func @transform_2(%arg0: i32) -> (i32, i32) {
    %c0_i32 = arith.constant 0 : i32
    %c0_i32_0 = arith.constant 0 : i32
    %c0_i32_1 = arith.constant 0 : i32
    return %c0_i32, %c0_i32_0 : i32, i32
  }
  func.func @transform_3(%arg0: i32) -> (i32, i32) {
    %c0_i32 = arith.constant 0 : i32
    %c0_i32_0 = arith.constant 0 : i32
    return %arg0, %c0_i32 : i32, i32
  }
}

module attributes {stable_mosaic.version = 11 : i64} {
  func.func @_mm_single_kernel(%arg0: i32, %arg1: i32, %arg2: memref<32x128xbf16, #tpu.memory_space<vmem>>, %arg3: memref<128x128xbf16, #tpu.memory_space<vmem>>, %arg4: memref<1x128xf32, #tpu.memory_space<vmem>>, %arg5: memref<1x128xf32, #tpu.memory_space<vmem>>, %arg6: memref<32x128xf32, #tpu.memory_space<vmem>>) attributes {dimension_semantics = [#tpu.dimension_semantics<parallel>, #tpu.dimension_semantics<parallel>], iteration_bounds = array<i64: 1, 1>, scalar_prefetch = 0 : i64, scratch_operands = 0 : i64, tpu.core_type = #tpu.core_type<tc>, window_params = [{transform_indices = @transform_0, window_bounds = array<i64: 32, 128>}, {transform_indices = @transform_1, window_bounds = array<i64: 128, 128>}, {transform_indices = @transform_2, window_bounds = array<i64: 1, 128>}, {transform_indices = @transform_3, window_bounds = array<i64: 1, 128>}, {transform_indices = @transform_4, window_bounds = array<i64: 32, 128>}]} {
    %c0 = arith.constant 0 : index
    %c0_0 = arith.constant 0 : index
    %0 = vector.load %arg2[%c0, %c0_0] : memref<32x128xbf16, #tpu.memory_space<vmem>>, vector<32x128xbf16>
    %c0_1 = arith.constant 0 : index
    %c0_2 = arith.constant 0 : index
    %1 = vector.load %arg3[%c0_1, %c0_2] : memref<128x128xbf16, #tpu.memory_space<vmem>>, vector<128x128xbf16>
    %cst = arith.constant dense<0.000000e+00> : vector<32x128xf32>
    %2 = tpu.matmul %0, %1, %cst {dimension_numbers = #tpu.dot_dimension_numbers<[1], [0], [0], [1], [0, 0, 1, 1], [], []>} : vector<32x128xbf16>, vector<128x128xbf16>, vector<32x128xf32> -> vector<32x128xf32>
    %c0_3 = arith.constant 0 : index
    %c0_4 = arith.constant 0 : index
    %3 = vector.load %arg4[%c0_3, %c0_4] : memref<1x128xf32, #tpu.memory_space<vmem>>, vector<1x128xf32>
    %4 = vector.broadcast %3 : vector<1x128xf32> to vector<32x128xf32>
    %5 = arith.mulf %2, %4 : vector<32x128xf32>
    %c0_5 = arith.constant 0 : index
    %c0_6 = arith.constant 0 : index
    %6 = vector.load %arg5[%c0_5, %c0_6] : memref<1x128xf32, #tpu.memory_space<vmem>>, vector<1x128xf32>
    %7 = vector.broadcast %6 : vector<1x128xf32> to vector<32x128xf32>
    %8 = arith.addf %5, %7 : vector<32x128xf32>
    %c0_7 = arith.constant 0 : index
    %c0_8 = arith.constant 0 : index
    %9 = vector.load %arg6[%c0_7, %c0_8] : memref<32x128xf32, #tpu.memory_space<vmem>>, vector<32x128xf32>
    tpu.vector_store %arg6[%c0_7, %c0_8], %8 {strides = array<i32>} : memref<32x128xf32, #tpu.memory_space<vmem>>, vector<32x128xf32>,
    return
  }
  func.func @transform_0(%arg0: i32, %arg1: i32) -> (i32, i32) {
    %c0_i32 = arith.constant 0 : i32
    %c0_i32_0 = arith.constant 0 : i32
    return %arg0, %c0_i32 : i32, i32
  }
  func.func @transform_1(%arg0: i32, %arg1: i32) -> (i32, i32) {
    %c0_i32 = arith.constant 0 : i32
    %c0_i32_0 = arith.constant 0 : i32
    return %c0_i32, %arg1 : i32, i32
  }
  func.func @transform_2(%arg0: i32, %arg1: i32) -> (i32, i32) {
    %c0_i32 = arith.constant 0 : i32
    %c0_i32_0 = arith.constant 0 : i32
    return %c0_i32, %arg1 : i32, i32
  }
  func.func @transform_3(%arg0: i32, %arg1: i32) -> (i32, i32) {
    %c0_i32 = arith.constant 0 : i32
    %c0_i32_0 = arith.constant 0 : i32
    return %c0_i32, %arg1 : i32, i32
  }
  func.func @transform_4(%arg0: i32, %arg1: i32) -> (i32, i32) {
    %c0_i32 = arith.constant 0 : i32
    return %arg0, %arg1 : i32, i32
  }
}

module attributes {stable_mosaic.version = 11 : i64} {
  func.func @_patch_reduce_kernel(%arg0: i32, %arg1: memref<8x4x16xf32, #tpu.memory_space<vmem>>, %arg2: memref<8x16xf32, #tpu.memory_space<vmem>>) attributes {dimension_semantics = [#tpu.dimension_semantics<parallel>], iteration_bounds = array<i64: 1>, scalar_prefetch = 0 : i64, scratch_operands = 0 : i64, tpu.core_type = #tpu.core_type<tc>, window_params = [{transform_indices = @transform_0, window_bounds = array<i64: 8, 4, 16>}, {transform_indices = @transform_1, window_bounds = array<i64: 8, 16>}]} {
    %c0 = arith.constant 0 : index
    %c0_0 = arith.constant 0 : index
    %c0_1 = arith.constant 0 : index
    %0 = vector.load %arg1[%c0, %c0_0, %c0_1] : memref<8x4x16xf32, #tpu.memory_space<vmem>>, vector<8x4x16xf32>
    %cst = arith.constant dense<0.000000e+00> : vector<8x16xf32>
    %1 = vector.multi_reduction <add>, %0, %cst [1] : vector<8x4x16xf32> to vector<8x16xf32>
    %cst_2 = arith.constant 2.500000e-01 : f32
    %2 = vector.broadcast %cst_2 : f32 to vector<8x16xf32>
    %3 = arith.mulf %1, %2 : vector<8x16xf32>
    %c0_3 = arith.constant 0 : index
    %c0_4 = arith.constant 0 : index
    %4 = vector.load %arg2[%c0_3, %c0_4] : memref<8x16xf32, #tpu.memory_space<vmem>>, vector<8x16xf32>
    tpu.vector_store %arg2[%c0_3, %c0_4], %3 {strides = array<i32>} : memref<8x16xf32, #tpu.memory_space<vmem>>, vector<8x16xf32>,
    return
  }
  func.func @transform_0(%arg0: i32) -> (i32, i32, i32) {
    %c0_i32 = arith.constant 0 : i32
    %c0_i32_0 = arith.constant 0 : i32
    %c0_i32_1 = arith.constant 0 : i32
    return %arg0, %c0_i32, %c0_i32_0 : i32, i32, i32
  }
  func.func @transform_1(%arg0: i32) -> (i32, i32) {
    %c0_i32 = arith.constant 0 : i32
    %c0_i32_0 = arith.constant 0 : i32
    return %arg0, %c0_i32 : i32, i32
  }
}

module attributes {stable_mosaic.version = 11 : i64} {
  func.func @_scale_bias_relu_kernel(%arg0: i32, %arg1: memref<8x16xf32, #tpu.memory_space<vmem>>, %arg2: memref<1x16xf32, #tpu.memory_space<vmem>>, %arg3: memref<1x16xf32, #tpu.memory_space<vmem>>, %arg4: memref<8x16xf32, #tpu.memory_space<vmem>>) attributes {dimension_semantics = [#tpu.dimension_semantics<parallel>], iteration_bounds = array<i64: 1>, scalar_prefetch = 0 : i64, scratch_operands = 0 : i64, tpu.core_type = #tpu.core_type<tc>, window_params = [{transform_indices = @transform_0, window_bounds = array<i64: 8, 16>}, {pipeline_mode = #tpu.pipeline_mode<synchronous>, transform_indices = @transform_1, window_bounds = array<i64: 1, 16>}, {pipeline_mode = #tpu.pipeline_mode<synchronous>, transform_indices = @transform_2, window_bounds = array<i64: 1, 16>}, {transform_indices = @transform_3, window_bounds = array<i64: 8, 16>}]} {
    %c0 = arith.constant 0 : index
    %c0_0 = arith.constant 0 : index
    %0 = vector.load %arg1[%c0, %c0_0] : memref<8x16xf32, #tpu.memory_space<vmem>>, vector<8x16xf32>
    %c0_1 = arith.constant 0 : index
    %c0_2 = arith.constant 0 : index
    %1 = vector.load %arg2[%c0_1, %c0_2] : memref<1x16xf32, #tpu.memory_space<vmem>>, vector<1x16xf32>
    %2 = vector.broadcast %1 : vector<1x16xf32> to vector<8x16xf32>
    %3 = arith.mulf %0, %2 : vector<8x16xf32>
    %c0_3 = arith.constant 0 : index
    %c0_4 = arith.constant 0 : index
    %4 = vector.load %arg3[%c0_3, %c0_4] : memref<1x16xf32, #tpu.memory_space<vmem>>, vector<1x16xf32>
    %5 = vector.broadcast %4 : vector<1x16xf32> to vector<8x16xf32>
    %6 = arith.addf %3, %5 : vector<8x16xf32>
    %cst = arith.constant 0.000000e+00 : f32
    %7 = vector.broadcast %cst : f32 to vector<8x16xf32>
    %8 = arith.maximumf %6, %7 : vector<8x16xf32>
    %c0_5 = arith.constant 0 : index
    %c0_6 = arith.constant 0 : index
    %9 = vector.load %arg4[%c0_5, %c0_6] : memref<8x16xf32, #tpu.memory_space<vmem>>, vector<8x16xf32>
    tpu.vector_store %arg4[%c0_5, %c0_6], %8 {strides = array<i32>} : memref<8x16xf32, #tpu.memory_space<vmem>>, vector<8x16xf32>,
    return
  }
  func.func @transform_0(%arg0: i32) -> (i32, i32) {
    %c0_i32 = arith.constant 0 : i32
    %c0_i32_0 = arith.constant 0 : i32
    return %arg0, %c0_i32 : i32, i32
  }
  func.func @transform_1(%arg0: i32) -> (i32, i32) {
    %c0_i32 = arith.constant 0 : i32
    %c0_i32_0 = arith.constant 0 : i32
    %c0_i32_1 = arith.constant 0 : i32
    return %c0_i32, %c0_i32_0 : i32, i32
  }
  func.func @transform_2(%arg0: i32) -> (i32, i32) {
    %c0_i32 = arith.constant 0 : i32
    %c0_i32_0 = arith.constant 0 : i32
    %c0_i32_1 = arith.constant 0 : i32
    return %c0_i32, %c0_i32_0 : i32, i32
  }
  func.func @transform_3(%arg0: i32) -> (i32, i32) {
    %c0_i32 = arith.constant 0 : i32
    %c0_i32_0 = arith.constant 0 : i32
    return %arg0, %c0_i32 : i32, i32
  }
}

module attributes {stable_mosaic.version = 11 : i64} {
  func.func @_mm_single_kernel(%arg0: i32, %arg1: i32, %arg2: memref<16x128xbf16, #tpu.memory_space<vmem>>, %arg3: memref<128x128xbf16, #tpu.memory_space<vmem>>, %arg4: memref<1x128xf32, #tpu.memory_space<vmem>>, %arg5: memref<1x128xf32, #tpu.memory_space<vmem>>, %arg6: memref<16x128xf32, #tpu.memory_space<vmem>>) attributes {dimension_semantics = [#tpu.dimension_semantics<parallel>, #tpu.dimension_semantics<parallel>], iteration_bounds = array<i64: 1, 1>, scalar_prefetch = 0 : i64, scratch_operands = 0 : i64, tpu.core_type = #tpu.core_type<tc>, window_params = [{transform_indices = @transform_0, window_bounds = array<i64: 16, 128>}, {transform_indices = @transform_1, window_bounds = array<i64: 128, 128>}, {transform_indices = @transform_2, window_bounds = array<i64: 1, 128>}, {transform_indices = @transform_3, window_bounds = array<i64: 1, 128>}, {transform_indices = @transform_4, window_bounds = array<i64: 16, 128>}]} {
    %c0 = arith.constant 0 : index
    %c0_0 = arith.constant 0 : index
    %0 = vector.load %arg2[%c0, %c0_0] : memref<16x128xbf16, #tpu.memory_space<vmem>>, vector<16x128xbf16>
    %c0_1 = arith.constant 0 : index
    %c0_2 = arith.constant 0 : index
    %1 = vector.load %arg3[%c0_1, %c0_2] : memref<128x128xbf16, #tpu.memory_space<vmem>>, vector<128x128xbf16>
    %cst = arith.constant dense<0.000000e+00> : vector<16x128xf32>
    %2 = tpu.matmul %0, %1, %cst {dimension_numbers = #tpu.dot_dimension_numbers<[1], [0], [0], [1], [0, 0, 1, 1], [], []>} : vector<16x128xbf16>, vector<128x128xbf16>, vector<16x128xf32> -> vector<16x128xf32>
    %c0_3 = arith.constant 0 : index
    %c0_4 = arith.constant 0 : index
    %3 = vector.load %arg4[%c0_3, %c0_4] : memref<1x128xf32, #tpu.memory_space<vmem>>, vector<1x128xf32>
    %4 = vector.broadcast %3 : vector<1x128xf32> to vector<16x128xf32>
    %5 = arith.mulf %2, %4 : vector<16x128xf32>
    %c0_5 = arith.constant 0 : index
    %c0_6 = arith.constant 0 : index
    %6 = vector.load %arg5[%c0_5, %c0_6] : memref<1x128xf32, #tpu.memory_space<vmem>>, vector<1x128xf32>
    %7 = vector.broadcast %6 : vector<1x128xf32> to vector<16x128xf32>
    %8 = arith.addf %5, %7 : vector<16x128xf32>
    %cst_7 = arith.constant 0.000000e+00 : f32
    %9 = vector.broadcast %cst_7 : f32 to vector<16x128xf32>
    %10 = arith.maximumf %8, %9 : vector<16x128xf32>
    %c0_8 = arith.constant 0 : index
    %c0_9 = arith.constant 0 : index
    %11 = vector.load %arg6[%c0_8, %c0_9] : memref<16x128xf32, #tpu.memory_space<vmem>>, vector<16x128xf32>
    tpu.vector_store %arg6[%c0_8, %c0_9], %10 {strides = array<i32>} : memref<16x128xf32, #tpu.memory_space<vmem>>, vector<16x128xf32>,
    return
  }
  func.func @transform_0(%arg0: i32, %arg1: i32) -> (i32, i32) {
    %c0_i32 = arith.constant 0 : i32
    %c0_i32_0 = arith.constant 0 : i32
    return %arg0, %c0_i32 : i32, i32
  }
  func.func @transform_1(%arg0: i32, %arg1: i32) -> (i32, i32) {
    %c0_i32 = arith.constant 0 : i32
    %c0_i32_0 = arith.constant 0 : i32
    return %c0_i32, %arg1 : i32, i32
  }
  func.func @transform_2(%arg0: i32, %arg1: i32) -> (i32, i32) {
    %c0_i32 = arith.constant 0 : i32
    %c0_i32_0 = arith.constant 0 : i32
    return %c0_i32, %arg1 : i32, i32
  }
  func.func @transform_3(%arg0: i32, %arg1: i32) -> (i32, i32) {
    %c0_i32 = arith.constant 0 : i32
    %c0_i32_0 = arith.constant 0 : i32
    return %c0_i32, %arg1 : i32, i32
  }
  func.func @transform_4(%arg0: i32, %arg1: i32) -> (i32, i32) {
    %c0_i32 = arith.constant 0 : i32
    return %arg0, %arg1 : i32, i32
  }
}

module attributes {stable_mosaic.version = 11 : i64} {
  func.func @_mm_single_kernel(%arg0: i32, %arg1: i32, %arg2: memref<16x384xbf16, #tpu.memory_space<vmem>>, %arg3: memref<384x128xbf16, #tpu.memory_space<vmem>>, %arg4: memref<1x128xf32, #tpu.memory_space<vmem>>, %arg5: memref<1x128xf32, #tpu.memory_space<vmem>>, %arg6: memref<16x128xf32, #tpu.memory_space<vmem>>) attributes {dimension_semantics = [#tpu.dimension_semantics<parallel>, #tpu.dimension_semantics<parallel>], iteration_bounds = array<i64: 1, 1>, scalar_prefetch = 0 : i64, scratch_operands = 0 : i64, tpu.core_type = #tpu.core_type<tc>, window_params = [{transform_indices = @transform_0, window_bounds = array<i64: 16, 384>}, {transform_indices = @transform_1, window_bounds = array<i64: 384, 128>}, {transform_indices = @transform_2, window_bounds = array<i64: 1, 128>}, {transform_indices = @transform_3, window_bounds = array<i64: 1, 128>}, {transform_indices = @transform_4, window_bounds = array<i64: 16, 128>}]} {
    %c0 = arith.constant 0 : index
    %c0_0 = arith.constant 0 : index
    %0 = vector.load %arg2[%c0, %c0_0] : memref<16x384xbf16, #tpu.memory_space<vmem>>, vector<16x384xbf16>
    %c0_1 = arith.constant 0 : index
    %c0_2 = arith.constant 0 : index
    %1 = vector.load %arg3[%c0_1, %c0_2] : memref<384x128xbf16, #tpu.memory_space<vmem>>, vector<384x128xbf16>
    %cst = arith.constant dense<0.000000e+00> : vector<16x128xf32>
    %2 = tpu.matmul %0, %1, %cst {dimension_numbers = #tpu.dot_dimension_numbers<[1], [0], [0], [1], [0, 0, 1, 1], [], []>} : vector<16x384xbf16>, vector<384x128xbf16>, vector<16x128xf32> -> vector<16x128xf32>
    %c0_3 = arith.constant 0 : index
    %c0_4 = arith.constant 0 : index
    %3 = vector.load %arg4[%c0_3, %c0_4] : memref<1x128xf32, #tpu.memory_space<vmem>>, vector<1x128xf32>
    %4 = vector.broadcast %3 : vector<1x128xf32> to vector<16x128xf32>
    %5 = arith.mulf %2, %4 : vector<16x128xf32>
    %c0_5 = arith.constant 0 : index
    %c0_6 = arith.constant 0 : index
    %6 = vector.load %arg5[%c0_5, %c0_6] : memref<1x128xf32, #tpu.memory_space<vmem>>, vector<1x128xf32>
    %7 = vector.broadcast %6 : vector<1x128xf32> to vector<16x128xf32>
    %8 = arith.addf %5, %7 : vector<16x128xf32>
    %c0_7 = arith.constant 0 : index
    %c0_8 = arith.constant 0 : index
    %9 = vector.load %arg6[%c0_7, %c0_8] : memref<16x128xf32, #tpu.memory_space<vmem>>, vector<16x128xf32>
    tpu.vector_store %arg6[%c0_7, %c0_8], %8 {strides = array<i32>} : memref<16x128xf32, #tpu.memory_space<vmem>>, vector<16x128xf32>,
    return
  }
  func.func @transform_0(%arg0: i32, %arg1: i32) -> (i32, i32) {
    %c0_i32 = arith.constant 0 : i32
    %c0_i32_0 = arith.constant 0 : i32
    return %arg0, %c0_i32 : i32, i32
  }
  func.func @transform_1(%arg0: i32, %arg1: i32) -> (i32, i32) {
    %c0_i32 = arith.constant 0 : i32
    %c0_i32_0 = arith.constant 0 : i32
    return %c0_i32, %arg1 : i32, i32
  }
  func.func @transform_2(%arg0: i32, %arg1: i32) -> (i32, i32) {
    %c0_i32 = arith.constant 0 : i32
    %c0_i32_0 = arith.constant 0 : i32
    return %c0_i32, %arg1 : i32, i32
  }
  func.func @transform_3(%arg0: i32, %arg1: i32) -> (i32, i32) {
    %c0_i32 = arith.constant 0 : i32
    %c0_i32_0 = arith.constant 0 : i32
    return %c0_i32, %arg1 : i32, i32
  }
  func.func @transform_4(%arg0: i32, %arg1: i32) -> (i32, i32) {
    %c0_i32 = arith.constant 0 : i32
    return %arg0, %arg1 : i32, i32
  }
}

module attributes {stable_mosaic.version = 11 : i64} {
  func.func @_scale_bias_relu_kernel(%arg0: i32, %arg1: memref<8x24xf32, #tpu.memory_space<vmem>>, %arg2: memref<1x24xf32, #tpu.memory_space<vmem>>, %arg3: memref<1x24xf32, #tpu.memory_space<vmem>>, %arg4: memref<8x24xf32, #tpu.memory_space<vmem>>) attributes {dimension_semantics = [#tpu.dimension_semantics<parallel>], iteration_bounds = array<i64: 1>, scalar_prefetch = 0 : i64, scratch_operands = 0 : i64, tpu.core_type = #tpu.core_type<tc>, window_params = [{transform_indices = @transform_0, window_bounds = array<i64: 8, 24>}, {pipeline_mode = #tpu.pipeline_mode<synchronous>, transform_indices = @transform_1, window_bounds = array<i64: 1, 24>}, {pipeline_mode = #tpu.pipeline_mode<synchronous>, transform_indices = @transform_2, window_bounds = array<i64: 1, 24>}, {transform_indices = @transform_3, window_bounds = array<i64: 8, 24>}]} {
    %c0 = arith.constant 0 : index
    %c0_0 = arith.constant 0 : index
    %0 = vector.load %arg1[%c0, %c0_0] : memref<8x24xf32, #tpu.memory_space<vmem>>, vector<8x24xf32>
    %c0_1 = arith.constant 0 : index
    %c0_2 = arith.constant 0 : index
    %1 = vector.load %arg2[%c0_1, %c0_2] : memref<1x24xf32, #tpu.memory_space<vmem>>, vector<1x24xf32>
    %2 = vector.broadcast %1 : vector<1x24xf32> to vector<8x24xf32>
    %3 = arith.mulf %0, %2 : vector<8x24xf32>
    %c0_3 = arith.constant 0 : index
    %c0_4 = arith.constant 0 : index
    %4 = vector.load %arg3[%c0_3, %c0_4] : memref<1x24xf32, #tpu.memory_space<vmem>>, vector<1x24xf32>
    %5 = vector.broadcast %4 : vector<1x24xf32> to vector<8x24xf32>
    %6 = arith.addf %3, %5 : vector<8x24xf32>
    %cst = arith.constant 0.000000e+00 : f32
    %7 = vector.broadcast %cst : f32 to vector<8x24xf32>
    %8 = arith.maximumf %6, %7 : vector<8x24xf32>
    %c0_5 = arith.constant 0 : index
    %c0_6 = arith.constant 0 : index
    %9 = vector.load %arg4[%c0_5, %c0_6] : memref<8x24xf32, #tpu.memory_space<vmem>>, vector<8x24xf32>
    tpu.vector_store %arg4[%c0_5, %c0_6], %8 {strides = array<i32>} : memref<8x24xf32, #tpu.memory_space<vmem>>, vector<8x24xf32>,
    return
  }
  func.func @transform_0(%arg0: i32) -> (i32, i32) {
    %c0_i32 = arith.constant 0 : i32
    %c0_i32_0 = arith.constant 0 : i32
    return %arg0, %c0_i32 : i32, i32
  }
  func.func @transform_1(%arg0: i32) -> (i32, i32) {
    %c0_i32 = arith.constant 0 : i32
    %c0_i32_0 = arith.constant 0 : i32
    %c0_i32_1 = arith.constant 0 : i32
    return %c0_i32, %c0_i32_0 : i32, i32
  }
  func.func @transform_2(%arg0: i32) -> (i32, i32) {
    %c0_i32 = arith.constant 0 : i32
    %c0_i32_0 = arith.constant 0 : i32
    %c0_i32_1 = arith.constant 0 : i32
    return %c0_i32, %c0_i32_0 : i32, i32
  }
  func.func @transform_3(%arg0: i32) -> (i32, i32) {
    %c0_i32 = arith.constant 0 : i32
    %c0_i32_0 = arith.constant 0 : i32
    return %arg0, %c0_i32 : i32, i32
  }
}

module attributes {stable_mosaic.version = 11 : i64} {
  func.func @_scale_bias_relu_kernel(%arg0: i32, %arg1: memref<8x32xf32, #tpu.memory_space<vmem>>, %arg2: memref<1x32xf32, #tpu.memory_space<vmem>>, %arg3: memref<1x32xf32, #tpu.memory_space<vmem>>, %arg4: memref<8x32xf32, #tpu.memory_space<vmem>>) attributes {dimension_semantics = [#tpu.dimension_semantics<parallel>], iteration_bounds = array<i64: 1>, scalar_prefetch = 0 : i64, scratch_operands = 0 : i64, tpu.core_type = #tpu.core_type<tc>, window_params = [{transform_indices = @transform_0, window_bounds = array<i64: 8, 32>}, {pipeline_mode = #tpu.pipeline_mode<synchronous>, transform_indices = @transform_1, window_bounds = array<i64: 1, 32>}, {pipeline_mode = #tpu.pipeline_mode<synchronous>, transform_indices = @transform_2, window_bounds = array<i64: 1, 32>}, {transform_indices = @transform_3, window_bounds = array<i64: 8, 32>}]} {
    %c0 = arith.constant 0 : index
    %c0_0 = arith.constant 0 : index
    %0 = vector.load %arg1[%c0, %c0_0] : memref<8x32xf32, #tpu.memory_space<vmem>>, vector<8x32xf32>
    %c0_1 = arith.constant 0 : index
    %c0_2 = arith.constant 0 : index
    %1 = vector.load %arg2[%c0_1, %c0_2] : memref<1x32xf32, #tpu.memory_space<vmem>>, vector<1x32xf32>
    %2 = vector.broadcast %1 : vector<1x32xf32> to vector<8x32xf32>
    %3 = arith.mulf %0, %2 : vector<8x32xf32>
    %c0_3 = arith.constant 0 : index
    %c0_4 = arith.constant 0 : index
    %4 = vector.load %arg3[%c0_3, %c0_4] : memref<1x32xf32, #tpu.memory_space<vmem>>, vector<1x32xf32>
    %5 = vector.broadcast %4 : vector<1x32xf32> to vector<8x32xf32>
    %6 = arith.addf %3, %5 : vector<8x32xf32>
    %cst = arith.constant 0.000000e+00 : f32
    %7 = vector.broadcast %cst : f32 to vector<8x32xf32>
    %8 = arith.maximumf %6, %7 : vector<8x32xf32>
    %c0_5 = arith.constant 0 : index
    %c0_6 = arith.constant 0 : index
    %9 = vector.load %arg4[%c0_5, %c0_6] : memref<8x32xf32, #tpu.memory_space<vmem>>, vector<8x32xf32>
    tpu.vector_store %arg4[%c0_5, %c0_6], %8 {strides = array<i32>} : memref<8x32xf32, #tpu.memory_space<vmem>>, vector<8x32xf32>,
    return
  }
  func.func @transform_0(%arg0: i32) -> (i32, i32) {
    %c0_i32 = arith.constant 0 : i32
    %c0_i32_0 = arith.constant 0 : i32
    return %arg0, %c0_i32 : i32, i32
  }
  func.func @transform_1(%arg0: i32) -> (i32, i32) {
    %c0_i32 = arith.constant 0 : i32
    %c0_i32_0 = arith.constant 0 : i32
    %c0_i32_1 = arith.constant 0 : i32
    return %c0_i32, %c0_i32_0 : i32, i32
  }
  func.func @transform_2(%arg0: i32) -> (i32, i32) {
    %c0_i32 = arith.constant 0 : i32
    %c0_i32_0 = arith.constant 0 : i32
    %c0_i32_1 = arith.constant 0 : i32
    return %c0_i32, %c0_i32_0 : i32, i32
  }
  func.func @transform_3(%arg0: i32) -> (i32, i32) {
    %c0_i32 = arith.constant 0 : i32
    %c0_i32_0 = arith.constant 0 : i32
    return %arg0, %c0_i32 : i32, i32
  }
}

module attributes {stable_mosaic.version = 11 : i64} {
  func.func @_mm_single_kernel(%arg0: i32, %arg1: i32, %arg2: memref<16x128xbf16, #tpu.memory_space<vmem>>, %arg3: memref<128x128xbf16, #tpu.memory_space<vmem>>, %arg4: memref<1x128xf32, #tpu.memory_space<vmem>>, %arg5: memref<1x128xf32, #tpu.memory_space<vmem>>, %arg6: memref<16x128xf32, #tpu.memory_space<vmem>>) attributes {dimension_semantics = [#tpu.dimension_semantics<parallel>, #tpu.dimension_semantics<parallel>], iteration_bounds = array<i64: 1, 1>, scalar_prefetch = 0 : i64, scratch_operands = 0 : i64, tpu.core_type = #tpu.core_type<tc>, window_params = [{transform_indices = @transform_0, window_bounds = array<i64: 16, 128>}, {transform_indices = @transform_1, window_bounds = array<i64: 128, 128>}, {transform_indices = @transform_2, window_bounds = array<i64: 1, 128>}, {transform_indices = @transform_3, window_bounds = array<i64: 1, 128>}, {transform_indices = @transform_4, window_bounds = array<i64: 16, 128>}]} {
    %c0 = arith.constant 0 : index
    %c0_0 = arith.constant 0 : index
    %0 = vector.load %arg2[%c0, %c0_0] : memref<16x128xbf16, #tpu.memory_space<vmem>>, vector<16x128xbf16>
    %c0_1 = arith.constant 0 : index
    %c0_2 = arith.constant 0 : index
    %1 = vector.load %arg3[%c0_1, %c0_2] : memref<128x128xbf16, #tpu.memory_space<vmem>>, vector<128x128xbf16>
    %cst = arith.constant dense<0.000000e+00> : vector<16x128xf32>
    %2 = tpu.matmul %0, %1, %cst {dimension_numbers = #tpu.dot_dimension_numbers<[1], [0], [0], [1], [0, 0, 1, 1], [], []>} : vector<16x128xbf16>, vector<128x128xbf16>, vector<16x128xf32> -> vector<16x128xf32>
    %c0_3 = arith.constant 0 : index
    %c0_4 = arith.constant 0 : index
    %3 = vector.load %arg4[%c0_3, %c0_4] : memref<1x128xf32, #tpu.memory_space<vmem>>, vector<1x128xf32>
    %4 = vector.broadcast %3 : vector<1x128xf32> to vector<16x128xf32>
    %5 = arith.mulf %2, %4 : vector<16x128xf32>
    %c0_5 = arith.constant 0 : index
    %c0_6 = arith.constant 0 : index
    %6 = vector.load %arg5[%c0_5, %c0_6] : memref<1x128xf32, #tpu.memory_space<vmem>>, vector<1x128xf32>
    %7 = vector.broadcast %6 : vector<1x128xf32> to vector<16x128xf32>
    %8 = arith.addf %5, %7 : vector<16x128xf32>
    %c0_7 = arith.constant 0 : index
    %c0_8 = arith.constant 0 : index
    %9 = vector.load %arg6[%c0_7, %c0_8] : memref<16x128xf32, #tpu.memory_space<vmem>>, vector<16x128xf32>
    tpu.vector_store %arg6[%c0_7, %c0_8], %8 {strides = array<i32>} : memref<16x128xf32, #tpu.memory_space<vmem>>, vector<16x128xf32>,
    return
  }
  func.func @transform_0(%arg0: i32, %arg1: i32) -> (i32, i32) {
    %c0_i32 = arith.constant 0 : i32
    %c0_i32_0 = arith.constant 0 : i32
    return %arg0, %c0_i32 : i32, i32
  }
  func.func @transform_1(%arg0: i32, %arg1: i32) -> (i32, i32) {
    %c0_i32 = arith.constant 0 : i32
    %c0_i32_0 = arith.constant 0 : i32
    return %c0_i32, %arg1 : i32, i32
  }
  func.func @transform_2(%arg0: i32, %arg1: i32) -> (i32, i32) {
    %c0_i32 = arith.constant 0 : i32
    %c0_i32_0 = arith.constant 0 : i32
    return %c0_i32, %arg1 : i32, i32
  }
  func.func @transform_3(%arg0: i32, %arg1: i32) -> (i32, i32) {
    %c0_i32 = arith.constant 0 : i32
    %c0_i32_0 = arith.constant 0 : i32
    return %c0_i32, %arg1 : i32, i32
  }
  func.func @transform_4(%arg0: i32, %arg1: i32) -> (i32, i32) {
    %c0_i32 = arith.constant 0 : i32
    return %arg0, %arg1 : i32, i32
  }
}

module attributes {stable_mosaic.version = 11 : i64} {
  func.func @_gap_classifier_kernel(%arg0: i32, %arg1: memref<2x1x32xf32, #tpu.memory_space<vmem>>, %arg2: memref<1x32xf32, #tpu.memory_space<vmem>>, %arg3: memref<1x1xf32, #tpu.memory_space<vmem>>, %arg4: memref<2x1xf32, #tpu.memory_space<vmem>>) attributes {dimension_semantics = [#tpu.dimension_semantics<arbitrary>], iteration_bounds = array<i64: 1>, scalar_prefetch = 0 : i64, scratch_operands = 0 : i64, tpu.core_type = #tpu.core_type<tc>, window_params = [{pipeline_mode = #tpu.pipeline_mode<synchronous>, transform_indices = @transform_0, window_bounds = array<i64: 2, 1, 32>}, {pipeline_mode = #tpu.pipeline_mode<synchronous>, transform_indices = @transform_1, window_bounds = array<i64: 1, 32>}, {pipeline_mode = #tpu.pipeline_mode<synchronous>, transform_indices = @transform_2, window_bounds = array<i64: 1, 1>}, {pipeline_mode = #tpu.pipeline_mode<synchronous>, transform_indices = @transform_3, window_bounds = array<i64: 2, 1>}]} {
    %c0 = arith.constant 0 : index
    %c0_0 = arith.constant 0 : index
    %c0_1 = arith.constant 0 : index
    %0 = vector.load %arg1[%c0, %c0_0, %c0_1] : memref<2x1x32xf32, #tpu.memory_space<vmem>>, vector<2x1x32xf32>
    %cst = arith.constant dense<0.000000e+00> : vector<2x32xf32>
    %1 = vector.multi_reduction <add>, %0, %cst [1] : vector<2x1x32xf32> to vector<2x32xf32>
    %cst_2 = arith.constant 1.000000e+00 : f32
    %2 = vector.broadcast %cst_2 : f32 to vector<2x32xf32>
    %3 = arith.divf %1, %2 : vector<2x32xf32>
    %c0_3 = arith.constant 0 : index
    %c0_4 = arith.constant 0 : index
    %4 = vector.load %arg2[%c0_3, %c0_4] : memref<1x32xf32, #tpu.memory_space<vmem>>, vector<1x32xf32>
    %5 = vector.broadcast %4 : vector<1x32xf32> to vector<2x32xf32>
    %6 = arith.mulf %3, %5 : vector<2x32xf32>
    %cst_5 = arith.constant dense<0.000000e+00> : vector<2xf32>
    %7 = vector.multi_reduction <add>, %6, %cst_5 [1] : vector<2x32xf32> to vector<2xf32>
    %8 = vector.shape_cast %7 : vector<2xf32> to vector<2x1xf32>
    %c0_6 = arith.constant 0 : index
    %c0_7 = arith.constant 0 : index
    %9 = vector.load %arg3[%c0_6, %c0_7] : memref<1x1xf32, #tpu.memory_space<vmem>>, vector<1x1xf32>
    %10 = vector.broadcast %9 : vector<1x1xf32> to vector<2x1xf32>
    %11 = arith.addf %8, %10 : vector<2x1xf32>
    %c0_8 = arith.constant 0 : index
    %c0_9 = arith.constant 0 : index
    %12 = vector.load %arg4[%c0_8, %c0_9] : memref<2x1xf32, #tpu.memory_space<vmem>>, vector<2x1xf32>
    tpu.vector_store %arg4[%c0_8, %c0_9], %11 {strides = array<i32>} : memref<2x1xf32, #tpu.memory_space<vmem>>, vector<2x1xf32>,
    return
  }
  func.func @transform_0(%arg0: i32) -> (i32, i32, i32) {
    %c0_i32 = arith.constant 0 : i32
    %c0_i32_0 = arith.constant 0 : i32
    %c0_i32_1 = arith.constant 0 : i32
    %c0_i32_2 = arith.constant 0 : i32
    return %c0_i32, %c0_i32_0, %c0_i32_1 : i32, i32, i32
  }
  func.func @transform_1(%arg0: i32) -> (i32, i32) {
    %c0_i32 = arith.constant 0 : i32
    %c0_i32_0 = arith.constant 0 : i32
    %c0_i32_1 = arith.constant 0 : i32
    return %c0_i32, %c0_i32_0 : i32, i32
  }
  func.func @transform_2(%arg0: i32) -> (i32, i32) {
    %c0_i32 = arith.constant 0 : i32
    %c0_i32_0 = arith.constant 0 : i32
    %c0_i32_1 = arith.constant 0 : i32
    return %c0_i32, %c0_i32_0 : i32, i32
  }
  func.func @transform_3(%arg0: i32) -> (i32, i32) {
    %c0_i32 = arith.constant 0 : i32
    %c0_i32_0 = arith.constant 0 : i32
    %c0_i32_1 = arith.constant 0 : i32
    return %c0_i32, %c0_i32_0 : i32, i32
  }
}

</mosaic_0001>

<llo_original>
// kernel: pneumonianet_forward.37
$region0: #{pneumonianet_forward.37}
  #allocation0 [shape = 'u32[]', space=smem, size = 0x4, offset = 0x4, fixed_abs, tag = 'smem constant byte address 0x4 - core index']
  #allocation1 [shape = 'u32[72,128]{1,0:T(1,128)}', space=vmem, size = 0x9000, scoped, tag = 'internal scratch']
  %s0 = inlined_call_operand.vmem [shape: bf16[512,256], index: 0, kind: input, shape index: {}]
  %s1 = inlined_call_operand.vmem [shape: bf16[256,128], index: 1, kind: input, shape index: {}]
  %s2 = inlined_call_operand.vmem [shape: f32[1,128], index: 2, kind: input, shape index: {}]
  %s3 = inlined_call_operand.vmem [shape: f32[1,128], index: 3, kind: input, shape index: {}]
  %s4 = inlined_call_operand.vmem [shape: f32[512,128], index: 4, kind: output, shape index: {}]
  %s5 = sld [smem:[#allocation0]]
  $region26: #{pneumonianet_forward.37} parent=0
    _
  %s7 = ssub.s32 1, %s5
  %s8 = scalar_select 0, %s7, %s5
  // Predicated region
  $region2: #{pneumonianet_forward.37} parent=0 // pred_check
    _
  $region3: #{pneumonianet_forward.37} parent=0 // pred_check_branch
    %10 = sbr.rel (0) target = $region5
  $region4: #{pneumonianet_forward.37} parent=0 // pred_region
    _
  $region5: #{pneumonianet_forward.37} parent=0 // pred_fallthru
    _
  // Predicated region
  $region6: #{pneumonianet_forward.37} parent=0 // pred_check
    _
  $region7: #{pneumonianet_forward.37} parent=0 // pred_check_branch
    %12 = sbr.rel (0) target = $region9
  $region8: #{pneumonianet_forward.37} parent=0 // pred_region
    _
  $region9: #{pneumonianet_forward.37} parent=0 // pred_fallthru
    _
  // Predicated region
  $region10: #{pneumonianet_forward.37} parent=0 // pred_check
    _
  $region11: #{pneumonianet_forward.37} parent=0 // pred_check_branch
    %14 = sbr.rel (0) target = $region13
  $region12: #{pneumonianet_forward.37} parent=0 // pred_region
    _
  $region13: #{pneumonianet_forward.37} parent=0 // pred_fallthru
    _
  // Predicated region
  $region14: #{pneumonianet_forward.37} parent=0 // pred_check
    _
  $region15: #{pneumonianet_forward.37} parent=0 // pred_check_branch
    %16 = sbr.rel (0) target = $region17
  $region16: #{pneumonianet_forward.37} parent=0 // pred_region
    _
  $region17: #{pneumonianet_forward.37} parent=0 // pred_fallthru
    _
  %v17 = vld [vmem:[%s0] sm:$0xff]
  %v18 = vld [vmem:[%s0 + $0x8] sm:$0xff]
  %v19 = vld [vmem:[%s0 + $0x10] sm:$0xff]
  %v20 = vld [vmem:[%s0 + $0x18] sm:$0xff]
  %v21 = vld [vmem:[%s0 + $0x20] sm:$0xff]
  %v22 = vld [vmem:[%s0 + $0x28] sm:$0xff]
  %v23 = vld [vmem:[%s0 + $0x30] sm:$0xff]
  %v24 = vld [vmem:[%s0 + $0x38] sm:$0xff]
  %v25 = vld [vmem:[%s0 + $0x40] sm:$0xff]
  %v26 = vld [vmem:[%s0 + $0x48] sm:$0xff]
  %v27 = vld [vmem:[%s0 + $0x50] sm:$0xff]
  %v28 = vld [vmem:[%s0 + $0x58] sm:$0xff]
  %v29 = vld [vmem:[%s0 + $0x60] sm:$0xff]
  %v30 = vld [vmem:[%s0 + $0x68] sm:$0xff]
  %v31 = vld [vmem:[%s0 + $0x70] sm:$0xff]
  %v32 = vld [vmem:[%s0 + $0x78] sm:$0xff]
  %v33 = vld [vmem:[%s0 + $0x80] sm:$0xff]
  %v34 = vld [vmem:[%s0 + $0x88] sm:$0xff]
  %v35 = vld [vmem:[%s0 + $0x90] sm:$0xff]
  %v36 = vld [vmem:[%s0 + $0x98] sm:$0xff]
  %v37 = vld [vmem:[%s0 + $0xa0] sm:$0xff]
  %v38 = vld [vmem:[%s0 + $0xa8] sm:$0xff]
  %v39 = vld [vmem:[%s0 + $0xb0] sm:$0xff]
  %v40 = vld [vmem:[%s0 + $0xb8] sm:$0xff]
  %v41 = vld [vmem:[%s0 + $0xc0] sm:$0xff]
  %v42 = vld [vmem:[%s0 + $0xc8] sm:$0xff]
  %v43 = vld [vmem:[%s0 + $0xd0] sm:$0xff]
  %v44 = vld [vmem:[%s0 + $0xd8] sm:$0xff]
  %v45 = vld [vmem:[%s0 + $0xe0] sm:$0xff]
  %v46 = vld [vmem:[%s0 + $0xe8] sm:$0xff]
  %v47 = vld [vmem:[%s0 + $0xf0] sm:$0xff]
  %v48 = vld [vmem:[%s0 + $0xf8] sm:$0xff]
  %v49 = vld [vmem:[%s0 + $0x100] sm:$0xff]
  %v50 = vld [vmem:[%s0 + $0x108] sm:$0xff]
  %v51 = vld [vmem:[%s0 + $0x110] sm:$0xff]
  %v52 = vld [vmem:[%s0 + $0x118] sm:$0xff]
  %v53 = vld [vmem:[%s0 + $0x120] sm:$0xff]
  %v54 = vld [vmem:[%s0 + $0x128] sm:$0xff]
  %v55 = vld [vmem:[%s0 + $0x130] sm:$0xff]
  %v56 = vld [vmem:[%s0 + $0x138] sm:$0xff]
  %v57 = vld [vmem:[%s0 + $0x140] sm:$0xff]
  %v58 = vld [vmem:[%s0 + $0x148] sm:$0xff]
  %v59 = vld [vmem:[%s0 + $0x150] sm:$0xff]
  %v60 = vld [vmem:[%s0 + $0x158] sm:$0xff]
  %v61 = vld [vmem:[%s0 + $0x160] sm:$0xff]
  %v62 = vld [vmem:[%s0 + $0x168] sm:$0xff]
  %v63 = vld [vmem:[%s0 + $0x170] sm:$0xff]
  %v64 = vld [vmem:[%s0 + $0x178] sm:$0xff]
  %v65 = vld [vmem:[%s0 + $0x180] sm:$0xff]
  %v66 = vld [vmem:[%s0 + $0x188] sm:$0xff]
  %v67 = vld [vmem:[%s0 + $0x190] sm:$0xff]
  %v68 = vld [vmem:[%s0 + $0x198] sm:$0xff]
  %v69 = vld [vmem:[%s0 + $0x1a0] sm:$0xff]
  %v70 = vld [vmem:[%s0 + $0x1a8] sm:$0xff]
  %v71 = vld [vmem:[%s0 + $0x1b0] sm:$0xff]
  %v72 = vld [vmem:[%s0 + $0x1b8] sm:$0xff]
  %v73 = vld [vmem:[%s0 + $0x1c0] sm:$0xff]
  %v74 = vld [vmem:[%s0 + $0x1c8] sm:$0xff]
  %v75 = vld [vmem:[%s0 + $0x1d0] sm:$0xff]
  %v76 = vld [vmem:[%s0 + $0x1d8] sm:$0xff]
  %v77 = vld [vmem:[%s0 + $0x1e0] sm:$0xff]
  %v78 = vld [vmem:[%s0 + $0x1e8] sm:$0xff]
  %v79 = vld [vmem:[%s0 + $0x1f0] sm:$0xff]
  %v80 = vld [vmem:[%s0 + $0x1f8] sm:$0xff]
  %v81 = vld [vmem:[%s1] sm:$0xf]
  %v82 = vld [vmem:[%s1 + $0x4] sm:$0xf]
  %v83 = vld [vmem:[%s1 + $0x8] sm:$0xf]
  %v84 = vld [vmem:[%s1 + $0xc] sm:$0xf]
  %v85 = vld [vmem:[%s1 + $0x10] sm:$0xf]
  %v86 = vld [vmem:[%s1 + $0x14] sm:$0xf]
  %v87 = vld [vmem:[%s1 + $0x18] sm:$0xf]
  %v88 = vld [vmem:[%s1 + $0x1c] sm:$0xf]
  %v89 = vld [vmem:[%s1 + $0x20] sm:$0xf]
  %v90 = vld [vmem:[%s1 + $0x24] sm:$0xf]
  %v91 = vld [vmem:[%s1 + $0x28] sm:$0xf]
  %v92 = vld [vmem:[%s1 + $0x2c] sm:$0xf]
  %v93 = vld [vmem:[%s1 + $0x30] sm:$0xf]
  %v94 = vld [vmem:[%s1 + $0x34] sm:$0xf]
  %v95 = vld [vmem:[%s1 + $0x38] sm:$0xf]
  %v96 = vld [vmem:[%s1 + $0x3c] sm:$0xf]
  %v97 = vld [vmem:[%s1 + $0x40] sm:$0xf]
  %v98 = vld [vmem:[%s1 + $0x44] sm:$0xf]
  %v99 = vld [vmem:[%s1 + $0x48] sm:$0xf]
  %v100 = vld [vmem:[%s1 + $0x4c] sm:$0xf]
  %v101 = vld [vmem:[%s1 + $0x50] sm:$0xf]
  %v102 = vld [vmem:[%s1 + $0x54] sm:$0xf]
  %v103 = vld [vmem:[%s1 + $0x58] sm:$0xf]
  %v104 = vld [vmem:[%s1 + $0x5c] sm:$0xf]
  %v105 = vld [vmem:[%s1 + $0x60] sm:$0xf]
  %v106 = vld [vmem:[%s1 + $0x64] sm:$0xf]
  %v107 = vld [vmem:[%s1 + $0x68] sm:$0xf]
  %v108 = vld [vmem:[%s1 + $0x6c] sm:$0xf]
  %v109 = vld [vmem:[%s1 + $0x70] sm:$0xf]
  %v110 = vld [vmem:[%s1 + $0x74] sm:$0xf]
  %v111 = vld [vmem:[%s1 + $0x78] sm:$0xf]
  %v112 = vld [vmem:[%s1 + $0x7c] sm:$0xf]
  %v177 = vunpack.c.l.b16 %v17
  %v178 = vunpack.c.h.b16 %v17
  %v179 = vunpack.c.l.b16 %v18
  %v180 = vunpack.c.h.b16 %v18
  %v181 = vunpack.c.l.b16 %v19
  %v182 = vunpack.c.h.b16 %v19
  %v183 = vunpack.c.l.b16 %v20
  %v184 = vunpack.c.h.b16 %v20
  %v185 = vunpack.c.l.b16 %v21
  %v186 = vunpack.c.h.b16 %v21
  %v187 = vunpack.c.l.b16 %v22
  %v188 = vunpack.c.h.b16 %v22
  %v189 = vunpack.c.l.b16 %v23
  %v190 = vunpack.c.h.b16 %v23
  %v191 = vunpack.c.l.b16 %v24
  %v192 = vunpack.c.h.b16 %v24
  %v193 = vunpack.c.l.b16 %v25
  %v194 = vunpack.c.h.b16 %v25
  %v195 = vunpack.c.l.b16 %v26
  %v196 = vunpack.c.h.b16 %v26
  %v197 = vunpack.c.l.b16 %v27
  %v198 = vunpack.c.h.b16 %v27
  %v199 = vunpack.c.l.b16 %v28
  %v200 = vunpack.c.h.b16 %v28
  %v201 = vunpack.c.l.b16 %v29
  %v202 = vunpack.c.h.b16 %v29
  %v203 = vunpack.c.l.b16 %v30
  %v204 = vunpack.c.h.b16 %v30
  %v205 = vunpack.c.l.b16 %v31
  %v206 = vunpack.c.h.b16 %v31
  %v207 = vunpack.c.l.b16 %v32
  %v208 = vunpack.c.h.b16 %v32
  %v209 = vunpack.c.l.b16 %v33
  %v210 = vunpack.c.h.b16 %v33
  %v211 = vunpack.c.l.b16 %v34
  %v212 = vunpack.c.h.b16 %v34
  %v213 = vunpack.c.l.b16 %v35
  %v214 = vunpack.c.h.b16 %v35
  %v215 = vunpack.c.l.b16 %v36
  %v216 = vunpack.c.h.b16 %v36
  %v217 = vunpack.c.l.b16 %v37
  %v218 = vunpack.c.h.b16 %v37
  %v219 = vunpack.c.l.b16 %v38
  %v220 = vunpack.c.h.b16 %v38
  %v221 = vunpack.c.l.b16 %v39
  %v222 = vunpack.c.h.b16 %v39
  %v223 = vunpack.c.l.b16 %v40
  %v224 = vunpack.c.h.b16 %v40
  %v225 = vunpack.c.l.b16 %v41
  %v226 = vunpack.c.h.b16 %v41
  %v227 = vunpack.c.l.b16 %v42
  %v228 = vunpack.c.h.b16 %v42
  %v229 = vunpack.c.l.b16 %v43
  %v230 = vunpack.c.h.b16 %v43
  %v231 = vunpack.c.l.b16 %v44
  %v232 = vunpack.c.h.b16 %v44
  %v233 = vunpack.c.l.b16 %v45
  %v234 = vunpack.c.h.b16 %v45
  %v235 = vunpack.c.l.b16 %v46
  %v236 = vunpack.c.h.b16 %v46
  %v237 = vunpack.c.l.b16 %v47
  %v238 = vunpack.c.h.b16 %v47
  %v239 = vunpack.c.l.b16 %v48
  %v240 = vunpack.c.h.b16 %v48
  %v241 = vunpack.c.l.b16 %v49
  %v242 = vunpack.c.h.b16 %v49
  %v243 = vunpack.c.l.b16 %v50
  %v244 = vunpack.c.h.b16 %v50
  %v245 = vunpack.c.l.b16 %v51
  %v246 = vunpack.c.h.b16 %v51
  %v247 = vunpack.c.l.b16 %v52
  %v248 = vunpack.c.h.b16 %v52
  %v249 = vunpack.c.l.b16 %v53
  %v250 = vunpack.c.h.b16 %v53
  %v251 = vunpack.c.l.b16 %v54
  %v252 = vunpack.c.h.b16 %v54
  %v253 = vunpack.c.l.b16 %v55
  %v254 = vunpack.c.h.b16 %v55
  %v255 = vunpack.c.l.b16 %v56
  %v256 = vunpack.c.h.b16 %v56
  %v257 = vunpack.c.l.b16 %v57
  %v258 = vunpack.c.h.b16 %v57
  %v259 = vunpack.c.l.b16 %v58
  %v260 = vunpack.c.h.b16 %v58
  %v261 = vunpack.c.l.b16 %v59
  %v262 = vunpack.c.h.b16 %v59
  %v263 = vunpack.c.l.b16 %v60
  %v264 = vunpack.c.h.b16 %v60
  %v265 = vunpack.c.l.b16 %v61
  %v266 = vunpack.c.h.b16 %v61
  %v267 = vunpack.c.l.b16 %v62
  %v268 = vunpack.c.h.b16 %v62
  %v269 = vunpack.c.l.b16 %v63
  %v270 = vunpack.c.h.b16 %v63
  %v271 = vunpack.c.l.b16 %v64
  %v272 = vunpack.c.h.b16 %v64
  %v273 = vunpack.c.l.b16 %v65
  %v274 = vunpack.c.h.b16 %v65
  %v275 = vunpack.c.l.b16 %v66
  %v276 = vunpack.c.h.b16 %v66
  %v277 = vunpack.c.l.b16 %v67
  %v278 = vunpack.c.h.b16 %v67
  %v279 = vunpack.c.l.b16 %v68
  %v280 = vunpack.c.h.b16 %v68
  %v281 = vunpack.c.l.b16 %v69
  %v282 = vunpack.c.h.b16 %v69
  %v283 = vunpack.c.l.b16 %v70
  %v284 = vunpack.c.h.b16 %v70
  %v285 = vunpack.c.l.b16 %v71
  %v286 = vunpack.c.h.b16 %v71
  %v287 = vunpack.c.l.b16 %v72
  %v288 = vunpack.c.h.b16 %v72
  %v289 = vunpack.c.l.b16 %v73
  %v290 = vunpack.c.h.b16 %v73
  %v291 = vunpack.c.l.b16 %v74
  %v292 = vunpack.c.h.b16 %v74
  %v293 = vunpack.c.l.b16 %v75
  %v294 = vunpack.c.h.b16 %v75
  %v295 = vunpack.c.l.b16 %v76
  %v296 = vunpack.c.h.b16 %v76
  %v297 = vunpack.c.l.b16 %v77
  %v298 = vunpack.c.h.b16 %v77
  %v299 = vunpack.c.l.b16 %v78
  %v300 = vunpack.c.h.b16 %v78
  %v301 = vunpack.c.l.b16 %v79
  %v302 = vunpack.c.h.b16 %v79
  %v303 = vunpack.c.l.b16 %v80
  %v304 = vunpack.c.h.b16 %v80
  %v305 = vpack.c.b16 %v179, %v177
  %v306 = vpack.c.b16 %v180, %v178
  %v307 = vpack.c.b16 %v183, %v181
  %v308 = vpack.c.b16 %v184, %v182
  %v309 = vpack.c.b16 %v187, %v185
  %v310 = vpack.c.b16 %v188, %v186
  %v311 = vpack.c.b16 %v191, %v189
  %v312 = vpack.c.b16 %v192, %v190
  %v313 = vpack.c.b16 %v195, %v193
  %v314 = vpack.c.b16 %v196, %v194
  %v315 = vpack.c.b16 %v199, %v197
  %v316 = vpack.c.b16 %v200, %v198
  %v317 = vpack.c.b16 %v203, %v201
  %v318 = vpack.c.b16 %v204, %v202
  %v319 = vpack.c.b16 %v207, %v205
  %v320 = vpack.c.b16 %v208, %v206
  %v321 = vpack.c.b16 %v211, %v209
  %v322 = vpack.c.b16 %v212, %v210
  %v323 = vpack.c.b16 %v215, %v213
  %v324 = vpack.c.b16 %v216, %v214
  %v325 = vpack.c.b16 %v219, %v217
  %v326 = vpack.c.b16 %v220, %v218
  %v327 = vpack.c.b16 %v223, %v221
  %v328 = vpack.c.b16 %v224, %v222
  %v329 = vpack.c.b16 %v227, %v225
  %v330 = vpack.c.b16 %v228, %v226
  %v331 = vpack.c.b16 %v231, %v229
  %v332 = vpack.c.b16 %v232, %v230
  %v333 = vpack.c.b16 %v235, %v233
  %v334 = vpack.c.b16 %v236, %v234
  %v335 = vpack.c.b16 %v239, %v237
  %v336 = vpack.c.b16 %v240, %v238
  %v337 = vpack.c.b16 %v243, %v241
  %v338 = vpack.c.b16 %v244, %v242
  %v339 = vpack.c.b16 %v247, %v245
  %v340 = vpack.c.b16 %v248, %v246
  %v341 = vpack.c.b16 %v251, %v249
  %v342 = vpack.c.b16 %v252, %v250
  %v343 = vpack.c.b16 %v255, %v253
  %v344 = vpack.c.b16 %v256, %v254
  %v345 = vpack.c.b16 %v259, %v257
  %v346 = vpack.c.b16 %v260, %v258
  %v347 = vpack.c.b16 %v263, %v261
  %v348 = vpack.c.b16 %v264, %v262
  %v349 = vpack.c.b16 %v267, %v265
  %v350 = vpack.c.b16 %v268, %v266
  %v351 = vpack.c.b16 %v271, %v269
  %v352 = vpack.c.b16 %v272, %v270
  %v353 = vpack.c.b16 %v275, %v273
  %v354 = vpack.c.b16 %v276, %v274
  %v355 = vpack.c.b16 %v279, %v277
  %v356 = vpack.c.b16 %v280, %v278
  %v357 = vpack.c.b16 %v283, %v281
  %v358 = vpack.c.b16 %v284, %v282
  %v359 = vpack.c.b16 %v287, %v285
  %v360 = vpack.c.b16 %v288, %v286
  %v361 = vpack.c.b16 %v291, %v289
  %v362 = vpack.c.b16 %v292, %v290
  %v363 = vpack.c.b16 %v295, %v293
  %v364 = vpack.c.b16 %v296, %v294
  %v365 = vpack.c.b16 %v299, %v297
  %v366 = vpack.c.b16 %v300, %v298
  %v367 = vpack.c.b16 %v303, %v301
  %v368 = vpack.c.b16 %v304, %v302
  %v465 = vunpack.c.l.b16 %v81
  %v466 = vunpack.c.l.b16 %v82
  %v467 = vunpack.c.l.b16 %v83
  %v468 = vunpack.c.l.b16 %v84
  %v469 = vunpack.c.l.b16 %v85
  %v470 = vunpack.c.l.b16 %v86
  %v471 = vunpack.c.l.b16 %v87
  %v472 = vunpack.c.l.b16 %v88
  %v473 = vunpack.c.l.b16 %v89
  %v474 = vunpack.c.l.b16 %v90
  %v475 = vunpack.c.l.b16 %v91
  %v476 = vunpack.c.l.b16 %v92
  %v477 = vunpack.c.l.b16 %v93
  %v478 = vunpack.c.l.b16 %v94
  %v479 = vunpack.c.l.b16 %v95
  %v480 = vunpack.c.l.b16 %v96
  %v481 = vunpack.c.l.b16 %v97
  %v482 = vunpack.c.l.b16 %v98
  %v483 = vunpack.c.l.b16 %v99
  %v484 = vunpack.c.l.b16 %v100
  %v485 = vunpack.c.l.b16 %v101
  %v486 = vunpack.c.l.b16 %v102
  %v487 = vunpack.c.l.b16 %v103
  %v488 = vunpack.c.l.b16 %v104
  %v489 = vunpack.c.l.b16 %v105
  %v490 = vunpack.c.l.b16 %v106
  %v491 = vunpack.c.l.b16 %v107
  %v492 = vunpack.c.l.b16 %v108
  %v493 = vunpack.c.l.b16 %v109
  %v494 = vunpack.c.l.b16 %v110
  %v495 = vunpack.c.l.b16 %v111
  %v496 = vunpack.c.l.b16 %v112
  %v497 = vpack.c.b16 %v466, %v465
  %v498 = vpack.c.b16 %v468, %v467
  %v499 = vpack.c.b16 %v470, %v469
  %v500 = vpack.c.b16 %v472, %v471
  %v501 = vpack.c.b16 %v474, %v473
  %v502 = vpack.c.b16 %v476, %v475
  %v503 = vpack.c.b16 %v478, %v477
  %v504 = vpack.c.b16 %v480, %v479
  %v505 = vpack.c.b16 %v482, %v481
  %v506 = vpack.c.b16 %v484, %v483
  %v507 = vpack.c.b16 %v486, %v485
  %v508 = vpack.c.b16 %v488, %v487
  %v509 = vpack.c.b16 %v490, %v489
  %v510 = vpack.c.b16 %v492, %v491
  %v511 = vpack.c.b16 %v494, %v493
  %v512 = vpack.c.b16 %v496, %v495
  %529 = vmatpush.bf16.msra.mxu0 %v504
  %530 = vmatpush.bf16.msra.mxu0 %v503
  %531 = vmatpush.bf16.msra.mxu0 %v502
  %532 = vmatpush.bf16.msra.mxu0 %v501
  %533 = vmatpush.bf16.msra.mxu0 %v500
  %534 = vmatpush.bf16.msra.mxu0 %v499
  %535 = vmatpush.bf16.msra.mxu0 %v498
  %536 = vmatpush.bf16.msra.mxu0 %v497
  %537 = vmatmul.bf16.gmra.mxu0 %v305
  %v538 = vpop.f32.mrf.mxu0
  %v539 = vadd.f32 0.0, %v538
  %v540 = vpop.f32.mrf.mxu0
  %v541 = vadd.f32 0.0, %v540
  %542 = vmatmul.bf16.gmra.mxu0 %v307
  %v543 = vpop.f32.mrf.mxu0
  %v544 = vadd.f32 0.0, %v543
  %v545 = vpop.f32.mrf.mxu0
  %v546 = vadd.f32 0.0, %v545
  %547 = vmatmul.bf16.gmra.mxu0 %v309
  %v548 = vpop.f32.mrf.mxu0
  %v549 = vadd.f32 0.0, %v548
  %v550 = vpop.f32.mrf.mxu0
  %v551 = vadd.f32 0.0, %v550
  %552 = vmatmul.bf16.gmra.mxu0 %v311
  %v553 = vpop.f32.mrf.mxu0
  %v554 = vadd.f32 0.0, %v553
  %v555 = vpop.f32.mrf.mxu0
  %v556 = vadd.f32 0.0, %v555
  %557 = vmatmul.bf16.gmra.mxu0 %v313
  %v558 = vpop.f32.mrf.mxu0
  %v559 = vadd.f32 0.0, %v558
  %v560 = vpop.f32.mrf.mxu0
  %v561 = vadd.f32 0.0, %v560
  %562 = vmatmul.bf16.gmra.mxu0 %v315
  %v563 = vpop.f32.mrf.mxu0
  %v564 = vadd.f32 0.0, %v563
  %v565 = vpop.f32.mrf.mxu0
  %v566 = vadd.f32 0.0, %v565
  %567 = vmatmul.bf16.gmra.mxu0 %v317
  %v568 = vpop.f32.mrf.mxu0
  %v569 = vadd.f32 0.0, %v568
  %v570 = vpop.f32.mrf.mxu0
  %v571 = vadd.f32 0.0, %v570
  %572 = vmatmul.bf16.gmra.mxu0 %v319
  %v573 = vpop.f32.mrf.mxu0
  %v574 = vadd.f32 0.0, %v573
  %v575 = vpop.f32.mrf.mxu0
  %v576 = vadd.f32 0.0, %v575
  %577 = vmatmul.bf16.gmra.mxu0 %v321
  %v578 = vpop.f32.mrf.mxu0
  %v579 = vadd.f32 0.0, %v578
  %v580 = vpop.f32.mrf.mxu0
  %v581 = vadd.f32 0.0, %v580
  %582 = vmatmul.bf16.gmra.mxu0 %v323
  %v583 = vpop.f32.mrf.mxu0
  %v584 = vadd.f32 0.0, %v583
  %v585 = vpop.f32.mrf.mxu0
  %v586 = vadd.f32 0.0, %v585
  %587 = vmatmul.bf16.gmra.mxu0 %v325
  %v588 = vpop.f32.mrf.mxu0
  %v589 = vadd.f32 0.0, %v588
  %v590 = vpop.f32.mrf.mxu0
  %v591 = vadd.f32 0.0, %v590
  %592 = vmatmul.bf16.gmra.mxu0 %v327
  %v593 = vpop.f32.mrf.mxu0
  %v594 = vadd.f32 0.0, %v593
  %v595 = vpop.f32.mrf.mxu0
  %v596 = vadd.f32 0.0, %v595
  %597 = vmatmul.bf16.gmra.mxu0 %v329
  %v598 = vpop.f32.mrf.mxu0
  %v599 = vadd.f32 0.0, %v598
  %v600 = vpop.f32.mrf.mxu0
  %v601 = vadd.f32 0.0, %v600
  %602 = vmatmul.bf16.gmra.mxu0 %v331
  %v603 = vpop.f32.mrf.mxu0
  %v604 = vadd.f32 0.0, %v603
  %v605 = vpop.f32.mrf.mxu0
  %v606 = vadd.f32 0.0, %v605
  %607 = vmatmul.bf16.gmra.mxu0 %v333
  %v608 = vpop.f32.mrf.mxu0
  %v609 = vadd.f32 0.0, %v608
  %v610 = vpop.f32.mrf.mxu0
  %v611 = vadd.f32 0.0, %v610
  %612 = vmatmul.bf16.gmra.mxu0 %v335
  %v613 = vpop.f32.mrf.mxu0
  %v614 = vadd.f32 0.0, %v613
  %v615 = vpop.f32.mrf.mxu0
  %v616 = vadd.f32 0.0, %v615
  %617 = vmatmul.bf16.gmra.mxu0 %v337
  %v618 = vpop.f32.mrf.mxu0
  %v619 = vadd.f32 0.0, %v618
  %v620 = vpop.f32.mrf.mxu0
  %v621 = vadd.f32 0.0, %v620
  %622 = vmatmul.bf16.gmra.mxu0 %v339
  %v623 = vpop.f32.mrf.mxu0
  %v624 = vadd.f32 0.0, %v623
  %v625 = vpop.f32.mrf.mxu0
  %v626 = vadd.f32 0.0, %v625
  %627 = vmatmul.bf16.gmra.mxu0 %v341
  %v628 = vpop.f32.mrf.mxu0
  %v629 = vadd.f32 0.0, %v628
  %v630 = vpop.f32.mrf.mxu0
  %v631 = vadd.f32 0.0, %v630
  %632 = vmatmul.bf16.gmra.mxu0 %v343
  %v633 = vpop.f32.mrf.mxu0
  %v634 = vadd.f32 0.0, %v633
  %v635 = vpop.f32.mrf.mxu0
  %v636 = vadd.f32 0.0, %v635
  %637 = vmatmul.bf16.gmra.mxu0 %v345
  %v638 = vpop.f32.mrf.mxu0
  %v639 = vadd.f32 0.0, %v638
  %v640 = vpop.f32.mrf.mxu0
  %v641 = vadd.f32 0.0, %v640
  %642 = vmatmul.bf16.gmra.mxu0 %v347
  %v643 = vpop.f32.mrf.mxu0
  %v644 = vadd.f32 0.0, %v643
  %v645 = vpop.f32.mrf.mxu0
  %v646 = vadd.f32 0.0, %v645
  %647 = vmatmul.bf16.gmra.mxu0 %v349
  %v648 = vpop.f32.mrf.mxu0
  %v649 = vadd.f32 0.0, %v648
  %v650 = vpop.f32.mrf.mxu0
  %v651 = vadd.f32 0.0, %v650
  %652 = vmatmul.bf16.gmra.mxu0 %v351
  %v653 = vpop.f32.mrf.mxu0
  %v654 = vadd.f32 0.0, %v653
  %v655 = vpop.f32.mrf.mxu0
  %v656 = vadd.f32 0.0, %v655
  %657 = vmatmul.bf16.gmra.mxu0 %v353
  %v658 = vpop.f32.mrf.mxu0
  %v659 = vadd.f32 0.0, %v658
  %v660 = vpop.f32.mrf.mxu0
  %v661 = vadd.f32 0.0, %v660
  %662 = vmatmul.bf16.gmra.mxu0 %v355
  %v663 = vpop.f32.mrf.mxu0
  %v664 = vadd.f32 0.0, %v663
  %v665 = vpop.f32.mrf.mxu0
  %v666 = vadd.f32 0.0, %v665
  %667 = vmatmul.bf16.gmra.mxu0 %v357
  %v668 = vpop.f32.mrf.mxu0
  %v669 = vadd.f32 0.0, %v668
  %v670 = vpop.f32.mrf.mxu0
  %v671 = vadd.f32 0.0, %v670
  %672 = vmatmul.bf16.gmra.mxu0 %v359
  %v673 = vpop.f32.mrf.mxu0
  %v674 = vadd.f32 0.0, %v673
  %v675 = vpop.f32.mrf.mxu0
  %v676 = vadd.f32 0.0, %v675
  %677 = vmatmul.bf16.gmra.mxu0 %v361
  %v678 = vpop.f32.mrf.mxu0
  %v679 = vadd.f32 0.0, %v678
  %v680 = vpop.f32.mrf.mxu0
  %v681 = vadd.f32 0.0, %v680
  %682 = vmatmul.bf16.gmra.mxu0 %v363
  %v683 = vpop.f32.mrf.mxu0
  %v684 = vadd.f32 0.0, %v683
  %v685 = vpop.f32.mrf.mxu0
  %v686 = vadd.f32 0.0, %v685
  %687 = vmatmul.bf16.gmra.mxu0 %v365
  %v688 = vpop.f32.mrf.mxu0
  %v689 = vadd.f32 0.0, %v688
  %v690 = vpop.f32.mrf.mxu0
  %v691 = vadd.f32 0.0, %v690
  %692 = vmatmul.bf16.gmra.mxu0 %v367
  %v693 = vpop.f32.mrf.mxu0
  %v694 = vadd.f32 0.0, %v693
  %v695 = vpop.f32.mrf.mxu0
  %v696 = vadd.f32 0.0, %v695
  %697 = vdwg.mxu0
  %698 = vmatpush.bf16.msra.mxu0 %v512
  %699 = vmatpush.bf16.msra.mxu0 %v511
  %700 = vmatpush.bf16.msra.mxu0 %v510
  %701 = vmatpush.bf16.msra.mxu0 %v509
  %702 = vmatpush.bf16.msra.mxu0 %v508
  %703 = vmatpush.bf16.msra.mxu0 %v507
  %704 = vmatpush.bf16.msra.mxu0 %v506
  %705 = vmatpush.bf16.msra.mxu0 %v505
  %706 = vmatmul.bf16.gmra.mxu0 %v306
  %v707 = vpop.f32.mrf.mxu0
  %v708 = vadd.f32 %v539, %v707
  %v709 = vpop.f32.mrf.mxu0
  %v710 = vadd.f32 %v541, %v709
  %711 = vmatmul.bf16.gmra.mxu0 %v308
  %v712 = vpop.f32.mrf.mxu0
  %v713 = vadd.f32 %v544, %v712
  %v714 = vpop.f32.mrf.mxu0
  %v715 = vadd.f32 %v546, %v714
  %716 = vmatmul.bf16.gmra.mxu0 %v310
  %v717 = vpop.f32.mrf.mxu0
  %v718 = vadd.f32 %v549, %v717
  %v719 = vpop.f32.mrf.mxu0
  %v720 = vadd.f32 %v551, %v719
  %721 = vmatmul.bf16.gmra.mxu0 %v312
  %v722 = vpop.f32.mrf.mxu0
  %v723 = vadd.f32 %v554, %v722
  %v724 = vpop.f32.mrf.mxu0
  %v725 = vadd.f32 %v556, %v724
  %726 = vmatmul.bf16.gmra.mxu0 %v314
  %v727 = vpop.f32.mrf.mxu0
  %v728 = vadd.f32 %v559, %v727
  %v729 = vpop.f32.mrf.mxu0
  %v730 = vadd.f32 %v561, %v729
  %731 = vmatmul.bf16.gmra.mxu0 %v316
  %v732 = vpop.f32.mrf.mxu0
  %v733 = vadd.f32 %v564, %v732
  %v734 = vpop.f32.mrf.mxu0
  %v735 = vadd.f32 %v566, %v734
  %736 = vmatmul.bf16.gmra.mxu0 %v318
  %v737 = vpop.f32.mrf.mxu0
  %v738 = vadd.f32 %v569, %v737
  %v739 = vpop.f32.mrf.mxu0
  %v740 = vadd.f32 %v571, %v739
  %741 = vmatmul.bf16.gmra.mxu0 %v320
  %v742 = vpop.f32.mrf.mxu0
  %v743 = vadd.f32 %v574, %v742
  %v744 = vpop.f32.mrf.mxu0
  %v745 = vadd.f32 %v576, %v744
  %746 = vmatmul.bf16.gmra.mxu0 %v322
  %v747 = vpop.f32.mrf.mxu0
  %v748 = vadd.f32 %v579, %v747
  %v749 = vpop.f32.mrf.mxu0
  %v750 = vadd.f32 %v581, %v749
  %751 = vmatmul.bf16.gmra.mxu0 %v324
  %v752 = vpop.f32.mrf.mxu0
  %v753 = vadd.f32 %v584, %v752
  %v754 = vpop.f32.mrf.mxu0
  %v755 = vadd.f32 %v586, %v754
  %756 = vmatmul.bf16.gmra.mxu0 %v326
  %v757 = vpop.f32.mrf.mxu0
  %v758 = vadd.f32 %v589, %v757
  %v759 = vpop.f32.mrf.mxu0
  %v760 = vadd.f32 %v591, %v759
  %761 = vmatmul.bf16.gmra.mxu0 %v328
  %v762 = vpop.f32.mrf.mxu0
  %v763 = vadd.f32 %v594, %v762
  %v764 = vpop.f32.mrf.mxu0
  %v765 = vadd.f32 %v596, %v764
  %766 = vmatmul.bf16.gmra.mxu0 %v330
  %v767 = vpop.f32.mrf.mxu0
  %v768 = vadd.f32 %v599, %v767
  %v769 = vpop.f32.mrf.mxu0
  %v770 = vadd.f32 %v601, %v769
  %771 = vmatmul.bf16.gmra.mxu0 %v332
  %v772 = vpop.f32.mrf.mxu0
  %v773 = vadd.f32 %v604, %v772
  %v774 = vpop.f32.mrf.mxu0
  %v775 = vadd.f32 %v606, %v774
  %776 = vmatmul.bf16.gmra.mxu0 %v334
  %v777 = vpop.f32.mrf.mxu0
  %v778 = vadd.f32 %v609, %v777
  %v779 = vpop.f32.mrf.mxu0
  %v780 = vadd.f32 %v611, %v779
  %781 = vmatmul.bf16.gmra.mxu0 %v336
  %v782 = vpop.f32.mrf.mxu0
  %v783 = vadd.f32 %v614, %v782
  %v784 = vpop.f32.mrf.mxu0
  %v785 = vadd.f32 %v616, %v784
  %786 = vmatmul.bf16.gmra.mxu0 %v338
  %v787 = vpop.f32.mrf.mxu0
  %v788 = vadd.f32 %v619, %v787
  %v789 = vpop.f32.mrf.mxu0
  %v790 = vadd.f32 %v621, %v789
  %791 = vmatmul.bf16.gmra.mxu0 %v340
  %v792 = vpop.f32.mrf.mxu0
  %v793 = vadd.f32 %v624, %v792
  %v794 = vpop.f32.mrf.mxu0
  %v795 = vadd.f32 %v626, %v794
  %796 = vmatmul.bf16.gmra.mxu0 %v342
  %v797 = vpop.f32.mrf.mxu0
  %v798 = vadd.f32 %v629, %v797
  %v799 = vpop.f32.mrf.mxu0
  %v800 = vadd.f32 %v631, %v799
  %801 = vmatmul.bf16.gmra.mxu0 %v344
  %v802 = vpop.f32.mrf.mxu0
  %v803 = vadd.f32 %v634, %v802
  %v804 = vpop.f32.mrf.mxu0
  %v805 = vadd.f32 %v636, %v804
  %806 = vmatmul.bf16.gmra.mxu0 %v346
  %v807 = vpop.f32.mrf.mxu0
  %v808 = vadd.f32 %v639, %v807
  %v809 = vpop.f32.mrf.mxu0
  %v810 = vadd.f32 %v641, %v809
  %811 = vmatmul.bf16.gmra.mxu0 %v348
  %v812 = vpop.f32.mrf.mxu0
  %v813 = vadd.f32 %v644, %v812
  %v814 = vpop.f32.mrf.mxu0
  %v815 = vadd.f32 %v646, %v814
  %816 = vmatmul.bf16.gmra.mxu0 %v350
  %v817 = vpop.f32.mrf.mxu0
  %v818 = vadd.f32 %v649, %v817
  %v819 = vpop.f32.mrf.mxu0
  %v820 = vadd.f32 %v651, %v819
  %821 = vmatmul.bf16.gmra.mxu0 %v352
  %v822 = vpop.f32.mrf.mxu0
  %v823 = vadd.f32 %v654, %v822
  %v824 = vpop.f32.mrf.mxu0
  %v825 = vadd.f32 %v656, %v824
  %826 = vmatmul.bf16.gmra.mxu0 %v354
  %v827 = vpop.f32.mrf.mxu0
  %v828 = vadd.f32 %v659, %v827
  %v829 = vpop.f32.mrf.mxu0
  %v830 = vadd.f32 %v661, %v829
  %831 = vmatmul.bf16.gmra.mxu0 %v356
  %v832 = vpop.f32.mrf.mxu0
  %v833 = vadd.f32 %v664, %v832
  %v834 = vpop.f32.mrf.mxu0
  %v835 = vadd.f32 %v666, %v834
  %836 = vmatmul.bf16.gmra.mxu0 %v358
  %v837 = vpop.f32.mrf.mxu0
  %v838 = vadd.f32 %v669, %v837
  %v839 = vpop.f32.mrf.mxu0
  %v840 = vadd.f32 %v671, %v839
  %841 = vmatmul.bf16.gmra.mxu0 %v360
  %v842 = vpop.f32.mrf.mxu0
  %v843 = vadd.f32 %v674, %v842
  %v844 = vpop.f32.mrf.mxu0
  %v845 = vadd.f32 %v676, %v844
  %846 = vmatmul.bf16.gmra.mxu0 %v362
  %v847 = vpop.f32.mrf.mxu0
  %v848 = vadd.f32 %v679, %v847
  %v849 = vpop.f32.mrf.mxu0
  %v850 = vadd.f32 %v681, %v849
  %851 = vmatmul.bf16.gmra.mxu0 %v364
  %v852 = vpop.f32.mrf.mxu0
  %v853 = vadd.f32 %v684, %v852
  %v854 = vpop.f32.mrf.mxu0
  %v855 = vadd.f32 %v686, %v854
  %856 = vmatmul.bf16.gmra.mxu0 %v366
  %v857 = vpop.f32.mrf.mxu0
  %v858 = vadd.f32 %v689, %v857
  %v859 = vpop.f32.mrf.mxu0
  %v860 = vadd.f32 %v691, %v859
  %861 = vmatmul.bf16.gmra.mxu0 %v368
  %v862 = vpop.f32.mrf.mxu0
  %v863 = vadd.f32 %v694, %v862
  %v864 = vpop.f32.mrf.mxu0
  %v865 = vadd.f32 %v696, %v864
  %866 = vdwg.mxu0
  %v867 = vld [vmem:[%s2] sm:$0x1]
  %v869 = vperm.slane %v867, 0
  %v871 = vmul.f32 %v708, %v869
  %v872 = vmul.f32 %v710, %v869
  %v873 = vmul.f32 %v713, %v869
  %v874 = vmul.f32 %v715, %v869
  %v875 = vmul.f32 %v718, %v869
  %v876 = vmul.f32 %v720, %v869
  %v877 = vmul.f32 %v723, %v869
  %v878 = vmul.f32 %v725, %v869
  %v879 = vmul.f32 %v728, %v869
  %v880 = vmul.f32 %v730, %v869
  %v881 = vmul.f32 %v733, %v869
  %v882 = vmul.f32 %v735, %v869
  %v883 = vmul.f32 %v738, %v869
  %v884 = vmul.f32 %v740, %v869
  %v885 = vmul.f32 %v743, %v869
  %v886 = vmul.f32 %v745, %v869
  %v887 = vmul.f32 %v748, %v869
  %v888 = vmul.f32 %v750, %v869
  %v889 = vmul.f32 %v753, %v869
  %v890 = vmul.f32 %v755, %v869
  %v891 = vmul.f32 %v758, %v869
  %v892 = vmul.f32 %v760, %v869
  %v893 = vmul.f32 %v763, %v869
  %v894 = vmul.f32 %v765, %v869
  %v895 = vmul.f32 %v768, %v869
  %v896 = vmul.f32 %v770, %v869
  %v897 = vmul.f32 %v773, %v869
  %v898 = vmul.f32 %v775, %v869
  %v899 = vmul.f32 %v778, %v869
  %v900 = vmul.f32 %v780, %v869
  %v901 = vmul.f32 %v783, %v869
  %v902 = vmul.f32 %v785, %v869
  %v903 = vmul.f32 %v788, %v869
  %v904 = vmul.f32 %v790, %v869
  %v905 = vmul.f32 %v793, %v869
  %v906 = vmul.f32 %v795, %v869
  %v907 = vmul.f32 %v798, %v869
  %v908 = vmul.f32 %v800, %v869
  %v909 = vmul.f32 %v803, %v869
  %v910 = vmul.f32 %v805, %v869
  %v911 = vmul.f32 %v808, %v869
  %v912 = vmul.f32 %v810, %v869
  %v913 = vmul.f32 %v813, %v869
  %v914 = vmul.f32 %v815, %v869
  %v915 = vmul.f32 %v818, %v869
  %v916 = vmul.f32 %v820, %v869
  %v917 = vmul.f32 %v823, %v869
  %v918 = vmul.f32 %v825, %v869
  %v919 = vmul.f32 %v828, %v869
  %v920 = vmul.f32 %v830, %v869
  %v921 = vmul.f32 %v833, %v869
  %v922 = vmul.f32 %v835, %v869
  %v923 = vmul.f32 %v838, %v869
  %v924 = vmul.f32 %v840, %v869
  %v925 = vmul.f32 %v843, %v869
  %v926 = vmul.f32 %v845, %v869
  %v927 = vmul.f32 %v848, %v869
  %v928 = vmul.f32 %v850, %v869
  %v929 = vmul.f32 %v853, %v869
  %v930 = vmul.f32 %v855, %v869
  %v931 = vmul.f32 %v858, %v869
  %v932 = vmul.f32 %v860, %v869
  %v933 = vmul.f32 %v863, %v869
  %v934 = vmul.f32 %v865, %v869
  %v935 = vld [vmem:[%s3] sm:$0x1]
  %v937 = vperm.slane %v935, 0
  %v939 = vadd.f32 %v871, %v937
  %v940 = vadd.f32 %v872, %v937
  %v941 = vadd.f32 %v873, %v937
  %v942 = vadd.f32 %v874, %v937
  %v943 = vadd.f32 %v875, %v937
  %v944 = vadd.f32 %v876, %v937
  %v945 = vadd.f32 %v877, %v937
  %v946 = vadd.f32 %v878, %v937
  %v947 = vadd.f32 %v879, %v937
  %v948 = vadd.f32 %v880, %v937
  %v949 = vadd.f32 %v881, %v937
  %v950 = vadd.f32 %v882, %v937
  %v951 = vadd.f32 %v883, %v937
  %v952 = vadd.f32 %v884, %v937
  %v953 = vadd.f32 %v885, %v937
  %v954 = vadd.f32 %v886, %v937
  %v955 = vadd.f32 %v887, %v937
  %v956 = vadd.f32 %v888, %v937
  %v957 = vadd.f32 %v889, %v937
  %v958 = vadd.f32 %v890, %v937
  %v959 = vadd.f32 %v891, %v937
  %v960 = vadd.f32 %v892, %v937
  %v961 = vadd.f32 %v893, %v937
  %v962 = vadd.f32 %v894, %v937
  %v963 = vadd.f32 %v895, %v937
  %v964 = vadd.f32 %v896, %v937
  %v965 = vadd.f32 %v897, %v937
  %v966 = vadd.f32 %v898, %v937
  %v967 = vadd.f32 %v899, %v937
  %v968 = vadd.f32 %v900, %v937
  %v969 = vadd.f32 %v901, %v937
  %v970 = vadd.f32 %v902, %v937
  %v971 = vadd.f32 %v903, %v937
  %v972 = vadd.f32 %v904, %v937
  %v973 = vadd.f32 %v905, %v937
  %v974 = vadd.f32 %v906, %v937
  %v975 = vadd.f32 %v907, %v937
  %v976 = vadd.f32 %v908, %v937
  %v977 = vadd.f32 %v909, %v937
  %v978 = vadd.f32 %v910, %v937
  %v979 = vadd.f32 %v911, %v937
  %v980 = vadd.f32 %v912, %v937
  %v981 = vadd.f32 %v913, %v937
  %v982 = vadd.f32 %v914, %v937
  %v983 = vadd.f32 %v915, %v937
  %v984 = vadd.f32 %v916, %v937
  %v985 = vadd.f32 %v917, %v937
  %v986 = vadd.f32 %v918, %v937
  %v987 = vadd.f32 %v919, %v937
  %v988 = vadd.f32 %v920, %v937
  %v989 = vadd.f32 %v921, %v937
  %v990 = vadd.f32 %v922, %v937
  %v991 = vadd.f32 %v923, %v937
  %v992 = vadd.f32 %v924, %v937
  %v993 = vadd.f32 %v925, %v937
  %v994 = vadd.f32 %v926, %v937
  %v995 = vadd.f32 %v927, %v937
  %v996 = vadd.f32 %v928, %v937
  %v997 = vadd.f32 %v929, %v937
  %v998 = vadd.f32 %v930, %v937
  %v999 = vadd.f32 %v931, %v937
  %v1000 = vadd.f32 %v932, %v937
  %v1001 = vadd.f32 %v933, %v937
  %v1002 = vadd.f32 %v934, %v937
  %v1003 = vmax.f32 %v939, 0.0
  %v1004 = vmax.f32 %v940, 0.0
  %v1005 = vmax.f32 %v941, 0.0
  %v1006 = vmax.f32 %v942, 0.0
  %v1007 = vmax.f32 %v943, 0.0
  %v1008 = vmax.f32 %v944, 0.0
  %v1009 = vmax.f32 %v945, 0.0
  %v1010 = vmax.f32 %v946, 0.0
  %v1011 = vmax.f32 %v947, 0.0
  %v1012 = vmax.f32 %v948, 0.0
  %v1013 = vmax.f32 %v949, 0.0
  %v1014 = vmax.f32 %v950, 0.0
  %v1015 = vmax.f32 %v951, 0.0
  %v1016 = vmax.f32 %v952, 0.0
  %v1017 = vmax.f32 %v953, 0.0
  %v1018 = vmax.f32 %v954, 0.0
  %v1019 = vmax.f32 %v955, 0.0
  %v1020 = vmax.f32 %v956, 0.0
  %v1021 = vmax.f32 %v957, 0.0
  %v1022 = vmax.f32 %v958, 0.0
  %v1023 = vmax.f32 %v959, 0.0
  %v1024 = vmax.f32 %v960, 0.0
  %v1025 = vmax.f32 %v961, 0.0
  %v1026 = vmax.f32 %v962, 0.0
  %v1027 = vmax.f32 %v963, 0.0
  %v1028 = vmax.f32 %v964, 0.0
  %v1029 = vmax.f32 %v965, 0.0
  %v1030 = vmax.f32 %v966, 0.0
  %v1031 = vmax.f32 %v967, 0.0
  %v1032 = vmax.f32 %v968, 0.0
  %v1033 = vmax.f32 %v969, 0.0
  %v1034 = vmax.f32 %v970, 0.0
  %v1035 = vmax.f32 %v971, 0.0
  %v1036 = vmax.f32 %v972, 0.0
  %v1037 = vmax.f32 %v973, 0.0
  %v1038 = vmax.f32 %v974, 0.0
  %v1039 = vmax.f32 %v975, 0.0
  %v1040 = vmax.f32 %v976, 0.0
  %v1041 = vmax.f32 %v977, 0.0
  %v1042 = vmax.f32 %v978, 0.0
  %v1043 = vmax.f32 %v979, 0.0
  %v1044 = vmax.f32 %v980, 0.0
  %v1045 = vmax.f32 %v981, 0.0
  %v1046 = vmax.f32 %v982, 0.0
  %v1047 = vmax.f32 %v983, 0.0
  %v1048 = vmax.f32 %v984, 0.0
  %v1049 = vmax.f32 %v985, 0.0
  %v1050 = vmax.f32 %v986, 0.0
  %v1051 = vmax.f32 %v987, 0.0
  %v1052 = vmax.f32 %v988, 0.0
  %v1053 = vmax.f32 %v989, 0.0
  %v1054 = vmax.f32 %v990, 0.0
  %v1055 = vmax.f32 %v991, 0.0
  %v1056 = vmax.f32 %v992, 0.0
  %v1057 = vmax.f32 %v993, 0.0
  %v1058 = vmax.f32 %v994, 0.0
  %v1059 = vmax.f32 %v995, 0.0
  %v1060 = vmax.f32 %v996, 0.0
  %v1061 = vmax.f32 %v997, 0.0
  %v1062 = vmax.f32 %v998, 0.0
  %v1063 = vmax.f32 %v999, 0.0
  %v1064 = vmax.f32 %v1000, 0.0
  %v1065 = vmax.f32 %v1001, 0.0
  %v1066 = vmax.f32 %v1002, 0.0
  %1067 = vst [vmem:[%s4] sm:$0xff] %v1003
  %1068 = vst [vmem:[%s4 + $0x8] sm:$0xff] %v1004
  %1069 = vst [vmem:[%s4 + $0x10] sm:$0xff] %v1005
  %1070 = vst [vmem:[%s4 + $0x18] sm:$0xff] %v1006
  %1071 = vst [vmem:[%s4 + $0x20] sm:$0xff] %v1007
  %1072 = vst [vmem:[%s4 + $0x28] sm:$0xff] %v1008
  %1073 = vst [vmem:[%s4 + $0x30] sm:$0xff] %v1009
  %1074 = vst [vmem:[%s4 + $0x38] sm:$0xff] %v1010
  %1075 = vst [vmem:[%s4 + $0x40] sm:$0xff] %v1011
  %1076 = vst [vmem:[%s4 + $0x48] sm:$0xff] %v1012
  %1077 = vst [vmem:[%s4 + $0x50] sm:$0xff] %v1013
  %1078 = vst [vmem:[%s4 + $0x58] sm:$0xff] %v1014
  %1079 = vst [vmem:[%s4 + $0x60] sm:$0xff] %v1015
  %1080 = vst [vmem:[%s4 + $0x68] sm:$0xff] %v1016
  %1081 = vst [vmem:[%s4 + $0x70] sm:$0xff] %v1017
  %1082 = vst [vmem:[%s4 + $0x78] sm:$0xff] %v1018
  %1083 = vst [vmem:[%s4 + $0x80] sm:$0xff] %v1019
  %1084 = vst [vmem:[%s4 + $0x88] sm:$0xff] %v1020
  %1085 = vst [vmem:[%s4 + $0x90] sm:$0xff] %v1021
  %1086 = vst [vmem:[%s4 + $0x98] sm:$0xff] %v1022
  %1087 = vst [vmem:[%s4 + $0xa0] sm:$0xff] %v1023
  %1088 = vst [vmem:[%s4 + $0xa8] sm:$0xff] %v1024
  %1089 = vst [vmem:[%s4 + $0xb0] sm:$0xff] %v1025
  %1090 = vst [vmem:[%s4 + $0xb8] sm:$0xff] %v1026
  %1091 = vst [vmem:[%s4 + $0xc0] sm:$0xff] %v1027
  %1092 = vst [vmem:[%s4 + $0xc8] sm:$0xff] %v1028
  %1093 = vst [vmem:[%s4 + $0xd0] sm:$0xff] %v1029
  %1094 = vst [vmem:[%s4 + $0xd8] sm:$0xff] %v1030
  %1095 = vst [vmem:[%s4 + $0xe0] sm:$0xff] %v1031
  %1096 = vst [vmem:[%s4 + $0xe8] sm:$0xff] %v1032
  %1097 = vst [vmem:[%s4 + $0xf0] sm:$0xff] %v1033
  %1098 = vst [vmem:[%s4 + $0xf8] sm:$0xff] %v1034
  %1099 = vst [vmem:[%s4 + $0x100] sm:$0xff] %v1035
  %1100 = vst [vmem:[%s4 + $0x108] sm:$0xff] %v1036
  %1101 = vst [vmem:[%s4 + $0x110] sm:$0xff] %v1037
  %1102 = vst [vmem:[%s4 + $0x118] sm:$0xff] %v1038
  %1103 = vst [vmem:[%s4 + $0x120] sm:$0xff] %v1039
  %1104 = vst [vmem:[%s4 + $0x128] sm:$0xff] %v1040
  %1105 = vst [vmem:[%s4 + $0x130] sm:$0xff] %v1041
  %1106 = vst [vmem:[%s4 + $0x138] sm:$0xff] %v1042
  %1107 = vst [vmem:[%s4 + $0x140] sm:$0xff] %v1043
  %1108 = vst [vmem:[%s4 + $0x148] sm:$0xff] %v1044
  %1109 = vst [vmem:[%s4 + $0x150] sm:$0xff] %v1045
  %1110 = vst [vmem:[%s4 + $0x158] sm:$0xff] %v1046
  %1111 = vst [vmem:[%s4 + $0x160] sm:$0xff] %v1047
  %1112 = vst [vmem:[%s4 + $0x168] sm:$0xff] %v1048
  %1113 = vst [vmem:[%s4 + $0x170] sm:$0xff] %v1049
  %1114 = vst [vmem:[%s4 + $0x178] sm:$0xff] %v1050
  %1115 = vst [vmem:[%s4 + $0x180] sm:$0xff] %v1051
  %1116 = vst [vmem:[%s4 + $0x188] sm:$0xff] %v1052
  %1117 = vst [vmem:[%s4 + $0x190] sm:$0xff] %v1053
  %1118 = vst [vmem:[%s4 + $0x198] sm:$0xff] %v1054
  %1119 = vst [vmem:[%s4 + $0x1a0] sm:$0xff] %v1055
  %1120 = vst [vmem:[%s4 + $0x1a8] sm:$0xff] %v1056
  %1121 = vst [vmem:[%s4 + $0x1b0] sm:$0xff] %v1057
  %1122 = vst [vmem:[%s4 + $0x1b8] sm:$0xff] %v1058
  %1123 = vst [vmem:[%s4 + $0x1c0] sm:$0xff] %v1059
  %1124 = vst [vmem:[%s4 + $0x1c8] sm:$0xff] %v1060
  %1125 = vst [vmem:[%s4 + $0x1d0] sm:$0xff] %v1061
  %1126 = vst [vmem:[%s4 + $0x1d8] sm:$0xff] %v1062
  %1127 = vst [vmem:[%s4 + $0x1e0] sm:$0xff] %v1063
  %1128 = vst [vmem:[%s4 + $0x1e8] sm:$0xff] %v1064
  %1129 = vst [vmem:[%s4 + $0x1f0] sm:$0xff] %v1065
  %1130 = vst [vmem:[%s4 + $0x1f8] sm:$0xff] %v1066
  // Predicated region
  $region18: #{pneumonianet_forward.37} parent=0 // pred_check
    _
  $region19: #{pneumonianet_forward.37} parent=0 // pred_check_branch
    %1132 = sbr.rel (0) target = $region21
  $region20: #{pneumonianet_forward.37} parent=0 // pred_region
    _
  $region21: #{pneumonianet_forward.37} parent=0 // pred_fallthru
    _
  // Predicated region
  $region22: #{pneumonianet_forward.37} parent=0 // pred_check
    _
  $region23: #{pneumonianet_forward.37} parent=0 // pred_check_branch
    %1134 = sbr.rel (0) target = $region25
  $region24: #{pneumonianet_forward.37} parent=0 // pred_region
    _
  $region25: #{pneumonianet_forward.37} parent=0 // pred_fallthru
    _

// kernel: pneumonianet_forward.38
$region0: #{pneumonianet_forward.38}
  #allocation0 [shape = 'u32[]', space=smem, size = 0x4, offset = 0x4, fixed_abs, tag = 'smem constant byte address 0x4 - core index']
  #allocation1 [shape = 'u32[72,128]{1,0:T(1,128)}', space=vmem, size = 0x9000, scoped, tag = 'internal scratch']
  %s0 = inlined_call_operand.vmem [shape: f32[128,9,16], index: 0, kind: input, shape index: {}]
  %s1 = inlined_call_operand.vmem [shape: f32[128,16], index: 1, kind: output, shape index: {}]
  %s2 = sld [smem:[#allocation0]]
  $region14: #{pneumonianet_forward.38} parent=0
    _
  %s4 = ssub.s32 1, %s2
  %s5 = scalar_select 0, %s4, %s2
  // Predicated region
  $region2: #{pneumonianet_forward.38} parent=0 // pred_check
    _
  $region3: #{pneumonianet_forward.38} parent=0 // pred_check_branch
    %7 = sbr.rel (0) target = $region5
  $region4: #{pneumonianet_forward.38} parent=0 // pred_region
    _
  $region5: #{pneumonianet_forward.38} parent=0 // pred_fallthru
    _
  %v8 = vld [vmem:[%s0] sm:$0xff]
  %v9 = vld [vmem:[%s0 + $0x8] sm:$0x1]
  %v10 = vld [vmem:[%s0 + $0x10] sm:$0xff]
  %v11 = vld [vmem:[%s0 + $0x18] sm:$0x1]
  %v12 = vld [vmem:[%s0 + $0x20] sm:$0xff]
  %v13 = vld [vmem:[%s0 + $0x28] sm:$0x1]
  %v14 = vld [vmem:[%s0 + $0x30] sm:$0xff]
  %v15 = vld [vmem:[%s0 + $0x38] sm:$0x1]
  %v16 = vld [vmem:[%s0 + $0x40] sm:$0xff]
  %v17 = vld [vmem:[%s0 + $0x48] sm:$0x1]
  %v18 = vld [vmem:[%s0 + $0x50] sm:$0xff]
  %v19 = vld [vmem:[%s0 + $0x58] sm:$0x1]
  %v20 = vld [vmem:[%s0 + $0x60] sm:$0xff]
  %v21 = vld [vmem:[%s0 + $0x68] sm:$0x1]
  %v22 = vld [vmem:[%s0 + $0x70] sm:$0xff]
  %v23 = vld [vmem:[%s0 + $0x78] sm:$0x1]
  %v24 = vld [vmem:[%s0 + $0x80] sm:$0xff]
  %v25 = vld [vmem:[%s0 + $0x88] sm:$0x1]
  %v26 = vld [vmem:[%s0 + $0x90] sm:$0xff]
  %v27 = vld [vmem:[%s0 + $0x98] sm:$0x1]
  %v28 = vld [vmem:[%s0 + $0xa0] sm:$0xff]
  %v29 = vld [vmem:[%s0 + $0xa8] sm:$0x1]
  %v30 = vld [vmem:[%s0 + $0xb0] sm:$0xff]
  %v31 = vld [vmem:[%s0 + $0xb8] sm:$0x1]
  %v32 = vld [vmem:[%s0 + $0xc0] sm:$0xff]
  %v33 = vld [vmem:[%s0 + $0xc8] sm:$0x1]
  %v34 = vld [vmem:[%s0 + $0xd0] sm:$0xff]
  %v35 = vld [vmem:[%s0 + $0xd8] sm:$0x1]
  %v36 = vld [vmem:[%s0 + $0xe0] sm:$0xff]
  %v37 = vld [vmem:[%s0 + $0xe8] sm:$0x1]
  %v38 = vld [vmem:[%s0 + $0xf0] sm:$0xff]
  %v39 = vld [vmem:[%s0 + $0xf8] sm:$0x1]
  %v40 = vld [vmem:[%s0 + $0x100] sm:$0xff]
  %v41 = vld [vmem:[%s0 + $0x108] sm:$0x1]
  %v42 = vld [vmem:[%s0 + $0x110] sm:$0xff]
  %v43 = vld [vmem:[%s0 + $0x118] sm:$0x1]
  %v44 = vld [vmem:[%s0 + $0x120] sm:$0xff]
  %v45 = vld [vmem:[%s0 + $0x128] sm:$0x1]
  %v46 = vld [vmem:[%s0 + $0x130] sm:$0xff]
  %v47 = vld [vmem:[%s0 + $0x138] sm:$0x1]
  %v48 = vld [vmem:[%s0 + $0x140] sm:$0xff]
  %v49 = vld [vmem:[%s0 + $0x148] sm:$0x1]
  %v50 = vld [vmem:[%s0 + $0x150] sm:$0xff]
  %v51 = vld [vmem:[%s0 + $0x158] sm:$0x1]
  %v52 = vld [vmem:[%s0 + $0x160] sm:$0xff]
  %v53 = vld [vmem:[%s0 + $0x168] sm:$0x1]
  %v54 = vld [vmem:[%s0 + $0x170] sm:$0xff]
  %v55 = vld [vmem:[%s0 + $0x178] sm:$0x1]
  %v56 = vld [vmem:[%s0 + $0x180] sm:$0xff]
  %v57 = vld [vmem:[%s0 + $0x188] sm:$0x1]
  %v58 = vld [vmem:[%s0 + $0x190] sm:$0xff]
  %v59 = vld [vmem:[%s0 + $0x198] sm:$0x1]
  %v60 = vld [vmem:[%s0 + $0x1a0] sm:$0xff]
  %v61 = vld [vmem:[%s0 + $0x1a8] sm:$0x1]
  %v62 = vld [vmem:[%s0 + $0x1b0] sm:$0xff]
  %v63 = vld [vmem:[%s0 + $0x1b8] sm:$0x1]
  %v64 = vld [vmem:[%s0 + $0x1c0] sm:$0xff]
  %v65 = vld [vmem:[%s0 + $0x1c8] sm:$0x1]
  %v66 = vld [vmem:[%s0 + $0x1d0] sm:$0xff]
  %v67 = vld [vmem:[%s0 + $0x1d8] sm:$0x1]
  %v68 = vld [vmem:[%s0 + $0x1e0] sm:$0xff]
  %v69 = vld [vmem:[%s0 + $0x1e8] sm:$0x1]
  %v70 = vld [vmem:[%s0 + $0x1f0] sm:$0xff]
  %v71 = vld [vmem:[%s0 + $0x1f8] sm:$0x1]
  %v72 = vld [vmem:[%s0 + $0x200] sm:$0xff]
  %v73 = vld [vmem:[%s0 + $0x208] sm:$0x1]
  %v74 = vld [vmem:[%s0 + $0x210] sm:$0xff]
  %v75 = vld [vmem:[%s0 + $0x218] sm:$0x1]
  %v76 = vld [vmem:[%s0 + $0x220] sm:$0xff]
  %v77 = vld [vmem:[%s0 + $0x228] sm:$0x1]
  %v78 = vld [vmem:[%s0 + $0x230] sm:$0xff]
  %v79 = vld [vmem:[%s0 + $0x238] sm:$0x1]
  %v80 = vld [vmem:[%s0 + $0x240] sm:$0xff]
  %v81 = vld [vmem:[%s0 + $0x248] sm:$0x1]
  %v82 = vld [vmem:[%s0 + $0x250] sm:$0xff]
  %v83 = vld [vmem:[%s0 + $0x258] sm:$0x1]
  %v84 = vld [vmem:[%s0 + $0x260] sm:$0xff]
  %v85 = vld [vmem:[%s0 + $0x268] sm:$0x1]
  %v86 = vld [vmem:[%s0 + $0x270] sm:$0xff]
  %v87 = vld [vmem:[%s0 + $0x278] sm:$0x1]
  %v88 = vld [vmem:[%s0 + $0x280] sm:$0xff]
  %v89 = vld [vmem:[%s0 + $0x288] sm:$0x1]
  %v90 = vld [vmem:[%s0 + $0x290] sm:$0xff]
  %v91 = vld [vmem:[%s0 + $0x298] sm:$0x1]
  %v92 = vld [vmem:[%s0 + $0x2a0] sm:$0xff]
  %v93 = vld [vmem:[%s0 + $0x2a8] sm:$0x1]
  %v94 = vld [vmem:[%s0 + $0x2b0] sm:$0xff]
  %v95 = vld [vmem:[%s0 + $0x2b8] sm:$0x1]
  %v96 = vld [vmem:[%s0 + $0x2c0] sm:$0xff]
  %v97 = vld [vmem:[%s0 + $0x2c8] sm:$0x1]
  %v98 = vld [vmem:[%s0 + $0x2d0] sm:$0xff]
  %v99 = vld [vmem:[%s0 + $0x2d8] sm:$0x1]
  %v100 = vld [vmem:[%s0 + $0x2e0] sm:$0xff]
  %v101 = vld [vmem:[%s0 + $0x2e8] sm:$0x1]
  %v102 = vld [vmem:[%s0 + $0x2f0] sm:$0xff]
  %v103 = vld [vmem:[%s0 + $0x2f8] sm:$0x1]
  %v104 = vld [vmem:[%s0 + $0x300] sm:$0xff]
  %v105 = vld [vmem:[%s0 + $0x308] sm:$0x1]
  %v106 = vld [vmem:[%s0 + $0x310] sm:$0xff]
  %v107 = vld [vmem:[%s0 + $0x318] sm:$0x1]
  %v108 = vld [vmem:[%s0 + $0x320] sm:$0xff]
  %v109 = vld [vmem:[%s0 + $0x328] sm:$0x1]
  %v110 = vld [vmem:[%s0 + $0x330] sm:$0xff]
  %v111 = vld [vmem:[%s0 + $0x338] sm:$0x1]
  %v112 = vld [vmem:[%s0 + $0x340] sm:$0xff]
  %v113 = vld [vmem:[%s0 + $0x348] sm:$0x1]
  %v114 = vld [vmem:[%s0 + $0x350] sm:$0xff]
  %v115 = vld [vmem:[%s0 + $0x358] sm:$0x1]
  %v116 = vld [vmem:[%s0 + $0x360] sm:$0xff]
  %v117 = vld [vmem:[%s0 + $0x368] sm:$0x1]
  %v118 = vld [vmem:[%s0 + $0x370] sm:$0xff]
  %v119 = vld [vmem:[%s0 + $0x378] sm:$0x1]
  %v120 = vld [vmem:[%s0 + $0x380] sm:$0xff]
  %v121 = vld [vmem:[%s0 + $0x388] sm:$0x1]
  %v122 = vld [vmem:[%s0 + $0x390] sm:$0xff]
  %v123 = vld [vmem:[%s0 + $0x398] sm:$0x1]
  %v124 = vld [vmem:[%s0 + $0x3a0] sm:$0xff]
  %v125 = vld [vmem:[%s0 + $0x3a8] sm:$0x1]
  %v126 = vld [vmem:[%s0 + $0x3b0] sm:$0xff]
  %v127 = vld [vmem:[%s0 + $0x3b8] sm:$0x1]
  %v128 = vld [vmem:[%s0 + $0x3c0] sm:$0xff]
  %v129 = vld [vmem:[%s0 + $0x3c8] sm:$0x1]
  %v130 = vld [vmem:[%s0 + $0x3d0] sm:$0xff]
  %v131 = vld [vmem:[%s0 + $0x3d8] sm:$0x1]
  %v132 = vld [vmem:[%s0 + $0x3e0] sm:$0xff]
  %v133 = vld [vmem:[%s0 + $0x3e8] sm:$0x1]
  %v134 = vld [vmem:[%s0 + $0x3f0] sm:$0xff]
  %v135 = vld [vmem:[%s0 + $0x3f8] sm:$0x1]
  %v136 = vld [vmem:[%s0 + $0x400] sm:$0xff]
  %v137 = vld [vmem:[%s0 + $0x408] sm:$0x1]
  %v138 = vld [vmem:[%s0 + $0x410] sm:$0xff]
  %v139 = vld [vmem:[%s0 + $0x418] sm:$0x1]
  %v140 = vld [vmem:[%s0 + $0x420] sm:$0xff]
  %v141 = vld [vmem:[%s0 + $0x428] sm:$0x1]
  %v142 = vld [vmem:[%s0 + $0x430] sm:$0xff]
  %v143 = vld [vmem:[%s0 + $0x438] sm:$0x1]
  %v144 = vld [vmem:[%s0 + $0x440] sm:$0xff]
  %v145 = vld [vmem:[%s0 + $0x448] sm:$0x1]
  %v146 = vld [vmem:[%s0 + $0x450] sm:$0xff]
  %v147 = vld [vmem:[%s0 + $0x458] sm:$0x1]
  %v148 = vld [vmem:[%s0 + $0x460] sm:$0xff]
  %v149 = vld [vmem:[%s0 + $0x468] sm:$0x1]
  %v150 = vld [vmem:[%s0 + $0x470] sm:$0xff]
  %v151 = vld [vmem:[%s0 + $0x478] sm:$0x1]
  %v152 = vld [vmem:[%s0 + $0x480] sm:$0xff]
  %v153 = vld [vmem:[%s0 + $0x488] sm:$0x1]
  %v154 = vld [vmem:[%s0 + $0x490] sm:$0xff]
  %v155 = vld [vmem:[%s0 + $0x498] sm:$0x1]
  %v156 = vld [vmem:[%s0 + $0x4a0] sm:$0xff]
  %v157 = vld [vmem:[%s0 + $0x4a8] sm:$0x1]
  %v158 = vld [vmem:[%s0 + $0x4b0] sm:$0xff]
  %v159 = vld [vmem:[%s0 + $0x4b8] sm:$0x1]
  %v160 = vld [vmem:[%s0 + $0x4c0] sm:$0xff]
  %v161 = vld [vmem:[%s0 + $0x4c8] sm:$0x1]
  %v162 = vld [vmem:[%s0 + $0x4d0] sm:$0xff]
  %v163 = vld [vmem:[%s0 + $0x4d8] sm:$0x1]
  %v164 = vld [vmem:[%s0 + $0x4e0] sm:$0xff]
  %v165 = vld [vmem:[%s0 + $0x4e8] sm:$0x1]
  %v166 = vld [vmem:[%s0 + $0x4f0] sm:$0xff]
  %v167 = vld [vmem:[%s0 + $0x4f8] sm:$0x1]
  %v168 = vld [vmem:[%s0 + $0x500] sm:$0xff]
  %v169 = vld [vmem:[%s0 + $0x508] sm:$0x1]
  %v170 = vld [vmem:[%s0 + $0x510] sm:$0xff]
  %v171 = vld [vmem:[%s0 + $0x518] sm:$0x1]
  %v172 = vld [vmem:[%s0 + $0x520] sm:$0xff]
  %v173 = vld [vmem:[%s0 + $0x528] sm:$0x1]
  %v174 = vld [vmem:[%s0 + $0x530] sm:$0xff]
  %v175 = vld [vmem:[%s0 + $0x538] sm:$0x1]
  %v176 = vld [vmem:[%s0 + $0x540] sm:$0xff]
  %v177 = vld [vmem:[%s0 + $0x548] sm:$0x1]
  %v178 = vld [vmem:[%s0 + $0x550] sm:$0xff]
  %v179 = vld [vmem:[%s0 + $0x558] sm:$0x1]
  %v180 = vld [vmem:[%s0 + $0x560] sm:$0xff]
  %v181 = vld [vmem:[%s0 + $0x568] sm:$0x1]
  %v182 = vld [vmem:[%s0 + $0x570] sm:$0xff]
  %v183 = vld [vmem:[%s0 + $0x578] sm:$0x1]
  %v184 = vld [vmem:[%s0 + $0x580] sm:$0xff]
  %v185 = vld [vmem:[%s0 + $0x588] sm:$0x1]
  %v186 = vld [vmem:[%s0 + $0x590] sm:$0xff]
  %v187 = vld [vmem:[%s0 + $0x598] sm:$0x1]
  %v188 = vld [vmem:[%s0 + $0x5a0] sm:$0xff]
  %v189 = vld [vmem:[%s0 + $0x5a8] sm:$0x1]
  %v190 = vld [vmem:[%s0 + $0x5b0] sm:$0xff]
  %v191 = vld [vmem:[%s0 + $0x5b8] sm:$0x1]
  %v192 = vld [vmem:[%s0 + $0x5c0] sm:$0xff]
  %v193 = vld [vmem:[%s0 + $0x5c8] sm:$0x1]
  %v194 = vld [vmem:[%s0 + $0x5d0] sm:$0xff]
  %v195 = vld [vmem:[%s0 + $0x5d8] sm:$0x1]
  %v196 = vld [vmem:[%s0 + $0x5e0] sm:$0xff]
  %v197 = vld [vmem:[%s0 + $0x5e8] sm:$0x1]
  %v198 = vld [vmem:[%s0 + $0x5f0] sm:$0xff]
  %v199 = vld [vmem:[%s0 + $0x5f8] sm:$0x1]
  %v200 = vld [vmem:[%s0 + $0x600] sm:$0xff]
  %v201 = vld [vmem:[%s0 + $0x608] sm:$0x1]
  %v202 = vld [vmem:[%s0 + $0x610] sm:$0xff]
  %v203 = vld [vmem:[%s0 + $0x618] sm:$0x1]
  %v204 = vld [vmem:[%s0 + $0x620] sm:$0xff]
  %v205 = vld [vmem:[%s0 + $0x628] sm:$0x1]
  %v206 = vld [vmem:[%s0 + $0x630] sm:$0xff]
  %v207 = vld [vmem:[%s0 + $0x638] sm:$0x1]
  %v208 = vld [vmem:[%s0 + $0x640] sm:$0xff]
  %v209 = vld [vmem:[%s0 + $0x648] sm:$0x1]
  %v210 = vld [vmem:[%s0 + $0x650] sm:$0xff]
  %v211 = vld [vmem:[%s0 + $0x658] sm:$0x1]
  %v212 = vld [vmem:[%s0 + $0x660] sm:$0xff]
  %v213 = vld [vmem:[%s0 + $0x668] sm:$0x1]
  %v214 = vld [vmem:[%s0 + $0x670] sm:$0xff]
  %v215 = vld [vmem:[%s0 + $0x678] sm:$0x1]
  %v216 = vld [vmem:[%s0 + $0x680] sm:$0xff]
  %v217 = vld [vmem:[%s0 + $0x688] sm:$0x1]
  %v218 = vld [vmem:[%s0 + $0x690] sm:$0xff]
  %v219 = vld [vmem:[%s0 + $0x698] sm:$0x1]
  %v220 = vld [vmem:[%s0 + $0x6a0] sm:$0xff]
  %v221 = vld [vmem:[%s0 + $0x6a8] sm:$0x1]
  %v222 = vld [vmem:[%s0 + $0x6b0] sm:$0xff]
  %v223 = vld [vmem:[%s0 + $0x6b8] sm:$0x1]
  %v224 = vld [vmem:[%s0 + $0x6c0] sm:$0xff]
  %v225 = vld [vmem:[%s0 + $0x6c8] sm:$0x1]
  %v226 = vld [vmem:[%s0 + $0x6d0] sm:$0xff]
  %v227 = vld [vmem:[%s0 + $0x6d8] sm:$0x1]
  %v228 = vld [vmem:[%s0 + $0x6e0] sm:$0xff]
  %v229 = vld [vmem:[%s0 + $0x6e8] sm:$0x1]
  %v230 = vld [vmem:[%s0 + $0x6f0] sm:$0xff]
  %v231 = vld [vmem:[%s0 + $0x6f8] sm:$0x1]
  %v232 = vld [vmem:[%s0 + $0x700] sm:$0xff]
  %v233 = vld [vmem:[%s0 + $0x708] sm:$0x1]
  %v234 = vld [vmem:[%s0 + $0x710] sm:$0xff]
  %v235 = vld [vmem:[%s0 + $0x718] sm:$0x1]
  %v236 = vld [vmem:[%s0 + $0x720] sm:$0xff]
  %v237 = vld [vmem:[%s0 + $0x728] sm:$0x1]
  %v238 = vld [vmem:[%s0 + $0x730] sm:$0xff]
  %v239 = vld [vmem:[%s0 + $0x738] sm:$0x1]
  %v240 = vld [vmem:[%s0 + $0x740] sm:$0xff]
  %v241 = vld [vmem:[%s0 + $0x748] sm:$0x1]
  %v242 = vld [vmem:[%s0 + $0x750] sm:$0xff]
  %v243 = vld [vmem:[%s0 + $0x758] sm:$0x1]
  %v244 = vld [vmem:[%s0 + $0x760] sm:$0xff]
  %v245 = vld [vmem:[%s0 + $0x768] sm:$0x1]
  %v246 = vld [vmem:[%s0 + $0x770] sm:$0xff]
  %v247 = vld [vmem:[%s0 + $0x778] sm:$0x1]
  %v248 = vld [vmem:[%s0 + $0x780] sm:$0xff]
  %v249 = vld [vmem:[%s0 + $0x788] sm:$0x1]
  %v250 = vld [vmem:[%s0 + $0x790] sm:$0xff]
  %v251 = vld [vmem:[%s0 + $0x798] sm:$0x1]
  %v252 = vld [vmem:[%s0 + $0x7a0] sm:$0xff]
  %v253 = vld [vmem:[%s0 + $0x7a8] sm:$0x1]
  %v254 = vld [vmem:[%s0 + $0x7b0] sm:$0xff]
  %v255 = vld [vmem:[%s0 + $0x7b8] sm:$0x1]
  %v256 = vld [vmem:[%s0 + $0x7c0] sm:$0xff]
  %v257 = vld [vmem:[%s0 + $0x7c8] sm:$0x1]
  %v258 = vld [vmem:[%s0 + $0x7d0] sm:$0xff]
  %v259 = vld [vmem:[%s0 + $0x7d8] sm:$0x1]
  %v260 = vld [vmem:[%s0 + $0x7e0] sm:$0xff]
  %v261 = vld [vmem:[%s0 + $0x7e8] sm:$0x1]
  %v262 = vld [vmem:[%s0 + $0x7f0] sm:$0xff]
  %v263 = vld [vmem:[%s0 + $0x7f8] sm:$0x1]
  %vm264 = vcmask 130048
  %v265 = vsel %vm264, %v8, -inf
  %vm266 = vcmask 122880
  %v267 = vsel %vm266, %v9, -inf
  %v268 = vmax.f32 %v265, %v267
  %v269 = vrot.slane %v268, 4
  %v270 = vmax.f32 %v268, %v269
  %v271 = vrot.slane %v270, 2
  %v272 = vmax.f32 %v270, %v271
  %v273 = vrot.slane %v272, 1
  %v274 = vmax.f32 %v272, %v273
  %v275 = vsel %vm264, %v10, -inf
  %v276 = vsel %vm266, %v11, -inf
  %v277 = vmax.f32 %v275, %v276
  %v278 = vrot.slane %v277, 4
  %v279 = vmax.f32 %v277, %v278
  %v280 = vrot.slane %v279, 2
  %v281 = vmax.f32 %v279, %v280
  %v282 = vrot.slane %v281, 1
  %v283 = vmax.f32 %v281, %v282
  %v284 = vsel %vm264, %v12, -inf
  %v285 = vsel %vm266, %v13, -inf
  %v286 = vmax.f32 %v284, %v285
  %v287 = vrot.slane %v286, 4
  %v288 = vmax.f32 %v286, %v287
  %v289 = vrot.slane %v288, 2
  %v290 = vmax.f32 %v288, %v289
  %v291 = vrot.slane %v290, 1
  %v292 = vmax.f32 %v290, %v291
  %v293 = vsel %vm264, %v14, -inf
  %v294 = vsel %vm266, %v15, -inf
  %v295 = vmax.f32 %v293, %v294
  %v296 = vrot.slane %v295, 4
  %v297 = vmax.f32 %v295, %v296
  %v298 = vrot.slane %v297, 2
  %v299 = vmax.f32 %v297, %v298
  %v300 = vrot.slane %v299, 1
  %v301 = vmax.f32 %v299, %v300
  %v302 = vsel %vm264, %v16, -inf
  %v303 = vsel %vm266, %v17, -inf
  %v304 = vmax.f32 %v302, %v303
  %v305 = vrot.slane %v304, 4
  %v306 = vmax.f32 %v304, %v305
  %v307 = vrot.slane %v306, 2
  %v308 = vmax.f32 %v306, %v307
  %v309 = vrot.slane %v308, 1
  %v310 = vmax.f32 %v308, %v309
  %v311 = vsel %vm264, %v18, -inf
  %v312 = vsel %vm266, %v19, -inf
  %v313 = vmax.f32 %v311, %v312
  %v314 = vrot.slane %v313, 4
  %v315 = vmax.f32 %v313, %v314
  %v316 = vrot.slane %v315, 2
  %v317 = vmax.f32 %v315, %v316
  %v318 = vrot.slane %v317, 1
  %v319 = vmax.f32 %v317, %v318
  %v320 = vsel %vm264, %v20, -inf
  %v321 = vsel %vm266, %v21, -inf
  %v322 = vmax.f32 %v320, %v321
  %v323 = vrot.slane %v322, 4
  %v324 = vmax.f32 %v322, %v323
  %v325 = vrot.slane %v324, 2
  %v326 = vmax.f32 %v324, %v325
  %v327 = vrot.slane %v326, 1
  %v328 = vmax.f32 %v326, %v327
  %v329 = vsel %vm264, %v22, -inf
  %v330 = vsel %vm266, %v23, -inf
  %v331 = vmax.f32 %v329, %v330
  %v332 = vrot.slane %v331, 4
  %v333 = vmax.f32 %v331, %v332
  %v334 = vrot.slane %v333, 2
  %v335 = vmax.f32 %v333, %v334
  %v336 = vrot.slane %v335, 1
  %v337 = vmax.f32 %v335, %v336
  %v338 = vsel %vm264, %v24, -inf
  %v339 = vsel %vm266, %v25, -inf
  %v340 = vmax.f32 %v338, %v339
  %v341 = vrot.slane %v340, 4
  %v342 = vmax.f32 %v340, %v341
  %v343 = vrot.slane %v342, 2
  %v344 = vmax.f32 %v342, %v343
  %v345 = vrot.slane %v344, 1
  %v346 = vmax.f32 %v344, %v345
  %v347 = vsel %vm264, %v26, -inf
  %v348 = vsel %vm266, %v27, -inf
  %v349 = vmax.f32 %v347, %v348
  %v350 = vrot.slane %v349, 4
  %v351 = vmax.f32 %v349, %v350
  %v352 = vrot.slane %v351, 2
  %v353 = vmax.f32 %v351, %v352
  %v354 = vrot.slane %v353, 1
  %v355 = vmax.f32 %v353, %v354
  %v356 = vsel %vm264, %v28, -inf
  %v357 = vsel %vm266, %v29, -inf
  %v358 = vmax.f32 %v356, %v357
  %v359 = vrot.slane %v358, 4
  %v360 = vmax.f32 %v358, %v359
  %v361 = vrot.slane %v360, 2
  %v362 = vmax.f32 %v360, %v361
  %v363 = vrot.slane %v362, 1
  %v364 = vmax.f32 %v362, %v363
  %v365 = vsel %vm264, %v30, -inf
  %v366 = vsel %vm266, %v31, -inf
  %v367 = vmax.f32 %v365, %v366
  %v368 = vrot.slane %v367, 4
  %v369 = vmax.f32 %v367, %v368
  %v370 = vrot.slane %v369, 2
  %v371 = vmax.f32 %v369, %v370
  %v372 = vrot.slane %v371, 1
  %v373 = vmax.f32 %v371, %v372
  %v374 = vsel %vm264, %v32, -inf
  %v375 = vsel %vm266, %v33, -inf
  %v376 = vmax.f32 %v374, %v375
  %v377 = vrot.slane %v376, 4
  %v378 = vmax.f32 %v376, %v377
  %v379 = vrot.slane %v378, 2
  %v380 = vmax.f32 %v378, %v379
  %v381 = vrot.slane %v380, 1
  %v382 = vmax.f32 %v380, %v381
  %v383 = vsel %vm264, %v34, -inf
  %v384 = vsel %vm266, %v35, -inf
  %v385 = vmax.f32 %v383, %v384
  %v386 = vrot.slane %v385, 4
  %v387 = vmax.f32 %v385, %v386
  %v388 = vrot.slane %v387, 2
  %v389 = vmax.f32 %v387, %v388
  %v390 = vrot.slane %v389, 1
  %v391 = vmax.f32 %v389, %v390
  %v392 = vsel %vm264, %v36, -inf
  %v393 = vsel %vm266, %v37, -inf
  %v394 = vmax.f32 %v392, %v393
  %v395 = vrot.slane %v394, 4
  %v396 = vmax.f32 %v394, %v395
  %v397 = vrot.slane %v396, 2
  %v398 = vmax.f32 %v396, %v397
  %v399 = vrot.slane %v398, 1
  %v400 = vmax.f32 %v398, %v399
  %v401 = vsel %vm264, %v38, -inf
  %v402 = vsel %vm266, %v39, -inf
  %v403 = vmax.f32 %v401, %v402
  %v404 = vrot.slane %v403, 4
  %v405 = vmax.f32 %v403, %v404
  %v406 = vrot.slane %v405, 2
  %v407 = vmax.f32 %v405, %v406
  %v408 = vrot.slane %v407, 1
  %v409 = vmax.f32 %v407, %v408
  %v410 = vsel %vm264, %v40, -inf
  %v411 = vsel %vm266, %v41, -inf
  %v412 = vmax.f32 %v410, %v411
  %v413 = vrot.slane %v412, 4
  %v414 = vmax.f32 %v412, %v413
  %v415 = vrot.slane %v414, 2
  %v416 = vmax.f32 %v414, %v415
  %v417 = vrot.slane %v416, 1
  %v418 = vmax.f32 %v416, %v417
  %v419 = vsel %vm264, %v42, -inf
  %v420 = vsel %vm266, %v43, -inf
  %v421 = vmax.f32 %v419, %v420
  %v422 = vrot.slane %v421, 4
  %v423 = vmax.f32 %v421, %v422
  %v424 = vrot.slane %v423, 2
  %v425 = vmax.f32 %v423, %v424
  %v426 = vrot.slane %v425, 1
  %v427 = vmax.f32 %v425, %v426
  %v428 = vsel %vm264, %v44, -inf
  %v429 = vsel %vm266, %v45, -inf
  %v430 = vmax.f32 %v428, %v429
  %v431 = vrot.slane %v430, 4
  %v432 = vmax.f32 %v430, %v431
  %v433 = vrot.slane %v432, 2
  %v434 = vmax.f32 %v432, %v433
  %v435 = vrot.slane %v434, 1
  %v436 = vmax.f32 %v434, %v435
  %v437 = vsel %vm264, %v46, -inf
  %v438 = vsel %vm266, %v47, -inf
  %v439 = vmax.f32 %v437, %v438
  %v440 = vrot.slane %v439, 4
  %v441 = vmax.f32 %v439, %v440
  %v442 = vrot.slane %v441, 2
  %v443 = vmax.f32 %v441, %v442
  %v444 = vrot.slane %v443, 1
  %v445 = vmax.f32 %v443, %v444
  %v446 = vsel %vm264, %v48, -inf
  %v447 = vsel %vm266, %v49, -inf
  %v448 = vmax.f32 %v446, %v447
  %v449 = vrot.slane %v448, 4
  %v450 = vmax.f32 %v448, %v449
  %v451 = vrot.slane %v450, 2
  %v452 = vmax.f32 %v450, %v451
  %v453 = vrot.slane %v452, 1
  %v454 = vmax.f32 %v452, %v453
  %v455 = vsel %vm264, %v50, -inf
  %v456 = vsel %vm266, %v51, -inf
  %v457 = vmax.f32 %v455, %v456
  %v458 = vrot.slane %v457, 4
  %v459 = vmax.f32 %v457, %v458
  %v460 = vrot.slane %v459, 2
  %v461 = vmax.f32 %v459, %v460
  %v462 = vrot.slane %v461, 1
  %v463 = vmax.f32 %v461, %v462
  %v464 = vsel %vm264, %v52, -inf
  %v465 = vsel %vm266, %v53, -inf
  %v466 = vmax.f32 %v464, %v465
  %v467 = vrot.slane %v466, 4
  %v468 = vmax.f32 %v466, %v467
  %v469 = vrot.slane %v468, 2
  %v470 = vmax.f32 %v468, %v469
  %v471 = vrot.slane %v470, 1
  %v472 = vmax.f32 %v470, %v471
  %v473 = vsel %vm264, %v54, -inf
  %v474 = vsel %vm266, %v55, -inf
  %v475 = vmax.f32 %v473, %v474
  %v476 = vrot.slane %v475, 4
  %v477 = vmax.f32 %v475, %v476
  %v478 = vrot.slane %v477, 2
  %v479 = vmax.f32 %v477, %v478
  %v480 = vrot.slane %v479, 1
  %v481 = vmax.f32 %v479, %v480
  %v482 = vsel %vm264, %v56, -inf
  %v483 = vsel %vm266, %v57, -inf
  %v484 = vmax.f32 %v482, %v483
  %v485 = vrot.slane %v484, 4
  %v486 = vmax.f32 %v484, %v485
  %v487 = vrot.slane %v486, 2
  %v488 = vmax.f32 %v486, %v487
  %v489 = vrot.slane %v488, 1
  %v490 = vmax.f32 %v488, %v489
  %v491 = vsel %vm264, %v58, -inf
  %v492 = vsel %vm266, %v59, -inf
  %v493 = vmax.f32 %v491, %v492
  %v494 = vrot.slane %v493, 4
  %v495 = vmax.f32 %v493, %v494
  %v496 = vrot.slane %v495, 2
  %v497 = vmax.f32 %v495, %v496
  %v498 = vrot.slane %v497, 1
  %v499 = vmax.f32 %v497, %v498
  %v500 = vsel %vm264, %v60, -inf
  %v501 = vsel %vm266, %v61, -inf
  %v502 = vmax.f32 %v500, %v501
  %v503 = vrot.slane %v502, 4
  %v504 = vmax.f32 %v502, %v503
  %v505 = vrot.slane %v504, 2
  %v506 = vmax.f32 %v504, %v505
  %v507 = vrot.slane %v506, 1
  %v508 = vmax.f32 %v506, %v507
  %v509 = vsel %vm264, %v62, -inf
  %v510 = vsel %vm266, %v63, -inf
  %v511 = vmax.f32 %v509, %v510
  %v512 = vrot.slane %v511, 4
  %v513 = vmax.f32 %v511, %v512
  %v514 = vrot.slane %v513, 2
  %v515 = vmax.f32 %v513, %v514
  %v516 = vrot.slane %v515, 1
  %v517 = vmax.f32 %v515, %v516
  %v518 = vsel %vm264, %v64, -inf
  %v519 = vsel %vm266, %v65, -inf
  %v520 = vmax.f32 %v518, %v519
  %v521 = vrot.slane %v520, 4
  %v522 = vmax.f32 %v520, %v521
  %v523 = vrot.slane %v522, 2
  %v524 = vmax.f32 %v522, %v523
  %v525 = vrot.slane %v524, 1
  %v526 = vmax.f32 %v524, %v525
  %v527 = vsel %vm264, %v66, -inf
  %v528 = vsel %vm266, %v67, -inf
  %v529 = vmax.f32 %v527, %v528
  %v530 = vrot.slane %v529, 4
  %v531 = vmax.f32 %v529, %v530
  %v532 = vrot.slane %v531, 2
  %v533 = vmax.f32 %v531, %v532
  %v534 = vrot.slane %v533, 1
  %v535 = vmax.f32 %v533, %v534
  %v536 = vsel %vm264, %v68, -inf
  %v537 = vsel %vm266, %v69, -inf
  %v538 = vmax.f32 %v536, %v537
  %v539 = vrot.slane %v538, 4
  %v540 = vmax.f32 %v538, %v539
  %v541 = vrot.slane %v540, 2
  %v542 = vmax.f32 %v540, %v541
  %v543 = vrot.slane %v542, 1
  %v544 = vmax.f32 %v542, %v543
  %v545 = vsel %vm264, %v70, -inf
  %v546 = vsel %vm266, %v71, -inf
  %v547 = vmax.f32 %v545, %v546
  %v548 = vrot.slane %v547, 4
  %v549 = vmax.f32 %v547, %v548
  %v550 = vrot.slane %v549, 2
  %v551 = vmax.f32 %v549, %v550
  %v552 = vrot.slane %v551, 1
  %v553 = vmax.f32 %v551, %v552
  %v554 = vsel %vm264, %v72, -inf
  %v555 = vsel %vm266, %v73, -inf
  %v556 = vmax.f32 %v554, %v555
  %v557 = vrot.slane %v556, 4
  %v558 = vmax.f32 %v556, %v557
  %v559 = vrot.slane %v558, 2
  %v560 = vmax.f32 %v558, %v559
  %v561 = vrot.slane %v560, 1
  %v562 = vmax.f32 %v560, %v561
  %v563 = vsel %vm264, %v74, -inf
  %v564 = vsel %vm266, %v75, -inf
  %v565 = vmax.f32 %v563, %v564
  %v566 = vrot.slane %v565, 4
  %v567 = vmax.f32 %v565, %v566
  %v568 = vrot.slane %v567, 2
  %v569 = vmax.f32 %v567, %v568
  %v570 = vrot.slane %v569, 1
  %v571 = vmax.f32 %v569, %v570
  %v572 = vsel %vm264, %v76, -inf
  %v573 = vsel %vm266, %v77, -inf
  %v574 = vmax.f32 %v572, %v573
  %v575 = vrot.slane %v574, 4
  %v576 = vmax.f32 %v574, %v575
  %v577 = vrot.slane %v576, 2
  %v578 = vmax.f32 %v576, %v577
  %v579 = vrot.slane %v578, 1
  %v580 = vmax.f32 %v578, %v579
  %v581 = vsel %vm264, %v78, -inf
  %v582 = vsel %vm266, %v79, -inf
  %v583 = vmax.f32 %v581, %v582
  %v584 = vrot.slane %v583, 4
  %v585 = vmax.f32 %v583, %v584
  %v586 = vrot.slane %v585, 2
  %v587 = vmax.f32 %v585, %v586
  %v588 = vrot.slane %v587, 1
  %v589 = vmax.f32 %v587, %v588
  %v590 = vsel %vm264, %v80, -inf
  %v591 = vsel %vm266, %v81, -inf
  %v592 = vmax.f32 %v590, %v591
  %v593 = vrot.slane %v592, 4
  %v594 = vmax.f32 %v592, %v593
  %v595 = vrot.slane %v594, 2
  %v596 = vmax.f32 %v594, %v595
  %v597 = vrot.slane %v596, 1
  %v598 = vmax.f32 %v596, %v597
  %v599 = vsel %vm264, %v82, -inf
  %v600 = vsel %vm266, %v83, -inf
  %v601 = vmax.f32 %v599, %v600
  %v602 = vrot.slane %v601, 4
  %v603 = vmax.f32 %v601, %v602
  %v604 = vrot.slane %v603, 2
  %v605 = vmax.f32 %v603, %v604
  %v606 = vrot.slane %v605, 1
  %v607 = vmax.f32 %v605, %v606
  %v608 = vsel %vm264, %v84, -inf
  %v609 = vsel %vm266, %v85, -inf
  %v610 = vmax.f32 %v608, %v609
  %v611 = vrot.slane %v610, 4
  %v612 = vmax.f32 %v610, %v611
  %v613 = vrot.slane %v612, 2
  %v614 = vmax.f32 %v612, %v613
  %v615 = vrot.slane %v614, 1
  %v616 = vmax.f32 %v614, %v615
  %v617 = vsel %vm264, %v86, -inf
  %v618 = vsel %vm266, %v87, -inf
  %v619 = vmax.f32 %v617, %v618
  %v620 = vrot.slane %v619, 4
  %v621 = vmax.f32 %v619, %v620
  %v622 = vrot.slane %v621, 2
  %v623 = vmax.f32 %v621, %v622
  %v624 = vrot.slane %v623, 1
  %v625 = vmax.f32 %v623, %v624
  %v626 = vsel %vm264, %v88, -inf
  %v627 = vsel %vm266, %v89, -inf
  %v628 = vmax.f32 %v626, %v627
  %v629 = vrot.slane %v628, 4
  %v630 = vmax.f32 %v628, %v629
  %v631 = vrot.slane %v630, 2
  %v632 = vmax.f32 %v630, %v631
  %v633 = vrot.slane %v632, 1
  %v634 = vmax.f32 %v632, %v633
  %v635 = vsel %vm264, %v90, -inf
  %v636 = vsel %vm266, %v91, -inf
  %v637 = vmax.f32 %v635, %v636
  %v638 = vrot.slane %v637, 4
  %v639 = vmax.f32 %v637, %v638
  %v640 = vrot.slane %v639, 2
  %v641 = vmax.f32 %v639, %v640
  %v642 = vrot.slane %v641, 1
  %v643 = vmax.f32 %v641, %v642
  %v644 = vsel %vm264, %v92, -inf
  %v645 = vsel %vm266, %v93, -inf
  %v646 = vmax.f32 %v644, %v645
  %v647 = vrot.slane %v646, 4
  %v648 = vmax.f32 %v646, %v647
  %v649 = vrot.slane %v648, 2
  %v650 = vmax.f32 %v648, %v649
  %v651 = vrot.slane %v650, 1
  %v652 = vmax.f32 %v650, %v651
  %v653 = vsel %vm264, %v94, -inf
  %v654 = vsel %vm266, %v95, -inf
  %v655 = vmax.f32 %v653, %v654
  %v656 = vrot.slane %v655, 4
  %v657 = vmax.f32 %v655, %v656
  %v658 = vrot.slane %v657, 2
  %v659 = vmax.f32 %v657, %v658
  %v660 = vrot.slane %v659, 1
  %v661 = vmax.f32 %v659, %v660
  %v662 = vsel %vm264, %v96, -inf
  %v663 = vsel %vm266, %v97, -inf
  %v664 = vmax.f32 %v662, %v663
  %v665 = vrot.slane %v664, 4
  %v666 = vmax.f32 %v664, %v665
  %v667 = vrot.slane %v666, 2
  %v668 = vmax.f32 %v666, %v667
  %v669 = vrot.slane %v668, 1
  %v670 = vmax.f32 %v668, %v669
  %v671 = vsel %vm264, %v98, -inf
  %v672 = vsel %vm266, %v99, -inf
  %v673 = vmax.f32 %v671, %v672
  %v674 = vrot.slane %v673, 4
  %v675 = vmax.f32 %v673, %v674
  %v676 = vrot.slane %v675, 2
  %v677 = vmax.f32 %v675, %v676
  %v678 = vrot.slane %v677, 1
  %v679 = vmax.f32 %v677, %v678
  %v680 = vsel %vm264, %v100, -inf
  %v681 = vsel %vm266, %v101, -inf
  %v682 = vmax.f32 %v680, %v681
  %v683 = vrot.slane %v682, 4
  %v684 = vmax.f32 %v682, %v683
  %v685 = vrot.slane %v684, 2
  %v686 = vmax.f32 %v684, %v685
  %v687 = vrot.slane %v686, 1
  %v688 = vmax.f32 %v686, %v687
  %v689 = vsel %vm264, %v102, -inf
  %v690 = vsel %vm266, %v103, -inf
  %v691 = vmax.f32 %v689, %v690
  %v692 = vrot.slane %v691, 4
  %v693 = vmax.f32 %v691, %v692
  %v694 = vrot.slane %v693, 2
  %v695 = vmax.f32 %v693, %v694
  %v696 = vrot.slane %v695, 1
  %v697 = vmax.f32 %v695, %v696
  %v698 = vsel %vm264, %v104, -inf
  %v699 = vsel %vm266, %v105, -inf
  %v700 = vmax.f32 %v698, %v699
  %v701 = vrot.slane %v700, 4
  %v702 = vmax.f32 %v700, %v701
  %v703 = vrot.slane %v702, 2
  %v704 = vmax.f32 %v702, %v703
  %v705 = vrot.slane %v704, 1
  %v706 = vmax.f32 %v704, %v705
  %v707 = vsel %vm264, %v106, -inf
  %v708 = vsel %vm266, %v107, -inf
  %v709 = vmax.f32 %v707, %v708
  %v710 = vrot.slane %v709, 4
  %v711 = vmax.f32 %v709, %v710
  %v712 = vrot.slane %v711, 2
  %v713 = vmax.f32 %v711, %v712
  %v714 = vrot.slane %v713, 1
  %v715 = vmax.f32 %v713, %v714
  %v716 = vsel %vm264, %v108, -inf
  %v717 = vsel %vm266, %v109, -inf
  %v718 = vmax.f32 %v716, %v717
  %v719 = vrot.slane %v718, 4
  %v720 = vmax.f32 %v718, %v719
  %v721 = vrot.slane %v720, 2
  %v722 = vmax.f32 %v720, %v721
  %v723 = vrot.slane %v722, 1
  %v724 = vmax.f32 %v722, %v723
  %v725 = vsel %vm264, %v110, -inf
  %v726 = vsel %vm266, %v111, -inf
  %v727 = vmax.f32 %v725, %v726
  %v728 = vrot.slane %v727, 4
  %v729 = vmax.f32 %v727, %v728
  %v730 = vrot.slane %v729, 2
  %v731 = vmax.f32 %v729, %v730
  %v732 = vrot.slane %v731, 1
  %v733 = vmax.f32 %v731, %v732
  %v734 = vsel %vm264, %v112, -inf
  %v735 = vsel %vm266, %v113, -inf
  %v736 = vmax.f32 %v734, %v735
  %v737 = vrot.slane %v736, 4
  %v738 = vmax.f32 %v736, %v737
  %v739 = vrot.slane %v738, 2
  %v740 = vmax.f32 %v738, %v739
  %v741 = vrot.slane %v740, 1
  %v742 = vmax.f32 %v740, %v741
  %v743 = vsel %vm264, %v114, -inf
  %v744 = vsel %vm266, %v115, -inf
  %v745 = vmax.f32 %v743, %v744
  %v746 = vrot.slane %v745, 4
  %v747 = vmax.f32 %v745, %v746
  %v748 = vrot.slane %v747, 2
  %v749 = vmax.f32 %v747, %v748
  %v750 = vrot.slane %v749, 1
  %v751 = vmax.f32 %v749, %v750
  %v752 = vsel %vm264, %v116, -inf
  %v753 = vsel %vm266, %v117, -inf
  %v754 = vmax.f32 %v752, %v753
  %v755 = vrot.slane %v754, 4
  %v756 = vmax.f32 %v754, %v755
  %v757 = vrot.slane %v756, 2
  %v758 = vmax.f32 %v756, %v757
  %v759 = vrot.slane %v758, 1
  %v760 = vmax.f32 %v758, %v759
  %v761 = vsel %vm264, %v118, -inf
  %v762 = vsel %vm266, %v119, -inf
  %v763 = vmax.f32 %v761, %v762
  %v764 = vrot.slane %v763, 4
  %v765 = vmax.f32 %v763, %v764
  %v766 = vrot.slane %v765, 2
  %v767 = vmax.f32 %v765, %v766
  %v768 = vrot.slane %v767, 1
  %v769 = vmax.f32 %v767, %v768
  %v770 = vsel %vm264, %v120, -inf
  %v771 = vsel %vm266, %v121, -inf
  %v772 = vmax.f32 %v770, %v771
  %v773 = vrot.slane %v772, 4
  %v774 = vmax.f32 %v772, %v773
  %v775 = vrot.slane %v774, 2
  %v776 = vmax.f32 %v774, %v775
  %v777 = vrot.slane %v776, 1
  %v778 = vmax.f32 %v776, %v777
  %v779 = vsel %vm264, %v122, -inf
  %v780 = vsel %vm266, %v123, -inf
  %v781 = vmax.f32 %v779, %v780
  %v782 = vrot.slane %v781, 4
  %v783 = vmax.f32 %v781, %v782
  %v784 = vrot.slane %v783, 2
  %v785 = vmax.f32 %v783, %v784
  %v786 = vrot.slane %v785, 1
  %v787 = vmax.f32 %v785, %v786
  %v788 = vsel %vm264, %v124, -inf
  %v789 = vsel %vm266, %v125, -inf
  %v790 = vmax.f32 %v788, %v789
  %v791 = vrot.slane %v790, 4
  %v792 = vmax.f32 %v790, %v791
  %v793 = vrot.slane %v792, 2
  %v794 = vmax.f32 %v792, %v793
  %v795 = vrot.slane %v794, 1
  %v796 = vmax.f32 %v794, %v795
  %v797 = vsel %vm264, %v126, -inf
  %v798 = vsel %vm266, %v127, -inf
  %v799 = vmax.f32 %v797, %v798
  %v800 = vrot.slane %v799, 4
  %v801 = vmax.f32 %v799, %v800
  %v802 = vrot.slane %v801, 2
  %v803 = vmax.f32 %v801, %v802
  %v804 = vrot.slane %v803, 1
  %v805 = vmax.f32 %v803, %v804
  %v806 = vsel %vm264, %v128, -inf
  %v807 = vsel %vm266, %v129, -inf
  %v808 = vmax.f32 %v806, %v807
  %v809 = vrot.slane %v808, 4
  %v810 = vmax.f32 %v808, %v809
  %v811 = vrot.slane %v810, 2
  %v812 = vmax.f32 %v810, %v811
  %v813 = vrot.slane %v812, 1
  %v814 = vmax.f32 %v812, %v813
  %v815 = vsel %vm264, %v130, -inf
  %v816 = vsel %vm266, %v131, -inf
  %v817 = vmax.f32 %v815, %v816
  %v818 = vrot.slane %v817, 4
  %v819 = vmax.f32 %v817, %v818
  %v820 = vrot.slane %v819, 2
  %v821 = vmax.f32 %v819, %v820
  %v822 = vrot.slane %v821, 1
  %v823 = vmax.f32 %v821, %v822
  %v824 = vsel %vm264, %v132, -inf
  %v825 = vsel %vm266, %v133, -inf
  %v826 = vmax.f32 %v824, %v825
  %v827 = vrot.slane %v826, 4
  %v828 = vmax.f32 %v826, %v827
  %v829 = vrot.slane %v828, 2
  %v830 = vmax.f32 %v828, %v829
  %v831 = vrot.slane %v830, 1
  %v832 = vmax.f32 %v830, %v831
  %v833 = vsel %vm264, %v134, -inf
  %v834 = vsel %vm266, %v135, -inf
  %v835 = vmax.f32 %v833, %v834
  %v836 = vrot.slane %v835, 4
  %v837 = vmax.f32 %v835, %v836
  %v838 = vrot.slane %v837, 2
  %v839 = vmax.f32 %v837, %v838
  %v840 = vrot.slane %v839, 1
  %v841 = vmax.f32 %v839, %v840
  %v842 = vsel %vm264, %v136, -inf
  %v843 = vsel %vm266, %v137, -inf
  %v844 = vmax.f32 %v842, %v843
  %v845 = vrot.slane %v844, 4
  %v846 = vmax.f32 %v844, %v845
  %v847 = vrot.slane %v846, 2
  %v848 = vmax.f32 %v846, %v847
  %v849 = vrot.slane %v848, 1
  %v850 = vmax.f32 %v848, %v849
  %v851 = vsel %vm264, %v138, -inf
  %v852 = vsel %vm266, %v139, -inf
  %v853 = vmax.f32 %v851, %v852
  %v854 = vrot.slane %v853, 4
  %v855 = vmax.f32 %v853, %v854
  %v856 = vrot.slane %v855, 2
  %v857 = vmax.f32 %v855, %v856
  %v858 = vrot.slane %v857, 1
  %v859 = vmax.f32 %v857, %v858
  %v860 = vsel %vm264, %v140, -inf
  %v861 = vsel %vm266, %v141, -inf
  %v862 = vmax.f32 %v860, %v861
  %v863 = vrot.slane %v862, 4
  %v864 = vmax.f32 %v862, %v863
  %v865 = vrot.slane %v864, 2
  %v866 = vmax.f32 %v864, %v865
  %v867 = vrot.slane %v866, 1
  %v868 = vmax.f32 %v866, %v867
  %v869 = vsel %vm264, %v142, -inf
  %v870 = vsel %vm266, %v143, -inf
  %v871 = vmax.f32 %v869, %v870
  %v872 = vrot.slane %v871, 4
  %v873 = vmax.f32 %v871, %v872
  %v874 = vrot.slane %v873, 2
  %v875 = vmax.f32 %v873, %v874
  %v876 = vrot.slane %v875, 1
  %v877 = vmax.f32 %v875, %v876
  %v878 = vsel %vm264, %v144, -inf
  %v879 = vsel %vm266, %v145, -inf
  %v880 = vmax.f32 %v878, %v879
  %v881 = vrot.slane %v880, 4
  %v882 = vmax.f32 %v880, %v881
  %v883 = vrot.slane %v882, 2
  %v884 = vmax.f32 %v882, %v883
  %v885 = vrot.slane %v884, 1
  %v886 = vmax.f32 %v884, %v885
  %v887 = vsel %vm264, %v146, -inf
  %v888 = vsel %vm266, %v147, -inf
  %v889 = vmax.f32 %v887, %v888
  %v890 = vrot.slane %v889, 4
  %v891 = vmax.f32 %v889, %v890
  %v892 = vrot.slane %v891, 2
  %v893 = vmax.f32 %v891, %v892
  %v894 = vrot.slane %v893, 1
  %v895 = vmax.f32 %v893, %v894
  %v896 = vsel %vm264, %v148, -inf
  %v897 = vsel %vm266, %v149, -inf
  %v898 = vmax.f32 %v896, %v897
  %v899 = vrot.slane %v898, 4
  %v900 = vmax.f32 %v898, %v899
  %v901 = vrot.slane %v900, 2
  %v902 = vmax.f32 %v900, %v901
  %v903 = vrot.slane %v902, 1
  %v904 = vmax.f32 %v902, %v903
  %v905 = vsel %vm264, %v150, -inf
  %v906 = vsel %vm266, %v151, -inf
  %v907 = vmax.f32 %v905, %v906
  %v908 = vrot.slane %v907, 4
  %v909 = vmax.f32 %v907, %v908
  %v910 = vrot.slane %v909, 2
  %v911 = vmax.f32 %v909, %v910
  %v912 = vrot.slane %v911, 1
  %v913 = vmax.f32 %v911, %v912
  %v914 = vsel %vm264, %v152, -inf
  %v915 = vsel %vm266, %v153, -inf
  %v916 = vmax.f32 %v914, %v915
  %v917 = vrot.slane %v916, 4
  %v918 = vmax.f32 %v916, %v917
  %v919 = vrot.slane %v918, 2
  %v920 = vmax.f32 %v918, %v919
  %v921 = vrot.slane %v920, 1
  %v922 = vmax.f32 %v920, %v921
  %v923 = vsel %vm264, %v154, -inf
  %v924 = vsel %vm266, %v155, -inf
  %v925 = vmax.f32 %v923, %v924
  %v926 = vrot.slane %v925, 4
  %v927 = vmax.f32 %v925, %v926
  %v928 = vrot.slane %v927, 2
  %v929 = vmax.f32 %v927, %v928
  %v930 = vrot.slane %v929, 1
  %v931 = vmax.f32 %v929, %v930
  %v932 = vsel %vm264, %v156, -inf
  %v933 = vsel %vm266, %v157, -inf
  %v934 = vmax.f32 %v932, %v933
  %v935 = vrot.slane %v934, 4
  %v936 = vmax.f32 %v934, %v935
  %v937 = vrot.slane %v936, 2
  %v938 = vmax.f32 %v936, %v937
  %v939 = vrot.slane %v938, 1
  %v940 = vmax.f32 %v938, %v939
  %v941 = vsel %vm264, %v158, -inf
  %v942 = vsel %vm266, %v159, -inf
  %v943 = vmax.f32 %v941, %v942
  %v944 = vrot.slane %v943, 4
  %v945 = vmax.f32 %v943, %v944
  %v946 = vrot.slane %v945, 2
  %v947 = vmax.f32 %v945, %v946
  %v948 = vrot.slane %v947, 1
  %v949 = vmax.f32 %v947, %v948
  %v950 = vsel %vm264, %v160, -inf
  %v951 = vsel %vm266, %v161, -inf
  %v952 = vmax.f32 %v950, %v951
  %v953 = vrot.slane %v952, 4
  %v954 = vmax.f32 %v952, %v953
  %v955 = vrot.slane %v954, 2
  %v956 = vmax.f32 %v954, %v955
  %v957 = vrot.slane %v956, 1
  %v958 = vmax.f32 %v956, %v957
  %v959 = vsel %vm264, %v162, -inf
  %v960 = vsel %vm266, %v163, -inf
  %v961 = vmax.f32 %v959, %v960
  %v962 = vrot.slane %v961, 4
  %v963 = vmax.f32 %v961, %v962
  %v964 = vrot.slane %v963, 2
  %v965 = vmax.f32 %v963, %v964
  %v966 = vrot.slane %v965, 1
  %v967 = vmax.f32 %v965, %v966
  %v968 = vsel %vm264, %v164, -inf
  %v969 = vsel %vm266, %v165, -inf
  %v970 = vmax.f32 %v968, %v969
  %v971 = vrot.slane %v970, 4
  %v972 = vmax.f32 %v970, %v971
  %v973 = vrot.slane %v972, 2
  %v974 = vmax.f32 %v972, %v973
  %v975 = vrot.slane %v974, 1
  %v976 = vmax.f32 %v974, %v975
  %v977 = vsel %vm264, %v166, -inf
  %v978 = vsel %vm266, %v167, -inf
  %v979 = vmax.f32 %v977, %v978
  %v980 = vrot.slane %v979, 4
  %v981 = vmax.f32 %v979, %v980
  %v982 = vrot.slane %v981, 2
  %v983 = vmax.f32 %v981, %v982
  %v984 = vrot.slane %v983, 1
  %v985 = vmax.f32 %v983, %v984
  %v986 = vsel %vm264, %v168, -inf
  %v987 = vsel %vm266, %v169, -inf
  %v988 = vmax.f32 %v986, %v987
  %v989 = vrot.slane %v988, 4
  %v990 = vmax.f32 %v988, %v989
  %v991 = vrot.slane %v990, 2
  %v992 = vmax.f32 %v990, %v991
  %v993 = vrot.slane %v992, 1
  %v994 = vmax.f32 %v992, %v993
  %v995 = vsel %vm264, %v170, -inf
  %v996 = vsel %vm266, %v171, -inf
  %v997 = vmax.f32 %v995, %v996
  %v998 = vrot.slane %v997, 4
  %v999 = vmax.f32 %v997, %v998
  %v1000 = vrot.slane %v999, 2
  %v1001 = vmax.f32 %v999, %v1000
  %v1002 = vrot.slane %v1001, 1
  %v1003 = vmax.f32 %v1001, %v1002
  %v1004 = vsel %vm264, %v172, -inf
  %v1005 = vsel %vm266, %v173, -inf
  %v1006 = vmax.f32 %v1004, %v1005
  %v1007 = vrot.slane %v1006, 4
  %v1008 = vmax.f32 %v1006, %v1007
  %v1009 = vrot.slane %v1008, 2
  %v1010 = vmax.f32 %v1008, %v1009
  %v1011 = vrot.slane %v1010, 1
  %v1012 = vmax.f32 %v1010, %v1011
  %v1013 = vsel %vm264, %v174, -inf
  %v1014 = vsel %vm266, %v175, -inf
  %v1015 = vmax.f32 %v1013, %v1014
  %v1016 = vrot.slane %v1015, 4
  %v1017 = vmax.f32 %v1015, %v1016
  %v1018 = vrot.slane %v1017, 2
  %v1019 = vmax.f32 %v1017, %v1018
  %v1020 = vrot.slane %v1019, 1
  %v1021 = vmax.f32 %v1019, %v1020
  %v1022 = vsel %vm264, %v176, -inf
  %v1023 = vsel %vm266, %v177, -inf
  %v1024 = vmax.f32 %v1022, %v1023
  %v1025 = vrot.slane %v1024, 4
  %v1026 = vmax.f32 %v1024, %v1025
  %v1027 = vrot.slane %v1026, 2
  %v1028 = vmax.f32 %v1026, %v1027
  %v1029 = vrot.slane %v1028, 1
  %v1030 = vmax.f32 %v1028, %v1029
  %v1031 = vsel %vm264, %v178, -inf
  %v1032 = vsel %vm266, %v179, -inf
  %v1033 = vmax.f32 %v1031, %v1032
  %v1034 = vrot.slane %v1033, 4
  %v1035 = vmax.f32 %v1033, %v1034
  %v1036 = vrot.slane %v1035, 2
  %v1037 = vmax.f32 %v1035, %v1036
  %v1038 = vrot.slane %v1037, 1
  %v1039 = vmax.f32 %v1037, %v1038
  %v1040 = vsel %vm264, %v180, -inf
  %v1041 = vsel %vm266, %v181, -inf
  %v1042 = vmax.f32 %v1040, %v1041
  %v1043 = vrot.slane %v1042, 4
  %v1044 = vmax.f32 %v1042, %v1043
  %v1045 = vrot.slane %v1044, 2
  %v1046 = vmax.f32 %v1044, %v1045
  %v1047 = vrot.slane %v1046, 1
  %v1048 = vmax.f32 %v1046, %v1047
  %v1049 = vsel %vm264, %v182, -inf
  %v1050 = vsel %vm266, %v183, -inf
  %v1051 = vmax.f32 %v1049, %v1050
  %v1052 = vrot.slane %v1051, 4
  %v1053 = vmax.f32 %v1051, %v1052
  %v1054 = vrot.slane %v1053, 2
  %v1055 = vmax.f32 %v1053, %v1054
  %v1056 = vrot.slane %v1055, 1
  %v1057 = vmax.f32 %v1055, %v1056
  %v1058 = vsel %vm264, %v184, -inf
  %v1059 = vsel %vm266, %v185, -inf
  %v1060 = vmax.f32 %v1058, %v1059
  %v1061 = vrot.slane %v1060, 4
  %v1062 = vmax.f32 %v1060, %v1061
  %v1063 = vrot.slane %v1062, 2
  %v1064 = vmax.f32 %v1062, %v1063
  %v1065 = vrot.slane %v1064, 1
  %v1066 = vmax.f32 %v1064, %v1065
  %v1067 = vsel %vm264, %v186, -inf
  %v1068 = vsel %vm266, %v187, -inf
  %v1069 = vmax.f32 %v1067, %v1068
  %v1070 = vrot.slane %v1069, 4
  %v1071 = vmax.f32 %v1069, %v1070
  %v1072 = vrot.slane %v1071, 2
  %v1073 = vmax.f32 %v1071, %v1072
  %v1074 = vrot.slane %v1073, 1
  %v1075 = vmax.f32 %v1073, %v1074
  %v1076 = vsel %vm264, %v188, -inf
  %v1077 = vsel %vm266, %v189, -inf
  %v1078 = vmax.f32 %v1076, %v1077
  %v1079 = vrot.slane %v1078, 4
  %v1080 = vmax.f32 %v1078, %v1079
  %v1081 = vrot.slane %v1080, 2
  %v1082 = vmax.f32 %v1080, %v1081
  %v1083 = vrot.slane %v1082, 1
  %v1084 = vmax.f32 %v1082, %v1083
  %v1085 = vsel %vm264, %v190, -inf
  %v1086 = vsel %vm266, %v191, -inf
  %v1087 = vmax.f32 %v1085, %v1086
  %v1088 = vrot.slane %v1087, 4
  %v1089 = vmax.f32 %v1087, %v1088
  %v1090 = vrot.slane %v1089, 2
  %v1091 = vmax.f32 %v1089, %v1090
  %v1092 = vrot.slane %v1091, 1
  %v1093 = vmax.f32 %v1091, %v1092
  %v1094 = vsel %vm264, %v192, -inf
  %v1095 = vsel %vm266, %v193, -inf
  %v1096 = vmax.f32 %v1094, %v1095
  %v1097 = vrot.slane %v1096, 4
  %v1098 = vmax.f32 %v1096, %v1097
  %v1099 = vrot.slane %v1098, 2
  %v1100 = vmax.f32 %v1098, %v1099
  %v1101 = vrot.slane %v1100, 1
  %v1102 = vmax.f32 %v1100, %v1101
  %v1103 = vsel %vm264, %v194, -inf
  %v1104 = vsel %vm266, %v195, -inf
  %v1105 = vmax.f32 %v1103, %v1104
  %v1106 = vrot.slane %v1105, 4
  %v1107 = vmax.f32 %v1105, %v1106
  %v1108 = vrot.slane %v1107, 2
  %v1109 = vmax.f32 %v1107, %v1108
  %v1110 = vrot.slane %v1109, 1
  %v1111 = vmax.f32 %v1109, %v1110
  %v1112 = vsel %vm264, %v196, -inf
  %v1113 = vsel %vm266, %v197, -inf
  %v1114 = vmax.f32 %v1112, %v1113
  %v1115 = vrot.slane %v1114, 4
  %v1116 = vmax.f32 %v1114, %v1115
  %v1117 = vrot.slane %v1116, 2
  %v1118 = vmax.f32 %v1116, %v1117
  %v1119 = vrot.slane %v1118, 1
  %v1120 = vmax.f32 %v1118, %v1119
  %v1121 = vsel %vm264, %v198, -inf
  %v1122 = vsel %vm266, %v199, -inf
  %v1123 = vmax.f32 %v1121, %v1122
  %v1124 = vrot.slane %v1123, 4
  %v1125 = vmax.f32 %v1123, %v1124
  %v1126 = vrot.slane %v1125, 2
  %v1127 = vmax.f32 %v1125, %v1126
  %v1128 = vrot.slane %v1127, 1
  %v1129 = vmax.f32 %v1127, %v1128
  %v1130 = vsel %vm264, %v200, -inf
  %v1131 = vsel %vm266, %v201, -inf
  %v1132 = vmax.f32 %v1130, %v1131
  %v1133 = vrot.slane %v1132, 4
  %v1134 = vmax.f32 %v1132, %v1133
  %v1135 = vrot.slane %v1134, 2
  %v1136 = vmax.f32 %v1134, %v1135
  %v1137 = vrot.slane %v1136, 1
  %v1138 = vmax.f32 %v1136, %v1137
  %v1139 = vsel %vm264, %v202, -inf
  %v1140 = vsel %vm266, %v203, -inf
  %v1141 = vmax.f32 %v1139, %v1140
  %v1142 = vrot.slane %v1141, 4
  %v1143 = vmax.f32 %v1141, %v1142
  %v1144 = vrot.slane %v1143, 2
  %v1145 = vmax.f32 %v1143, %v1144
  %v1146 = vrot.slane %v1145, 1
  %v1147 = vmax.f32 %v1145, %v1146
  %v1148 = vsel %vm264, %v204, -inf
  %v1149 = vsel %vm266, %v205, -inf
  %v1150 = vmax.f32 %v1148, %v1149
  %v1151 = vrot.slane %v1150, 4
  %v1152 = vmax.f32 %v1150, %v1151
  %v1153 = vrot.slane %v1152, 2
  %v1154 = vmax.f32 %v1152, %v1153
  %v1155 = vrot.slane %v1154, 1
  %v1156 = vmax.f32 %v1154, %v1155
  %v1157 = vsel %vm264, %v206, -inf
  %v1158 = vsel %vm266, %v207, -inf
  %v1159 = vmax.f32 %v1157, %v1158
  %v1160 = vrot.slane %v1159, 4
  %v1161 = vmax.f32 %v1159, %v1160
  %v1162 = vrot.slane %v1161, 2
  %v1163 = vmax.f32 %v1161, %v1162
  %v1164 = vrot.slane %v1163, 1
  %v1165 = vmax.f32 %v1163, %v1164
  %v1166 = vsel %vm264, %v208, -inf
  %v1167 = vsel %vm266, %v209, -inf
  %v1168 = vmax.f32 %v1166, %v1167
  %v1169 = vrot.slane %v1168, 4
  %v1170 = vmax.f32 %v1168, %v1169
  %v1171 = vrot.slane %v1170, 2
  %v1172 = vmax.f32 %v1170, %v1171
  %v1173 = vrot.slane %v1172, 1
  %v1174 = vmax.f32 %v1172, %v1173
  %v1175 = vsel %vm264, %v210, -inf
  %v1176 = vsel %vm266, %v211, -inf
  %v1177 = vmax.f32 %v1175, %v1176
  %v1178 = vrot.slane %v1177, 4
  %v1179 = vmax.f32 %v1177, %v1178
  %v1180 = vrot.slane %v1179, 2
  %v1181 = vmax.f32 %v1179, %v1180
  %v1182 = vrot.slane %v1181, 1
  %v1183 = vmax.f32 %v1181, %v1182
  %v1184 = vsel %vm264, %v212, -inf
  %v1185 = vsel %vm266, %v213, -inf
  %v1186 = vmax.f32 %v1184, %v1185
  %v1187 = vrot.slane %v1186, 4
  %v1188 = vmax.f32 %v1186, %v1187
  %v1189 = vrot.slane %v1188, 2
  %v1190 = vmax.f32 %v1188, %v1189
  %v1191 = vrot.slane %v1190, 1
  %v1192 = vmax.f32 %v1190, %v1191
  %v1193 = vsel %vm264, %v214, -inf
  %v1194 = vsel %vm266, %v215, -inf
  %v1195 = vmax.f32 %v1193, %v1194
  %v1196 = vrot.slane %v1195, 4
  %v1197 = vmax.f32 %v1195, %v1196
  %v1198 = vrot.slane %v1197, 2
  %v1199 = vmax.f32 %v1197, %v1198
  %v1200 = vrot.slane %v1199, 1
  %v1201 = vmax.f32 %v1199, %v1200
  %v1202 = vsel %vm264, %v216, -inf
  %v1203 = vsel %vm266, %v217, -inf
  %v1204 = vmax.f32 %v1202, %v1203
  %v1205 = vrot.slane %v1204, 4
  %v1206 = vmax.f32 %v1204, %v1205
  %v1207 = vrot.slane %v1206, 2
  %v1208 = vmax.f32 %v1206, %v1207
  %v1209 = vrot.slane %v1208, 1
  %v1210 = vmax.f32 %v1208, %v1209
  %v1211 = vsel %vm264, %v218, -inf
  %v1212 = vsel %vm266, %v219, -inf
  %v1213 = vmax.f32 %v1211, %v1212
  %v1214 = vrot.slane %v1213, 4
  %v1215 = vmax.f32 %v1213, %v1214
  %v1216 = vrot.slane %v1215, 2
  %v1217 = vmax.f32 %v1215, %v1216
  %v1218 = vrot.slane %v1217, 1
  %v1219 = vmax.f32 %v1217, %v1218
  %v1220 = vsel %vm264, %v220, -inf
  %v1221 = vsel %vm266, %v221, -inf
  %v1222 = vmax.f32 %v1220, %v1221
  %v1223 = vrot.slane %v1222, 4
  %v1224 = vmax.f32 %v1222, %v1223
  %v1225 = vrot.slane %v1224, 2
  %v1226 = vmax.f32 %v1224, %v1225
  %v1227 = vrot.slane %v1226, 1
  %v1228 = vmax.f32 %v1226, %v1227
  %v1229 = vsel %vm264, %v222, -inf
  %v1230 = vsel %vm266, %v223, -inf
  %v1231 = vmax.f32 %v1229, %v1230
  %v1232 = vrot.slane %v1231, 4
  %v1233 = vmax.f32 %v1231, %v1232
  %v1234 = vrot.slane %v1233, 2
  %v1235 = vmax.f32 %v1233, %v1234
  %v1236 = vrot.slane %v1235, 1
  %v1237 = vmax.f32 %v1235, %v1236
  %v1238 = vsel %vm264, %v224, -inf
  %v1239 = vsel %vm266, %v225, -inf
  %v1240 = vmax.f32 %v1238, %v1239
  %v1241 = vrot.slane %v1240, 4
  %v1242 = vmax.f32 %v1240, %v1241
  %v1243 = vrot.slane %v1242, 2
  %v1244 = vmax.f32 %v1242, %v1243
  %v1245 = vrot.slane %v1244, 1
  %v1246 = vmax.f32 %v1244, %v1245
  %v1247 = vsel %vm264, %v226, -inf
  %v1248 = vsel %vm266, %v227, -inf
  %v1249 = vmax.f32 %v1247, %v1248
  %v1250 = vrot.slane %v1249, 4
  %v1251 = vmax.f32 %v1249, %v1250
  %v1252 = vrot.slane %v1251, 2
  %v1253 = vmax.f32 %v1251, %v1252
  %v1254 = vrot.slane %v1253, 1
  %v1255 = vmax.f32 %v1253, %v1254
  %v1256 = vsel %vm264, %v228, -inf
  %v1257 = vsel %vm266, %v229, -inf
  %v1258 = vmax.f32 %v1256, %v1257
  %v1259 = vrot.slane %v1258, 4
  %v1260 = vmax.f32 %v1258, %v1259
  %v1261 = vrot.slane %v1260, 2
  %v1262 = vmax.f32 %v1260, %v1261
  %v1263 = vrot.slane %v1262, 1
  %v1264 = vmax.f32 %v1262, %v1263
  %v1265 = vsel %vm264, %v230, -inf
  %v1266 = vsel %vm266, %v231, -inf
  %v1267 = vmax.f32 %v1265, %v1266
  %v1268 = vrot.slane %v1267, 4
  %v1269 = vmax.f32 %v1267, %v1268
  %v1270 = vrot.slane %v1269, 2
  %v1271 = vmax.f32 %v1269, %v1270
  %v1272 = vrot.slane %v1271, 1
  %v1273 = vmax.f32 %v1271, %v1272
  %v1274 = vsel %vm264, %v232, -inf
  %v1275 = vsel %vm266, %v233, -inf
  %v1276 = vmax.f32 %v1274, %v1275
  %v1277 = vrot.slane %v1276, 4
  %v1278 = vmax.f32 %v1276, %v1277
  %v1279 = vrot.slane %v1278, 2
  %v1280 = vmax.f32 %v1278, %v1279
  %v1281 = vrot.slane %v1280, 1
  %v1282 = vmax.f32 %v1280, %v1281
  %v1283 = vsel %vm264, %v234, -inf
  %v1284 = vsel %vm266, %v235, -inf
  %v1285 = vmax.f32 %v1283, %v1284
  %v1286 = vrot.slane %v1285, 4
  %v1287 = vmax.f32 %v1285, %v1286
  %v1288 = vrot.slane %v1287, 2
  %v1289 = vmax.f32 %v1287, %v1288
  %v1290 = vrot.slane %v1289, 1
  %v1291 = vmax.f32 %v1289, %v1290
  %v1292 = vsel %vm264, %v236, -inf
  %v1293 = vsel %vm266, %v237, -inf
  %v1294 = vmax.f32 %v1292, %v1293
  %v1295 = vrot.slane %v1294, 4
  %v1296 = vmax.f32 %v1294, %v1295
  %v1297 = vrot.slane %v1296, 2
  %v1298 = vmax.f32 %v1296, %v1297
  %v1299 = vrot.slane %v1298, 1
  %v1300 = vmax.f32 %v1298, %v1299
  %v1301 = vsel %vm264, %v238, -inf
  %v1302 = vsel %vm266, %v239, -inf
  %v1303 = vmax.f32 %v1301, %v1302
  %v1304 = vrot.slane %v1303, 4
  %v1305 = vmax.f32 %v1303, %v1304
  %v1306 = vrot.slane %v1305, 2
  %v1307 = vmax.f32 %v1305, %v1306
  %v1308 = vrot.slane %v1307, 1
  %v1309 = vmax.f32 %v1307, %v1308
  %v1310 = vsel %vm264, %v240, -inf
  %v1311 = vsel %vm266, %v241, -inf
  %v1312 = vmax.f32 %v1310, %v1311
  %v1313 = vrot.slane %v1312, 4
  %v1314 = vmax.f32 %v1312, %v1313
  %v1315 = vrot.slane %v1314, 2
  %v1316 = vmax.f32 %v1314, %v1315
  %v1317 = vrot.slane %v1316, 1
  %v1318 = vmax.f32 %v1316, %v1317
  %v1319 = vsel %vm264, %v242, -inf
  %v1320 = vsel %vm266, %v243, -inf
  %v1321 = vmax.f32 %v1319, %v1320
  %v1322 = vrot.slane %v1321, 4
  %v1323 = vmax.f32 %v1321, %v1322
  %v1324 = vrot.slane %v1323, 2
  %v1325 = vmax.f32 %v1323, %v1324
  %v1326 = vrot.slane %v1325, 1
  %v1327 = vmax.f32 %v1325, %v1326
  %v1328 = vsel %vm264, %v244, -inf
  %v1329 = vsel %vm266, %v245, -inf
  %v1330 = vmax.f32 %v1328, %v1329
  %v1331 = vrot.slane %v1330, 4
  %v1332 = vmax.f32 %v1330, %v1331
  %v1333 = vrot.slane %v1332, 2
  %v1334 = vmax.f32 %v1332, %v1333
  %v1335 = vrot.slane %v1334, 1
  %v1336 = vmax.f32 %v1334, %v1335
  %v1337 = vsel %vm264, %v246, -inf
  %v1338 = vsel %vm266, %v247, -inf
  %v1339 = vmax.f32 %v1337, %v1338
  %v1340 = vrot.slane %v1339, 4
  %v1341 = vmax.f32 %v1339, %v1340
  %v1342 = vrot.slane %v1341, 2
  %v1343 = vmax.f32 %v1341, %v1342
  %v1344 = vrot.slane %v1343, 1
  %v1345 = vmax.f32 %v1343, %v1344
  %v1346 = vsel %vm264, %v248, -inf
  %v1347 = vsel %vm266, %v249, -inf
  %v1348 = vmax.f32 %v1346, %v1347
  %v1349 = vrot.slane %v1348, 4
  %v1350 = vmax.f32 %v1348, %v1349
  %v1351 = vrot.slane %v1350, 2
  %v1352 = vmax.f32 %v1350, %v1351
  %v1353 = vrot.slane %v1352, 1
  %v1354 = vmax.f32 %v1352, %v1353
  %v1355 = vsel %vm264, %v250, -inf
  %v1356 = vsel %vm266, %v251, -inf
  %v1357 = vmax.f32 %v1355, %v1356
  %v1358 = vrot.slane %v1357, 4
  %v1359 = vmax.f32 %v1357, %v1358
  %v1360 = vrot.slane %v1359, 2
  %v1361 = vmax.f32 %v1359, %v1360
  %v1362 = vrot.slane %v1361, 1
  %v1363 = vmax.f32 %v1361, %v1362
  %v1364 = vsel %vm264, %v252, -inf
  %v1365 = vsel %vm266, %v253, -inf
  %v1366 = vmax.f32 %v1364, %v1365
  %v1367 = vrot.slane %v1366, 4
  %v1368 = vmax.f32 %v1366, %v1367
  %v1369 = vrot.slane %v1368, 2
  %v1370 = vmax.f32 %v1368, %v1369
  %v1371 = vrot.slane %v1370, 1
  %v1372 = vmax.f32 %v1370, %v1371
  %v1373 = vsel %vm264, %v254, -inf
  %v1374 = vsel %vm266, %v255, -inf
  %v1375 = vmax.f32 %v1373, %v1374
  %v1376 = vrot.slane %v1375, 4
  %v1377 = vmax.f32 %v1375, %v1376
  %v1378 = vrot.slane %v1377, 2
  %v1379 = vmax.f32 %v1377, %v1378
  %v1380 = vrot.slane %v1379, 1
  %v1381 = vmax.f32 %v1379, %v1380
  %v1382 = vsel %vm264, %v256, -inf
  %v1383 = vsel %vm266, %v257, -inf
  %v1384 = vmax.f32 %v1382, %v1383
  %v1385 = vrot.slane %v1384, 4
  %v1386 = vmax.f32 %v1384, %v1385
  %v1387 = vrot.slane %v1386, 2
  %v1388 = vmax.f32 %v1386, %v1387
  %v1389 = vrot.slane %v1388, 1
  %v1390 = vmax.f32 %v1388, %v1389
  %v1391 = vsel %vm264, %v258, -inf
  %v1392 = vsel %vm266, %v259, -inf
  %v1393 = vmax.f32 %v1391, %v1392
  %v1394 = vrot.slane %v1393, 4
  %v1395 = vmax.f32 %v1393, %v1394
  %v1396 = vrot.slane %v1395, 2
  %v1397 = vmax.f32 %v1395, %v1396
  %v1398 = vrot.slane %v1397, 1
  %v1399 = vmax.f32 %v1397, %v1398
  %v1400 = vsel %vm264, %v260, -inf
  %v1401 = vsel %vm266, %v261, -inf
  %v1402 = vmax.f32 %v1400, %v1401
  %v1403 = vrot.slane %v1402, 4
  %v1404 = vmax.f32 %v1402, %v1403
  %v1405 = vrot.slane %v1404, 2
  %v1406 = vmax.f32 %v1404, %v1405
  %v1407 = vrot.slane %v1406, 1
  %v1408 = vmax.f32 %v1406, %v1407
  %v1409 = vsel %vm264, %v262, -inf
  %v1410 = vsel %vm266, %v263, -inf
  %v1411 = vmax.f32 %v1409, %v1410
  %v1412 = vrot.slane %v1411, 4
  %v1413 = vmax.f32 %v1411, %v1412
  %v1414 = vrot.slane %v1413, 2
  %v1415 = vmax.f32 %v1413, %v1414
  %v1416 = vrot.slane %v1415, 1
  %v1417 = vmax.f32 %v1415, %v1416
  %vm1546 = vcmask 1041409
  %v1547 = vsel %vm1546, %v283, %v274
  %vm1548 = vcmask 1042434
  %v1549 = vsel %vm1548, %v292, %v1547
  %vm1550 = vcmask 1043459
  %v1551 = vsel %vm1550, %v301, %v1549
  %vm1552 = vcmask 1044484
  %v1553 = vsel %vm1552, %v310, %v1551
  %vm1554 = vcmask 1045509
  %v1555 = vsel %vm1554, %v319, %v1553
  %vm1556 = vcmask 1046534
  %v1557 = vsel %vm1556, %v328, %v1555
  %vm1558 = vcmask 1047559
  %v1559 = vsel %vm1558, %v337, %v1557
  %v1560 = vsel %vm1546, %v355, %v346
  %v1561 = vsel %vm1548, %v364, %v1560
  %v1562 = vsel %vm1550, %v373, %v1561
  %v1563 = vsel %vm1552, %v382, %v1562
  %v1564 = vsel %vm1554, %v391, %v1563
  %v1565 = vsel %vm1556, %v400, %v1564
  %v1566 = vsel %vm1558, %v409, %v1565
  %v1567 = vsel %vm1546, %v427, %v418
  %v1568 = vsel %vm1548, %v436, %v1567
  %v1569 = vsel %vm1550, %v445, %v1568
  %v1570 = vsel %vm1552, %v454, %v1569
  %v1571 = vsel %vm1554, %v463, %v1570
  %v1572 = vsel %vm1556, %v472, %v1571
  %v1573 = vsel %vm1558, %v481, %v1572
  %v1574 = vsel %vm1546, %v499, %v490
  %v1575 = vsel %vm1548, %v508, %v1574
  %v1576 = vsel %vm1550, %v517, %v1575
  %v1577 = vsel %vm1552, %v526, %v1576
  %v1578 = vsel %vm1554, %v535, %v1577
  %v1579 = vsel %vm1556, %v544, %v1578
  %v1580 = vsel %vm1558, %v553, %v1579
  %v1581 = vsel %vm1546, %v571, %v562
  %v1582 = vsel %vm1548, %v580, %v1581
  %v1583 = vsel %vm1550, %v589, %v1582
  %v1584 = vsel %vm1552, %v598, %v1583
  %v1585 = vsel %vm1554, %v607, %v1584
  %v1586 = vsel %vm1556, %v616, %v1585
  %v1587 = vsel %vm1558, %v625, %v1586
  %v1588 = vsel %vm1546, %v643, %v634
  %v1589 = vsel %vm1548, %v652, %v1588
  %v1590 = vsel %vm1550, %v661, %v1589
  %v1591 = vsel %vm1552, %v670, %v1590
  %v1592 = vsel %vm1554, %v679, %v1591
  %v1593 = vsel %vm1556, %v688, %v1592
  %v1594 = vsel %vm1558, %v697, %v1593
  %v1595 = vsel %vm1546, %v715, %v706
  %v1596 = vsel %vm1548, %v724, %v1595
  %v1597 = vsel %vm1550, %v733, %v1596
  %v1598 = vsel %vm1552, %v742, %v1597
  %v1599 = vsel %vm1554, %v751, %v1598
  %v1600 = vsel %vm1556, %v760, %v1599
  %v1601 = vsel %vm1558, %v769, %v1600
  %v1602 = vsel %vm1546, %v787, %v778
  %v1603 = vsel %vm1548, %v796, %v1602
  %v1604 = vsel %vm1550, %v805, %v1603
  %v1605 = vsel %vm1552, %v814, %v1604
  %v1606 = vsel %vm1554, %v823, %v1605
  %v1607 = vsel %vm1556, %v832, %v1606
  %v1608 = vsel %vm1558, %v841, %v1607
  %v1609 = vsel %vm1546, %v859, %v850
  %v1610 = vsel %vm1548, %v868, %v1609
  %v1611 = vsel %vm1550, %v877, %v1610
  %v1612 = vsel %vm1552, %v886, %v1611
  %v1613 = vsel %vm1554, %v895, %v1612
  %v1614 = vsel %vm1556, %v904, %v1613
  %v1615 = vsel %vm1558, %v913, %v1614
  %v1616 = vsel %vm1546, %v931, %v922
  %v1617 = vsel %vm1548, %v940, %v1616
  %v1618 = vsel %vm1550, %v949, %v1617
  %v1619 = vsel %vm1552, %v958, %v1618
  %v1620 = vsel %vm1554, %v967, %v1619
  %v1621 = vsel %vm1556, %v976, %v1620
  %v1622 = vsel %vm1558, %v985, %v1621
  %v1623 = vsel %vm1546, %v1003, %v994
  %v1624 = vsel %vm1548, %v1012, %v1623
  %v1625 = vsel %vm1550, %v1021, %v1624
  %v1626 = vsel %vm1552, %v1030, %v1625
  %v1627 = vsel %vm1554, %v1039, %v1626
  %v1628 = vsel %vm1556, %v1048, %v1627
  %v1629 = vsel %vm1558, %v1057, %v1628
  %v1630 = vsel %vm1546, %v1075, %v1066
  %v1631 = vsel %vm1548, %v1084, %v1630
  %v1632 = vsel %vm1550, %v1093, %v1631
  %v1633 = vsel %vm1552, %v1102, %v1632
  %v1634 = vsel %vm1554, %v1111, %v1633
  %v1635 = vsel %vm1556, %v1120, %v1634
  %v1636 = vsel %vm1558, %v1129, %v1635
  %v1637 = vsel %vm1546, %v1147, %v1138
  %v1638 = vsel %vm1548, %v1156, %v1637
  %v1639 = vsel %vm1550, %v1165, %v1638
  %v1640 = vsel %vm1552, %v1174, %v1639
  %v1641 = vsel %vm1554, %v1183, %v1640
  %v1642 = vsel %vm1556, %v1192, %v1641
  %v1643 = vsel %vm1558, %v1201, %v1642
  %v1644 = vsel %vm1546, %v1219, %v1210
  %v1645 = vsel %vm1548, %v1228, %v1644
  %v1646 = vsel %vm1550, %v1237, %v1645
  %v1647 = vsel %vm1552, %v1246, %v1646
  %v1648 = vsel %vm1554, %v1255, %v1647
  %v1649 = vsel %vm1556, %v1264, %v1648
  %v1650 = vsel %vm1558, %v1273, %v1649
  %v1651 = vsel %vm1546, %v1291, %v1282
  %v1652 = vsel %vm1548, %v1300, %v1651
  %v1653 = vsel %vm1550, %v1309, %v1652
  %v1654 = vsel %vm1552, %v1318, %v1653
  %v1655 = vsel %vm1554, %v1327, %v1654
  %v1656 = vsel %vm1556, %v1336, %v1655
  %v1657 = vsel %vm1558, %v1345, %v1656
  %v1658 = vsel %vm1546, %v1363, %v1354
  %v1659 = vsel %vm1548, %v1372, %v1658
  %v1660 = vsel %vm1550, %v1381, %v1659
  %v1661 = vsel %vm1552, %v1390, %v1660
  %v1662 = vsel %vm1554, %v1399, %v1661
  %v1663 = vsel %vm1556, %v1408, %v1662
  %v1664 = vsel %vm1558, %v1417, %v1663
  %1681 = vst.msk [vmem:[%s1] sm:$0xff] %vm264, %v1559
  %1682 = vst.msk [vmem:[%s1 + $0x8] sm:$0xff] %vm264, %v1566
  %1683 = vst.msk [vmem:[%s1 + $0x10] sm:$0xff] %vm264, %v1573
  %1684 = vst.msk [vmem:[%s1 + $0x18] sm:$0xff] %vm264, %v1580
  %1685 = vst.msk [vmem:[%s1 + $0x20] sm:$0xff] %vm264, %v1587
  %1686 = vst.msk [vmem:[%s1 + $0x28] sm:$0xff] %vm264, %v1594
  %1687 = vst.msk [vmem:[%s1 + $0x30] sm:$0xff] %vm264, %v1601
  %1688 = vst.msk [vmem:[%s1 + $0x38] sm:$0xff] %vm264, %v1608
  %1689 = vst.msk [vmem:[%s1 + $0x40] sm:$0xff] %vm264, %v1615
  %1690 = vst.msk [vmem:[%s1 + $0x48] sm:$0xff] %vm264, %v1622
  %1691 = vst.msk [vmem:[%s1 + $0x50] sm:$0xff] %vm264, %v1629
  %1692 = vst.msk [vmem:[%s1 + $0x58] sm:$0xff] %vm264, %v1636
  %1693 = vst.msk [vmem:[%s1 + $0x60] sm:$0xff] %vm264, %v1643
  %1694 = vst.msk [vmem:[%s1 + $0x68] sm:$0xff] %vm264, %v1650
  %1695 = vst.msk [vmem:[%s1 + $0x70] sm:$0xff] %vm264, %v1657
  %1696 = vst.msk [vmem:[%s1 + $0x78] sm:$0xff] %vm264, %v1664
  // Predicated region
  $region6: #{pneumonianet_forward.38} parent=0 // pred_check
    _
  $region7: #{pneumonianet_forward.38} parent=0 // pred_check_branch
    %1698 = sbr.rel (0) target = $region9
  $region8: #{pneumonianet_forward.38} parent=0 // pred_region
    _
  $region9: #{pneumonianet_forward.38} parent=0 // pred_fallthru
    _
  // Predicated region
  $region10: #{pneumonianet_forward.38} parent=0 // pred_check
    _
  $region11: #{pneumonianet_forward.38} parent=0 // pred_check_branch
    %1700 = sbr.rel (0) target = $region13
  $region12: #{pneumonianet_forward.38} parent=0 // pred_region
    _
  $region13: #{pneumonianet_forward.38} parent=0 // pred_fallthru
    _

// kernel: pneumonianet_forward.39
$region0: #{pneumonianet_forward.39}
  #allocation0 [shape = 'u32[]', space=smem, size = 0x4, offset = 0x4, fixed_abs, tag = 'smem constant byte address 0x4 - core index']
  #allocation1 [shape = 'u32[72,128]{1,0:T(1,128)}', space=vmem, size = 0x9000, scoped, tag = 'internal scratch']
  %s0 = inlined_call_operand.vmem [shape: f32[128,16], index: 0, kind: input, shape index: {}]
  %s1 = inlined_call_operand.vmem [shape: f32[1,16], index: 1, kind: input, shape index: {}]
  %s2 = inlined_call_operand.vmem [shape: f32[1,16], index: 2, kind: input, shape index: {}]
  %s3 = inlined_call_operand.vmem [shape: f32[128,16], index: 3, kind: output, shape index: {}]
  %s4 = sld [smem:[#allocation0]]
  $region22: #{pneumonianet_forward.39} parent=0
    _
  %s6 = ssub.s32 1, %s4
  %s7 = scalar_select 0, %s6, %s4
  // Predicated region
  $region2: #{pneumonianet_forward.39} parent=0 // pred_check
    _
  $region3: #{pneumonianet_forward.39} parent=0 // pred_check_branch
    %9 = sbr.rel (0) target = $region5
  $region4: #{pneumonianet_forward.39} parent=0 // pred_region
    _
  $region5: #{pneumonianet_forward.39} parent=0 // pred_fallthru
    _
  // Predicated region
  $region6: #{pneumonianet_forward.39} parent=0 // pred_check
    _
  $region7: #{pneumonianet_forward.39} parent=0 // pred_check_branch
    %11 = sbr.rel (0) target = $region9
  $region8: #{pneumonianet_forward.39} parent=0 // pred_region
    _
  $region9: #{pneumonianet_forward.39} parent=0 // pred_fallthru
    _
  // Predicated region
  $region10: #{pneumonianet_forward.39} parent=0 // pred_check
    _
  $region11: #{pneumonianet_forward.39} parent=0 // pred_check_branch
    %13 = sbr.rel (0) target = $region13
  $region12: #{pneumonianet_forward.39} parent=0 // pred_region
    _
  $region13: #{pneumonianet_forward.39} parent=0 // pred_fallthru
    _
  %v14 = vld [vmem:[%s0] sm:$0xff]
  %v15 = vld [vmem:[%s0 + $0x8] sm:$0xff]
  %v16 = vld [vmem:[%s0 + $0x10] sm:$0xff]
  %v17 = vld [vmem:[%s0 + $0x18] sm:$0xff]
  %v18 = vld [vmem:[%s0 + $0x20] sm:$0xff]
  %v19 = vld [vmem:[%s0 + $0x28] sm:$0xff]
  %v20 = vld [vmem:[%s0 + $0x30] sm:$0xff]
  %v21 = vld [vmem:[%s0 + $0x38] sm:$0xff]
  %v22 = vld [vmem:[%s0 + $0x40] sm:$0xff]
  %v23 = vld [vmem:[%s0 + $0x48] sm:$0xff]
  %v24 = vld [vmem:[%s0 + $0x50] sm:$0xff]
  %v25 = vld [vmem:[%s0 + $0x58] sm:$0xff]
  %v26 = vld [vmem:[%s0 + $0x60] sm:$0xff]
  %v27 = vld [vmem:[%s0 + $0x68] sm:$0xff]
  %v28 = vld [vmem:[%s0 + $0x70] sm:$0xff]
  %v29 = vld [vmem:[%s0 + $0x78] sm:$0xff]
  %v30 = vld [vmem:[%s1] sm:$0x1]
  %v32 = vperm.slane %v30, 0
  %v34 = vmul.f32 %v14, %v32
  %v35 = vmul.f32 %v15, %v32
  %v36 = vmul.f32 %v16, %v32
  %v37 = vmul.f32 %v17, %v32
  %v38 = vmul.f32 %v18, %v32
  %v39 = vmul.f32 %v19, %v32
  %v40 = vmul.f32 %v20, %v32
  %v41 = vmul.f32 %v21, %v32
  %v42 = vmul.f32 %v22, %v32
  %v43 = vmul.f32 %v23, %v32
  %v44 = vmul.f32 %v24, %v32
  %v45 = vmul.f32 %v25, %v32
  %v46 = vmul.f32 %v26, %v32
  %v47 = vmul.f32 %v27, %v32
  %v48 = vmul.f32 %v28, %v32
  %v49 = vmul.f32 %v29, %v32
  %v50 = vld [vmem:[%s2] sm:$0x1]
  %v52 = vperm.slane %v50, 0
  %v54 = vadd.f32 %v34, %v52
  %v55 = vadd.f32 %v35, %v52
  %v56 = vadd.f32 %v36, %v52
  %v57 = vadd.f32 %v37, %v52
  %v58 = vadd.f32 %v38, %v52
  %v59 = vadd.f32 %v39, %v52
  %v60 = vadd.f32 %v40, %v52
  %v61 = vadd.f32 %v41, %v52
  %v62 = vadd.f32 %v42, %v52
  %v63 = vadd.f32 %v43, %v52
  %v64 = vadd.f32 %v44, %v52
  %v65 = vadd.f32 %v45, %v52
  %v66 = vadd.f32 %v46, %v52
  %v67 = vadd.f32 %v47, %v52
  %v68 = vadd.f32 %v48, %v52
  %v69 = vadd.f32 %v49, %v52
  %v70 = vmax.f32 %v54, 0.0
  %v71 = vmax.f32 %v55, 0.0
  %v72 = vmax.f32 %v56, 0.0
  %v73 = vmax.f32 %v57, 0.0
  %v74 = vmax.f32 %v58, 0.0
  %v75 = vmax.f32 %v59, 0.0
  %v76 = vmax.f32 %v60, 0.0
  %v77 = vmax.f32 %v61, 0.0
  %v78 = vmax.f32 %v62, 0.0
  %v79 = vmax.f32 %v63, 0.0
  %v80 = vmax.f32 %v64, 0.0
  %v81 = vmax.f32 %v65, 0.0
  %v82 = vmax.f32 %v66, 0.0
  %v83 = vmax.f32 %v67, 0.0
  %v84 = vmax.f32 %v68, 0.0
  %v85 = vmax.f32 %v69, 0.0
  %vm86 = vcmask 130048
  %87 = vst.msk [vmem:[%s3] sm:$0xff] %vm86, %v70
  %88 = vst.msk [vmem:[%s3 + $0x8] sm:$0xff] %vm86, %v71
  %89 = vst.msk [vmem:[%s3 + $0x10] sm:$0xff] %vm86, %v72
  %90 = vst.msk [vmem:[%s3 + $0x18] sm:$0xff] %vm86, %v73
  %91 = vst.msk [vmem:[%s3 + $0x20] sm:$0xff] %vm86, %v74
  %92 = vst.msk [vmem:[%s3 + $0x28] sm:$0xff] %vm86, %v75
  %93 = vst.msk [vmem:[%s3 + $0x30] sm:$0xff] %vm86, %v76
  %94 = vst.msk [vmem:[%s3 + $0x38] sm:$0xff] %vm86, %v77
  %95 = vst.msk [vmem:[%s3 + $0x40] sm:$0xff] %vm86, %v78
  %96 = vst.msk [vmem:[%s3 + $0x48] sm:$0xff] %vm86, %v79
  %97 = vst.msk [vmem:[%s3 + $0x50] sm:$0xff] %vm86, %v80
  %98 = vst.msk [vmem:[%s3 + $0x58] sm:$0xff] %vm86, %v81
  %99 = vst.msk [vmem:[%s3 + $0x60] sm:$0xff] %vm86, %v82
  %100 = vst.msk [vmem:[%s3 + $0x68] sm:$0xff] %vm86, %v83
  %101 = vst.msk [vmem:[%s3 + $0x70] sm:$0xff] %vm86, %v84
  %102 = vst.msk [vmem:[%s3 + $0x78] sm:$0xff] %vm86, %v85
  // Predicated region
  $region14: #{pneumonianet_forward.39} parent=0 // pred_check
    _
  $region15: #{pneumonianet_forward.39} parent=0 // pred_check_branch
    %104 = sbr.rel (0) target = $region17
  $region16: #{pneumonianet_forward.39} parent=0 // pred_region
    _
  $region17: #{pneumonianet_forward.39} parent=0 // pred_fallthru
    _
  // Predicated region
  $region18: #{pneumonianet_forward.39} parent=0 // pred_check
    _
  $region19: #{pneumonianet_forward.39} parent=0 // pred_check_branch
    %106 = sbr.rel (0) target = $region21
  $region20: #{pneumonianet_forward.39} parent=0 // pred_region
    _
  $region21: #{pneumonianet_forward.39} parent=0 // pred_fallthru
    _

// kernel: pneumonianet_forward.40
$region0: #{pneumonianet_forward.40}
  #allocation0 [shape = 'u32[]', space=smem, size = 0x4, offset = 0x4, fixed_abs, tag = 'smem constant byte address 0x4 - core index']
  #allocation1 [shape = 'u32[72,128]{1,0:T(1,128)}', space=vmem, size = 0x9000, scoped, tag = 'internal scratch']
  %s0 = inlined_call_operand.vmem [shape: bf16[128,128], index: 0, kind: input, shape index: {}]
  %s1 = inlined_call_operand.vmem [shape: bf16[128,128], index: 1, kind: input, shape index: {}]
  %s2 = inlined_call_operand.vmem [shape: f32[1,128], index: 2, kind: input, shape index: {}]
  %s3 = inlined_call_operand.vmem [shape: f32[1,128], index: 3, kind: input, shape index: {}]
  %s4 = inlined_call_operand.vmem [shape: f32[128,128], index: 4, kind: output, shape index: {}]
  %s5 = sld [smem:[#allocation0]]
  $region26: #{pneumonianet_forward.40} parent=0
    _
  %s7 = ssub.s32 1, %s5
  %s8 = scalar_select 0, %s7, %s5
  // Predicated region
  $region2: #{pneumonianet_forward.40} parent=0 // pred_check
    _
  $region3: #{pneumonianet_forward.40} parent=0 // pred_check_branch
    %10 = sbr.rel (0) target = $region5
  $region4: #{pneumonianet_forward.40} parent=0 // pred_region
    _
  $region5: #{pneumonianet_forward.40} parent=0 // pred_fallthru
    _
  // Predicated region
  $region6: #{pneumonianet_forward.40} parent=0 // pred_check
    _
  $region7: #{pneumonianet_forward.40} parent=0 // pred_check_branch
    %12 = sbr.rel (0) target = $region9
  $region8: #{pneumonianet_forward.40} parent=0 // pred_region
    _
  $region9: #{pneumonianet_forward.40} parent=0 // pred_fallthru
    _
  // Predicated region
  $region10: #{pneumonianet_forward.40} parent=0 // pred_check
    _
  $region11: #{pneumonianet_forward.40} parent=0 // pred_check_branch
    %14 = sbr.rel (0) target = $region13
  $region12: #{pneumonianet_forward.40} parent=0 // pred_region
    _
  $region13: #{pneumonianet_forward.40} parent=0 // pred_fallthru
    _
  // Predicated region
  $region14: #{pneumonianet_forward.40} parent=0 // pred_check
    _
  $region15: #{pneumonianet_forward.40} parent=0 // pred_check_branch
    %16 = sbr.rel (0) target = $region17
  $region16: #{pneumonianet_forward.40} parent=0 // pred_region
    _
  $region17: #{pneumonianet_forward.40} parent=0 // pred_fallthru
    _
  %v17 = vld [vmem:[%s0] sm:$0xf]
  %v18 = vld [vmem:[%s0 + $0x4] sm:$0xf]
  %v19 = vld [vmem:[%s0 + $0x8] sm:$0xf]
  %v20 = vld [vmem:[%s0 + $0xc] sm:$0xf]
  %v21 = vld [vmem:[%s0 + $0x10] sm:$0xf]
  %v22 = vld [vmem:[%s0 + $0x14] sm:$0xf]
  %v23 = vld [vmem:[%s0 + $0x18] sm:$0xf]
  %v24 = vld [vmem:[%s0 + $0x1c] sm:$0xf]
  %v25 = vld [vmem:[%s0 + $0x20] sm:$0xf]
  %v26 = vld [vmem:[%s0 + $0x24] sm:$0xf]
  %v27 = vld [vmem:[%s0 + $0x28] sm:$0xf]
  %v28 = vld [vmem:[%s0 + $0x2c] sm:$0xf]
  %v29 = vld [vmem:[%s0 + $0x30] sm:$0xf]
  %v30 = vld [vmem:[%s0 + $0x34] sm:$0xf]
  %v31 = vld [vmem:[%s0 + $0x38] sm:$0xf]
  %v32 = vld [vmem:[%s0 + $0x3c] sm:$0xf]
  %v33 = vld [vmem:[%s1] sm:$0xf]
  %v34 = vld [vmem:[%s1 + $0x4] sm:$0xf]
  %v35 = vld [vmem:[%s1 + $0x8] sm:$0xf]
  %v36 = vld [vmem:[%s1 + $0xc] sm:$0xf]
  %v37 = vld [vmem:[%s1 + $0x10] sm:$0xf]
  %v38 = vld [vmem:[%s1 + $0x14] sm:$0xf]
  %v39 = vld [vmem:[%s1 + $0x18] sm:$0xf]
  %v40 = vld [vmem:[%s1 + $0x1c] sm:$0xf]
  %v41 = vld [vmem:[%s1 + $0x20] sm:$0xf]
  %v42 = vld [vmem:[%s1 + $0x24] sm:$0xf]
  %v43 = vld [vmem:[%s1 + $0x28] sm:$0xf]
  %v44 = vld [vmem:[%s1 + $0x2c] sm:$0xf]
  %v45 = vld [vmem:[%s1 + $0x30] sm:$0xf]
  %v46 = vld [vmem:[%s1 + $0x34] sm:$0xf]
  %v47 = vld [vmem:[%s1 + $0x38] sm:$0xf]
  %v48 = vld [vmem:[%s1 + $0x3c] sm:$0xf]
  %v65 = vunpack.c.l.b16 %v17
  %v66 = vunpack.c.l.b16 %v18
  %v67 = vunpack.c.l.b16 %v19
  %v68 = vunpack.c.l.b16 %v20
  %v69 = vunpack.c.l.b16 %v21
  %v70 = vunpack.c.l.b16 %v22
  %v71 = vunpack.c.l.b16 %v23
  %v72 = vunpack.c.l.b16 %v24
  %v73 = vunpack.c.l.b16 %v25
  %v74 = vunpack.c.l.b16 %v26
  %v75 = vunpack.c.l.b16 %v27
  %v76 = vunpack.c.l.b16 %v28
  %v77 = vunpack.c.l.b16 %v29
  %v78 = vunpack.c.l.b16 %v30
  %v79 = vunpack.c.l.b16 %v31
  %v80 = vunpack.c.l.b16 %v32
  %v81 = vpack.c.b16 %v66, %v65
  %v82 = vpack.c.b16 %v68, %v67
  %v83 = vpack.c.b16 %v70, %v69
  %v84 = vpack.c.b16 %v72, %v71
  %v85 = vpack.c.b16 %v74, %v73
  %v86 = vpack.c.b16 %v76, %v75
  %v87 = vpack.c.b16 %v78, %v77
  %v88 = vpack.c.b16 %v80, %v79
  %v113 = vunpack.c.l.b16 %v33
  %v114 = vunpack.c.l.b16 %v34
  %v115 = vunpack.c.l.b16 %v35
  %v116 = vunpack.c.l.b16 %v36
  %v117 = vunpack.c.l.b16 %v37
  %v118 = vunpack.c.l.b16 %v38
  %v119 = vunpack.c.l.b16 %v39
  %v120 = vunpack.c.l.b16 %v40
  %v121 = vunpack.c.l.b16 %v41
  %v122 = vunpack.c.l.b16 %v42
  %v123 = vunpack.c.l.b16 %v43
  %v124 = vunpack.c.l.b16 %v44
  %v125 = vunpack.c.l.b16 %v45
  %v126 = vunpack.c.l.b16 %v46
  %v127 = vunpack.c.l.b16 %v47
  %v128 = vunpack.c.l.b16 %v48
  %v129 = vpack.c.b16 %v114, %v113
  %v130 = vpack.c.b16 %v116, %v115
  %v131 = vpack.c.b16 %v118, %v117
  %v132 = vpack.c.b16 %v120, %v119
  %v133 = vpack.c.b16 %v122, %v121
  %v134 = vpack.c.b16 %v124, %v123
  %v135 = vpack.c.b16 %v126, %v125
  %v136 = vpack.c.b16 %v128, %v127
  %145 = vmatpush.bf16.msra.mxu0 %v136
  %146 = vmatpush.bf16.msra.mxu0 %v135
  %147 = vmatpush.bf16.msra.mxu0 %v134
  %148 = vmatpush.bf16.msra.mxu0 %v133
  %149 = vmatpush.bf16.msra.mxu0 %v132
  %150 = vmatpush.bf16.msra.mxu0 %v131
  %151 = vmatpush.bf16.msra.mxu0 %v130
  %152 = vmatpush.bf16.msra.mxu0 %v129
  %153 = vmatmul.bf16.gmra.mxu0 %v81
  %v154 = vpop.f32.mrf.mxu0
  %v155 = vadd.f32 0.0, %v154
  %v156 = vpop.f32.mrf.mxu0
  %v157 = vadd.f32 0.0, %v156
  %158 = vmatmul.bf16.gmra.mxu0 %v82
  %v159 = vpop.f32.mrf.mxu0
  %v160 = vadd.f32 0.0, %v159
  %v161 = vpop.f32.mrf.mxu0
  %v162 = vadd.f32 0.0, %v161
  %163 = vmatmul.bf16.gmra.mxu0 %v83
  %v164 = vpop.f32.mrf.mxu0
  %v165 = vadd.f32 0.0, %v164
  %v166 = vpop.f32.mrf.mxu0
  %v167 = vadd.f32 0.0, %v166
  %168 = vmatmul.bf16.gmra.mxu0 %v84
  %v169 = vpop.f32.mrf.mxu0
  %v170 = vadd.f32 0.0, %v169
  %v171 = vpop.f32.mrf.mxu0
  %v172 = vadd.f32 0.0, %v171
  %173 = vmatmul.bf16.gmra.mxu0 %v85
  %v174 = vpop.f32.mrf.mxu0
  %v175 = vadd.f32 0.0, %v174
  %v176 = vpop.f32.mrf.mxu0
  %v177 = vadd.f32 0.0, %v176
  %178 = vmatmul.bf16.gmra.mxu0 %v86
  %v179 = vpop.f32.mrf.mxu0
  %v180 = vadd.f32 0.0, %v179
  %v181 = vpop.f32.mrf.mxu0
  %v182 = vadd.f32 0.0, %v181
  %183 = vmatmul.bf16.gmra.mxu0 %v87
  %v184 = vpop.f32.mrf.mxu0
  %v185 = vadd.f32 0.0, %v184
  %v186 = vpop.f32.mrf.mxu0
  %v187 = vadd.f32 0.0, %v186
  %188 = vmatmul.bf16.gmra.mxu0 %v88
  %v189 = vpop.f32.mrf.mxu0
  %v190 = vadd.f32 0.0, %v189
  %v191 = vpop.f32.mrf.mxu0
  %v192 = vadd.f32 0.0, %v191
  %193 = vdwg.mxu0
  %v194 = vld [vmem:[%s2] sm:$0x1]
  %v196 = vperm.slane %v194, 0
  %v198 = vmul.f32 %v155, %v196
  %v199 = vmul.f32 %v157, %v196
  %v200 = vmul.f32 %v160, %v196
  %v201 = vmul.f32 %v162, %v196
  %v202 = vmul.f32 %v165, %v196
  %v203 = vmul.f32 %v167, %v196
  %v204 = vmul.f32 %v170, %v196
  %v205 = vmul.f32 %v172, %v196
  %v206 = vmul.f32 %v175, %v196
  %v207 = vmul.f32 %v177, %v196
  %v208 = vmul.f32 %v180, %v196
  %v209 = vmul.f32 %v182, %v196
  %v210 = vmul.f32 %v185, %v196
  %v211 = vmul.f32 %v187, %v196
  %v212 = vmul.f32 %v190, %v196
  %v213 = vmul.f32 %v192, %v196
  %v214 = vld [vmem:[%s3] sm:$0x1]
  %v216 = vperm.slane %v214, 0
  %v218 = vadd.f32 %v198, %v216
  %v219 = vadd.f32 %v199, %v216
  %v220 = vadd.f32 %v200, %v216
  %v221 = vadd.f32 %v201, %v216
  %v222 = vadd.f32 %v202, %v216
  %v223 = vadd.f32 %v203, %v216
  %v224 = vadd.f32 %v204, %v216
  %v225 = vadd.f32 %v205, %v216
  %v226 = vadd.f32 %v206, %v216
  %v227 = vadd.f32 %v207, %v216
  %v228 = vadd.f32 %v208, %v216
  %v229 = vadd.f32 %v209, %v216
  %v230 = vadd.f32 %v210, %v216
  %v231 = vadd.f32 %v211, %v216
  %v232 = vadd.f32 %v212, %v216
  %v233 = vadd.f32 %v213, %v216
  %v234 = vmax.f32 %v218, 0.0
  %v235 = vmax.f32 %v219, 0.0
  %v236 = vmax.f32 %v220, 0.0
  %v237 = vmax.f32 %v221, 0.0
  %v238 = vmax.f32 %v222, 0.0
  %v239 = vmax.f32 %v223, 0.0
  %v240 = vmax.f32 %v224, 0.0
  %v241 = vmax.f32 %v225, 0.0
  %v242 = vmax.f32 %v226, 0.0
  %v243 = vmax.f32 %v227, 0.0
  %v244 = vmax.f32 %v228, 0.0
  %v245 = vmax.f32 %v229, 0.0
  %v246 = vmax.f32 %v230, 0.0
  %v247 = vmax.f32 %v231, 0.0
  %v248 = vmax.f32 %v232, 0.0
  %v249 = vmax.f32 %v233, 0.0
  %250 = vst [vmem:[%s4] sm:$0xff] %v234
  %251 = vst [vmem:[%s4 + $0x8] sm:$0xff] %v235
  %252 = vst [vmem:[%s4 + $0x10] sm:$0xff] %v236
  %253 = vst [vmem:[%s4 + $0x18] sm:$0xff] %v237
  %254 = vst [vmem:[%s4 + $0x20] sm:$0xff] %v238
  %255 = vst [vmem:[%s4 + $0x28] sm:$0xff] %v239
  %256 = vst [vmem:[%s4 + $0x30] sm:$0xff] %v240
  %257 = vst [vmem:[%s4 + $0x38] sm:$0xff] %v241
  %258 = vst [vmem:[%s4 + $0x40] sm:$0xff] %v242
  %259 = vst [vmem:[%s4 + $0x48] sm:$0xff] %v243
  %260 = vst [vmem:[%s4 + $0x50] sm:$0xff] %v244
  %261 = vst [vmem:[%s4 + $0x58] sm:$0xff] %v245
  %262 = vst [vmem:[%s4 + $0x60] sm:$0xff] %v246
  %263 = vst [vmem:[%s4 + $0x68] sm:$0xff] %v247
  %264 = vst [vmem:[%s4 + $0x70] sm:$0xff] %v248
  %265 = vst [vmem:[%s4 + $0x78] sm:$0xff] %v249
  // Predicated region
  $region18: #{pneumonianet_forward.40} parent=0 // pred_check
    _
  $region19: #{pneumonianet_forward.40} parent=0 // pred_check_branch
    %267 = sbr.rel (0) target = $region21
  $region20: #{pneumonianet_forward.40} parent=0 // pred_region
    _
  $region21: #{pneumonianet_forward.40} parent=0 // pred_fallthru
    _
  // Predicated region
  $region22: #{pneumonianet_forward.40} parent=0 // pred_check
    _
  $region23: #{pneumonianet_forward.40} parent=0 // pred_check_branch
    %269 = sbr.rel (0) target = $region25
  $region24: #{pneumonianet_forward.40} parent=0 // pred_region
    _
  $region25: #{pneumonianet_forward.40} parent=0 // pred_fallthru
    _

// kernel: pneumonianet_forward.41
$region0: #{pneumonianet_forward.41}
  #allocation0 [shape = 'u32[]', space=smem, size = 0x4, offset = 0x4, fixed_abs, tag = 'smem constant byte address 0x4 - core index']
  #allocation1 [shape = 'u32[72,128]{1,0:T(1,128)}', space=vmem, size = 0x9000, scoped, tag = 'internal scratch']
  %s0 = inlined_call_operand.vmem [shape: bf16[128,384], index: 0, kind: input, shape index: {}]
  %s1 = inlined_call_operand.vmem [shape: bf16[384,128], index: 1, kind: input, shape index: {}]
  %s2 = inlined_call_operand.vmem [shape: f32[1,128], index: 2, kind: input, shape index: {}]
  %s3 = inlined_call_operand.vmem [shape: f32[1,128], index: 3, kind: input, shape index: {}]
  %s4 = inlined_call_operand.vmem [shape: f32[128,128], index: 4, kind: output, shape index: {}]
  %s5 = sld [smem:[#allocation0]]
  $region26: #{pneumonianet_forward.41} parent=0
    _
  %s7 = ssub.s32 1, %s5
  %s8 = scalar_select 0, %s7, %s5
  // Predicated region
  $region2: #{pneumonianet_forward.41} parent=0 // pred_check
    _
  $region3: #{pneumonianet_forward.41} parent=0 // pred_check_branch
    %10 = sbr.rel (0) target = $region5
  $region4: #{pneumonianet_forward.41} parent=0 // pred_region
    _
  $region5: #{pneumonianet_forward.41} parent=0 // pred_fallthru
    _
  // Predicated region
  $region6: #{pneumonianet_forward.41} parent=0 // pred_check
    _
  $region7: #{pneumonianet_forward.41} parent=0 // pred_check_branch
    %12 = sbr.rel (0) target = $region9
  $region8: #{pneumonianet_forward.41} parent=0 // pred_region
    _
  $region9: #{pneumonianet_forward.41} parent=0 // pred_fallthru
    _
  // Predicated region
  $region10: #{pneumonianet_forward.41} parent=0 // pred_check
    _
  $region11: #{pneumonianet_forward.41} parent=0 // pred_check_branch
    %14 = sbr.rel (0) target = $region13
  $region12: #{pneumonianet_forward.41} parent=0 // pred_region
    _
  $region13: #{pneumonianet_forward.41} parent=0 // pred_fallthru
    _
  // Predicated region
  $region14: #{pneumonianet_forward.41} parent=0 // pred_check
    _
  $region15: #{pneumonianet_forward.41} parent=0 // pred_check_branch
    %16 = sbr.rel (0) target = $region17
  $region16: #{pneumonianet_forward.41} parent=0 // pred_region
    _
  $region17: #{pneumonianet_forward.41} parent=0 // pred_fallthru
    _
  %v17 = vld [vmem:[%s0] sm:$0xff]
  %v18 = vld [vmem:[%s0 + $0x8] sm:$0xf]
  %v19 = vld [vmem:[%s0 + $0xc] sm:$0xff]
  %v20 = vld [vmem:[%s0 + $0x14] sm:$0xf]
  %v21 = vld [vmem:[%s0 + $0x18] sm:$0xff]
  %v22 = vld [vmem:[%s0 + $0x20] sm:$0xf]
  %v23 = vld [vmem:[%s0 + $0x24] sm:$0xff]
  %v24 = vld [vmem:[%s0 + $0x2c] sm:$0xf]
  %v25 = vld [vmem:[%s0 + $0x30] sm:$0xff]
  %v26 = vld [vmem:[%s0 + $0x38] sm:$0xf]
  %v27 = vld [vmem:[%s0 + $0x3c] sm:$0xff]
  %v28 = vld [vmem:[%s0 + $0x44] sm:$0xf]
  %v29 = vld [vmem:[%s0 + $0x48] sm:$0xff]
  %v30 = vld [vmem:[%s0 + $0x50] sm:$0xf]
  %v31 = vld [vmem:[%s0 + $0x54] sm:$0xff]
  %v32 = vld [vmem:[%s0 + $0x5c] sm:$0xf]
  %v33 = vld [vmem:[%s0 + $0x60] sm:$0xff]
  %v34 = vld [vmem:[%s0 + $0x68] sm:$0xf]
  %v35 = vld [vmem:[%s0 + $0x6c] sm:$0xff]
  %v36 = vld [vmem:[%s0 + $0x74] sm:$0xf]
  %v37 = vld [vmem:[%s0 + $0x78] sm:$0xff]
  %v38 = vld [vmem:[%s0 + $0x80] sm:$0xf]
  %v39 = vld [vmem:[%s0 + $0x84] sm:$0xff]
  %v40 = vld [vmem:[%s0 + $0x8c] sm:$0xf]
  %v41 = vld [vmem:[%s0 + $0x90] sm:$0xff]
  %v42 = vld [vmem:[%s0 + $0x98] sm:$0xf]
  %v43 = vld [vmem:[%s0 + $0x9c] sm:$0xff]
  %v44 = vld [vmem:[%s0 + $0xa4] sm:$0xf]
  %v45 = vld [vmem:[%s0 + $0xa8] sm:$0xff]
  %v46 = vld [vmem:[%s0 + $0xb0] sm:$0xf]
  %v47 = vld [vmem:[%s0 + $0xb4] sm:$0xff]
  %v48 = vld [vmem:[%s0 + $0xbc] sm:$0xf]
  %v49 = vld [vmem:[%s1] sm:$0xf]
  %v50 = vld [vmem:[%s1 + $0x4] sm:$0xf]
  %v51 = vld [vmem:[%s1 + $0x8] sm:$0xf]
  %v52 = vld [vmem:[%s1 + $0xc] sm:$0xf]
  %v53 = vld [vmem:[%s1 + $0x10] sm:$0xf]
  %v54 = vld [vmem:[%s1 + $0x14] sm:$0xf]
  %v55 = vld [vmem:[%s1 + $0x18] sm:$0xf]
  %v56 = vld [vmem:[%s1 + $0x1c] sm:$0xf]
  %v57 = vld [vmem:[%s1 + $0x20] sm:$0xf]
  %v58 = vld [vmem:[%s1 + $0x24] sm:$0xf]
  %v59 = vld [vmem:[%s1 + $0x28] sm:$0xf]
  %v60 = vld [vmem:[%s1 + $0x2c] sm:$0xf]
  %v61 = vld [vmem:[%s1 + $0x30] sm:$0xf]
  %v62 = vld [vmem:[%s1 + $0x34] sm:$0xf]
  %v63 = vld [vmem:[%s1 + $0x38] sm:$0xf]
  %v64 = vld [vmem:[%s1 + $0x3c] sm:$0xf]
  %v65 = vld [vmem:[%s1 + $0x40] sm:$0xf]
  %v66 = vld [vmem:[%s1 + $0x44] sm:$0xf]
  %v67 = vld [vmem:[%s1 + $0x48] sm:$0xf]
  %v68 = vld [vmem:[%s1 + $0x4c] sm:$0xf]
  %v69 = vld [vmem:[%s1 + $0x50] sm:$0xf]
  %v70 = vld [vmem:[%s1 + $0x54] sm:$0xf]
  %v71 = vld [vmem:[%s1 + $0x58] sm:$0xf]
  %v72 = vld [vmem:[%s1 + $0x5c] sm:$0xf]
  %v73 = vld [vmem:[%s1 + $0x60] sm:$0xf]
  %v74 = vld [vmem:[%s1 + $0x64] sm:$0xf]
  %v75 = vld [vmem:[%s1 + $0x68] sm:$0xf]
  %v76 = vld [vmem:[%s1 + $0x6c] sm:$0xf]
  %v77 = vld [vmem:[%s1 + $0x70] sm:$0xf]
  %v78 = vld [vmem:[%s1 + $0x74] sm:$0xf]
  %v79 = vld [vmem:[%s1 + $0x78] sm:$0xf]
  %v80 = vld [vmem:[%s1 + $0x7c] sm:$0xf]
  %v81 = vld [vmem:[%s1 + $0x80] sm:$0xf]
  %v82 = vld [vmem:[%s1 + $0x84] sm:$0xf]
  %v83 = vld [vmem:[%s1 + $0x88] sm:$0xf]
  %v84 = vld [vmem:[%s1 + $0x8c] sm:$0xf]
  %v85 = vld [vmem:[%s1 + $0x90] sm:$0xf]
  %v86 = vld [vmem:[%s1 + $0x94] sm:$0xf]
  %v87 = vld [vmem:[%s1 + $0x98] sm:$0xf]
  %v88 = vld [vmem:[%s1 + $0x9c] sm:$0xf]
  %v89 = vld [vmem:[%s1 + $0xa0] sm:$0xf]
  %v90 = vld [vmem:[%s1 + $0xa4] sm:$0xf]
  %v91 = vld [vmem:[%s1 + $0xa8] sm:$0xf]
  %v92 = vld [vmem:[%s1 + $0xac] sm:$0xf]
  %v93 = vld [vmem:[%s1 + $0xb0] sm:$0xf]
  %v94 = vld [vmem:[%s1 + $0xb4] sm:$0xf]
  %v95 = vld [vmem:[%s1 + $0xb8] sm:$0xf]
  %v96 = vld [vmem:[%s1 + $0xbc] sm:$0xf]
  %v129 = vunpack.c.l.b16 %v17
  %v130 = vunpack.c.h.b16 %v17
  %v131 = vunpack.c.l.b16 %v18
  %v132 = vunpack.c.l.b16 %v19
  %v133 = vunpack.c.h.b16 %v19
  %v134 = vunpack.c.l.b16 %v20
  %v135 = vunpack.c.l.b16 %v21
  %v136 = vunpack.c.h.b16 %v21
  %v137 = vunpack.c.l.b16 %v22
  %v138 = vunpack.c.l.b16 %v23
  %v139 = vunpack.c.h.b16 %v23
  %v140 = vunpack.c.l.b16 %v24
  %v141 = vunpack.c.l.b16 %v25
  %v142 = vunpack.c.h.b16 %v25
  %v143 = vunpack.c.l.b16 %v26
  %v144 = vunpack.c.l.b16 %v27
  %v145 = vunpack.c.h.b16 %v27
  %v146 = vunpack.c.l.b16 %v28
  %v147 = vunpack.c.l.b16 %v29
  %v148 = vunpack.c.h.b16 %v29
  %v149 = vunpack.c.l.b16 %v30
  %v150 = vunpack.c.l.b16 %v31
  %v151 = vunpack.c.h.b16 %v31
  %v152 = vunpack.c.l.b16 %v32
  %v153 = vunpack.c.l.b16 %v33
  %v154 = vunpack.c.h.b16 %v33
  %v155 = vunpack.c.l.b16 %v34
  %v156 = vunpack.c.l.b16 %v35
  %v157 = vunpack.c.h.b16 %v35
  %v158 = vunpack.c.l.b16 %v36
  %v159 = vunpack.c.l.b16 %v37
  %v160 = vunpack.c.h.b16 %v37
  %v161 = vunpack.c.l.b16 %v38
  %v162 = vunpack.c.l.b16 %v39
  %v163 = vunpack.c.h.b16 %v39
  %v164 = vunpack.c.l.b16 %v40
  %v165 = vunpack.c.l.b16 %v41
  %v166 = vunpack.c.h.b16 %v41
  %v167 = vunpack.c.l.b16 %v42
  %v168 = vunpack.c.l.b16 %v43
  %v169 = vunpack.c.h.b16 %v43
  %v170 = vunpack.c.l.b16 %v44
  %v171 = vunpack.c.l.b16 %v45
  %v172 = vunpack.c.h.b16 %v45
  %v173 = vunpack.c.l.b16 %v46
  %v174 = vunpack.c.l.b16 %v47
  %v175 = vunpack.c.h.b16 %v47
  %v176 = vunpack.c.l.b16 %v48
  %v177 = vpack.c.b16 %v132, %v129
  %v178 = vpack.c.b16 %v133, %v130
  %v179 = vpack.c.b16 %v134, %v131
  %v180 = vpack.c.b16 %v138, %v135
  %v181 = vpack.c.b16 %v139, %v136
  %v182 = vpack.c.b16 %v140, %v137
  %v183 = vpack.c.b16 %v144, %v141
  %v184 = vpack.c.b16 %v145, %v142
  %v185 = vpack.c.b16 %v146, %v143
  %v186 = vpack.c.b16 %v150, %v147
  %v187 = vpack.c.b16 %v151, %v148
  %v188 = vpack.c.b16 %v152, %v149
  %v189 = vpack.c.b16 %v156, %v153
  %v190 = vpack.c.b16 %v157, %v154
  %v191 = vpack.c.b16 %v158, %v155
  %v192 = vpack.c.b16 %v162, %v159
  %v193 = vpack.c.b16 %v163, %v160
  %v194 = vpack.c.b16 %v164, %v161
  %v195 = vpack.c.b16 %v168, %v165
  %v196 = vpack.c.b16 %v169, %v166
  %v197 = vpack.c.b16 %v170, %v167
  %v198 = vpack.c.b16 %v174, %v171
  %v199 = vpack.c.b16 %v175, %v172
  %v200 = vpack.c.b16 %v176, %v173
  %v273 = vunpack.c.l.b16 %v49
  %v274 = vunpack.c.l.b16 %v50
  %v275 = vunpack.c.l.b16 %v51
  %v276 = vunpack.c.l.b16 %v52
  %v277 = vunpack.c.l.b16 %v53
  %v278 = vunpack.c.l.b16 %v54
  %v279 = vunpack.c.l.b16 %v55
  %v280 = vunpack.c.l.b16 %v56
  %v281 = vunpack.c.l.b16 %v57
  %v282 = vunpack.c.l.b16 %v58
  %v283 = vunpack.c.l.b16 %v59
  %v284 = vunpack.c.l.b16 %v60
  %v285 = vunpack.c.l.b16 %v61
  %v286 = vunpack.c.l.b16 %v62
  %v287 = vunpack.c.l.b16 %v63
  %v288 = vunpack.c.l.b16 %v64
  %v289 = vunpack.c.l.b16 %v65
  %v290 = vunpack.c.l.b16 %v66
  %v291 = vunpack.c.l.b16 %v67
  %v292 = vunpack.c.l.b16 %v68
  %v293 = vunpack.c.l.b16 %v69
  %v294 = vunpack.c.l.b16 %v70
  %v295 = vunpack.c.l.b16 %v71
  %v296 = vunpack.c.l.b16 %v72
  %v297 = vunpack.c.l.b16 %v73
  %v298 = vunpack.c.l.b16 %v74
  %v299 = vunpack.c.l.b16 %v75
  %v300 = vunpack.c.l.b16 %v76
  %v301 = vunpack.c.l.b16 %v77
  %v302 = vunpack.c.l.b16 %v78
  %v303 = vunpack.c.l.b16 %v79
  %v304 = vunpack.c.l.b16 %v80
  %v305 = vunpack.c.l.b16 %v81
  %v306 = vunpack.c.l.b16 %v82
  %v307 = vunpack.c.l.b16 %v83
  %v308 = vunpack.c.l.b16 %v84
  %v309 = vunpack.c.l.b16 %v85
  %v310 = vunpack.c.l.b16 %v86
  %v311 = vunpack.c.l.b16 %v87
  %v312 = vunpack.c.l.b16 %v88
  %v313 = vunpack.c.l.b16 %v89
  %v314 = vunpack.c.l.b16 %v90
  %v315 = vunpack.c.l.b16 %v91
  %v316 = vunpack.c.l.b16 %v92
  %v317 = vunpack.c.l.b16 %v93
  %v318 = vunpack.c.l.b16 %v94
  %v319 = vunpack.c.l.b16 %v95
  %v320 = vunpack.c.l.b16 %v96
  %v321 = vpack.c.b16 %v274, %v273
  %v322 = vpack.c.b16 %v276, %v275
  %v323 = vpack.c.b16 %v278, %v277
  %v324 = vpack.c.b16 %v280, %v279
  %v325 = vpack.c.b16 %v282, %v281
  %v326 = vpack.c.b16 %v284, %v283
  %v327 = vpack.c.b16 %v286, %v285
  %v328 = vpack.c.b16 %v288, %v287
  %v329 = vpack.c.b16 %v290, %v289
  %v330 = vpack.c.b16 %v292, %v291
  %v331 = vpack.c.b16 %v294, %v293
  %v332 = vpack.c.b16 %v296, %v295
  %v333 = vpack.c.b16 %v298, %v297
  %v334 = vpack.c.b16 %v300, %v299
  %v335 = vpack.c.b16 %v302, %v301
  %v336 = vpack.c.b16 %v304, %v303
  %v337 = vpack.c.b16 %v306, %v305
  %v338 = vpack.c.b16 %v308, %v307
  %v339 = vpack.c.b16 %v310, %v309
  %v340 = vpack.c.b16 %v312, %v311
  %v341 = vpack.c.b16 %v314, %v313
  %v342 = vpack.c.b16 %v316, %v315
  %v343 = vpack.c.b16 %v318, %v317
  %v344 = vpack.c.b16 %v320, %v319
  %369 = vmatpush.bf16.msra.mxu0 %v328
  %370 = vmatpush.bf16.msra.mxu0 %v327
  %371 = vmatpush.bf16.msra.mxu0 %v326
  %372 = vmatpush.bf16.msra.mxu0 %v325
  %373 = vmatpush.bf16.msra.mxu0 %v324
  %374 = vmatpush.bf16.msra.mxu0 %v323
  %375 = vmatpush.bf16.msra.mxu0 %v322
  %376 = vmatpush.bf16.msra.mxu0 %v321
  %377 = vmatmul.bf16.gmra.mxu0 %v177
  %v378 = vpop.f32.mrf.mxu0
  %v379 = vadd.f32 0.0, %v378
  %v380 = vpop.f32.mrf.mxu0
  %v381 = vadd.f32 0.0, %v380
  %382 = vmatmul.bf16.gmra.mxu0 %v180
  %v383 = vpop.f32.mrf.mxu0
  %v384 = vadd.f32 0.0, %v383
  %v385 = vpop.f32.mrf.mxu0
  %v386 = vadd.f32 0.0, %v385
  %387 = vmatmul.bf16.gmra.mxu0 %v183
  %v388 = vpop.f32.mrf.mxu0
  %v389 = vadd.f32 0.0, %v388
  %v390 = vpop.f32.mrf.mxu0
  %v391 = vadd.f32 0.0, %v390
  %392 = vmatmul.bf16.gmra.mxu0 %v186
  %v393 = vpop.f32.mrf.mxu0
  %v394 = vadd.f32 0.0, %v393
  %v395 = vpop.f32.mrf.mxu0
  %v396 = vadd.f32 0.0, %v395
  %397 = vmatmul.bf16.gmra.mxu0 %v189
  %v398 = vpop.f32.mrf.mxu0
  %v399 = vadd.f32 0.0, %v398
  %v400 = vpop.f32.mrf.mxu0
  %v401 = vadd.f32 0.0, %v400
  %402 = vmatmul.bf16.gmra.mxu0 %v192
  %v403 = vpop.f32.mrf.mxu0
  %v404 = vadd.f32 0.0, %v403
  %v405 = vpop.f32.mrf.mxu0
  %v406 = vadd.f32 0.0, %v405
  %407 = vmatmul.bf16.gmra.mxu0 %v195
  %v408 = vpop.f32.mrf.mxu0
  %v409 = vadd.f32 0.0, %v408
  %v410 = vpop.f32.mrf.mxu0
  %v411 = vadd.f32 0.0, %v410
  %412 = vmatmul.bf16.gmra.mxu0 %v198
  %v413 = vpop.f32.mrf.mxu0
  %v414 = vadd.f32 0.0, %v413
  %v415 = vpop.f32.mrf.mxu0
  %v416 = vadd.f32 0.0, %v415
  %417 = vdwg.mxu0
  %418 = vmatpush.bf16.msra.mxu0 %v336
  %419 = vmatpush.bf16.msra.mxu0 %v335
  %420 = vmatpush.bf16.msra.mxu0 %v334
  %421 = vmatpush.bf16.msra.mxu0 %v333
  %422 = vmatpush.bf16.msra.mxu0 %v332
  %423 = vmatpush.bf16.msra.mxu0 %v331
  %424 = vmatpush.bf16.msra.mxu0 %v330
  %425 = vmatpush.bf16.msra.mxu0 %v329
  %426 = vmatmul.bf16.gmra.mxu0 %v178
  %v427 = vpop.f32.mrf.mxu0
  %v428 = vadd.f32 %v379, %v427
  %v429 = vpop.f32.mrf.mxu0
  %v430 = vadd.f32 %v381, %v429
  %431 = vmatmul.bf16.gmra.mxu0 %v181
  %v432 = vpop.f32.mrf.mxu0
  %v433 = vadd.f32 %v384, %v432
  %v434 = vpop.f32.mrf.mxu0
  %v435 = vadd.f32 %v386, %v434
  %436 = vmatmul.bf16.gmra.mxu0 %v184
  %v437 = vpop.f32.mrf.mxu0
  %v438 = vadd.f32 %v389, %v437
  %v439 = vpop.f32.mrf.mxu0
  %v440 = vadd.f32 %v391, %v439
  %441 = vmatmul.bf16.gmra.mxu0 %v187
  %v442 = vpop.f32.mrf.mxu0
  %v443 = vadd.f32 %v394, %v442
  %v444 = vpop.f32.mrf.mxu0
  %v445 = vadd.f32 %v396, %v444
  %446 = vmatmul.bf16.gmra.mxu0 %v190
  %v447 = vpop.f32.mrf.mxu0
  %v448 = vadd.f32 %v399, %v447
  %v449 = vpop.f32.mrf.mxu0
  %v450 = vadd.f32 %v401, %v449
  %451 = vmatmul.bf16.gmra.mxu0 %v193
  %v452 = vpop.f32.mrf.mxu0
  %v453 = vadd.f32 %v404, %v452
  %v454 = vpop.f32.mrf.mxu0
  %v455 = vadd.f32 %v406, %v454
  %456 = vmatmul.bf16.gmra.mxu0 %v196
  %v457 = vpop.f32.mrf.mxu0
  %v458 = vadd.f32 %v409, %v457
  %v459 = vpop.f32.mrf.mxu0
  %v460 = vadd.f32 %v411, %v459
  %461 = vmatmul.bf16.gmra.mxu0 %v199
  %v462 = vpop.f32.mrf.mxu0
  %v463 = vadd.f32 %v414, %v462
  %v464 = vpop.f32.mrf.mxu0
  %v465 = vadd.f32 %v416, %v464
  %466 = vdwg.mxu0
  %467 = vmatpush.bf16.msra.mxu0 %v344
  %468 = vmatpush.bf16.msra.mxu0 %v343
  %469 = vmatpush.bf16.msra.mxu0 %v342
  %470 = vmatpush.bf16.msra.mxu0 %v341
  %471 = vmatpush.bf16.msra.mxu0 %v340
  %472 = vmatpush.bf16.msra.mxu0 %v339
  %473 = vmatpush.bf16.msra.mxu0 %v338
  %474 = vmatpush.bf16.msra.mxu0 %v337
  %475 = vmatmul.bf16.gmra.mxu0 %v179
  %v476 = vpop.f32.mrf.mxu0
  %v477 = vadd.f32 %v428, %v476
  %v478 = vpop.f32.mrf.mxu0
  %v479 = vadd.f32 %v430, %v478
  %480 = vmatmul.bf16.gmra.mxu0 %v182
  %v481 = vpop.f32.mrf.mxu0
  %v482 = vadd.f32 %v433, %v481
  %v483 = vpop.f32.mrf.mxu0
  %v484 = vadd.f32 %v435, %v483
  %485 = vmatmul.bf16.gmra.mxu0 %v185
  %v486 = vpop.f32.mrf.mxu0
  %v487 = vadd.f32 %v438, %v486
  %v488 = vpop.f32.mrf.mxu0
  %v489 = vadd.f32 %v440, %v488
  %490 = vmatmul.bf16.gmra.mxu0 %v188
  %v491 = vpop.f32.mrf.mxu0
  %v492 = vadd.f32 %v443, %v491
  %v493 = vpop.f32.mrf.mxu0
  %v494 = vadd.f32 %v445, %v493
  %495 = vmatmul.bf16.gmra.mxu0 %v191
  %v496 = vpop.f32.mrf.mxu0
  %v497 = vadd.f32 %v448, %v496
  %v498 = vpop.f32.mrf.mxu0
  %v499 = vadd.f32 %v450, %v498
  %500 = vmatmul.bf16.gmra.mxu0 %v194
  %v501 = vpop.f32.mrf.mxu0
  %v502 = vadd.f32 %v453, %v501
  %v503 = vpop.f32.mrf.mxu0
  %v504 = vadd.f32 %v455, %v503
  %505 = vmatmul.bf16.gmra.mxu0 %v197
  %v506 = vpop.f32.mrf.mxu0
  %v507 = vadd.f32 %v458, %v506
  %v508 = vpop.f32.mrf.mxu0
  %v509 = vadd.f32 %v460, %v508
  %510 = vmatmul.bf16.gmra.mxu0 %v200
  %v511 = vpop.f32.mrf.mxu0
  %v512 = vadd.f32 %v463, %v511
  %v513 = vpop.f32.mrf.mxu0
  %v514 = vadd.f32 %v465, %v513
  %515 = vdwg.mxu0
  %v516 = vld [vmem:[%s2] sm:$0x1]
  %v518 = vperm.slane %v516, 0
  %v520 = vmul.f32 %v477, %v518
  %v521 = vmul.f32 %v479, %v518
  %v522 = vmul.f32 %v482, %v518
  %v523 = vmul.f32 %v484, %v518
  %v524 = vmul.f32 %v487, %v518
  %v525 = vmul.f32 %v489, %v518
  %v526 = vmul.f32 %v492, %v518
  %v527 = vmul.f32 %v494, %v518
  %v528 = vmul.f32 %v497, %v518
  %v529 = vmul.f32 %v499, %v518
  %v530 = vmul.f32 %v502, %v518
  %v531 = vmul.f32 %v504, %v518
  %v532 = vmul.f32 %v507, %v518
  %v533 = vmul.f32 %v509, %v518
  %v534 = vmul.f32 %v512, %v518
  %v535 = vmul.f32 %v514, %v518
  %v536 = vld [vmem:[%s3] sm:$0x1]
  %v538 = vperm.slane %v536, 0
  %v540 = vadd.f32 %v520, %v538
  %v541 = vadd.f32 %v521, %v538
  %v542 = vadd.f32 %v522, %v538
  %v543 = vadd.f32 %v523, %v538
  %v544 = vadd.f32 %v524, %v538
  %v545 = vadd.f32 %v525, %v538
  %v546 = vadd.f32 %v526, %v538
  %v547 = vadd.f32 %v527, %v538
  %v548 = vadd.f32 %v528, %v538
  %v549 = vadd.f32 %v529, %v538
  %v550 = vadd.f32 %v530, %v538
  %v551 = vadd.f32 %v531, %v538
  %v552 = vadd.f32 %v532, %v538
  %v553 = vadd.f32 %v533, %v538
  %v554 = vadd.f32 %v534, %v538
  %v555 = vadd.f32 %v535, %v538
  %556 = vst [vmem:[%s4] sm:$0xff] %v540
  %557 = vst [vmem:[%s4 + $0x8] sm:$0xff] %v541
  %558 = vst [vmem:[%s4 + $0x10] sm:$0xff] %v542
  %559 = vst [vmem:[%s4 + $0x18] sm:$0xff] %v543
  %560 = vst [vmem:[%s4 + $0x20] sm:$0xff] %v544
  %561 = vst [vmem:[%s4 + $0x28] sm:$0xff] %v545
  %562 = vst [vmem:[%s4 + $0x30] sm:$0xff] %v546
  %563 = vst [vmem:[%s4 + $0x38] sm:$0xff] %v547
  %564 = vst [vmem:[%s4 + $0x40] sm:$0xff] %v548
  %565 = vst [vmem:[%s4 + $0x48] sm:$0xff] %v549
  %566 = vst [vmem:[%s4 + $0x50] sm:$0xff] %v550
  %567 = vst [vmem:[%s4 + $0x58] sm:$0xff] %v551
  %568 = vst [vmem:[%s4 + $0x60] sm:$0xff] %v552
  %569 = vst [vmem:[%s4 + $0x68] sm:$0xff] %v553
  %570 = vst [vmem:[%s4 + $0x70] sm:$0xff] %v554
  %571 = vst [vmem:[%s4 + $0x78] sm:$0xff] %v555
  // Predicated region
  $region18: #{pneumonianet_forward.41} parent=0 // pred_check
    _
  $region19: #{pneumonianet_forward.41} parent=0 // pred_check_branch
    %573 = sbr.rel (0) target = $region21
  $region20: #{pneumonianet_forward.41} parent=0 // pred_region
    _
  $region21: #{pneumonianet_forward.41} parent=0 // pred_fallthru
    _
  // Predicated region
  $region22: #{pneumonianet_forward.41} parent=0 // pred_check
    _
  $region23: #{pneumonianet_forward.41} parent=0 // pred_check_branch
    %575 = sbr.rel (0) target = $region25
  $region24: #{pneumonianet_forward.41} parent=0 // pred_region
    _
  $region25: #{pneumonianet_forward.41} parent=0 // pred_fallthru
    _

// kernel: pneumonianet_forward.42
$region0: #{pneumonianet_forward.42}
  #allocation0 [shape = 'u32[]', space=smem, size = 0x4, offset = 0x4, fixed_abs, tag = 'smem constant byte address 0x4 - core index']
  #allocation1 [shape = 'u32[72,128]{1,0:T(1,128)}', space=vmem, size = 0x9000, scoped, tag = 'internal scratch']
  %s0 = inlined_call_operand.vmem [shape: f32[128,24], index: 0, kind: input, shape index: {}]
  %s1 = inlined_call_operand.vmem [shape: f32[1,24], index: 1, kind: input, shape index: {}]
  %s2 = inlined_call_operand.vmem [shape: f32[1,24], index: 2, kind: input, shape index: {}]
  %s3 = inlined_call_operand.vmem [shape: f32[128,24], index: 3, kind: output, shape index: {}]
  %s4 = sld [smem:[#allocation0]]
  $region22: #{pneumonianet_forward.42} parent=0
    _
  %s6 = ssub.s32 1, %s4
  %s7 = scalar_select 0, %s6, %s4
  // Predicated region
  $region2: #{pneumonianet_forward.42} parent=0 // pred_check
    _
  $region3: #{pneumonianet_forward.42} parent=0 // pred_check_branch
    %9 = sbr.rel (0) target = $region5
  $region4: #{pneumonianet_forward.42} parent=0 // pred_region
    _
  $region5: #{pneumonianet_forward.42} parent=0 // pred_fallthru
    _
  // Predicated region
  $region6: #{pneumonianet_forward.42} parent=0 // pred_check
    _
  $region7: #{pneumonianet_forward.42} parent=0 // pred_check_branch
    %11 = sbr.rel (0) target = $region9
  $region8: #{pneumonianet_forward.42} parent=0 // pred_region
    _
  $region9: #{pneumonianet_forward.42} parent=0 // pred_fallthru
    _
  // Predicated region
  $region10: #{pneumonianet_forward.42} parent=0 // pred_check
    _
  $region11: #{pneumonianet_forward.42} parent=0 // pred_check_branch
    %13 = sbr.rel (0) target = $region13
  $region12: #{pneumonianet_forward.42} parent=0 // pred_region
    _
  $region13: #{pneumonianet_forward.42} parent=0 // pred_fallthru
    _
  %v14 = vld [vmem:[%s0] sm:$0xff]
  %v15 = vld [vmem:[%s0 + $0x8] sm:$0xff]
  %v16 = vld [vmem:[%s0 + $0x10] sm:$0xff]
  %v17 = vld [vmem:[%s0 + $0x18] sm:$0xff]
  %v18 = vld [vmem:[%s0 + $0x20] sm:$0xff]
  %v19 = vld [vmem:[%s0 + $0x28] sm:$0xff]
  %v20 = vld [vmem:[%s0 + $0x30] sm:$0xff]
  %v21 = vld [vmem:[%s0 + $0x38] sm:$0xff]
  %v22 = vld [vmem:[%s0 + $0x40] sm:$0xff]
  %v23 = vld [vmem:[%s0 + $0x48] sm:$0xff]
  %v24 = vld [vmem:[%s0 + $0x50] sm:$0xff]
  %v25 = vld [vmem:[%s0 + $0x58] sm:$0xff]
  %v26 = vld [vmem:[%s0 + $0x60] sm:$0xff]
  %v27 = vld [vmem:[%s0 + $0x68] sm:$0xff]
  %v28 = vld [vmem:[%s0 + $0x70] sm:$0xff]
  %v29 = vld [vmem:[%s0 + $0x78] sm:$0xff]
  %v30 = vld [vmem:[%s1] sm:$0x1]
  %v32 = vperm.slane %v30, 0
  %v34 = vmul.f32 %v14, %v32
  %v35 = vmul.f32 %v15, %v32
  %v36 = vmul.f32 %v16, %v32
  %v37 = vmul.f32 %v17, %v32
  %v38 = vmul.f32 %v18, %v32
  %v39 = vmul.f32 %v19, %v32
  %v40 = vmul.f32 %v20, %v32
  %v41 = vmul.f32 %v21, %v32
  %v42 = vmul.f32 %v22, %v32
  %v43 = vmul.f32 %v23, %v32
  %v44 = vmul.f32 %v24, %v32
  %v45 = vmul.f32 %v25, %v32
  %v46 = vmul.f32 %v26, %v32
  %v47 = vmul.f32 %v27, %v32
  %v48 = vmul.f32 %v28, %v32
  %v49 = vmul.f32 %v29, %v32
  %v50 = vld [vmem:[%s2] sm:$0x1]
  %v52 = vperm.slane %v50, 0
  %v54 = vadd.f32 %v34, %v52
  %v55 = vadd.f32 %v35, %v52
  %v56 = vadd.f32 %v36, %v52
  %v57 = vadd.f32 %v37, %v52
  %v58 = vadd.f32 %v38, %v52
  %v59 = vadd.f32 %v39, %v52
  %v60 = vadd.f32 %v40, %v52
  %v61 = vadd.f32 %v41, %v52
  %v62 = vadd.f32 %v42, %v52
  %v63 = vadd.f32 %v43, %v52
  %v64 = vadd.f32 %v44, %v52
  %v65 = vadd.f32 %v45, %v52
  %v66 = vadd.f32 %v46, %v52
  %v67 = vadd.f32 %v47, %v52
  %v68 = vadd.f32 %v48, %v52
  %v69 = vadd.f32 %v49, %v52
  %v70 = vmax.f32 %v54, 0.0
  %v71 = vmax.f32 %v55, 0.0
  %v72 = vmax.f32 %v56, 0.0
  %v73 = vmax.f32 %v57, 0.0
  %v74 = vmax.f32 %v58, 0.0
  %v75 = vmax.f32 %v59, 0.0
  %v76 = vmax.f32 %v60, 0.0
  %v77 = vmax.f32 %v61, 0.0
  %v78 = vmax.f32 %v62, 0.0
  %v79 = vmax.f32 %v63, 0.0
  %v80 = vmax.f32 %v64, 0.0
  %v81 = vmax.f32 %v65, 0.0
  %v82 = vmax.f32 %v66, 0.0
  %v83 = vmax.f32 %v67, 0.0
  %v84 = vmax.f32 %v68, 0.0
  %v85 = vmax.f32 %v69, 0.0
  %vm86 = vcmask 195584
  %87 = vst.msk [vmem:[%s3] sm:$0xff] %vm86, %v70
  %88 = vst.msk [vmem:[%s3 + $0x8] sm:$0xff] %vm86, %v71
  %89 = vst.msk [vmem:[%s3 + $0x10] sm:$0xff] %vm86, %v72
  %90 = vst.msk [vmem:[%s3 + $0x18] sm:$0xff] %vm86, %v73
  %91 = vst.msk [vmem:[%s3 + $0x20] sm:$0xff] %vm86, %v74
  %92 = vst.msk [vmem:[%s3 + $0x28] sm:$0xff] %vm86, %v75
  %93 = vst.msk [vmem:[%s3 + $0x30] sm:$0xff] %vm86, %v76
  %94 = vst.msk [vmem:[%s3 + $0x38] sm:$0xff] %vm86, %v77
  %95 = vst.msk [vmem:[%s3 + $0x40] sm:$0xff] %vm86, %v78
  %96 = vst.msk [vmem:[%s3 + $0x48] sm:$0xff] %vm86, %v79
  %97 = vst.msk [vmem:[%s3 + $0x50] sm:$0xff] %vm86, %v80
  %98 = vst.msk [vmem:[%s3 + $0x58] sm:$0xff] %vm86, %v81
  %99 = vst.msk [vmem:[%s3 + $0x60] sm:$0xff] %vm86, %v82
  %100 = vst.msk [vmem:[%s3 + $0x68] sm:$0xff] %vm86, %v83
  %101 = vst.msk [vmem:[%s3 + $0x70] sm:$0xff] %vm86, %v84
  %102 = vst.msk [vmem:[%s3 + $0x78] sm:$0xff] %vm86, %v85
  // Predicated region
  $region14: #{pneumonianet_forward.42} parent=0 // pred_check
    _
  $region15: #{pneumonianet_forward.42} parent=0 // pred_check_branch
    %104 = sbr.rel (0) target = $region17
  $region16: #{pneumonianet_forward.42} parent=0 // pred_region
    _
  $region17: #{pneumonianet_forward.42} parent=0 // pred_fallthru
    _
  // Predicated region
  $region18: #{pneumonianet_forward.42} parent=0 // pred_check
    _
  $region19: #{pneumonianet_forward.42} parent=0 // pred_check_branch
    %106 = sbr.rel (0) target = $region21
  $region20: #{pneumonianet_forward.42} parent=0 // pred_region
    _
  $region21: #{pneumonianet_forward.42} parent=0 // pred_fallthru
    _

// kernel: pneumonianet_forward.45
$region0: #{pneumonianet_forward.45}
  #allocation0 [shape = 'u32[]', space=smem, size = 0x4, offset = 0x4, fixed_abs, tag = 'smem constant byte address 0x4 - core index']
  #allocation1 [shape = 'u32[72,128]{1,0:T(1,128)}', space=vmem, size = 0x9000, scoped, tag = 'internal scratch']
  %s0 = inlined_call_operand.vmem [shape: f32[128,32], index: 0, kind: input, shape index: {}]
  %s1 = inlined_call_operand.vmem [shape: f32[1,32], index: 1, kind: input, shape index: {}]
  %s2 = inlined_call_operand.vmem [shape: f32[1,32], index: 2, kind: input, shape index: {}]
  %s3 = inlined_call_operand.vmem [shape: f32[128,32], index: 3, kind: output, shape index: {}]
  %s4 = sld [smem:[#allocation0]]
  $region22: #{pneumonianet_forward.45} parent=0
    _
  %s6 = ssub.s32 1, %s4
  %s7 = scalar_select 0, %s6, %s4
  // Predicated region
  $region2: #{pneumonianet_forward.45} parent=0 // pred_check
    _
  $region3: #{pneumonianet_forward.45} parent=0 // pred_check_branch
    %9 = sbr.rel (0) target = $region5
  $region4: #{pneumonianet_forward.45} parent=0 // pred_region
    _
  $region5: #{pneumonianet_forward.45} parent=0 // pred_fallthru
    _
  // Predicated region
  $region6: #{pneumonianet_forward.45} parent=0 // pred_check
    _
  $region7: #{pneumonianet_forward.45} parent=0 // pred_check_branch
    %11 = sbr.rel (0) target = $region9
  $region8: #{pneumonianet_forward.45} parent=0 // pred_region
    _
  $region9: #{pneumonianet_forward.45} parent=0 // pred_fallthru
    _
  // Predicated region
  $region10: #{pneumonianet_forward.45} parent=0 // pred_check
    _
  $region11: #{pneumonianet_forward.45} parent=0 // pred_check_branch
    %13 = sbr.rel (0) target = $region13
  $region12: #{pneumonianet_forward.45} parent=0 // pred_region
    _
  $region13: #{pneumonianet_forward.45} parent=0 // pred_fallthru
    _
  %v14 = vld [vmem:[%s0] sm:$0xff]
  %v15 = vld [vmem:[%s0 + $0x8] sm:$0xff]
  %v16 = vld [vmem:[%s0 + $0x10] sm:$0xff]
  %v17 = vld [vmem:[%s0 + $0x18] sm:$0xff]
  %v18 = vld [vmem:[%s0 + $0x20] sm:$0xff]
  %v19 = vld [vmem:[%s0 + $0x28] sm:$0xff]
  %v20 = vld [vmem:[%s0 + $0x30] sm:$0xff]
  %v21 = vld [vmem:[%s0 + $0x38] sm:$0xff]
  %v22 = vld [vmem:[%s0 + $0x40] sm:$0xff]
  %v23 = vld [vmem:[%s0 + $0x48] sm:$0xff]
  %v24 = vld [vmem:[%s0 + $0x50] sm:$0xff]
  %v25 = vld [vmem:[%s0 + $0x58] sm:$0xff]
  %v26 = vld [vmem:[%s0 + $0x60] sm:$0xff]
  %v27 = vld [vmem:[%s0 + $0x68] sm:$0xff]
  %v28 = vld [vmem:[%s0 + $0x70] sm:$0xff]
  %v29 = vld [vmem:[%s0 + $0x78] sm:$0xff]
  %v30 = vld [vmem:[%s1] sm:$0x1]
  %v32 = vperm.slane %v30, 0
  %v34 = vmul.f32 %v14, %v32
  %v35 = vmul.f32 %v15, %v32
  %v36 = vmul.f32 %v16, %v32
  %v37 = vmul.f32 %v17, %v32
  %v38 = vmul.f32 %v18, %v32
  %v39 = vmul.f32 %v19, %v32
  %v40 = vmul.f32 %v20, %v32
  %v41 = vmul.f32 %v21, %v32
  %v42 = vmul.f32 %v22, %v32
  %v43 = vmul.f32 %v23, %v32
  %v44 = vmul.f32 %v24, %v32
  %v45 = vmul.f32 %v25, %v32
  %v46 = vmul.f32 %v26, %v32
  %v47 = vmul.f32 %v27, %v32
  %v48 = vmul.f32 %v28, %v32
  %v49 = vmul.f32 %v29, %v32
  %v50 = vld [vmem:[%s2] sm:$0x1]
  %v52 = vperm.slane %v50, 0
  %v54 = vadd.f32 %v34, %v52
  %v55 = vadd.f32 %v35, %v52
  %v56 = vadd.f32 %v36, %v52
  %v57 = vadd.f32 %v37, %v52
  %v58 = vadd.f32 %v38, %v52
  %v59 = vadd.f32 %v39, %v52
  %v60 = vadd.f32 %v40, %v52
  %v61 = vadd.f32 %v41, %v52
  %v62 = vadd.f32 %v42, %v52
  %v63 = vadd.f32 %v43, %v52
  %v64 = vadd.f32 %v44, %v52
  %v65 = vadd.f32 %v45, %v52
  %v66 = vadd.f32 %v46, %v52
  %v67 = vadd.f32 %v47, %v52
  %v68 = vadd.f32 %v48, %v52
  %v69 = vadd.f32 %v49, %v52
  %v70 = vmax.f32 %v54, 0.0
  %v71 = vmax.f32 %v55, 0.0
  %v72 = vmax.f32 %v56, 0.0
  %v73 = vmax.f32 %v57, 0.0
  %v74 = vmax.f32 %v58, 0.0
  %v75 = vmax.f32 %v59, 0.0
  %v76 = vmax.f32 %v60, 0.0
  %v77 = vmax.f32 %v61, 0.0
  %v78 = vmax.f32 %v62, 0.0
  %v79 = vmax.f32 %v63, 0.0
  %v80 = vmax.f32 %v64, 0.0
  %v81 = vmax.f32 %v65, 0.0
  %v82 = vmax.f32 %v66, 0.0
  %v83 = vmax.f32 %v67, 0.0
  %v84 = vmax.f32 %v68, 0.0
  %v85 = vmax.f32 %v69, 0.0
  %vm86 = vcmask 261120
  %87 = vst.msk [vmem:[%s3] sm:$0xff] %vm86, %v70
  %88 = vst.msk [vmem:[%s3 + $0x8] sm:$0xff] %vm86, %v71
  %89 = vst.msk [vmem:[%s3 + $0x10] sm:$0xff] %vm86, %v72
  %90 = vst.msk [vmem:[%s3 + $0x18] sm:$0xff] %vm86, %v73
  %91 = vst.msk [vmem:[%s3 + $0x20] sm:$0xff] %vm86, %v74
  %92 = vst.msk [vmem:[%s3 + $0x28] sm:$0xff] %vm86, %v75
  %93 = vst.msk [vmem:[%s3 + $0x30] sm:$0xff] %vm86, %v76
  %94 = vst.msk [vmem:[%s3 + $0x38] sm:$0xff] %vm86, %v77
  %95 = vst.msk [vmem:[%s3 + $0x40] sm:$0xff] %vm86, %v78
  %96 = vst.msk [vmem:[%s3 + $0x48] sm:$0xff] %vm86, %v79
  %97 = vst.msk [vmem:[%s3 + $0x50] sm:$0xff] %vm86, %v80
  %98 = vst.msk [vmem:[%s3 + $0x58] sm:$0xff] %vm86, %v81
  %99 = vst.msk [vmem:[%s3 + $0x60] sm:$0xff] %vm86, %v82
  %100 = vst.msk [vmem:[%s3 + $0x68] sm:$0xff] %vm86, %v83
  %101 = vst.msk [vmem:[%s3 + $0x70] sm:$0xff] %vm86, %v84
  %102 = vst.msk [vmem:[%s3 + $0x78] sm:$0xff] %vm86, %v85
  // Predicated region
  $region14: #{pneumonianet_forward.45} parent=0 // pred_check
    _
  $region15: #{pneumonianet_forward.45} parent=0 // pred_check_branch
    %104 = sbr.rel (0) target = $region17
  $region16: #{pneumonianet_forward.45} parent=0 // pred_region
    _
  $region17: #{pneumonianet_forward.45} parent=0 // pred_fallthru
    _
  // Predicated region
  $region18: #{pneumonianet_forward.45} parent=0 // pred_check
    _
  $region19: #{pneumonianet_forward.45} parent=0 // pred_check_branch
    %106 = sbr.rel (0) target = $region21
  $region20: #{pneumonianet_forward.45} parent=0 // pred_region
    _
  $region21: #{pneumonianet_forward.45} parent=0 // pred_fallthru
    _

// kernel: pneumonianet_forward.46
$region0: #{pneumonianet_forward.46}
  #allocation0 [shape = 'u32[]', space=smem, size = 0x4, offset = 0x4, fixed_abs, tag = 'smem constant byte address 0x4 - core index']
  #allocation1 [shape = 'u32[72,128]{1,0:T(1,128)}', space=vmem, size = 0x9000, scoped, tag = 'internal scratch']
  %s0 = inlined_call_operand.vmem [shape: bf16[128,128], index: 0, kind: input, shape index: {}]
  %s1 = inlined_call_operand.vmem [shape: bf16[128,128], index: 1, kind: input, shape index: {}]
  %s2 = inlined_call_operand.vmem [shape: f32[1,128], index: 2, kind: input, shape index: {}]
  %s3 = inlined_call_operand.vmem [shape: f32[1,128], index: 3, kind: input, shape index: {}]
  %s4 = inlined_call_operand.vmem [shape: f32[128,128], index: 4, kind: output, shape index: {}]
  %s5 = sld [smem:[#allocation0]]
  $region26: #{pneumonianet_forward.46} parent=0
    _
  %s7 = ssub.s32 1, %s5
  %s8 = scalar_select 0, %s7, %s5
  // Predicated region
  $region2: #{pneumonianet_forward.46} parent=0 // pred_check
    _
  $region3: #{pneumonianet_forward.46} parent=0 // pred_check_branch
    %10 = sbr.rel (0) target = $region5
  $region4: #{pneumonianet_forward.46} parent=0 // pred_region
    _
  $region5: #{pneumonianet_forward.46} parent=0 // pred_fallthru
    _
  // Predicated region
  $region6: #{pneumonianet_forward.46} parent=0 // pred_check
    _
  $region7: #{pneumonianet_forward.46} parent=0 // pred_check_branch
    %12 = sbr.rel (0) target = $region9
  $region8: #{pneumonianet_forward.46} parent=0 // pred_region
    _
  $region9: #{pneumonianet_forward.46} parent=0 // pred_fallthru
    _
  // Predicated region
  $region10: #{pneumonianet_forward.46} parent=0 // pred_check
    _
  $region11: #{pneumonianet_forward.46} parent=0 // pred_check_branch
    %14 = sbr.rel (0) target = $region13
  $region12: #{pneumonianet_forward.46} parent=0 // pred_region
    _
  $region13: #{pneumonianet_forward.46} parent=0 // pred_fallthru
    _
  // Predicated region
  $region14: #{pneumonianet_forward.46} parent=0 // pred_check
    _
  $region15: #{pneumonianet_forward.46} parent=0 // pred_check_branch
    %16 = sbr.rel (0) target = $region17
  $region16: #{pneumonianet_forward.46} parent=0 // pred_region
    _
  $region17: #{pneumonianet_forward.46} parent=0 // pred_fallthru
    _
  %v17 = vld [vmem:[%s0] sm:$0xf]
  %v18 = vld [vmem:[%s0 + $0x4] sm:$0xf]
  %v19 = vld [vmem:[%s0 + $0x8] sm:$0xf]
  %v20 = vld [vmem:[%s0 + $0xc] sm:$0xf]
  %v21 = vld [vmem:[%s0 + $0x10] sm:$0xf]
  %v22 = vld [vmem:[%s0 + $0x14] sm:$0xf]
  %v23 = vld [vmem:[%s0 + $0x18] sm:$0xf]
  %v24 = vld [vmem:[%s0 + $0x1c] sm:$0xf]
  %v25 = vld [vmem:[%s0 + $0x20] sm:$0xf]
  %v26 = vld [vmem:[%s0 + $0x24] sm:$0xf]
  %v27 = vld [vmem:[%s0 + $0x28] sm:$0xf]
  %v28 = vld [vmem:[%s0 + $0x2c] sm:$0xf]
  %v29 = vld [vmem:[%s0 + $0x30] sm:$0xf]
  %v30 = vld [vmem:[%s0 + $0x34] sm:$0xf]
  %v31 = vld [vmem:[%s0 + $0x38] sm:$0xf]
  %v32 = vld [vmem:[%s0 + $0x3c] sm:$0xf]
  %v33 = vld [vmem:[%s1] sm:$0xf]
  %v34 = vld [vmem:[%s1 + $0x4] sm:$0xf]
  %v35 = vld [vmem:[%s1 + $0x8] sm:$0xf]
  %v36 = vld [vmem:[%s1 + $0xc] sm:$0xf]
  %v37 = vld [vmem:[%s1 + $0x10] sm:$0xf]
  %v38 = vld [vmem:[%s1 + $0x14] sm:$0xf]
  %v39 = vld [vmem:[%s1 + $0x18] sm:$0xf]
  %v40 = vld [vmem:[%s1 + $0x1c] sm:$0xf]
  %v41 = vld [vmem:[%s1 + $0x20] sm:$0xf]
  %v42 = vld [vmem:[%s1 + $0x24] sm:$0xf]
  %v43 = vld [vmem:[%s1 + $0x28] sm:$0xf]
  %v44 = vld [vmem:[%s1 + $0x2c] sm:$0xf]
  %v45 = vld [vmem:[%s1 + $0x30] sm:$0xf]
  %v46 = vld [vmem:[%s1 + $0x34] sm:$0xf]
  %v47 = vld [vmem:[%s1 + $0x38] sm:$0xf]
  %v48 = vld [vmem:[%s1 + $0x3c] sm:$0xf]
  %v65 = vunpack.c.l.b16 %v17
  %v66 = vunpack.c.l.b16 %v18
  %v67 = vunpack.c.l.b16 %v19
  %v68 = vunpack.c.l.b16 %v20
  %v69 = vunpack.c.l.b16 %v21
  %v70 = vunpack.c.l.b16 %v22
  %v71 = vunpack.c.l.b16 %v23
  %v72 = vunpack.c.l.b16 %v24
  %v73 = vunpack.c.l.b16 %v25
  %v74 = vunpack.c.l.b16 %v26
  %v75 = vunpack.c.l.b16 %v27
  %v76 = vunpack.c.l.b16 %v28
  %v77 = vunpack.c.l.b16 %v29
  %v78 = vunpack.c.l.b16 %v30
  %v79 = vunpack.c.l.b16 %v31
  %v80 = vunpack.c.l.b16 %v32
  %v81 = vpack.c.b16 %v66, %v65
  %v82 = vpack.c.b16 %v68, %v67
  %v83 = vpack.c.b16 %v70, %v69
  %v84 = vpack.c.b16 %v72, %v71
  %v85 = vpack.c.b16 %v74, %v73
  %v86 = vpack.c.b16 %v76, %v75
  %v87 = vpack.c.b16 %v78, %v77
  %v88 = vpack.c.b16 %v80, %v79
  %v113 = vunpack.c.l.b16 %v33
  %v114 = vunpack.c.l.b16 %v34
  %v115 = vunpack.c.l.b16 %v35
  %v116 = vunpack.c.l.b16 %v36
  %v117 = vunpack.c.l.b16 %v37
  %v118 = vunpack.c.l.b16 %v38
  %v119 = vunpack.c.l.b16 %v39
  %v120 = vunpack.c.l.b16 %v40
  %v121 = vunpack.c.l.b16 %v41
  %v122 = vunpack.c.l.b16 %v42
  %v123 = vunpack.c.l.b16 %v43
  %v124 = vunpack.c.l.b16 %v44
  %v125 = vunpack.c.l.b16 %v45
  %v126 = vunpack.c.l.b16 %v46
  %v127 = vunpack.c.l.b16 %v47
  %v128 = vunpack.c.l.b16 %v48
  %v129 = vpack.c.b16 %v114, %v113
  %v130 = vpack.c.b16 %v116, %v115
  %v131 = vpack.c.b16 %v118, %v117
  %v132 = vpack.c.b16 %v120, %v119
  %v133 = vpack.c.b16 %v122, %v121
  %v134 = vpack.c.b16 %v124, %v123
  %v135 = vpack.c.b16 %v126, %v125
  %v136 = vpack.c.b16 %v128, %v127
  %145 = vmatpush.bf16.msra.mxu0 %v136
  %146 = vmatpush.bf16.msra.mxu0 %v135
  %147 = vmatpush.bf16.msra.mxu0 %v134
  %148 = vmatpush.bf16.msra.mxu0 %v133
  %149 = vmatpush.bf16.msra.mxu0 %v132
  %150 = vmatpush.bf16.msra.mxu0 %v131
  %151 = vmatpush.bf16.msra.mxu0 %v130
  %152 = vmatpush.bf16.msra.mxu0 %v129
  %153 = vmatmul.bf16.gmra.mxu0 %v81
  %v154 = vpop.f32.mrf.mxu0
  %v155 = vadd.f32 0.0, %v154
  %v156 = vpop.f32.mrf.mxu0
  %v157 = vadd.f32 0.0, %v156
  %158 = vmatmul.bf16.gmra.mxu0 %v82
  %v159 = vpop.f32.mrf.mxu0
  %v160 = vadd.f32 0.0, %v159
  %v161 = vpop.f32.mrf.mxu0
  %v162 = vadd.f32 0.0, %v161
  %163 = vmatmul.bf16.gmra.mxu0 %v83
  %v164 = vpop.f32.mrf.mxu0
  %v165 = vadd.f32 0.0, %v164
  %v166 = vpop.f32.mrf.mxu0
  %v167 = vadd.f32 0.0, %v166
  %168 = vmatmul.bf16.gmra.mxu0 %v84
  %v169 = vpop.f32.mrf.mxu0
  %v170 = vadd.f32 0.0, %v169
  %v171 = vpop.f32.mrf.mxu0
  %v172 = vadd.f32 0.0, %v171
  %173 = vmatmul.bf16.gmra.mxu0 %v85
  %v174 = vpop.f32.mrf.mxu0
  %v175 = vadd.f32 0.0, %v174
  %v176 = vpop.f32.mrf.mxu0
  %v177 = vadd.f32 0.0, %v176
  %178 = vmatmul.bf16.gmra.mxu0 %v86
  %v179 = vpop.f32.mrf.mxu0
  %v180 = vadd.f32 0.0, %v179
  %v181 = vpop.f32.mrf.mxu0
  %v182 = vadd.f32 0.0, %v181
  %183 = vmatmul.bf16.gmra.mxu0 %v87
  %v184 = vpop.f32.mrf.mxu0
  %v185 = vadd.f32 0.0, %v184
  %v186 = vpop.f32.mrf.mxu0
  %v187 = vadd.f32 0.0, %v186
  %188 = vmatmul.bf16.gmra.mxu0 %v88
  %v189 = vpop.f32.mrf.mxu0
  %v190 = vadd.f32 0.0, %v189
  %v191 = vpop.f32.mrf.mxu0
  %v192 = vadd.f32 0.0, %v191
  %193 = vdwg.mxu0
  %v194 = vld [vmem:[%s2] sm:$0x1]
  %v196 = vperm.slane %v194, 0
  %v198 = vmul.f32 %v155, %v196
  %v199 = vmul.f32 %v157, %v196
  %v200 = vmul.f32 %v160, %v196
  %v201 = vmul.f32 %v162, %v196
  %v202 = vmul.f32 %v165, %v196
  %v203 = vmul.f32 %v167, %v196
  %v204 = vmul.f32 %v170, %v196
  %v205 = vmul.f32 %v172, %v196
  %v206 = vmul.f32 %v175, %v196
  %v207 = vmul.f32 %v177, %v196
  %v208 = vmul.f32 %v180, %v196
  %v209 = vmul.f32 %v182, %v196
  %v210 = vmul.f32 %v185, %v196
  %v211 = vmul.f32 %v187, %v196
  %v212 = vmul.f32 %v190, %v196
  %v213 = vmul.f32 %v192, %v196
  %v214 = vld [vmem:[%s3] sm:$0x1]
  %v216 = vperm.slane %v214, 0
  %v218 = vadd.f32 %v198, %v216
  %v219 = vadd.f32 %v199, %v216
  %v220 = vadd.f32 %v200, %v216
  %v221 = vadd.f32 %v201, %v216
  %v222 = vadd.f32 %v202, %v216
  %v223 = vadd.f32 %v203, %v216
  %v224 = vadd.f32 %v204, %v216
  %v225 = vadd.f32 %v205, %v216
  %v226 = vadd.f32 %v206, %v216
  %v227 = vadd.f32 %v207, %v216
  %v228 = vadd.f32 %v208, %v216
  %v229 = vadd.f32 %v209, %v216
  %v230 = vadd.f32 %v210, %v216
  %v231 = vadd.f32 %v211, %v216
  %v232 = vadd.f32 %v212, %v216
  %v233 = vadd.f32 %v213, %v216
  %234 = vst [vmem:[%s4] sm:$0xff] %v218
  %235 = vst [vmem:[%s4 + $0x8] sm:$0xff] %v219
  %236 = vst [vmem:[%s4 + $0x10] sm:$0xff] %v220
  %237 = vst [vmem:[%s4 + $0x18] sm:$0xff] %v221
  %238 = vst [vmem:[%s4 + $0x20] sm:$0xff] %v222
  %239 = vst [vmem:[%s4 + $0x28] sm:$0xff] %v223
  %240 = vst [vmem:[%s4 + $0x30] sm:$0xff] %v224
  %241 = vst [vmem:[%s4 + $0x38] sm:$0xff] %v225
  %242 = vst [vmem:[%s4 + $0x40] sm:$0xff] %v226
  %243 = vst [vmem:[%s4 + $0x48] sm:$0xff] %v227
  %244 = vst [vmem:[%s4 + $0x50] sm:$0xff] %v228
  %245 = vst [vmem:[%s4 + $0x58] sm:$0xff] %v229
  %246 = vst [vmem:[%s4 + $0x60] sm:$0xff] %v230
  %247 = vst [vmem:[%s4 + $0x68] sm:$0xff] %v231
  %248 = vst [vmem:[%s4 + $0x70] sm:$0xff] %v232
  %249 = vst [vmem:[%s4 + $0x78] sm:$0xff] %v233
  // Predicated region
  $region18: #{pneumonianet_forward.46} parent=0 // pred_check
    _
  $region19: #{pneumonianet_forward.46} parent=0 // pred_check_branch
    %251 = sbr.rel (0) target = $region21
  $region20: #{pneumonianet_forward.46} parent=0 // pred_region
    _
  $region21: #{pneumonianet_forward.46} parent=0 // pred_fallthru
    _
  // Predicated region
  $region22: #{pneumonianet_forward.46} parent=0 // pred_check
    _
  $region23: #{pneumonianet_forward.46} parent=0 // pred_check_branch
    %253 = sbr.rel (0) target = $region25
  $region24: #{pneumonianet_forward.46} parent=0 // pred_region
    _
  $region25: #{pneumonianet_forward.46} parent=0 // pred_fallthru
    _

// kernel: pneumonianet_forward.47
$region0: #{pneumonianet_forward.47}
  #allocation0 [shape = 'u32[]', space=smem, size = 0x4, offset = 0x4, fixed_abs, tag = 'smem constant byte address 0x4 - core index']
  #allocation1 [shape = 'u32[72,128]{1,0:T(1,128)}', space=vmem, size = 0x9000, scoped, tag = 'internal scratch']
  %s0 = inlined_call_operand.vmem [shape: f32[32,4,16], index: 0, kind: input, shape index: {}]
  %s1 = inlined_call_operand.vmem [shape: f32[32,16], index: 1, kind: output, shape index: {}]
  %s2 = sld [smem:[#allocation0]]
  $region14: #{pneumonianet_forward.47} parent=0
    _
  %s4 = ssub.s32 1, %s2
  %s5 = scalar_select 0, %s4, %s2
  // Predicated region
  $region2: #{pneumonianet_forward.47} parent=0 // pred_check
    _
  $region3: #{pneumonianet_forward.47} parent=0 // pred_check_branch
    %7 = sbr.rel (0) target = $region5
  $region4: #{pneumonianet_forward.47} parent=0 // pred_region
    _
  $region5: #{pneumonianet_forward.47} parent=0 // pred_fallthru
    _
  %v8 = vld [vmem:[%s0] sm:$0xf]
  %v9 = vld [vmem:[%s0 + $0x4] sm:$0xf]
  %v10 = vld [vmem:[%s0 + $0x8] sm:$0xf]
  %v11 = vld [vmem:[%s0 + $0xc] sm:$0xf]
  %v12 = vld [vmem:[%s0 + $0x10] sm:$0xf]
  %v13 = vld [vmem:[%s0 + $0x14] sm:$0xf]
  %v14 = vld [vmem:[%s0 + $0x18] sm:$0xf]
  %v15 = vld [vmem:[%s0 + $0x1c] sm:$0xf]
  %v16 = vld [vmem:[%s0 + $0x20] sm:$0xf]
  %v17 = vld [vmem:[%s0 + $0x24] sm:$0xf]
  %v18 = vld [vmem:[%s0 + $0x28] sm:$0xf]
  %v19 = vld [vmem:[%s0 + $0x2c] sm:$0xf]
  %v20 = vld [vmem:[%s0 + $0x30] sm:$0xf]
  %v21 = vld [vmem:[%s0 + $0x34] sm:$0xf]
  %v22 = vld [vmem:[%s0 + $0x38] sm:$0xf]
  %v23 = vld [vmem:[%s0 + $0x3c] sm:$0xf]
  %v24 = vld [vmem:[%s0 + $0x40] sm:$0xf]
  %v25 = vld [vmem:[%s0 + $0x44] sm:$0xf]
  %v26 = vld [vmem:[%s0 + $0x48] sm:$0xf]
  %v27 = vld [vmem:[%s0 + $0x4c] sm:$0xf]
  %v28 = vld [vmem:[%s0 + $0x50] sm:$0xf]
  %v29 = vld [vmem:[%s0 + $0x54] sm:$0xf]
  %v30 = vld [vmem:[%s0 + $0x58] sm:$0xf]
  %v31 = vld [vmem:[%s0 + $0x5c] sm:$0xf]
  %v32 = vld [vmem:[%s0 + $0x60] sm:$0xf]
  %v33 = vld [vmem:[%s0 + $0x64] sm:$0xf]
  %v34 = vld [vmem:[%s0 + $0x68] sm:$0xf]
  %v35 = vld [vmem:[%s0 + $0x6c] sm:$0xf]
  %v36 = vld [vmem:[%s0 + $0x70] sm:$0xf]
  %v37 = vld [vmem:[%s0 + $0x74] sm:$0xf]
  %v38 = vld [vmem:[%s0 + $0x78] sm:$0xf]
  %v39 = vld [vmem:[%s0 + $0x7c] sm:$0xf]
  %vm40 = vcmask 125952
  %v41 = vsel %vm40, %v8, 0.0
  %v42 = vrot.slane %v41, 4
  %v43 = vadd.f32 %v41, %v42
  %v44 = vrot.slane %v43, 2
  %v45 = vadd.f32 %v43, %v44
  %v46 = vrot.slane %v45, 1
  %v47 = vadd.f32 %v45, %v46
  %v48 = vsel %vm40, %v9, 0.0
  %v49 = vrot.slane %v48, 4
  %v50 = vadd.f32 %v48, %v49
  %v51 = vrot.slane %v50, 2
  %v52 = vadd.f32 %v50, %v51
  %v53 = vrot.slane %v52, 1
  %v54 = vadd.f32 %v52, %v53
  %v55 = vsel %vm40, %v10, 0.0
  %v56 = vrot.slane %v55, 4
  %v57 = vadd.f32 %v55, %v56
  %v58 = vrot.slane %v57, 2
  %v59 = vadd.f32 %v57, %v58
  %v60 = vrot.slane %v59, 1
  %v61 = vadd.f32 %v59, %v60
  %v62 = vsel %vm40, %v11, 0.0
  %v63 = vrot.slane %v62, 4
  %v64 = vadd.f32 %v62, %v63
  %v65 = vrot.slane %v64, 2
  %v66 = vadd.f32 %v64, %v65
  %v67 = vrot.slane %v66, 1
  %v68 = vadd.f32 %v66, %v67
  %v69 = vsel %vm40, %v12, 0.0
  %v70 = vrot.slane %v69, 4
  %v71 = vadd.f32 %v69, %v70
  %v72 = vrot.slane %v71, 2
  %v73 = vadd.f32 %v71, %v72
  %v74 = vrot.slane %v73, 1
  %v75 = vadd.f32 %v73, %v74
  %v76 = vsel %vm40, %v13, 0.0
  %v77 = vrot.slane %v76, 4
  %v78 = vadd.f32 %v76, %v77
  %v79 = vrot.slane %v78, 2
  %v80 = vadd.f32 %v78, %v79
  %v81 = vrot.slane %v80, 1
  %v82 = vadd.f32 %v80, %v81
  %v83 = vsel %vm40, %v14, 0.0
  %v84 = vrot.slane %v83, 4
  %v85 = vadd.f32 %v83, %v84
  %v86 = vrot.slane %v85, 2
  %v87 = vadd.f32 %v85, %v86
  %v88 = vrot.slane %v87, 1
  %v89 = vadd.f32 %v87, %v88
  %v90 = vsel %vm40, %v15, 0.0
  %v91 = vrot.slane %v90, 4
  %v92 = vadd.f32 %v90, %v91
  %v93 = vrot.slane %v92, 2
  %v94 = vadd.f32 %v92, %v93
  %v95 = vrot.slane %v94, 1
  %v96 = vadd.f32 %v94, %v95
  %v97 = vsel %vm40, %v16, 0.0
  %v98 = vrot.slane %v97, 4
  %v99 = vadd.f32 %v97, %v98
  %v100 = vrot.slane %v99, 2
  %v101 = vadd.f32 %v99, %v100
  %v102 = vrot.slane %v101, 1
  %v103 = vadd.f32 %v101, %v102
  %v104 = vsel %vm40, %v17, 0.0
  %v105 = vrot.slane %v104, 4
  %v106 = vadd.f32 %v104, %v105
  %v107 = vrot.slane %v106, 2
  %v108 = vadd.f32 %v106, %v107
  %v109 = vrot.slane %v108, 1
  %v110 = vadd.f32 %v108, %v109
  %v111 = vsel %vm40, %v18, 0.0
  %v112 = vrot.slane %v111, 4
  %v113 = vadd.f32 %v111, %v112
  %v114 = vrot.slane %v113, 2
  %v115 = vadd.f32 %v113, %v114
  %v116 = vrot.slane %v115, 1
  %v117 = vadd.f32 %v115, %v116
  %v118 = vsel %vm40, %v19, 0.0
  %v119 = vrot.slane %v118, 4
  %v120 = vadd.f32 %v118, %v119
  %v121 = vrot.slane %v120, 2
  %v122 = vadd.f32 %v120, %v121
  %v123 = vrot.slane %v122, 1
  %v124 = vadd.f32 %v122, %v123
  %v125 = vsel %vm40, %v20, 0.0
  %v126 = vrot.slane %v125, 4
  %v127 = vadd.f32 %v125, %v126
  %v128 = vrot.slane %v127, 2
  %v129 = vadd.f32 %v127, %v128
  %v130 = vrot.slane %v129, 1
  %v131 = vadd.f32 %v129, %v130
  %v132 = vsel %vm40, %v21, 0.0
  %v133 = vrot.slane %v132, 4
  %v134 = vadd.f32 %v132, %v133
  %v135 = vrot.slane %v134, 2
  %v136 = vadd.f32 %v134, %v135
  %v137 = vrot.slane %v136, 1
  %v138 = vadd.f32 %v136, %v137
  %v139 = vsel %vm40, %v22, 0.0
  %v140 = vrot.slane %v139, 4
  %v141 = vadd.f32 %v139, %v140
  %v142 = vrot.slane %v141, 2
  %v143 = vadd.f32 %v141, %v142
  %v144 = vrot.slane %v143, 1
  %v145 = vadd.f32 %v143, %v144
  %v146 = vsel %vm40, %v23, 0.0
  %v147 = vrot.slane %v146, 4
  %v148 = vadd.f32 %v146, %v147
  %v149 = vrot.slane %v148, 2
  %v150 = vadd.f32 %v148, %v149
  %v151 = vrot.slane %v150, 1
  %v152 = vadd.f32 %v150, %v151
  %v153 = vsel %vm40, %v24, 0.0
  %v154 = vrot.slane %v153, 4
  %v155 = vadd.f32 %v153, %v154
  %v156 = vrot.slane %v155, 2
  %v157 = vadd.f32 %v155, %v156
  %v158 = vrot.slane %v157, 1
  %v159 = vadd.f32 %v157, %v158
  %v160 = vsel %vm40, %v25, 0.0
  %v161 = vrot.slane %v160, 4
  %v162 = vadd.f32 %v160, %v161
  %v163 = vrot.slane %v162, 2
  %v164 = vadd.f32 %v162, %v163
  %v165 = vrot.slane %v164, 1
  %v166 = vadd.f32 %v164, %v165
  %v167 = vsel %vm40, %v26, 0.0
  %v168 = vrot.slane %v167, 4
  %v169 = vadd.f32 %v167, %v168
  %v170 = vrot.slane %v169, 2
  %v171 = vadd.f32 %v169, %v170
  %v172 = vrot.slane %v171, 1
  %v173 = vadd.f32 %v171, %v172
  %v174 = vsel %vm40, %v27, 0.0
  %v175 = vrot.slane %v174, 4
  %v176 = vadd.f32 %v174, %v175
  %v177 = vrot.slane %v176, 2
  %v178 = vadd.f32 %v176, %v177
  %v179 = vrot.slane %v178, 1
  %v180 = vadd.f32 %v178, %v179
  %v181 = vsel %vm40, %v28, 0.0
  %v182 = vrot.slane %v181, 4
  %v183 = vadd.f32 %v181, %v182
  %v184 = vrot.slane %v183, 2
  %v185 = vadd.f32 %v183, %v184
  %v186 = vrot.slane %v185, 1
  %v187 = vadd.f32 %v185, %v186
  %v188 = vsel %vm40, %v29, 0.0
  %v189 = vrot.slane %v188, 4
  %v190 = vadd.f32 %v188, %v189
  %v191 = vrot.slane %v190, 2
  %v192 = vadd.f32 %v190, %v191
  %v193 = vrot.slane %v192, 1
  %v194 = vadd.f32 %v192, %v193
  %v195 = vsel %vm40, %v30, 0.0
  %v196 = vrot.slane %v195, 4
  %v197 = vadd.f32 %v195, %v196
  %v198 = vrot.slane %v197, 2
  %v199 = vadd.f32 %v197, %v198
  %v200 = vrot.slane %v199, 1
  %v201 = vadd.f32 %v199, %v200
  %v202 = vsel %vm40, %v31, 0.0
  %v203 = vrot.slane %v202, 4
  %v204 = vadd.f32 %v202, %v203
  %v205 = vrot.slane %v204, 2
  %v206 = vadd.f32 %v204, %v205
  %v207 = vrot.slane %v206, 1
  %v208 = vadd.f32 %v206, %v207
  %v209 = vsel %vm40, %v32, 0.0
  %v210 = vrot.slane %v209, 4
  %v211 = vadd.f32 %v209, %v210
  %v212 = vrot.slane %v211, 2
  %v213 = vadd.f32 %v211, %v212
  %v214 = vrot.slane %v213, 1
  %v215 = vadd.f32 %v213, %v214
  %v216 = vsel %vm40, %v33, 0.0
  %v217 = vrot.slane %v216, 4
  %v218 = vadd.f32 %v216, %v217
  %v219 = vrot.slane %v218, 2
  %v220 = vadd.f32 %v218, %v219
  %v221 = vrot.slane %v220, 1
  %v222 = vadd.f32 %v220, %v221
  %v223 = vsel %vm40, %v34, 0.0
  %v224 = vrot.slane %v223, 4
  %v225 = vadd.f32 %v223, %v224
  %v226 = vrot.slane %v225, 2
  %v227 = vadd.f32 %v225, %v226
  %v228 = vrot.slane %v227, 1
  %v229 = vadd.f32 %v227, %v228
  %v230 = vsel %vm40, %v35, 0.0
  %v231 = vrot.slane %v230, 4
  %v232 = vadd.f32 %v230, %v231
  %v233 = vrot.slane %v232, 2
  %v234 = vadd.f32 %v232, %v233
  %v235 = vrot.slane %v234, 1
  %v236 = vadd.f32 %v234, %v235
  %v237 = vsel %vm40, %v36, 0.0
  %v238 = vrot.slane %v237, 4
  %v239 = vadd.f32 %v237, %v238
  %v240 = vrot.slane %v239, 2
  %v241 = vadd.f32 %v239, %v240
  %v242 = vrot.slane %v241, 1
  %v243 = vadd.f32 %v241, %v242
  %v244 = vsel %vm40, %v37, 0.0
  %v245 = vrot.slane %v244, 4
  %v246 = vadd.f32 %v244, %v245
  %v247 = vrot.slane %v246, 2
  %v248 = vadd.f32 %v246, %v247
  %v249 = vrot.slane %v248, 1
  %v250 = vadd.f32 %v248, %v249
  %v251 = vsel %vm40, %v38, 0.0
  %v252 = vrot.slane %v251, 4
  %v253 = vadd.f32 %v251, %v252
  %v254 = vrot.slane %v253, 2
  %v255 = vadd.f32 %v253, %v254
  %v256 = vrot.slane %v255, 1
  %v257 = vadd.f32 %v255, %v256
  %v258 = vsel %vm40, %v39, 0.0
  %v259 = vrot.slane %v258, 4
  %v260 = vadd.f32 %v258, %v259
  %v261 = vrot.slane %v260, 2
  %v262 = vadd.f32 %v260, %v261
  %v263 = vrot.slane %v262, 1
  %v264 = vadd.f32 %v262, %v263
  %v265 = vmul.f32 %v47, 0.25
  %v266 = vmul.f32 %v54, 0.25
  %v267 = vmul.f32 %v61, 0.25
  %v268 = vmul.f32 %v68, 0.25
  %v269 = vmul.f32 %v75, 0.25
  %v270 = vmul.f32 %v82, 0.25
  %v271 = vmul.f32 %v89, 0.25
  %v272 = vmul.f32 %v96, 0.25
  %v273 = vmul.f32 %v103, 0.25
  %v274 = vmul.f32 %v110, 0.25
  %v275 = vmul.f32 %v117, 0.25
  %v276 = vmul.f32 %v124, 0.25
  %v277 = vmul.f32 %v131, 0.25
  %v278 = vmul.f32 %v138, 0.25
  %v279 = vmul.f32 %v145, 0.25
  %v280 = vmul.f32 %v152, 0.25
  %v281 = vmul.f32 %v159, 0.25
  %v282 = vmul.f32 %v166, 0.25
  %v283 = vmul.f32 %v173, 0.25
  %v284 = vmul.f32 %v180, 0.25
  %v285 = vmul.f32 %v187, 0.25
  %v286 = vmul.f32 %v194, 0.25
  %v287 = vmul.f32 %v201, 0.25
  %v288 = vmul.f32 %v208, 0.25
  %v289 = vmul.f32 %v215, 0.25
  %v290 = vmul.f32 %v222, 0.25
  %v291 = vmul.f32 %v229, 0.25
  %v292 = vmul.f32 %v236, 0.25
  %v293 = vmul.f32 %v243, 0.25
  %v294 = vmul.f32 %v250, 0.25
  %v295 = vmul.f32 %v257, 0.25
  %v296 = vmul.f32 %v264, 0.25
  %vm329 = vcmask 1041409
  %v330 = vsel %vm329, %v266, %v265
  %vm331 = vcmask 1042434
  %v332 = vsel %vm331, %v267, %v330
  %vm333 = vcmask 1043459
  %v334 = vsel %vm333, %v268, %v332
  %vm335 = vcmask 1044484
  %v336 = vsel %vm335, %v269, %v334
  %vm337 = vcmask 1045509
  %v338 = vsel %vm337, %v270, %v336
  %vm339 = vcmask 1046534
  %v340 = vsel %vm339, %v271, %v338
  %vm341 = vcmask 1047559
  %v342 = vsel %vm341, %v272, %v340
  %v343 = vsel %vm329, %v274, %v273
  %v344 = vsel %vm331, %v275, %v343
  %v345 = vsel %vm333, %v276, %v344
  %v346 = vsel %vm335, %v277, %v345
  %v347 = vsel %vm337, %v278, %v346
  %v348 = vsel %vm339, %v279, %v347
  %v349 = vsel %vm341, %v280, %v348
  %v350 = vsel %vm329, %v282, %v281
  %v351 = vsel %vm331, %v283, %v350
  %v352 = vsel %vm333, %v284, %v351
  %v353 = vsel %vm335, %v285, %v352
  %v354 = vsel %vm337, %v286, %v353
  %v355 = vsel %vm339, %v287, %v354
  %v356 = vsel %vm341, %v288, %v355
  %v357 = vsel %vm329, %v290, %v289
  %v358 = vsel %vm331, %v291, %v357
  %v359 = vsel %vm333, %v292, %v358
  %v360 = vsel %vm335, %v293, %v359
  %v361 = vsel %vm337, %v294, %v360
  %v362 = vsel %vm339, %v295, %v361
  %v363 = vsel %vm341, %v296, %v362
  %vm368 = vcmask 130048
  %369 = vst.msk [vmem:[%s1] sm:$0xff] %vm368, %v342
  %370 = vst.msk [vmem:[%s1 + $0x8] sm:$0xff] %vm368, %v349
  %371 = vst.msk [vmem:[%s1 + $0x10] sm:$0xff] %vm368, %v356
  %372 = vst.msk [vmem:[%s1 + $0x18] sm:$0xff] %vm368, %v363
  // Predicated region
  $region6: #{pneumonianet_forward.47} parent=0 // pred_check
    _
  $region7: #{pneumonianet_forward.47} parent=0 // pred_check_branch
    %374 = sbr.rel (0) target = $region9
  $region8: #{pneumonianet_forward.47} parent=0 // pred_region
    _
  $region9: #{pneumonianet_forward.47} parent=0 // pred_fallthru
    _
  // Predicated region
  $region10: #{pneumonianet_forward.47} parent=0 // pred_check
    _
  $region11: #{pneumonianet_forward.47} parent=0 // pred_check_branch
    %376 = sbr.rel (0) target = $region13
  $region12: #{pneumonianet_forward.47} parent=0 // pred_region
    _
  $region13: #{pneumonianet_forward.47} parent=0 // pred_fallthru
    _

// kernel: pneumonianet_forward.48
$region0: #{pneumonianet_forward.48}
  #allocation0 [shape = 'u32[]', space=smem, size = 0x4, offset = 0x4, fixed_abs, tag = 'smem constant byte address 0x4 - core index']
  #allocation1 [shape = 'u32[72,128]{1,0:T(1,128)}', space=vmem, size = 0x9000, scoped, tag = 'internal scratch']
  %s0 = inlined_call_operand.vmem [shape: f32[32,16], index: 0, kind: input, shape index: {}]
  %s1 = inlined_call_operand.vmem [shape: f32[1,16], index: 1, kind: input, shape index: {}]
  %s2 = inlined_call_operand.vmem [shape: f32[1,16], index: 2, kind: input, shape index: {}]
  %s3 = inlined_call_operand.vmem [shape: f32[32,16], index: 3, kind: output, shape index: {}]
  %s4 = sld [smem:[#allocation0]]
  $region22: #{pneumonianet_forward.48} parent=0
    _
  %s6 = ssub.s32 1, %s4
  %s7 = scalar_select 0, %s6, %s4
  // Predicated region
  $region2: #{pneumonianet_forward.48} parent=0 // pred_check
    _
  $region3: #{pneumonianet_forward.48} parent=0 // pred_check_branch
    %9 = sbr.rel (0) target = $region5
  $region4: #{pneumonianet_forward.48} parent=0 // pred_region
    _
  $region5: #{pneumonianet_forward.48} parent=0 // pred_fallthru
    _
  // Predicated region
  $region6: #{pneumonianet_forward.48} parent=0 // pred_check
    _
  $region7: #{pneumonianet_forward.48} parent=0 // pred_check_branch
    %11 = sbr.rel (0) target = $region9
  $region8: #{pneumonianet_forward.48} parent=0 // pred_region
    _
  $region9: #{pneumonianet_forward.48} parent=0 // pred_fallthru
    _
  // Predicated region
  $region10: #{pneumonianet_forward.48} parent=0 // pred_check
    _
  $region11: #{pneumonianet_forward.48} parent=0 // pred_check_branch
    %13 = sbr.rel (0) target = $region13
  $region12: #{pneumonianet_forward.48} parent=0 // pred_region
    _
  $region13: #{pneumonianet_forward.48} parent=0 // pred_fallthru
    _
  %v14 = vld [vmem:[%s0] sm:$0xff]
  %v15 = vld [vmem:[%s0 + $0x8] sm:$0xff]
  %v16 = vld [vmem:[%s0 + $0x10] sm:$0xff]
  %v17 = vld [vmem:[%s0 + $0x18] sm:$0xff]
  %v18 = vld [vmem:[%s1] sm:$0x1]
  %v20 = vperm.slane %v18, 0
  %v22 = vmul.f32 %v14, %v20
  %v23 = vmul.f32 %v15, %v20
  %v24 = vmul.f32 %v16, %v20
  %v25 = vmul.f32 %v17, %v20
  %v26 = vld [vmem:[%s2] sm:$0x1]
  %v28 = vperm.slane %v26, 0
  %v30 = vadd.f32 %v22, %v28
  %v31 = vadd.f32 %v23, %v28
  %v32 = vadd.f32 %v24, %v28
  %v33 = vadd.f32 %v25, %v28
  %v34 = vmax.f32 %v30, 0.0
  %v35 = vmax.f32 %v31, 0.0
  %v36 = vmax.f32 %v32, 0.0
  %v37 = vmax.f32 %v33, 0.0
  %vm38 = vcmask 130048
  %39 = vst.msk [vmem:[%s3] sm:$0xff] %vm38, %v34
  %40 = vst.msk [vmem:[%s3 + $0x8] sm:$0xff] %vm38, %v35
  %41 = vst.msk [vmem:[%s3 + $0x10] sm:$0xff] %vm38, %v36
  %42 = vst.msk [vmem:[%s3 + $0x18] sm:$0xff] %vm38, %v37
  // Predicated region
  $region14: #{pneumonianet_forward.48} parent=0 // pred_check
    _
  $region15: #{pneumonianet_forward.48} parent=0 // pred_check_branch
    %44 = sbr.rel (0) target = $region17
  $region16: #{pneumonianet_forward.48} parent=0 // pred_region
    _
  $region17: #{pneumonianet_forward.48} parent=0 // pred_fallthru
    _
  // Predicated region
  $region18: #{pneumonianet_forward.48} parent=0 // pred_check
    _
  $region19: #{pneumonianet_forward.48} parent=0 // pred_check_branch
    %46 = sbr.rel (0) target = $region21
  $region20: #{pneumonianet_forward.48} parent=0 // pred_region
    _
  $region21: #{pneumonianet_forward.48} parent=0 // pred_fallthru
    _

// kernel: pneumonianet_forward.49
$region0: #{pneumonianet_forward.49}
  #allocation0 [shape = 'u32[]', space=smem, size = 0x4, offset = 0x4, fixed_abs, tag = 'smem constant byte address 0x4 - core index']
  #allocation1 [shape = 'u32[72,128]{1,0:T(1,128)}', space=vmem, size = 0x9000, scoped, tag = 'internal scratch']
  %s0 = inlined_call_operand.vmem [shape: bf16[32,128], index: 0, kind: input, shape index: {}]
  %s1 = inlined_call_operand.vmem [shape: bf16[128,128], index: 1, kind: input, shape index: {}]
  %s2 = inlined_call_operand.vmem [shape: f32[1,128], index: 2, kind: input, shape index: {}]
  %s3 = inlined_call_operand.vmem [shape: f32[1,128], index: 3, kind: input, shape index: {}]
  %s4 = inlined_call_operand.vmem [shape: f32[32,128], index: 4, kind: output, shape index: {}]
  %s5 = sld [smem:[#allocation0]]
  $region26: #{pneumonianet_forward.49} parent=0
    _
  %s7 = ssub.s32 1, %s5
  %s8 = scalar_select 0, %s7, %s5
  // Predicated region
  $region2: #{pneumonianet_forward.49} parent=0 // pred_check
    _
  $region3: #{pneumonianet_forward.49} parent=0 // pred_check_branch
    %10 = sbr.rel (0) target = $region5
  $region4: #{pneumonianet_forward.49} parent=0 // pred_region
    _
  $region5: #{pneumonianet_forward.49} parent=0 // pred_fallthru
    _
  // Predicated region
  $region6: #{pneumonianet_forward.49} parent=0 // pred_check
    _
  $region7: #{pneumonianet_forward.49} parent=0 // pred_check_branch
    %12 = sbr.rel (0) target = $region9
  $region8: #{pneumonianet_forward.49} parent=0 // pred_region
    _
  $region9: #{pneumonianet_forward.49} parent=0 // pred_fallthru
    _
  // Predicated region
  $region10: #{pneumonianet_forward.49} parent=0 // pred_check
    _
  $region11: #{pneumonianet_forward.49} parent=0 // pred_check_branch
    %14 = sbr.rel (0) target = $region13
  $region12: #{pneumonianet_forward.49} parent=0 // pred_region
    _
  $region13: #{pneumonianet_forward.49} parent=0 // pred_fallthru
    _
  // Predicated region
  $region14: #{pneumonianet_forward.49} parent=0 // pred_check
    _
  $region15: #{pneumonianet_forward.49} parent=0 // pred_check_branch
    %16 = sbr.rel (0) target = $region17
  $region16: #{pneumonianet_forward.49} parent=0 // pred_region
    _
  $region17: #{pneumonianet_forward.49} parent=0 // pred_fallthru
    _
  %v17 = vld [vmem:[%s0] sm:$0xf]
  %v18 = vld [vmem:[%s0 + $0x4] sm:$0xf]
  %v19 = vld [vmem:[%s0 + $0x8] sm:$0xf]
  %v20 = vld [vmem:[%s0 + $0xc] sm:$0xf]
  %v21 = vld [vmem:[%s1] sm:$0xf]
  %v22 = vld [vmem:[%s1 + $0x4] sm:$0xf]
  %v23 = vld [vmem:[%s1 + $0x8] sm:$0xf]
  %v24 = vld [vmem:[%s1 + $0xc] sm:$0xf]
  %v25 = vld [vmem:[%s1 + $0x10] sm:$0xf]
  %v26 = vld [vmem:[%s1 + $0x14] sm:$0xf]
  %v27 = vld [vmem:[%s1 + $0x18] sm:$0xf]
  %v28 = vld [vmem:[%s1 + $0x1c] sm:$0xf]
  %v29 = vld [vmem:[%s1 + $0x20] sm:$0xf]
  %v30 = vld [vmem:[%s1 + $0x24] sm:$0xf]
  %v31 = vld [vmem:[%s1 + $0x28] sm:$0xf]
  %v32 = vld [vmem:[%s1 + $0x2c] sm:$0xf]
  %v33 = vld [vmem:[%s1 + $0x30] sm:$0xf]
  %v34 = vld [vmem:[%s1 + $0x34] sm:$0xf]
  %v35 = vld [vmem:[%s1 + $0x38] sm:$0xf]
  %v36 = vld [vmem:[%s1 + $0x3c] sm:$0xf]
  %v41 = vunpack.c.l.b16 %v17
  %v42 = vunpack.c.l.b16 %v18
  %v43 = vunpack.c.l.b16 %v19
  %v44 = vunpack.c.l.b16 %v20
  %v45 = vpack.c.b16 %v42, %v41
  %v46 = vpack.c.b16 %v44, %v43
  %v65 = vunpack.c.l.b16 %v21
  %v66 = vunpack.c.l.b16 %v22
  %v67 = vunpack.c.l.b16 %v23
  %v68 = vunpack.c.l.b16 %v24
  %v69 = vunpack.c.l.b16 %v25
  %v70 = vunpack.c.l.b16 %v26
  %v71 = vunpack.c.l.b16 %v27
  %v72 = vunpack.c.l.b16 %v28
  %v73 = vunpack.c.l.b16 %v29
  %v74 = vunpack.c.l.b16 %v30
  %v75 = vunpack.c.l.b16 %v31
  %v76 = vunpack.c.l.b16 %v32
  %v77 = vunpack.c.l.b16 %v33
  %v78 = vunpack.c.l.b16 %v34
  %v79 = vunpack.c.l.b16 %v35
  %v80 = vunpack.c.l.b16 %v36
  %v81 = vpack.c.b16 %v66, %v65
  %v82 = vpack.c.b16 %v68, %v67
  %v83 = vpack.c.b16 %v70, %v69
  %v84 = vpack.c.b16 %v72, %v71
  %v85 = vpack.c.b16 %v74, %v73
  %v86 = vpack.c.b16 %v76, %v75
  %v87 = vpack.c.b16 %v78, %v77
  %v88 = vpack.c.b16 %v80, %v79
  %97 = vmatpush.bf16.msra.mxu0 %v88
  %98 = vmatpush.bf16.msra.mxu0 %v87
  %99 = vmatpush.bf16.msra.mxu0 %v86
  %100 = vmatpush.bf16.msra.mxu0 %v85
  %101 = vmatpush.bf16.msra.mxu0 %v84
  %102 = vmatpush.bf16.msra.mxu0 %v83
  %103 = vmatpush.bf16.msra.mxu0 %v82
  %104 = vmatpush.bf16.msra.mxu0 %v81
  %105 = vmatmul.bf16.gmra.mxu0 %v45
  %v106 = vpop.f32.mrf.mxu0
  %v107 = vadd.f32 0.0, %v106
  %v108 = vpop.f32.mrf.mxu0
  %v109 = vadd.f32 0.0, %v108
  %110 = vmatmul.bf16.gmra.mxu0 %v46
  %v111 = vpop.f32.mrf.mxu0
  %v112 = vadd.f32 0.0, %v111
  %v113 = vpop.f32.mrf.mxu0
  %v114 = vadd.f32 0.0, %v113
  %115 = vdwg.mxu0
  %v116 = vld [vmem:[%s2] sm:$0x1]
  %v118 = vperm.slane %v116, 0
  %v120 = vmul.f32 %v107, %v118
  %v121 = vmul.f32 %v109, %v118
  %v122 = vmul.f32 %v112, %v118
  %v123 = vmul.f32 %v114, %v118
  %v124 = vld [vmem:[%s3] sm:$0x1]
  %v126 = vperm.slane %v124, 0
  %v128 = vadd.f32 %v120, %v126
  %v129 = vadd.f32 %v121, %v126
  %v130 = vadd.f32 %v122, %v126
  %v131 = vadd.f32 %v123, %v126
  %v132 = vmax.f32 %v128, 0.0
  %v133 = vmax.f32 %v129, 0.0
  %v134 = vmax.f32 %v130, 0.0
  %v135 = vmax.f32 %v131, 0.0
  %136 = vst [vmem:[%s4] sm:$0xff] %v132
  %137 = vst [vmem:[%s4 + $0x8] sm:$0xff] %v133
  %138 = vst [vmem:[%s4 + $0x10] sm:$0xff] %v134
  %139 = vst [vmem:[%s4 + $0x18] sm:$0xff] %v135
  // Predicated region
  $region18: #{pneumonianet_forward.49} parent=0 // pred_check
    _
  $region19: #{pneumonianet_forward.49} parent=0 // pred_check_branch
    %141 = sbr.rel (0) target = $region21
  $region20: #{pneumonianet_forward.49} parent=0 // pred_region
    _
  $region21: #{pneumonianet_forward.49} parent=0 // pred_fallthru
    _
  // Predicated region
  $region22: #{pneumonianet_forward.49} parent=0 // pred_check
    _
  $region23: #{pneumonianet_forward.49} parent=0 // pred_check_branch
    %143 = sbr.rel (0) target = $region25
  $region24: #{pneumonianet_forward.49} parent=0 // pred_region
    _
  $region25: #{pneumonianet_forward.49} parent=0 // pred_fallthru
    _

// kernel: pneumonianet_forward.50
$region0: #{pneumonianet_forward.50}
  #allocation0 [shape = 'u32[]', space=smem, size = 0x4, offset = 0x4, fixed_abs, tag = 'smem constant byte address 0x4 - core index']
  #allocation1 [shape = 'u32[72,128]{1,0:T(1,128)}', space=vmem, size = 0x9000, scoped, tag = 'internal scratch']
  %s0 = inlined_call_operand.vmem [shape: bf16[32,384], index: 0, kind: input, shape index: {}]
  %s1 = inlined_call_operand.vmem [shape: bf16[384,128], index: 1, kind: input, shape index: {}]
  %s2 = inlined_call_operand.vmem [shape: f32[1,128], index: 2, kind: input, shape index: {}]
  %s3 = inlined_call_operand.vmem [shape: f32[1,128], index: 3, kind: input, shape index: {}]
  %s4 = inlined_call_operand.vmem [shape: f32[32,128], index: 4, kind: output, shape index: {}]
  %s5 = sld [smem:[#allocation0]]
  $region26: #{pneumonianet_forward.50} parent=0
    _
  %s7 = ssub.s32 1, %s5
  %s8 = scalar_select 0, %s7, %s5
  // Predicated region
  $region2: #{pneumonianet_forward.50} parent=0 // pred_check
    _
  $region3: #{pneumonianet_forward.50} parent=0 // pred_check_branch
    %10 = sbr.rel (0) target = $region5
  $region4: #{pneumonianet_forward.50} parent=0 // pred_region
    _
  $region5: #{pneumonianet_forward.50} parent=0 // pred_fallthru
    _
  // Predicated region
  $region6: #{pneumonianet_forward.50} parent=0 // pred_check
    _
  $region7: #{pneumonianet_forward.50} parent=0 // pred_check_branch
    %12 = sbr.rel (0) target = $region9
  $region8: #{pneumonianet_forward.50} parent=0 // pred_region
    _
  $region9: #{pneumonianet_forward.50} parent=0 // pred_fallthru
    _
  // Predicated region
  $region10: #{pneumonianet_forward.50} parent=0 // pred_check
    _
  $region11: #{pneumonianet_forward.50} parent=0 // pred_check_branch
    %14 = sbr.rel (0) target = $region13
  $region12: #{pneumonianet_forward.50} parent=0 // pred_region
    _
  $region13: #{pneumonianet_forward.50} parent=0 // pred_fallthru
    _
  // Predicated region
  $region14: #{pneumonianet_forward.50} parent=0 // pred_check
    _
  $region15: #{pneumonianet_forward.50} parent=0 // pred_check_branch
    %16 = sbr.rel (0) target = $region17
  $region16: #{pneumonianet_forward.50} parent=0 // pred_region
    _
  $region17: #{pneumonianet_forward.50} parent=0 // pred_fallthru
    _
  %v17 = vld [vmem:[%s0] sm:$0xff]
  %v18 = vld [vmem:[%s0 + $0x8] sm:$0xf]
  %v19 = vld [vmem:[%s0 + $0xc] sm:$0xff]
  %v20 = vld [vmem:[%s0 + $0x14] sm:$0xf]
  %v21 = vld [vmem:[%s0 + $0x18] sm:$0xff]
  %v22 = vld [vmem:[%s0 + $0x20] sm:$0xf]
  %v23 = vld [vmem:[%s0 + $0x24] sm:$0xff]
  %v24 = vld [vmem:[%s0 + $0x2c] sm:$0xf]
  %v25 = vld [vmem:[%s1] sm:$0xf]
  %v26 = vld [vmem:[%s1 + $0x4] sm:$0xf]
  %v27 = vld [vmem:[%s1 + $0x8] sm:$0xf]
  %v28 = vld [vmem:[%s1 + $0xc] sm:$0xf]
  %v29 = vld [vmem:[%s1 + $0x10] sm:$0xf]
  %v30 = vld [vmem:[%s1 + $0x14] sm:$0xf]
  %v31 = vld [vmem:[%s1 + $0x18] sm:$0xf]
  %v32 = vld [vmem:[%s1 + $0x1c] sm:$0xf]
  %v33 = vld [vmem:[%s1 + $0x20] sm:$0xf]
  %v34 = vld [vmem:[%s1 + $0x24] sm:$0xf]
  %v35 = vld [vmem:[%s1 + $0x28] sm:$0xf]
  %v36 = vld [vmem:[%s1 + $0x2c] sm:$0xf]
  %v37 = vld [vmem:[%s1 + $0x30] sm:$0xf]
  %v38 = vld [vmem:[%s1 + $0x34] sm:$0xf]
  %v39 = vld [vmem:[%s1 + $0x38] sm:$0xf]
  %v40 = vld [vmem:[%s1 + $0x3c] sm:$0xf]
  %v41 = vld [vmem:[%s1 + $0x40] sm:$0xf]
  %v42 = vld [vmem:[%s1 + $0x44] sm:$0xf]
  %v43 = vld [vmem:[%s1 + $0x48] sm:$0xf]
  %v44 = vld [vmem:[%s1 + $0x4c] sm:$0xf]
  %v45 = vld [vmem:[%s1 + $0x50] sm:$0xf]
  %v46 = vld [vmem:[%s1 + $0x54] sm:$0xf]
  %v47 = vld [vmem:[%s1 + $0x58] sm:$0xf]
  %v48 = vld [vmem:[%s1 + $0x5c] sm:$0xf]
  %v49 = vld [vmem:[%s1 + $0x60] sm:$0xf]
  %v50 = vld [vmem:[%s1 + $0x64] sm:$0xf]
  %v51 = vld [vmem:[%s1 + $0x68] sm:$0xf]
  %v52 = vld [vmem:[%s1 + $0x6c] sm:$0xf]
  %v53 = vld [vmem:[%s1 + $0x70] sm:$0xf]
  %v54 = vld [vmem:[%s1 + $0x74] sm:$0xf]
  %v55 = vld [vmem:[%s1 + $0x78] sm:$0xf]
  %v56 = vld [vmem:[%s1 + $0x7c] sm:$0xf]
  %v57 = vld [vmem:[%s1 + $0x80] sm:$0xf]
  %v58 = vld [vmem:[%s1 + $0x84] sm:$0xf]
  %v59 = vld [vmem:[%s1 + $0x88] sm:$0xf]
  %v60 = vld [vmem:[%s1 + $0x8c] sm:$0xf]
  %v61 = vld [vmem:[%s1 + $0x90] sm:$0xf]
  %v62 = vld [vmem:[%s1 + $0x94] sm:$0xf]
  %v63 = vld [vmem:[%s1 + $0x98] sm:$0xf]
  %v64 = vld [vmem:[%s1 + $0x9c] sm:$0xf]
  %v65 = vld [vmem:[%s1 + $0xa0] sm:$0xf]
  %v66 = vld [vmem:[%s1 + $0xa4] sm:$0xf]
  %v67 = vld [vmem:[%s1 + $0xa8] sm:$0xf]
  %v68 = vld [vmem:[%s1 + $0xac] sm:$0xf]
  %v69 = vld [vmem:[%s1 + $0xb0] sm:$0xf]
  %v70 = vld [vmem:[%s1 + $0xb4] sm:$0xf]
  %v71 = vld [vmem:[%s1 + $0xb8] sm:$0xf]
  %v72 = vld [vmem:[%s1 + $0xbc] sm:$0xf]
  %v81 = vunpack.c.l.b16 %v17
  %v82 = vunpack.c.h.b16 %v17
  %v83 = vunpack.c.l.b16 %v18
  %v84 = vunpack.c.l.b16 %v19
  %v85 = vunpack.c.h.b16 %v19
  %v86 = vunpack.c.l.b16 %v20
  %v87 = vunpack.c.l.b16 %v21
  %v88 = vunpack.c.h.b16 %v21
  %v89 = vunpack.c.l.b16 %v22
  %v90 = vunpack.c.l.b16 %v23
  %v91 = vunpack.c.h.b16 %v23
  %v92 = vunpack.c.l.b16 %v24
  %v93 = vpack.c.b16 %v84, %v81
  %v94 = vpack.c.b16 %v85, %v82
  %v95 = vpack.c.b16 %v86, %v83
  %v96 = vpack.c.b16 %v90, %v87
  %v97 = vpack.c.b16 %v91, %v88
  %v98 = vpack.c.b16 %v92, %v89
  %v153 = vunpack.c.l.b16 %v25
  %v154 = vunpack.c.l.b16 %v26
  %v155 = vunpack.c.l.b16 %v27
  %v156 = vunpack.c.l.b16 %v28
  %v157 = vunpack.c.l.b16 %v29
  %v158 = vunpack.c.l.b16 %v30
  %v159 = vunpack.c.l.b16 %v31
  %v160 = vunpack.c.l.b16 %v32
  %v161 = vunpack.c.l.b16 %v33
  %v162 = vunpack.c.l.b16 %v34
  %v163 = vunpack.c.l.b16 %v35
  %v164 = vunpack.c.l.b16 %v36
  %v165 = vunpack.c.l.b16 %v37
  %v166 = vunpack.c.l.b16 %v38
  %v167 = vunpack.c.l.b16 %v39
  %v168 = vunpack.c.l.b16 %v40
  %v169 = vunpack.c.l.b16 %v41
  %v170 = vunpack.c.l.b16 %v42
  %v171 = vunpack.c.l.b16 %v43
  %v172 = vunpack.c.l.b16 %v44
  %v173 = vunpack.c.l.b16 %v45
  %v174 = vunpack.c.l.b16 %v46
  %v175 = vunpack.c.l.b16 %v47
  %v176 = vunpack.c.l.b16 %v48
  %v177 = vunpack.c.l.b16 %v49
  %v178 = vunpack.c.l.b16 %v50
  %v179 = vunpack.c.l.b16 %v51
  %v180 = vunpack.c.l.b16 %v52
  %v181 = vunpack.c.l.b16 %v53
  %v182 = vunpack.c.l.b16 %v54
  %v183 = vunpack.c.l.b16 %v55
  %v184 = vunpack.c.l.b16 %v56
  %v185 = vunpack.c.l.b16 %v57
  %v186 = vunpack.c.l.b16 %v58
  %v187 = vunpack.c.l.b16 %v59
  %v188 = vunpack.c.l.b16 %v60
  %v189 = vunpack.c.l.b16 %v61
  %v190 = vunpack.c.l.b16 %v62
  %v191 = vunpack.c.l.b16 %v63
  %v192 = vunpack.c.l.b16 %v64
  %v193 = vunpack.c.l.b16 %v65
  %v194 = vunpack.c.l.b16 %v66
  %v195 = vunpack.c.l.b16 %v67
  %v196 = vunpack.c.l.b16 %v68
  %v197 = vunpack.c.l.b16 %v69
  %v198 = vunpack.c.l.b16 %v70
  %v199 = vunpack.c.l.b16 %v71
  %v200 = vunpack.c.l.b16 %v72
  %v201 = vpack.c.b16 %v154, %v153
  %v202 = vpack.c.b16 %v156, %v155
  %v203 = vpack.c.b16 %v158, %v157
  %v204 = vpack.c.b16 %v160, %v159
  %v205 = vpack.c.b16 %v162, %v161
  %v206 = vpack.c.b16 %v164, %v163
  %v207 = vpack.c.b16 %v166, %v165
  %v208 = vpack.c.b16 %v168, %v167
  %v209 = vpack.c.b16 %v170, %v169
  %v210 = vpack.c.b16 %v172, %v171
  %v211 = vpack.c.b16 %v174, %v173
  %v212 = vpack.c.b16 %v176, %v175
  %v213 = vpack.c.b16 %v178, %v177
  %v214 = vpack.c.b16 %v180, %v179
  %v215 = vpack.c.b16 %v182, %v181
  %v216 = vpack.c.b16 %v184, %v183
  %v217 = vpack.c.b16 %v186, %v185
  %v218 = vpack.c.b16 %v188, %v187
  %v219 = vpack.c.b16 %v190, %v189
  %v220 = vpack.c.b16 %v192, %v191
  %v221 = vpack.c.b16 %v194, %v193
  %v222 = vpack.c.b16 %v196, %v195
  %v223 = vpack.c.b16 %v198, %v197
  %v224 = vpack.c.b16 %v200, %v199
  %249 = vmatpush.bf16.msra.mxu0 %v208
  %250 = vmatpush.bf16.msra.mxu0 %v207
  %251 = vmatpush.bf16.msra.mxu0 %v206
  %252 = vmatpush.bf16.msra.mxu0 %v205
  %253 = vmatpush.bf16.msra.mxu0 %v204
  %254 = vmatpush.bf16.msra.mxu0 %v203
  %255 = vmatpush.bf16.msra.mxu0 %v202
  %256 = vmatpush.bf16.msra.mxu0 %v201
  %257 = vmatmul.bf16.gmra.mxu0 %v93
  %v258 = vpop.f32.mrf.mxu0
  %v259 = vadd.f32 0.0, %v258
  %v260 = vpop.f32.mrf.mxu0
  %v261 = vadd.f32 0.0, %v260
  %262 = vmatmul.bf16.gmra.mxu0 %v96
  %v263 = vpop.f32.mrf.mxu0
  %v264 = vadd.f32 0.0, %v263
  %v265 = vpop.f32.mrf.mxu0
  %v266 = vadd.f32 0.0, %v265
  %267 = vdwg.mxu0
  %268 = vmatpush.bf16.msra.mxu0 %v216
  %269 = vmatpush.bf16.msra.mxu0 %v215
  %270 = vmatpush.bf16.msra.mxu0 %v214
  %271 = vmatpush.bf16.msra.mxu0 %v213
  %272 = vmatpush.bf16.msra.mxu0 %v212
  %273 = vmatpush.bf16.msra.mxu0 %v211
  %274 = vmatpush.bf16.msra.mxu0 %v210
  %275 = vmatpush.bf16.msra.mxu0 %v209
  %276 = vmatmul.bf16.gmra.mxu0 %v94
  %v277 = vpop.f32.mrf.mxu0
  %v278 = vadd.f32 %v259, %v277
  %v279 = vpop.f32.mrf.mxu0
  %v280 = vadd.f32 %v261, %v279
  %281 = vmatmul.bf16.gmra.mxu0 %v97
  %v282 = vpop.f32.mrf.mxu0
  %v283 = vadd.f32 %v264, %v282
  %v284 = vpop.f32.mrf.mxu0
  %v285 = vadd.f32 %v266, %v284
  %286 = vdwg.mxu0
  %287 = vmatpush.bf16.msra.mxu0 %v224
  %288 = vmatpush.bf16.msra.mxu0 %v223
  %289 = vmatpush.bf16.msra.mxu0 %v222
  %290 = vmatpush.bf16.msra.mxu0 %v221
  %291 = vmatpush.bf16.msra.mxu0 %v220
  %292 = vmatpush.bf16.msra.mxu0 %v219
  %293 = vmatpush.bf16.msra.mxu0 %v218
  %294 = vmatpush.bf16.msra.mxu0 %v217
  %295 = vmatmul.bf16.gmra.mxu0 %v95
  %v296 = vpop.f32.mrf.mxu0
  %v297 = vadd.f32 %v278, %v296
  %v298 = vpop.f32.mrf.mxu0
  %v299 = vadd.f32 %v280, %v298
  %300 = vmatmul.bf16.gmra.mxu0 %v98
  %v301 = vpop.f32.mrf.mxu0
  %v302 = vadd.f32 %v283, %v301
  %v303 = vpop.f32.mrf.mxu0
  %v304 = vadd.f32 %v285, %v303
  %305 = vdwg.mxu0
  %v306 = vld [vmem:[%s2] sm:$0x1]
  %v308 = vperm.slane %v306, 0
  %v310 = vmul.f32 %v297, %v308
  %v311 = vmul.f32 %v299, %v308
  %v312 = vmul.f32 %v302, %v308
  %v313 = vmul.f32 %v304, %v308
  %v314 = vld [vmem:[%s3] sm:$0x1]
  %v316 = vperm.slane %v314, 0
  %v318 = vadd.f32 %v310, %v316
  %v319 = vadd.f32 %v311, %v316
  %v320 = vadd.f32 %v312, %v316
  %v321 = vadd.f32 %v313, %v316
  %322 = vst [vmem:[%s4] sm:$0xff] %v318
  %323 = vst [vmem:[%s4 + $0x8] sm:$0xff] %v319
  %324 = vst [vmem:[%s4 + $0x10] sm:$0xff] %v320
  %325 = vst [vmem:[%s4 + $0x18] sm:$0xff] %v321
  // Predicated region
  $region18: #{pneumonianet_forward.50} parent=0 // pred_check
    _
  $region19: #{pneumonianet_forward.50} parent=0 // pred_check_branch
    %327 = sbr.rel (0) target = $region21
  $region20: #{pneumonianet_forward.50} parent=0 // pred_region
    _
  $region21: #{pneumonianet_forward.50} parent=0 // pred_fallthru
    _
  // Predicated region
  $region22: #{pneumonianet_forward.50} parent=0 // pred_check
    _
  $region23: #{pneumonianet_forward.50} parent=0 // pred_check_branch
    %329 = sbr.rel (0) target = $region25
  $region24: #{pneumonianet_forward.50} parent=0 // pred_region
    _
  $region25: #{pneumonianet_forward.50} parent=0 // pred_fallthru
    _

// kernel: pneumonianet_forward.51
$region0: #{pneumonianet_forward.51}
  #allocation0 [shape = 'u32[]', space=smem, size = 0x4, offset = 0x4, fixed_abs, tag = 'smem constant byte address 0x4 - core index']
  #allocation1 [shape = 'u32[72,128]{1,0:T(1,128)}', space=vmem, size = 0x9000, scoped, tag = 'internal scratch']
  %s0 = inlined_call_operand.vmem [shape: f32[32,24], index: 0, kind: input, shape index: {}]
  %s1 = inlined_call_operand.vmem [shape: f32[1,24], index: 1, kind: input, shape index: {}]
  %s2 = inlined_call_operand.vmem [shape: f32[1,24], index: 2, kind: input, shape index: {}]
  %s3 = inlined_call_operand.vmem [shape: f32[32,24], index: 3, kind: output, shape index: {}]
  %s4 = sld [smem:[#allocation0]]
  $region22: #{pneumonianet_forward.51} parent=0
    _
  %s6 = ssub.s32 1, %s4
  %s7 = scalar_select 0, %s6, %s4
  // Predicated region
  $region2: #{pneumonianet_forward.51} parent=0 // pred_check
    _
  $region3: #{pneumonianet_forward.51} parent=0 // pred_check_branch
    %9 = sbr.rel (0) target = $region5
  $region4: #{pneumonianet_forward.51} parent=0 // pred_region
    _
  $region5: #{pneumonianet_forward.51} parent=0 // pred_fallthru
    _
  // Predicated region
  $region6: #{pneumonianet_forward.51} parent=0 // pred_check
    _
  $region7: #{pneumonianet_forward.51} parent=0 // pred_check_branch
    %11 = sbr.rel (0) target = $region9
  $region8: #{pneumonianet_forward.51} parent=0 // pred_region
    _
  $region9: #{pneumonianet_forward.51} parent=0 // pred_fallthru
    _
  // Predicated region
  $region10: #{pneumonianet_forward.51} parent=0 // pred_check
    _
  $region11: #{pneumonianet_forward.51} parent=0 // pred_check_branch
    %13 = sbr.rel (0) target = $region13
  $region12: #{pneumonianet_forward.51} parent=0 // pred_region
    _
  $region13: #{pneumonianet_forward.51} parent=0 // pred_fallthru
    _
  %v14 = vld [vmem:[%s0] sm:$0xff]
  %v15 = vld [vmem:[%s0 + $0x8] sm:$0xff]
  %v16 = vld [vmem:[%s0 + $0x10] sm:$0xff]
  %v17 = vld [vmem:[%s0 + $0x18] sm:$0xff]
  %v18 = vld [vmem:[%s1] sm:$0x1]
  %v20 = vperm.slane %v18, 0
  %v22 = vmul.f32 %v14, %v20
  %v23 = vmul.f32 %v15, %v20
  %v24 = vmul.f32 %v16, %v20
  %v25 = vmul.f32 %v17, %v20
  %v26 = vld [vmem:[%s2] sm:$0x1]
  %v28 = vperm.slane %v26, 0
  %v30 = vadd.f32 %v22, %v28
  %v31 = vadd.f32 %v23, %v28
  %v32 = vadd.f32 %v24, %v28
  %v33 = vadd.f32 %v25, %v28
  %v34 = vmax.f32 %v30, 0.0
  %v35 = vmax.f32 %v31, 0.0
  %v36 = vmax.f32 %v32, 0.0
  %v37 = vmax.f32 %v33, 0.0
  %vm38 = vcmask 195584
  %39 = vst.msk [vmem:[%s3] sm:$0xff] %vm38, %v34
  %40 = vst.msk [vmem:[%s3 + $0x8] sm:$0xff] %vm38, %v35
  %41 = vst.msk [vmem:[%s3 + $0x10] sm:$0xff] %vm38, %v36
  %42 = vst.msk [vmem:[%s3 + $0x18] sm:$0xff] %vm38, %v37
  // Predicated region
  $region14: #{pneumonianet_forward.51} parent=0 // pred_check
    _
  $region15: #{pneumonianet_forward.51} parent=0 // pred_check_branch
    %44 = sbr.rel (0) target = $region17
  $region16: #{pneumonianet_forward.51} parent=0 // pred_region
    _
  $region17: #{pneumonianet_forward.51} parent=0 // pred_fallthru
    _
  // Predicated region
  $region18: #{pneumonianet_forward.51} parent=0 // pred_check
    _
  $region19: #{pneumonianet_forward.51} parent=0 // pred_check_branch
    %46 = sbr.rel (0) target = $region21
  $region20: #{pneumonianet_forward.51} parent=0 // pred_region
    _
  $region21: #{pneumonianet_forward.51} parent=0 // pred_fallthru
    _

// kernel: pneumonianet_forward.54
$region0: #{pneumonianet_forward.54}
  #allocation0 [shape = 'u32[]', space=smem, size = 0x4, offset = 0x4, fixed_abs, tag = 'smem constant byte address 0x4 - core index']
  #allocation1 [shape = 'u32[72,128]{1,0:T(1,128)}', space=vmem, size = 0x9000, scoped, tag = 'internal scratch']
  %s0 = inlined_call_operand.vmem [shape: f32[32,32], index: 0, kind: input, shape index: {}]
  %s1 = inlined_call_operand.vmem [shape: f32[1,32], index: 1, kind: input, shape index: {}]
  %s2 = inlined_call_operand.vmem [shape: f32[1,32], index: 2, kind: input, shape index: {}]
  %s3 = inlined_call_operand.vmem [shape: f32[32,32], index: 3, kind: output, shape index: {}]
  %s4 = sld [smem:[#allocation0]]
  $region22: #{pneumonianet_forward.54} parent=0
    _
  %s6 = ssub.s32 1, %s4
  %s7 = scalar_select 0, %s6, %s4
  // Predicated region
  $region2: #{pneumonianet_forward.54} parent=0 // pred_check
    _
  $region3: #{pneumonianet_forward.54} parent=0 // pred_check_branch
    %9 = sbr.rel (0) target = $region5
  $region4: #{pneumonianet_forward.54} parent=0 // pred_region
    _
  $region5: #{pneumonianet_forward.54} parent=0 // pred_fallthru
    _
  // Predicated region
  $region6: #{pneumonianet_forward.54} parent=0 // pred_check
    _
  $region7: #{pneumonianet_forward.54} parent=0 // pred_check_branch
    %11 = sbr.rel (0) target = $region9
  $region8: #{pneumonianet_forward.54} parent=0 // pred_region
    _
  $region9: #{pneumonianet_forward.54} parent=0 // pred_fallthru
    _
  // Predicated region
  $region10: #{pneumonianet_forward.54} parent=0 // pred_check
    _
  $region11: #{pneumonianet_forward.54} parent=0 // pred_check_branch
    %13 = sbr.rel (0) target = $region13
  $region12: #{pneumonianet_forward.54} parent=0 // pred_region
    _
  $region13: #{pneumonianet_forward.54} parent=0 // pred_fallthru
    _
  %v14 = vld [vmem:[%s0] sm:$0xff]
  %v15 = vld [vmem:[%s0 + $0x8] sm:$0xff]
  %v16 = vld [vmem:[%s0 + $0x10] sm:$0xff]
  %v17 = vld [vmem:[%s0 + $0x18] sm:$0xff]
  %v18 = vld [vmem:[%s1] sm:$0x1]
  %v20 = vperm.slane %v18, 0
  %v22 = vmul.f32 %v14, %v20
  %v23 = vmul.f32 %v15, %v20
  %v24 = vmul.f32 %v16, %v20
  %v25 = vmul.f32 %v17, %v20
  %v26 = vld [vmem:[%s2] sm:$0x1]
  %v28 = vperm.slane %v26, 0
  %v30 = vadd.f32 %v22, %v28
  %v31 = vadd.f32 %v23, %v28
  %v32 = vadd.f32 %v24, %v28
  %v33 = vadd.f32 %v25, %v28
  %v34 = vmax.f32 %v30, 0.0
  %v35 = vmax.f32 %v31, 0.0
  %v36 = vmax.f32 %v32, 0.0
  %v37 = vmax.f32 %v33, 0.0
  %vm38 = vcmask 261120
  %39 = vst.msk [vmem:[%s3] sm:$0xff] %vm38, %v34
  %40 = vst.msk [vmem:[%s3 + $0x8] sm:$0xff] %vm38, %v35
  %41 = vst.msk [vmem:[%s3 + $0x10] sm:$0xff] %vm38, %v36
  %42 = vst.msk [vmem:[%s3 + $0x18] sm:$0xff] %vm38, %v37
  // Predicated region
  $region14: #{pneumonianet_forward.54} parent=0 // pred_check
    _
  $region15: #{pneumonianet_forward.54} parent=0 // pred_check_branch
    %44 = sbr.rel (0) target = $region17
  $region16: #{pneumonianet_forward.54} parent=0 // pred_region
    _
  $region17: #{pneumonianet_forward.54} parent=0 // pred_fallthru
    _
  // Predicated region
  $region18: #{pneumonianet_forward.54} parent=0 // pred_check
    _
  $region19: #{pneumonianet_forward.54} parent=0 // pred_check_branch
    %46 = sbr.rel (0) target = $region21
  $region20: #{pneumonianet_forward.54} parent=0 // pred_region
    _
  $region21: #{pneumonianet_forward.54} parent=0 // pred_fallthru
    _

// kernel: pneumonianet_forward.55
$region0: #{pneumonianet_forward.55}
  #allocation0 [shape = 'u32[]', space=smem, size = 0x4, offset = 0x4, fixed_abs, tag = 'smem constant byte address 0x4 - core index']
  #allocation1 [shape = 'u32[72,128]{1,0:T(1,128)}', space=vmem, size = 0x9000, scoped, tag = 'internal scratch']
  %s0 = inlined_call_operand.vmem [shape: bf16[32,128], index: 0, kind: input, shape index: {}]
  %s1 = inlined_call_operand.vmem [shape: bf16[128,128], index: 1, kind: input, shape index: {}]
  %s2 = inlined_call_operand.vmem [shape: f32[1,128], index: 2, kind: input, shape index: {}]
  %s3 = inlined_call_operand.vmem [shape: f32[1,128], index: 3, kind: input, shape index: {}]
  %s4 = inlined_call_operand.vmem [shape: f32[32,128], index: 4, kind: output, shape index: {}]
  %s5 = sld [smem:[#allocation0]]
  $region26: #{pneumonianet_forward.55} parent=0
    _
  %s7 = ssub.s32 1, %s5
  %s8 = scalar_select 0, %s7, %s5
  // Predicated region
  $region2: #{pneumonianet_forward.55} parent=0 // pred_check
    _
  $region3: #{pneumonianet_forward.55} parent=0 // pred_check_branch
    %10 = sbr.rel (0) target = $region5
  $region4: #{pneumonianet_forward.55} parent=0 // pred_region
    _
  $region5: #{pneumonianet_forward.55} parent=0 // pred_fallthru
    _
  // Predicated region
  $region6: #{pneumonianet_forward.55} parent=0 // pred_check
    _
  $region7: #{pneumonianet_forward.55} parent=0 // pred_check_branch
    %12 = sbr.rel (0) target = $region9
  $region8: #{pneumonianet_forward.55} parent=0 // pred_region
    _
  $region9: #{pneumonianet_forward.55} parent=0 // pred_fallthru
    _
  // Predicated region
  $region10: #{pneumonianet_forward.55} parent=0 // pred_check
    _
  $region11: #{pneumonianet_forward.55} parent=0 // pred_check_branch
    %14 = sbr.rel (0) target = $region13
  $region12: #{pneumonianet_forward.55} parent=0 // pred_region
    _
  $region13: #{pneumonianet_forward.55} parent=0 // pred_fallthru
    _
  // Predicated region
  $region14: #{pneumonianet_forward.55} parent=0 // pred_check
    _
  $region15: #{pneumonianet_forward.55} parent=0 // pred_check_branch
    %16 = sbr.rel (0) target = $region17
  $region16: #{pneumonianet_forward.55} parent=0 // pred_region
    _
  $region17: #{pneumonianet_forward.55} parent=0 // pred_fallthru
    _
  %v17 = vld [vmem:[%s0] sm:$0xf]
  %v18 = vld [vmem:[%s0 + $0x4] sm:$0xf]
  %v19 = vld [vmem:[%s0 + $0x8] sm:$0xf]
  %v20 = vld [vmem:[%s0 + $0xc] sm:$0xf]
  %v21 = vld [vmem:[%s1] sm:$0xf]
  %v22 = vld [vmem:[%s1 + $0x4] sm:$0xf]
  %v23 = vld [vmem:[%s1 + $0x8] sm:$0xf]
  %v24 = vld [vmem:[%s1 + $0xc] sm:$0xf]
  %v25 = vld [vmem:[%s1 + $0x10] sm:$0xf]
  %v26 = vld [vmem:[%s1 + $0x14] sm:$0xf]
  %v27 = vld [vmem:[%s1 + $0x18] sm:$0xf]
  %v28 = vld [vmem:[%s1 + $0x1c] sm:$0xf]
  %v29 = vld [vmem:[%s1 + $0x20] sm:$0xf]
  %v30 = vld [vmem:[%s1 + $0x24] sm:$0xf]
  %v31 = vld [vmem:[%s1 + $0x28] sm:$0xf]
  %v32 = vld [vmem:[%s1 + $0x2c] sm:$0xf]
  %v33 = vld [vmem:[%s1 + $0x30] sm:$0xf]
  %v34 = vld [vmem:[%s1 + $0x34] sm:$0xf]
  %v35 = vld [vmem:[%s1 + $0x38] sm:$0xf]
  %v36 = vld [vmem:[%s1 + $0x3c] sm:$0xf]
  %v41 = vunpack.c.l.b16 %v17
  %v42 = vunpack.c.l.b16 %v18
  %v43 = vunpack.c.l.b16 %v19
  %v44 = vunpack.c.l.b16 %v20
  %v45 = vpack.c.b16 %v42, %v41
  %v46 = vpack.c.b16 %v44, %v43
  %v65 = vunpack.c.l.b16 %v21
  %v66 = vunpack.c.l.b16 %v22
  %v67 = vunpack.c.l.b16 %v23
  %v68 = vunpack.c.l.b16 %v24
  %v69 = vunpack.c.l.b16 %v25
  %v70 = vunpack.c.l.b16 %v26
  %v71 = vunpack.c.l.b16 %v27
  %v72 = vunpack.c.l.b16 %v28
  %v73 = vunpack.c.l.b16 %v29
  %v74 = vunpack.c.l.b16 %v30
  %v75 = vunpack.c.l.b16 %v31
  %v76 = vunpack.c.l.b16 %v32
  %v77 = vunpack.c.l.b16 %v33
  %v78 = vunpack.c.l.b16 %v34
  %v79 = vunpack.c.l.b16 %v35
  %v80 = vunpack.c.l.b16 %v36
  %v81 = vpack.c.b16 %v66, %v65
  %v82 = vpack.c.b16 %v68, %v67
  %v83 = vpack.c.b16 %v70, %v69
  %v84 = vpack.c.b16 %v72, %v71
  %v85 = vpack.c.b16 %v74, %v73
  %v86 = vpack.c.b16 %v76, %v75
  %v87 = vpack.c.b16 %v78, %v77
  %v88 = vpack.c.b16 %v80, %v79
  %97 = vmatpush.bf16.msra.mxu0 %v88
  %98 = vmatpush.bf16.msra.mxu0 %v87
  %99 = vmatpush.bf16.msra.mxu0 %v86
  %100 = vmatpush.bf16.msra.mxu0 %v85
  %101 = vmatpush.bf16.msra.mxu0 %v84
  %102 = vmatpush.bf16.msra.mxu0 %v83
  %103 = vmatpush.bf16.msra.mxu0 %v82
  %104 = vmatpush.bf16.msra.mxu0 %v81
  %105 = vmatmul.bf16.gmra.mxu0 %v45
  %v106 = vpop.f32.mrf.mxu0
  %v107 = vadd.f32 0.0, %v106
  %v108 = vpop.f32.mrf.mxu0
  %v109 = vadd.f32 0.0, %v108
  %110 = vmatmul.bf16.gmra.mxu0 %v46
  %v111 = vpop.f32.mrf.mxu0
  %v112 = vadd.f32 0.0, %v111
  %v113 = vpop.f32.mrf.mxu0
  %v114 = vadd.f32 0.0, %v113
  %115 = vdwg.mxu0
  %v116 = vld [vmem:[%s2] sm:$0x1]
  %v118 = vperm.slane %v116, 0
  %v120 = vmul.f32 %v107, %v118
  %v121 = vmul.f32 %v109, %v118
  %v122 = vmul.f32 %v112, %v118
  %v123 = vmul.f32 %v114, %v118
  %v124 = vld [vmem:[%s3] sm:$0x1]
  %v126 = vperm.slane %v124, 0
  %v128 = vadd.f32 %v120, %v126
  %v129 = vadd.f32 %v121, %v126
  %v130 = vadd.f32 %v122, %v126
  %v131 = vadd.f32 %v123, %v126
  %132 = vst [vmem:[%s4] sm:$0xff] %v128
  %133 = vst [vmem:[%s4 + $0x8] sm:$0xff] %v129
  %134 = vst [vmem:[%s4 + $0x10] sm:$0xff] %v130
  %135 = vst [vmem:[%s4 + $0x18] sm:$0xff] %v131
  // Predicated region
  $region18: #{pneumonianet_forward.55} parent=0 // pred_check
    _
  $region19: #{pneumonianet_forward.55} parent=0 // pred_check_branch
    %137 = sbr.rel (0) target = $region21
  $region20: #{pneumonianet_forward.55} parent=0 // pred_region
    _
  $region21: #{pneumonianet_forward.55} parent=0 // pred_fallthru
    _
  // Predicated region
  $region22: #{pneumonianet_forward.55} parent=0 // pred_check
    _
  $region23: #{pneumonianet_forward.55} parent=0 // pred_check_branch
    %139 = sbr.rel (0) target = $region25
  $region24: #{pneumonianet_forward.55} parent=0 // pred_region
    _
  $region25: #{pneumonianet_forward.55} parent=0 // pred_fallthru
    _

// kernel: pneumonianet_forward.56
$region0: #{pneumonianet_forward.56}
  #allocation0 [shape = 'u32[]', space=smem, size = 0x4, offset = 0x4, fixed_abs, tag = 'smem constant byte address 0x4 - core index']
  #allocation1 [shape = 'u32[72,128]{1,0:T(1,128)}', space=vmem, size = 0x9000, scoped, tag = 'internal scratch']
  %s0 = inlined_call_operand.vmem [shape: f32[8,4,16], index: 0, kind: input, shape index: {}]
  %s1 = inlined_call_operand.vmem [shape: f32[8,16], index: 1, kind: output, shape index: {}]
  %s2 = sld [smem:[#allocation0]]
  $region14: #{pneumonianet_forward.56} parent=0
    _
  %s4 = ssub.s32 1, %s2
  %s5 = scalar_select 0, %s4, %s2
  // Predicated region
  $region2: #{pneumonianet_forward.56} parent=0 // pred_check
    _
  $region3: #{pneumonianet_forward.56} parent=0 // pred_check_branch
    %7 = sbr.rel (0) target = $region5
  $region4: #{pneumonianet_forward.56} parent=0 // pred_region
    _
  $region5: #{pneumonianet_forward.56} parent=0 // pred_fallthru
    _
  %v8 = vld [vmem:[%s0] sm:$0xf]
  %v9 = vld [vmem:[%s0 + $0x4] sm:$0xf]
  %v10 = vld [vmem:[%s0 + $0x8] sm:$0xf]
  %v11 = vld [vmem:[%s0 + $0xc] sm:$0xf]
  %v12 = vld [vmem:[%s0 + $0x10] sm:$0xf]
  %v13 = vld [vmem:[%s0 + $0x14] sm:$0xf]
  %v14 = vld [vmem:[%s0 + $0x18] sm:$0xf]
  %v15 = vld [vmem:[%s0 + $0x1c] sm:$0xf]
  %vm16 = vcmask 125952
  %v17 = vsel %vm16, %v8, 0.0
  %v18 = vrot.slane %v17, 4
  %v19 = vadd.f32 %v17, %v18
  %v20 = vrot.slane %v19, 2
  %v21 = vadd.f32 %v19, %v20
  %v22 = vrot.slane %v21, 1
  %v23 = vadd.f32 %v21, %v22
  %v24 = vsel %vm16, %v9, 0.0
  %v25 = vrot.slane %v24, 4
  %v26 = vadd.f32 %v24, %v25
  %v27 = vrot.slane %v26, 2
  %v28 = vadd.f32 %v26, %v27
  %v29 = vrot.slane %v28, 1
  %v30 = vadd.f32 %v28, %v29
  %v31 = vsel %vm16, %v10, 0.0
  %v32 = vrot.slane %v31, 4
  %v33 = vadd.f32 %v31, %v32
  %v34 = vrot.slane %v33, 2
  %v35 = vadd.f32 %v33, %v34
  %v36 = vrot.slane %v35, 1
  %v37 = vadd.f32 %v35, %v36
  %v38 = vsel %vm16, %v11, 0.0
  %v39 = vrot.slane %v38, 4
  %v40 = vadd.f32 %v38, %v39
  %v41 = vrot.slane %v40, 2
  %v42 = vadd.f32 %v40, %v41
  %v43 = vrot.slane %v42, 1
  %v44 = vadd.f32 %v42, %v43
  %v45 = vsel %vm16, %v12, 0.0
  %v46 = vrot.slane %v45, 4
  %v47 = vadd.f32 %v45, %v46
  %v48 = vrot.slane %v47, 2
  %v49 = vadd.f32 %v47, %v48
  %v50 = vrot.slane %v49, 1
  %v51 = vadd.f32 %v49, %v50
  %v52 = vsel %vm16, %v13, 0.0
  %v53 = vrot.slane %v52, 4
  %v54 = vadd.f32 %v52, %v53
  %v55 = vrot.slane %v54, 2
  %v56 = vadd.f32 %v54, %v55
  %v57 = vrot.slane %v56, 1
  %v58 = vadd.f32 %v56, %v57
  %v59 = vsel %vm16, %v14, 0.0
  %v60 = vrot.slane %v59, 4
  %v61 = vadd.f32 %v59, %v60
  %v62 = vrot.slane %v61, 2
  %v63 = vadd.f32 %v61, %v62
  %v64 = vrot.slane %v63, 1
  %v65 = vadd.f32 %v63, %v64
  %v66 = vsel %vm16, %v15, 0.0
  %v67 = vrot.slane %v66, 4
  %v68 = vadd.f32 %v66, %v67
  %v69 = vrot.slane %v68, 2
  %v70 = vadd.f32 %v68, %v69
  %v71 = vrot.slane %v70, 1
  %v72 = vadd.f32 %v70, %v71
  %v73 = vmul.f32 %v23, 0.25
  %v74 = vmul.f32 %v30, 0.25
  %v75 = vmul.f32 %v37, 0.25
  %v76 = vmul.f32 %v44, 0.25
  %v77 = vmul.f32 %v51, 0.25
  %v78 = vmul.f32 %v58, 0.25
  %v79 = vmul.f32 %v65, 0.25
  %v80 = vmul.f32 %v72, 0.25
  %vm89 = vcmask 1041409
  %v90 = vsel %vm89, %v74, %v73
  %vm91 = vcmask 1042434
  %v92 = vsel %vm91, %v75, %v90
  %vm93 = vcmask 1043459
  %v94 = vsel %vm93, %v76, %v92
  %vm95 = vcmask 1044484
  %v96 = vsel %vm95, %v77, %v94
  %vm97 = vcmask 1045509
  %v98 = vsel %vm97, %v78, %v96
  %vm99 = vcmask 1046534
  %v100 = vsel %vm99, %v79, %v98
  %vm101 = vcmask 1047559
  %v102 = vsel %vm101, %v80, %v100
  %vm104 = vcmask 130048
  %105 = vst.msk [vmem:[%s1] sm:$0xff] %vm104, %v102
  // Predicated region
  $region6: #{pneumonianet_forward.56} parent=0 // pred_check
    _
  $region7: #{pneumonianet_forward.56} parent=0 // pred_check_branch
    %107 = sbr.rel (0) target = $region9
  $region8: #{pneumonianet_forward.56} parent=0 // pred_region
    _
  $region9: #{pneumonianet_forward.56} parent=0 // pred_fallthru
    _
  // Predicated region
  $region10: #{pneumonianet_forward.56} parent=0 // pred_check
    _
  $region11: #{pneumonianet_forward.56} parent=0 // pred_check_branch
    %109 = sbr.rel (0) target = $region13
  $region12: #{pneumonianet_forward.56} parent=0 // pred_region
    _
  $region13: #{pneumonianet_forward.56} parent=0 // pred_fallthru
    _

// kernel: pneumonianet_forward.57
$region0: #{pneumonianet_forward.57}
  #allocation0 [shape = 'u32[]', space=smem, size = 0x4, offset = 0x4, fixed_abs, tag = 'smem constant byte address 0x4 - core index']
  #allocation1 [shape = 'u32[72,128]{1,0:T(1,128)}', space=vmem, size = 0x9000, scoped, tag = 'internal scratch']
  %s0 = inlined_call_operand.vmem [shape: f32[8,16], index: 0, kind: input, shape index: {}]
  %s1 = inlined_call_operand.vmem [shape: f32[1,16], index: 1, kind: input, shape index: {}]
  %s2 = inlined_call_operand.vmem [shape: f32[1,16], index: 2, kind: input, shape index: {}]
  %s3 = inlined_call_operand.vmem [shape: f32[8,16], index: 3, kind: output, shape index: {}]
  %s4 = sld [smem:[#allocation0]]
  $region22: #{pneumonianet_forward.57} parent=0
    _
  %s6 = ssub.s32 1, %s4
  %s7 = scalar_select 0, %s6, %s4
  // Predicated region
  $region2: #{pneumonianet_forward.57} parent=0 // pred_check
    _
  $region3: #{pneumonianet_forward.57} parent=0 // pred_check_branch
    %9 = sbr.rel (0) target = $region5
  $region4: #{pneumonianet_forward.57} parent=0 // pred_region
    _
  $region5: #{pneumonianet_forward.57} parent=0 // pred_fallthru
    _
  // Predicated region
  $region6: #{pneumonianet_forward.57} parent=0 // pred_check
    _
  $region7: #{pneumonianet_forward.57} parent=0 // pred_check_branch
    %11 = sbr.rel (0) target = $region9
  $region8: #{pneumonianet_forward.57} parent=0 // pred_region
    _
  $region9: #{pneumonianet_forward.57} parent=0 // pred_fallthru
    _
  // Predicated region
  $region10: #{pneumonianet_forward.57} parent=0 // pred_check
    _
  $region11: #{pneumonianet_forward.57} parent=0 // pred_check_branch
    %13 = sbr.rel (0) target = $region13
  $region12: #{pneumonianet_forward.57} parent=0 // pred_region
    _
  $region13: #{pneumonianet_forward.57} parent=0 // pred_fallthru
    _
  %v14 = vld [vmem:[%s0] sm:$0xff]
  %v15 = vld [vmem:[%s1] sm:$0x1]
  %v17 = vperm.slane %v15, 0
  %v19 = vmul.f32 %v14, %v17
  %v20 = vld [vmem:[%s2] sm:$0x1]
  %v22 = vperm.slane %v20, 0
  %v24 = vadd.f32 %v19, %v22
  %v25 = vmax.f32 %v24, 0.0
  %vm26 = vcmask 130048
  %27 = vst.msk [vmem:[%s3] sm:$0xff] %vm26, %v25
  // Predicated region
  $region14: #{pneumonianet_forward.57} parent=0 // pred_check
    _
  $region15: #{pneumonianet_forward.57} parent=0 // pred_check_branch
    %29 = sbr.rel (0) target = $region17
  $region16: #{pneumonianet_forward.57} parent=0 // pred_region
    _
  $region17: #{pneumonianet_forward.57} parent=0 // pred_fallthru
    _
  // Predicated region
  $region18: #{pneumonianet_forward.57} parent=0 // pred_check
    _
  $region19: #{pneumonianet_forward.57} parent=0 // pred_check_branch
    %31 = sbr.rel (0) target = $region21
  $region20: #{pneumonianet_forward.57} parent=0 // pred_region
    _
  $region21: #{pneumonianet_forward.57} parent=0 // pred_fallthru
    _

// kernel: pneumonianet_forward.58
$region0: #{pneumonianet_forward.58}
  #allocation0 [shape = 'u32[]', space=smem, size = 0x4, offset = 0x4, fixed_abs, tag = 'smem constant byte address 0x4 - core index']
  #allocation1 [shape = 'u32[72,128]{1,0:T(1,128)}', space=vmem, size = 0x9000, scoped, tag = 'internal scratch']
  %s0 = inlined_call_operand.vmem [shape: bf16[16,128], index: 0, kind: input, shape index: {}]
  %s1 = inlined_call_operand.vmem [shape: bf16[128,128], index: 1, kind: input, shape index: {}]
  %s2 = inlined_call_operand.vmem [shape: f32[1,128], index: 2, kind: input, shape index: {}]
  %s3 = inlined_call_operand.vmem [shape: f32[1,128], index: 3, kind: input, shape index: {}]
  %s4 = inlined_call_operand.vmem [shape: f32[16,128], index: 4, kind: output, shape index: {}]
  %s5 = sld [smem:[#allocation0]]
  $region26: #{pneumonianet_forward.58} parent=0
    _
  %s7 = ssub.s32 1, %s5
  %s8 = scalar_select 0, %s7, %s5
  // Predicated region
  $region2: #{pneumonianet_forward.58} parent=0 // pred_check
    _
  $region3: #{pneumonianet_forward.58} parent=0 // pred_check_branch
    %10 = sbr.rel (0) target = $region5
  $region4: #{pneumonianet_forward.58} parent=0 // pred_region
    _
  $region5: #{pneumonianet_forward.58} parent=0 // pred_fallthru
    _
  // Predicated region
  $region6: #{pneumonianet_forward.58} parent=0 // pred_check
    _
  $region7: #{pneumonianet_forward.58} parent=0 // pred_check_branch
    %12 = sbr.rel (0) target = $region9
  $region8: #{pneumonianet_forward.58} parent=0 // pred_region
    _
  $region9: #{pneumonianet_forward.58} parent=0 // pred_fallthru
    _
  // Predicated region
  $region10: #{pneumonianet_forward.58} parent=0 // pred_check
    _
  $region11: #{pneumonianet_forward.58} parent=0 // pred_check_branch
    %14 = sbr.rel (0) target = $region13
  $region12: #{pneumonianet_forward.58} parent=0 // pred_region
    _
  $region13: #{pneumonianet_forward.58} parent=0 // pred_fallthru
    _
  // Predicated region
  $region14: #{pneumonianet_forward.58} parent=0 // pred_check
    _
  $region15: #{pneumonianet_forward.58} parent=0 // pred_check_branch
    %16 = sbr.rel (0) target = $region17
  $region16: #{pneumonianet_forward.58} parent=0 // pred_region
    _
  $region17: #{pneumonianet_forward.58} parent=0 // pred_fallthru
    _
  %v17 = vld [vmem:[%s0] sm:$0xf]
  %v18 = vld [vmem:[%s0 + $0x4] sm:$0xf]
  %v19 = vld [vmem:[%s1] sm:$0xf]
  %v20 = vld [vmem:[%s1 + $0x4] sm:$0xf]
  %v21 = vld [vmem:[%s1 + $0x8] sm:$0xf]
  %v22 = vld [vmem:[%s1 + $0xc] sm:$0xf]
  %v23 = vld [vmem:[%s1 + $0x10] sm:$0xf]
  %v24 = vld [vmem:[%s1 + $0x14] sm:$0xf]
  %v25 = vld [vmem:[%s1 + $0x18] sm:$0xf]
  %v26 = vld [vmem:[%s1 + $0x1c] sm:$0xf]
  %v27 = vld [vmem:[%s1 + $0x20] sm:$0xf]
  %v28 = vld [vmem:[%s1 + $0x24] sm:$0xf]
  %v29 = vld [vmem:[%s1 + $0x28] sm:$0xf]
  %v30 = vld [vmem:[%s1 + $0x2c] sm:$0xf]
  %v31 = vld [vmem:[%s1 + $0x30] sm:$0xf]
  %v32 = vld [vmem:[%s1 + $0x34] sm:$0xf]
  %v33 = vld [vmem:[%s1 + $0x38] sm:$0xf]
  %v34 = vld [vmem:[%s1 + $0x3c] sm:$0xf]
  %v37 = vunpack.c.l.b16 %v17
  %v38 = vunpack.c.l.b16 %v18
  %v39 = vpack.c.b16 %v38, %v37
  %v57 = vunpack.c.l.b16 %v19
  %v58 = vunpack.c.l.b16 %v20
  %v59 = vunpack.c.l.b16 %v21
  %v60 = vunpack.c.l.b16 %v22
  %v61 = vunpack.c.l.b16 %v23
  %v62 = vunpack.c.l.b16 %v24
  %v63 = vunpack.c.l.b16 %v25
  %v64 = vunpack.c.l.b16 %v26
  %v65 = vunpack.c.l.b16 %v27
  %v66 = vunpack.c.l.b16 %v28
  %v67 = vunpack.c.l.b16 %v29
  %v68 = vunpack.c.l.b16 %v30
  %v69 = vunpack.c.l.b16 %v31
  %v70 = vunpack.c.l.b16 %v32
  %v71 = vunpack.c.l.b16 %v33
  %v72 = vunpack.c.l.b16 %v34
  %v73 = vpack.c.b16 %v58, %v57
  %v74 = vpack.c.b16 %v60, %v59
  %v75 = vpack.c.b16 %v62, %v61
  %v76 = vpack.c.b16 %v64, %v63
  %v77 = vpack.c.b16 %v66, %v65
  %v78 = vpack.c.b16 %v68, %v67
  %v79 = vpack.c.b16 %v70, %v69
  %v80 = vpack.c.b16 %v72, %v71
  %89 = vmatpush.bf16.msra.mxu0 %v80
  %90 = vmatpush.bf16.msra.mxu0 %v79
  %91 = vmatpush.bf16.msra.mxu0 %v78
  %92 = vmatpush.bf16.msra.mxu0 %v77
  %93 = vmatpush.bf16.msra.mxu0 %v76
  %94 = vmatpush.bf16.msra.mxu0 %v75
  %95 = vmatpush.bf16.msra.mxu0 %v74
  %96 = vmatpush.bf16.msra.mxu0 %v73
  %97 = vmatmul.bf16.gmra.mxu0 %v39
  %v98 = vpop.f32.mrf.mxu0
  %v99 = vadd.f32 0.0, %v98
  %v100 = vpop.f32.mrf.mxu0
  %v101 = vadd.f32 0.0, %v100
  %102 = vdwg.mxu0
  %v103 = vld [vmem:[%s2] sm:$0x1]
  %v105 = vperm.slane %v103, 0
  %v107 = vmul.f32 %v99, %v105
  %v108 = vmul.f32 %v101, %v105
  %v109 = vld [vmem:[%s3] sm:$0x1]
  %v111 = vperm.slane %v109, 0
  %v113 = vadd.f32 %v107, %v111
  %v114 = vadd.f32 %v108, %v111
  %v115 = vmax.f32 %v113, 0.0
  %v116 = vmax.f32 %v114, 0.0
  %117 = vst [vmem:[%s4] sm:$0xff] %v115
  %118 = vst [vmem:[%s4 + $0x8] sm:$0xff] %v116
  // Predicated region
  $region18: #{pneumonianet_forward.58} parent=0 // pred_check
    _
  $region19: #{pneumonianet_forward.58} parent=0 // pred_check_branch
    %120 = sbr.rel (0) target = $region21
  $region20: #{pneumonianet_forward.58} parent=0 // pred_region
    _
  $region21: #{pneumonianet_forward.58} parent=0 // pred_fallthru
    _
  // Predicated region
  $region22: #{pneumonianet_forward.58} parent=0 // pred_check
    _
  $region23: #{pneumonianet_forward.58} parent=0 // pred_check_branch
    %122 = sbr.rel (0) target = $region25
  $region24: #{pneumonianet_forward.58} parent=0 // pred_region
    _
  $region25: #{pneumonianet_forward.58} parent=0 // pred_fallthru
    _

// kernel: pneumonianet_forward.60
$region0: #{pneumonianet_forward.60}
  #allocation0 [shape = 'u32[]', space=smem, size = 0x4, offset = 0x4, fixed_abs, tag = 'smem constant byte address 0x4 - core index']
  #allocation1 [shape = 'u32[72,128]{1,0:T(1,128)}', space=vmem, size = 0x9000, scoped, tag = 'internal scratch']
  %s0 = inlined_call_operand.vmem [shape: f32[8,24], index: 0, kind: input, shape index: {}]
  %s1 = inlined_call_operand.vmem [shape: f32[1,24], index: 1, kind: input, shape index: {}]
  %s2 = inlined_call_operand.vmem [shape: f32[1,24], index: 2, kind: input, shape index: {}]
  %s3 = inlined_call_operand.vmem [shape: f32[8,24], index: 3, kind: output, shape index: {}]
  %s4 = sld [smem:[#allocation0]]
  $region22: #{pneumonianet_forward.60} parent=0
    _
  %s6 = ssub.s32 1, %s4
  %s7 = scalar_select 0, %s6, %s4
  // Predicated region
  $region2: #{pneumonianet_forward.60} parent=0 // pred_check
    _
  $region3: #{pneumonianet_forward.60} parent=0 // pred_check_branch
    %9 = sbr.rel (0) target = $region5
  $region4: #{pneumonianet_forward.60} parent=0 // pred_region
    _
  $region5: #{pneumonianet_forward.60} parent=0 // pred_fallthru
    _
  // Predicated region
  $region6: #{pneumonianet_forward.60} parent=0 // pred_check
    _
  $region7: #{pneumonianet_forward.60} parent=0 // pred_check_branch
    %11 = sbr.rel (0) target = $region9
  $region8: #{pneumonianet_forward.60} parent=0 // pred_region
    _
  $region9: #{pneumonianet_forward.60} parent=0 // pred_fallthru
    _
  // Predicated region
  $region10: #{pneumonianet_forward.60} parent=0 // pred_check
    _
  $region11: #{pneumonianet_forward.60} parent=0 // pred_check_branch
    %13 = sbr.rel (0) target = $region13
  $region12: #{pneumonianet_forward.60} parent=0 // pred_region
    _
  $region13: #{pneumonianet_forward.60} parent=0 // pred_fallthru
    _
  %v14 = vld [vmem:[%s0] sm:$0xff]
  %v15 = vld [vmem:[%s1] sm:$0x1]
  %v17 = vperm.slane %v15, 0
  %v19 = vmul.f32 %v14, %v17
  %v20 = vld [vmem:[%s2] sm:$0x1]
  %v22 = vperm.slane %v20, 0
  %v24 = vadd.f32 %v19, %v22
  %v25 = vmax.f32 %v24, 0.0
  %vm26 = vcmask 195584
  %27 = vst.msk [vmem:[%s3] sm:$0xff] %vm26, %v25
  // Predicated region
  $region14: #{pneumonianet_forward.60} parent=0 // pred_check
    _
  $region15: #{pneumonianet_forward.60} parent=0 // pred_check_branch
    %29 = sbr.rel (0) target = $region17
  $region16: #{pneumonianet_forward.60} parent=0 // pred_region
    _
  $region17: #{pneumonianet_forward.60} parent=0 // pred_fallthru
    _
  // Predicated region
  $region18: #{pneumonianet_forward.60} parent=0 // pred_check
    _
  $region19: #{pneumonianet_forward.60} parent=0 // pred_check_branch
    %31 = sbr.rel (0) target = $region21
  $region20: #{pneumonianet_forward.60} parent=0 // pred_region
    _
  $region21: #{pneumonianet_forward.60} parent=0 // pred_fallthru
    _

// kernel: pneumonianet_forward.59
$region0: #{pneumonianet_forward.59}
  #allocation0 [shape = 'u32[]', space=smem, size = 0x4, offset = 0x4, fixed_abs, tag = 'smem constant byte address 0x4 - core index']
  #allocation1 [shape = 'u32[72,128]{1,0:T(1,128)}', space=vmem, size = 0x9000, scoped, tag = 'internal scratch']
  %s0 = inlined_call_operand.vmem [shape: bf16[16,384], index: 0, kind: input, shape index: {}]
  %s1 = inlined_call_operand.vmem [shape: bf16[384,128], index: 1, kind: input, shape index: {}]
  %s2 = inlined_call_operand.vmem [shape: f32[1,128], index: 2, kind: input, shape index: {}]
  %s3 = inlined_call_operand.vmem [shape: f32[1,128], index: 3, kind: input, shape index: {}]
  %s4 = inlined_call_operand.vmem [shape: f32[16,128], index: 4, kind: output, shape index: {}]
  %s5 = sld [smem:[#allocation0]]
  $region26: #{pneumonianet_forward.59} parent=0
    _
  %s7 = ssub.s32 1, %s5
  %s8 = scalar_select 0, %s7, %s5
  // Predicated region
  $region2: #{pneumonianet_forward.59} parent=0 // pred_check
    _
  $region3: #{pneumonianet_forward.59} parent=0 // pred_check_branch
    %10 = sbr.rel (0) target = $region5
  $region4: #{pneumonianet_forward.59} parent=0 // pred_region
    _
  $region5: #{pneumonianet_forward.59} parent=0 // pred_fallthru
    _
  // Predicated region
  $region6: #{pneumonianet_forward.59} parent=0 // pred_check
    _
  $region7: #{pneumonianet_forward.59} parent=0 // pred_check_branch
    %12 = sbr.rel (0) target = $region9
  $region8: #{pneumonianet_forward.59} parent=0 // pred_region
    _
  $region9: #{pneumonianet_forward.59} parent=0 // pred_fallthru
    _
  // Predicated region
  $region10: #{pneumonianet_forward.59} parent=0 // pred_check
    _
  $region11: #{pneumonianet_forward.59} parent=0 // pred_check_branch
    %14 = sbr.rel (0) target = $region13
  $region12: #{pneumonianet_forward.59} parent=0 // pred_region
    _
  $region13: #{pneumonianet_forward.59} parent=0 // pred_fallthru
    _
  // Predicated region
  $region14: #{pneumonianet_forward.59} parent=0 // pred_check
    _
  $region15: #{pneumonianet_forward.59} parent=0 // pred_check_branch
    %16 = sbr.rel (0) target = $region17
  $region16: #{pneumonianet_forward.59} parent=0 // pred_region
    _
  $region17: #{pneumonianet_forward.59} parent=0 // pred_fallthru
    _
  %v17 = vld [vmem:[%s0] sm:$0xff]
  %v18 = vld [vmem:[%s0 + $0x8] sm:$0xf]
  %v19 = vld [vmem:[%s0 + $0xc] sm:$0xff]
  %v20 = vld [vmem:[%s0 + $0x14] sm:$0xf]
  %v21 = vld [vmem:[%s1] sm:$0xf]
  %v22 = vld [vmem:[%s1 + $0x4] sm:$0xf]
  %v23 = vld [vmem:[%s1 + $0x8] sm:$0xf]
  %v24 = vld [vmem:[%s1 + $0xc] sm:$0xf]
  %v25 = vld [vmem:[%s1 + $0x10] sm:$0xf]
  %v26 = vld [vmem:[%s1 + $0x14] sm:$0xf]
  %v27 = vld [vmem:[%s1 + $0x18] sm:$0xf]
  %v28 = vld [vmem:[%s1 + $0x1c] sm:$0xf]
  %v29 = vld [vmem:[%s1 + $0x20] sm:$0xf]
  %v30 = vld [vmem:[%s1 + $0x24] sm:$0xf]
  %v31 = vld [vmem:[%s1 + $0x28] sm:$0xf]
  %v32 = vld [vmem:[%s1 + $0x2c] sm:$0xf]
  %v33 = vld [vmem:[%s1 + $0x30] sm:$0xf]
  %v34 = vld [vmem:[%s1 + $0x34] sm:$0xf]
  %v35 = vld [vmem:[%s1 + $0x38] sm:$0xf]
  %v36 = vld [vmem:[%s1 + $0x3c] sm:$0xf]
  %v37 = vld [vmem:[%s1 + $0x40] sm:$0xf]
  %v38 = vld [vmem:[%s1 + $0x44] sm:$0xf]
  %v39 = vld [vmem:[%s1 + $0x48] sm:$0xf]
  %v40 = vld [vmem:[%s1 + $0x4c] sm:$0xf]
  %v41 = vld [vmem:[%s1 + $0x50] sm:$0xf]
  %v42 = vld [vmem:[%s1 + $0x54] sm:$0xf]
  %v43 = vld [vmem:[%s1 + $0x58] sm:$0xf]
  %v44 = vld [vmem:[%s1 + $0x5c] sm:$0xf]
  %v45 = vld [vmem:[%s1 + $0x60] sm:$0xf]
  %v46 = vld [vmem:[%s1 + $0x64] sm:$0xf]
  %v47 = vld [vmem:[%s1 + $0x68] sm:$0xf]
  %v48 = vld [vmem:[%s1 + $0x6c] sm:$0xf]
  %v49 = vld [vmem:[%s1 + $0x70] sm:$0xf]
  %v50 = vld [vmem:[%s1 + $0x74] sm:$0xf]
  %v51 = vld [vmem:[%s1 + $0x78] sm:$0xf]
  %v52 = vld [vmem:[%s1 + $0x7c] sm:$0xf]
  %v53 = vld [vmem:[%s1 + $0x80] sm:$0xf]
  %v54 = vld [vmem:[%s1 + $0x84] sm:$0xf]
  %v55 = vld [vmem:[%s1 + $0x88] sm:$0xf]
  %v56 = vld [vmem:[%s1 + $0x8c] sm:$0xf]
  %v57 = vld [vmem:[%s1 + $0x90] sm:$0xf]
  %v58 = vld [vmem:[%s1 + $0x94] sm:$0xf]
  %v59 = vld [vmem:[%s1 + $0x98] sm:$0xf]
  %v60 = vld [vmem:[%s1 + $0x9c] sm:$0xf]
  %v61 = vld [vmem:[%s1 + $0xa0] sm:$0xf]
  %v62 = vld [vmem:[%s1 + $0xa4] sm:$0xf]
  %v63 = vld [vmem:[%s1 + $0xa8] sm:$0xf]
  %v64 = vld [vmem:[%s1 + $0xac] sm:$0xf]
  %v65 = vld [vmem:[%s1 + $0xb0] sm:$0xf]
  %v66 = vld [vmem:[%s1 + $0xb4] sm:$0xf]
  %v67 = vld [vmem:[%s1 + $0xb8] sm:$0xf]
  %v68 = vld [vmem:[%s1 + $0xbc] sm:$0xf]
  %v73 = vunpack.c.l.b16 %v17
  %v74 = vunpack.c.h.b16 %v17
  %v75 = vunpack.c.l.b16 %v18
  %v76 = vunpack.c.l.b16 %v19
  %v77 = vunpack.c.h.b16 %v19
  %v78 = vunpack.c.l.b16 %v20
  %v79 = vpack.c.b16 %v76, %v73
  %v80 = vpack.c.b16 %v77, %v74
  %v81 = vpack.c.b16 %v78, %v75
  %v133 = vunpack.c.l.b16 %v21
  %v134 = vunpack.c.l.b16 %v22
  %v135 = vunpack.c.l.b16 %v23
  %v136 = vunpack.c.l.b16 %v24
  %v137 = vunpack.c.l.b16 %v25
  %v138 = vunpack.c.l.b16 %v26
  %v139 = vunpack.c.l.b16 %v27
  %v140 = vunpack.c.l.b16 %v28
  %v141 = vunpack.c.l.b16 %v29
  %v142 = vunpack.c.l.b16 %v30
  %v143 = vunpack.c.l.b16 %v31
  %v144 = vunpack.c.l.b16 %v32
  %v145 = vunpack.c.l.b16 %v33
  %v146 = vunpack.c.l.b16 %v34
  %v147 = vunpack.c.l.b16 %v35
  %v148 = vunpack.c.l.b16 %v36
  %v149 = vunpack.c.l.b16 %v37
  %v150 = vunpack.c.l.b16 %v38
  %v151 = vunpack.c.l.b16 %v39
  %v152 = vunpack.c.l.b16 %v40
  %v153 = vunpack.c.l.b16 %v41
  %v154 = vunpack.c.l.b16 %v42
  %v155 = vunpack.c.l.b16 %v43
  %v156 = vunpack.c.l.b16 %v44
  %v157 = vunpack.c.l.b16 %v45
  %v158 = vunpack.c.l.b16 %v46
  %v159 = vunpack.c.l.b16 %v47
  %v160 = vunpack.c.l.b16 %v48
  %v161 = vunpack.c.l.b16 %v49
  %v162 = vunpack.c.l.b16 %v50
  %v163 = vunpack.c.l.b16 %v51
  %v164 = vunpack.c.l.b16 %v52
  %v165 = vunpack.c.l.b16 %v53
  %v166 = vunpack.c.l.b16 %v54
  %v167 = vunpack.c.l.b16 %v55
  %v168 = vunpack.c.l.b16 %v56
  %v169 = vunpack.c.l.b16 %v57
  %v170 = vunpack.c.l.b16 %v58
  %v171 = vunpack.c.l.b16 %v59
  %v172 = vunpack.c.l.b16 %v60
  %v173 = vunpack.c.l.b16 %v61
  %v174 = vunpack.c.l.b16 %v62
  %v175 = vunpack.c.l.b16 %v63
  %v176 = vunpack.c.l.b16 %v64
  %v177 = vunpack.c.l.b16 %v65
  %v178 = vunpack.c.l.b16 %v66
  %v179 = vunpack.c.l.b16 %v67
  %v180 = vunpack.c.l.b16 %v68
  %v181 = vpack.c.b16 %v134, %v133
  %v182 = vpack.c.b16 %v136, %v135
  %v183 = vpack.c.b16 %v138, %v137
  %v184 = vpack.c.b16 %v140, %v139
  %v185 = vpack.c.b16 %v142, %v141
  %v186 = vpack.c.b16 %v144, %v143
  %v187 = vpack.c.b16 %v146, %v145
  %v188 = vpack.c.b16 %v148, %v147
  %v189 = vpack.c.b16 %v150, %v149
  %v190 = vpack.c.b16 %v152, %v151
  %v191 = vpack.c.b16 %v154, %v153
  %v192 = vpack.c.b16 %v156, %v155
  %v193 = vpack.c.b16 %v158, %v157
  %v194 = vpack.c.b16 %v160, %v159
  %v195 = vpack.c.b16 %v162, %v161
  %v196 = vpack.c.b16 %v164, %v163
  %v197 = vpack.c.b16 %v166, %v165
  %v198 = vpack.c.b16 %v168, %v167
  %v199 = vpack.c.b16 %v170, %v169
  %v200 = vpack.c.b16 %v172, %v171
  %v201 = vpack.c.b16 %v174, %v173
  %v202 = vpack.c.b16 %v176, %v175
  %v203 = vpack.c.b16 %v178, %v177
  %v204 = vpack.c.b16 %v180, %v179
  %229 = vmatpush.bf16.msra.mxu0 %v188
  %230 = vmatpush.bf16.msra.mxu0 %v187
  %231 = vmatpush.bf16.msra.mxu0 %v186
  %232 = vmatpush.bf16.msra.mxu0 %v185
  %233 = vmatpush.bf16.msra.mxu0 %v184
  %234 = vmatpush.bf16.msra.mxu0 %v183
  %235 = vmatpush.bf16.msra.mxu0 %v182
  %236 = vmatpush.bf16.msra.mxu0 %v181
  %237 = vmatmul.bf16.gmra.mxu0 %v79
  %v238 = vpop.f32.mrf.mxu0
  %v239 = vadd.f32 0.0, %v238
  %v240 = vpop.f32.mrf.mxu0
  %v241 = vadd.f32 0.0, %v240
  %242 = vdwg.mxu0
  %243 = vmatpush.bf16.msra.mxu0 %v196
  %244 = vmatpush.bf16.msra.mxu0 %v195
  %245 = vmatpush.bf16.msra.mxu0 %v194
  %246 = vmatpush.bf16.msra.mxu0 %v193
  %247 = vmatpush.bf16.msra.mxu0 %v192
  %248 = vmatpush.bf16.msra.mxu0 %v191
  %249 = vmatpush.bf16.msra.mxu0 %v190
  %250 = vmatpush.bf16.msra.mxu0 %v189
  %251 = vmatmul.bf16.gmra.mxu0 %v80
  %v252 = vpop.f32.mrf.mxu0
  %v253 = vadd.f32 %v239, %v252
  %v254 = vpop.f32.mrf.mxu0
  %v255 = vadd.f32 %v241, %v254
  %256 = vdwg.mxu0
  %257 = vmatpush.bf16.msra.mxu0 %v204
  %258 = vmatpush.bf16.msra.mxu0 %v203
  %259 = vmatpush.bf16.msra.mxu0 %v202
  %260 = vmatpush.bf16.msra.mxu0 %v201
  %261 = vmatpush.bf16.msra.mxu0 %v200
  %262 = vmatpush.bf16.msra.mxu0 %v199
  %263 = vmatpush.bf16.msra.mxu0 %v198
  %264 = vmatpush.bf16.msra.mxu0 %v197
  %265 = vmatmul.bf16.gmra.mxu0 %v81
  %v266 = vpop.f32.mrf.mxu0
  %v267 = vadd.f32 %v253, %v266
  %v268 = vpop.f32.mrf.mxu0
  %v269 = vadd.f32 %v255, %v268
  %270 = vdwg.mxu0
  %v271 = vld [vmem:[%s2] sm:$0x1]
  %v273 = vperm.slane %v271, 0
  %v275 = vmul.f32 %v267, %v273
  %v276 = vmul.f32 %v269, %v273
  %v277 = vld [vmem:[%s3] sm:$0x1]
  %v279 = vperm.slane %v277, 0
  %v281 = vadd.f32 %v275, %v279
  %v282 = vadd.f32 %v276, %v279
  %283 = vst [vmem:[%s4] sm:$0xff] %v281
  %284 = vst [vmem:[%s4 + $0x8] sm:$0xff] %v282
  // Predicated region
  $region18: #{pneumonianet_forward.59} parent=0 // pred_check
    _
  $region19: #{pneumonianet_forward.59} parent=0 // pred_check_branch
    %286 = sbr.rel (0) target = $region21
  $region20: #{pneumonianet_forward.59} parent=0 // pred_region
    _
  $region21: #{pneumonianet_forward.59} parent=0 // pred_fallthru
    _
  // Predicated region
  $region22: #{pneumonianet_forward.59} parent=0 // pred_check
    _
  $region23: #{pneumonianet_forward.59} parent=0 // pred_check_branch
    %288 = sbr.rel (0) target = $region25
  $region24: #{pneumonianet_forward.59} parent=0 // pred_region
    _
  $region25: #{pneumonianet_forward.59} parent=0 // pred_fallthru
    _

// kernel: pneumonianet_forward.63
$region0: #{pneumonianet_forward.63}
  #allocation0 [shape = 'u32[]', space=smem, size = 0x4, offset = 0x4, fixed_abs, tag = 'smem constant byte address 0x4 - core index']
  #allocation1 [shape = 'u32[72,128]{1,0:T(1,128)}', space=vmem, size = 0x9000, scoped, tag = 'internal scratch']
  %s0 = inlined_call_operand.vmem [shape: f32[8,32], index: 0, kind: input, shape index: {}]
  %s1 = inlined_call_operand.vmem [shape: f32[1,32], index: 1, kind: input, shape index: {}]
  %s2 = inlined_call_operand.vmem [shape: f32[1,32], index: 2, kind: input, shape index: {}]
  %s3 = inlined_call_operand.vmem [shape: f32[8,32], index: 3, kind: output, shape index: {}]
  %s4 = sld [smem:[#allocation0]]
  $region22: #{pneumonianet_forward.63} parent=0
    _
  %s6 = ssub.s32 1, %s4
  %s7 = scalar_select 0, %s6, %s4
  // Predicated region
  $region2: #{pneumonianet_forward.63} parent=0 // pred_check
    _
  $region3: #{pneumonianet_forward.63} parent=0 // pred_check_branch
    %9 = sbr.rel (0) target = $region5
  $region4: #{pneumonianet_forward.63} parent=0 // pred_region
    _
  $region5: #{pneumonianet_forward.63} parent=0 // pred_fallthru
    _
  // Predicated region
  $region6: #{pneumonianet_forward.63} parent=0 // pred_check
    _
  $region7: #{pneumonianet_forward.63} parent=0 // pred_check_branch
    %11 = sbr.rel (0) target = $region9
  $region8: #{pneumonianet_forward.63} parent=0 // pred_region
    _
  $region9: #{pneumonianet_forward.63} parent=0 // pred_fallthru
    _
  // Predicated region
  $region10: #{pneumonianet_forward.63} parent=0 // pred_check
    _
  $region11: #{pneumonianet_forward.63} parent=0 // pred_check_branch
    %13 = sbr.rel (0) target = $region13
  $region12: #{pneumonianet_forward.63} parent=0 // pred_region
    _
  $region13: #{pneumonianet_forward.63} parent=0 // pred_fallthru
    _
  %v14 = vld [vmem:[%s0] sm:$0xff]
  %v15 = vld [vmem:[%s1] sm:$0x1]
  %v17 = vperm.slane %v15, 0
  %v19 = vmul.f32 %v14, %v17
  %v20 = vld [vmem:[%s2] sm:$0x1]
  %v22 = vperm.slane %v20, 0
  %v24 = vadd.f32 %v19, %v22
  %v25 = vmax.f32 %v24, 0.0
  %vm26 = vcmask 261120
  %27 = vst.msk [vmem:[%s3] sm:$0xff] %vm26, %v25
  // Predicated region
  $region14: #{pneumonianet_forward.63} parent=0 // pred_check
    _
  $region15: #{pneumonianet_forward.63} parent=0 // pred_check_branch
    %29 = sbr.rel (0) target = $region17
  $region16: #{pneumonianet_forward.63} parent=0 // pred_region
    _
  $region17: #{pneumonianet_forward.63} parent=0 // pred_fallthru
    _
  // Predicated region
  $region18: #{pneumonianet_forward.63} parent=0 // pred_check
    _
  $region19: #{pneumonianet_forward.63} parent=0 // pred_check_branch
    %31 = sbr.rel (0) target = $region21
  $region20: #{pneumonianet_forward.63} parent=0 // pred_region
    _
  $region21: #{pneumonianet_forward.63} parent=0 // pred_fallthru
    _

// kernel: pneumonianet_forward.64
$region0: #{pneumonianet_forward.64}
  #allocation0 [shape = 'u32[]', space=smem, size = 0x4, offset = 0x4, fixed_abs, tag = 'smem constant byte address 0x4 - core index']
  #allocation1 [shape = 'u32[72,128]{1,0:T(1,128)}', space=vmem, size = 0x9000, scoped, tag = 'internal scratch']
  %s0 = inlined_call_operand.vmem [shape: bf16[16,128], index: 0, kind: input, shape index: {}]
  %s1 = inlined_call_operand.vmem [shape: bf16[128,128], index: 1, kind: input, shape index: {}]
  %s2 = inlined_call_operand.vmem [shape: f32[1,128], index: 2, kind: input, shape index: {}]
  %s3 = inlined_call_operand.vmem [shape: f32[1,128], index: 3, kind: input, shape index: {}]
  %s4 = inlined_call_operand.vmem [shape: f32[16,128], index: 4, kind: output, shape index: {}]
  %s5 = sld [smem:[#allocation0]]
  $region26: #{pneumonianet_forward.64} parent=0
    _
  %s7 = ssub.s32 1, %s5
  %s8 = scalar_select 0, %s7, %s5
  // Predicated region
  $region2: #{pneumonianet_forward.64} parent=0 // pred_check
    _
  $region3: #{pneumonianet_forward.64} parent=0 // pred_check_branch
    %10 = sbr.rel (0) target = $region5
  $region4: #{pneumonianet_forward.64} parent=0 // pred_region
    _
  $region5: #{pneumonianet_forward.64} parent=0 // pred_fallthru
    _
  // Predicated region
  $region6: #{pneumonianet_forward.64} parent=0 // pred_check
    _
  $region7: #{pneumonianet_forward.64} parent=0 // pred_check_branch
    %12 = sbr.rel (0) target = $region9
  $region8: #{pneumonianet_forward.64} parent=0 // pred_region
    _
  $region9: #{pneumonianet_forward.64} parent=0 // pred_fallthru
    _
  // Predicated region
  $region10: #{pneumonianet_forward.64} parent=0 // pred_check
    _
  $region11: #{pneumonianet_forward.64} parent=0 // pred_check_branch
    %14 = sbr.rel (0) target = $region13
  $region12: #{pneumonianet_forward.64} parent=0 // pred_region
    _
  $region13: #{pneumonianet_forward.64} parent=0 // pred_fallthru
    _
  // Predicated region
  $region14: #{pneumonianet_forward.64} parent=0 // pred_check
    _
  $region15: #{pneumonianet_forward.64} parent=0 // pred_check_branch
    %16 = sbr.rel (0) target = $region17
  $region16: #{pneumonianet_forward.64} parent=0 // pred_region
    _
  $region17: #{pneumonianet_forward.64} parent=0 // pred_fallthru
    _
  %v17 = vld [vmem:[%s0] sm:$0xf]
  %v18 = vld [vmem:[%s0 + $0x4] sm:$0xf]
  %v19 = vld [vmem:[%s1] sm:$0xf]
  %v20 = vld [vmem:[%s1 + $0x4] sm:$0xf]
  %v21 = vld [vmem:[%s1 + $0x8] sm:$0xf]
  %v22 = vld [vmem:[%s1 + $0xc] sm:$0xf]
  %v23 = vld [vmem:[%s1 + $0x10] sm:$0xf]
  %v24 = vld [vmem:[%s1 + $0x14] sm:$0xf]
  %v25 = vld [vmem:[%s1 + $0x18] sm:$0xf]
  %v26 = vld [vmem:[%s1 + $0x1c] sm:$0xf]
  %v27 = vld [vmem:[%s1 + $0x20] sm:$0xf]
  %v28 = vld [vmem:[%s1 + $0x24] sm:$0xf]
  %v29 = vld [vmem:[%s1 + $0x28] sm:$0xf]
  %v30 = vld [vmem:[%s1 + $0x2c] sm:$0xf]
  %v31 = vld [vmem:[%s1 + $0x30] sm:$0xf]
  %v32 = vld [vmem:[%s1 + $0x34] sm:$0xf]
  %v33 = vld [vmem:[%s1 + $0x38] sm:$0xf]
  %v34 = vld [vmem:[%s1 + $0x3c] sm:$0xf]
  %v37 = vunpack.c.l.b16 %v17
  %v38 = vunpack.c.l.b16 %v18
  %v39 = vpack.c.b16 %v38, %v37
  %v57 = vunpack.c.l.b16 %v19
  %v58 = vunpack.c.l.b16 %v20
  %v59 = vunpack.c.l.b16 %v21
  %v60 = vunpack.c.l.b16 %v22
  %v61 = vunpack.c.l.b16 %v23
  %v62 = vunpack.c.l.b16 %v24
  %v63 = vunpack.c.l.b16 %v25
  %v64 = vunpack.c.l.b16 %v26
  %v65 = vunpack.c.l.b16 %v27
  %v66 = vunpack.c.l.b16 %v28
  %v67 = vunpack.c.l.b16 %v29
  %v68 = vunpack.c.l.b16 %v30
  %v69 = vunpack.c.l.b16 %v31
  %v70 = vunpack.c.l.b16 %v32
  %v71 = vunpack.c.l.b16 %v33
  %v72 = vunpack.c.l.b16 %v34
  %v73 = vpack.c.b16 %v58, %v57
  %v74 = vpack.c.b16 %v60, %v59
  %v75 = vpack.c.b16 %v62, %v61
  %v76 = vpack.c.b16 %v64, %v63
  %v77 = vpack.c.b16 %v66, %v65
  %v78 = vpack.c.b16 %v68, %v67
  %v79 = vpack.c.b16 %v70, %v69
  %v80 = vpack.c.b16 %v72, %v71
  %89 = vmatpush.bf16.msra.mxu0 %v80
  %90 = vmatpush.bf16.msra.mxu0 %v79
  %91 = vmatpush.bf16.msra.mxu0 %v78
  %92 = vmatpush.bf16.msra.mxu0 %v77
  %93 = vmatpush.bf16.msra.mxu0 %v76
  %94 = vmatpush.bf16.msra.mxu0 %v75
  %95 = vmatpush.bf16.msra.mxu0 %v74
  %96 = vmatpush.bf16.msra.mxu0 %v73
  %97 = vmatmul.bf16.gmra.mxu0 %v39
  %v98 = vpop.f32.mrf.mxu0
  %v99 = vadd.f32 0.0, %v98
  %v100 = vpop.f32.mrf.mxu0
  %v101 = vadd.f32 0.0, %v100
  %102 = vdwg.mxu0
  %v103 = vld [vmem:[%s2] sm:$0x1]
  %v105 = vperm.slane %v103, 0
  %v107 = vmul.f32 %v99, %v105
  %v108 = vmul.f32 %v101, %v105
  %v109 = vld [vmem:[%s3] sm:$0x1]
  %v111 = vperm.slane %v109, 0
  %v113 = vadd.f32 %v107, %v111
  %v114 = vadd.f32 %v108, %v111
  %115 = vst [vmem:[%s4] sm:$0xff] %v113
  %116 = vst [vmem:[%s4 + $0x8] sm:$0xff] %v114
  // Predicated region
  $region18: #{pneumonianet_forward.64} parent=0 // pred_check
    _
  $region19: #{pneumonianet_forward.64} parent=0 // pred_check_branch
    %118 = sbr.rel (0) target = $region21
  $region20: #{pneumonianet_forward.64} parent=0 // pred_region
    _
  $region21: #{pneumonianet_forward.64} parent=0 // pred_fallthru
    _
  // Predicated region
  $region22: #{pneumonianet_forward.64} parent=0 // pred_check
    _
  $region23: #{pneumonianet_forward.64} parent=0 // pred_check_branch
    %120 = sbr.rel (0) target = $region25
  $region24: #{pneumonianet_forward.64} parent=0 // pred_region
    _
  $region25: #{pneumonianet_forward.64} parent=0 // pred_fallthru
    _

// kernel: pneumonianet_forward.73
$region0: #{pneumonianet_forward.73}
  #allocation0 [shape = 'u32[]', space=smem, size = 0x4, offset = 0x4, fixed_abs, tag = 'smem constant byte address 0x4 - core index']
  #allocation1 [shape = 'u32[72,128]{1,0:T(1,128)}', space=vmem, size = 0x9000, scoped, tag = 'internal scratch']
  #allocation2 [shape = 'f32[1,1]{1,0:T(1,128)S(1)}', space=vmem, size = 0x200, scoped, tag = 'scoped memory for pneumonianet_forward.73']
  %s0 = inlined_call_operand.vmem [shape: f32[2,1,32], index: 0, kind: input, shape index: {}]
  %s1 = inlined_call_operand.vmem [shape: f32[1,32], index: 1, kind: input, shape index: {}]
  %s2 = inlined_call_operand.<no memory space> [shape: f32[1,1], index: 2, kind: input, shape index: {}]
  %s3 = inlined_call_operand.vmem [shape: f32[2,1], index: 3, kind: output, shape index: {}]
  %s4 = sld [smem:[#allocation0]]
  $region22: #{pneumonianet_forward.73} parent=0
    _
  %s6 = ssub.s32 1, %s4
  %s7 = scalar_select 0, %s6, %s4
  %v8 = vstv %s2
  %9 = vst [vmem:[#allocation2] sm:$0x1] %v8
  // Predicated region
  $region2: #{pneumonianet_forward.73} parent=0 // pred_check
    _
  $region3: #{pneumonianet_forward.73} parent=0 // pred_check_branch
    %11 = sbr.rel (0) target = $region5
  $region4: #{pneumonianet_forward.73} parent=0 // pred_region
    _
  $region5: #{pneumonianet_forward.73} parent=0 // pred_fallthru
    _
  // Predicated region
  $region6: #{pneumonianet_forward.73} parent=0 // pred_check
    _
  $region7: #{pneumonianet_forward.73} parent=0 // pred_check_branch
    %13 = sbr.rel (0) target = $region9
  $region8: #{pneumonianet_forward.73} parent=0 // pred_region
    _
  $region9: #{pneumonianet_forward.73} parent=0 // pred_fallthru
    _
  // Predicated region
  $region10: #{pneumonianet_forward.73} parent=0 // pred_check
    _
  $region11: #{pneumonianet_forward.73} parent=0 // pred_check_branch
    %15 = sbr.rel (0) target = $region13
  $region12: #{pneumonianet_forward.73} parent=0 // pred_region
    _
  $region13: #{pneumonianet_forward.73} parent=0 // pred_fallthru
    _
  %v16 = vld [vmem:[%s0] sm:$0x1]
  %v17 = vld [vmem:[%s0 + $0x1] sm:$0x1]
  %v18 = vadd.f32 %v16, 0.0
  %v19 = vadd.f32 %v17, 0.0
  %v20 = vld [vmem:[%s1] sm:$0x1]
  %v22 = vperm.slane %v20, 0
  %v24 = vrot.slane %v22, 1
  %v26 = vmul.f32 %v18, %v22
  %v27 = vmul.f32 %v19, %v24
  %30 = vst [vmem:[#allocation1] ss:$9 sm:$0xff] %v26
  %s31 = scalar_lea.vmem [#allocation1], 1
  %32 = vst [vmem:[%s31] ss:$9 sm:$0xff] %v27
  %v33 = vld [vmem:[#allocation1] sm:$0xff]
  %vm35 = vcmask 254976
  %v36 = vsel %vm35, %v33, 0.0
  %37 = vadd.xlane.f32.xlu0 %v36
  %v38 = vpop.xlane.xlu0 %37
  %v39 = vld [vmem:[#allocation2] sm:$0x1]
  %v41 = vperm.slane %v39, 0
  %v43 = vadd.f32 %v38, %v41
  %vm44 = vcmask 1024
  %45 = vst.msk [vmem:[%s3] sm:$0x3] %vm44, %v43
  // Predicated region
  $region14: #{pneumonianet_forward.73} parent=0 // pred_check
    _
  $region15: #{pneumonianet_forward.73} parent=0 // pred_check_branch
    %47 = sbr.rel (0) target = $region17
  $region16: #{pneumonianet_forward.73} parent=0 // pred_region
    _
  $region17: #{pneumonianet_forward.73} parent=0 // pred_fallthru
    _
  // Predicated region
  $region18: #{pneumonianet_forward.73} parent=0 // pred_check
    _
  $region19: #{pneumonianet_forward.73} parent=0 // pred_check_branch
    %49 = sbr.rel (0) target = $region21
  $region20: #{pneumonianet_forward.73} parent=0 // pred_region
    _
  $region21: #{pneumonianet_forward.73} parent=0 // pred_fallthru
    _

</llo_original>
